<compile_context>
chip_gen: v5e
topology: v5e:2x2
jax: 0.10.0
libtpu: 0.0.40
codegen_flags: <defaults>
</compile_context>

<pallas_src>
import jax
import jax.numpy as jnp
from jax import lax
from jax.experimental import pallas as pl
from jax.experimental.pallas import tpu as pltpu


# --------------------------------------------------------------------------
# Weight packing (done once, outside the per-call path)
# --------------------------------------------------------------------------
def _pack_deconv_weight(w):
    """PyTorch ConvTranspose2d weight (Cin, Cout, 3, 3) -> packed (4, Cin, 4*Cout).

    Sub-pixel decomposition of ConvTranspose2d(k=3, s=2, p=1, op=1):
      y[2r+0,2s+0] = w[1,1]@x00
      y[2r+0,2s+1] = w[1,2]@x00 + w[1,0]@x01
      y[2r+1,2s+0] = w[2,1]@x00 + w[0,1]@x10
      y[2r+1,2s+1] = w[2,2]@x00 + w[2,0]@x01 + w[0,2]@x10 + w[0,0]@x11
    Tap t in {0:x(r,s), 1:x(r,s+1), 2:x(r+1,s), 3:x(r+1,s+1)}; output column
    blocks are the four output sub-pixels (p,q) = (0,0),(0,1),(1,0),(1,1).
    """
    z = jnp.zeros_like(w[:, :, 0, 0])
    tap0 = jnp.concatenate([w[:, :, 1, 1], w[:, :, 1, 2], w[:, :, 2, 1], w[:, :, 2, 2]], axis=1)
    tap1 = jnp.concatenate([z,             w[:, :, 1, 0], z,             w[:, :, 2, 0]], axis=1)
    tap2 = jnp.concatenate([z,             z,             w[:, :, 0, 1], w[:, :, 0, 2]], axis=1)
    tap3 = jnp.concatenate([z,             z,             z,             w[:, :, 0, 0]], axis=1)
    return jnp.stack([tap0, tap1, tap2, tap3], axis=0)


# --------------------------------------------------------------------------
# Fused kernel: three ConvTranspose2d(3,2,1,1,bias=False)+ReLU per image
# --------------------------------------------------------------------------
def _decoder_kernel(x_ref, w1_ref, w2_ref, w3_ref, out_ref, s0, s1, s2):
    H0, W0, c0 = x_ref.shape

    # Zero-fill the padded scratch activations (the extra last row / column
    # block must read as zeros -> bottom/right padding of the sub-pixel
    # decomposition), then stage the input.
    s0[...] = jnp.zeros(s0.shape, s0.dtype)
    s1[...] = jnp.zeros(s1.shape, s1.dtype)
    s2[...] = jnp.zeros(s2.shape, s2.dtype)
    s0[0:H0, 0:W0, :] = x_ref[...]

    def deconv_relu(src, w_ref, cin):
        """One deconv+ReLU on a packed-layout activation.

        `src` holds the zero-padded input activation as
          src[r, B, v*cin + c] = act[r, nb*B + v, c],   nb = src.shape[2]//cin,
        with one trailing zero row and zero column-block.

        Returns (slabs, cout): slabs[v] has shape (2R, Wb, 2*cout) and belongs
        at dst[0:2R, 0:Wb, 2*v*cout:(2*v+2)*cout], which reproduces the same
        packed layout for the next layer with nb_out = 2*nb.
        """
        R = src.shape[0] - 1
        Wb = src.shape[1] - 1
        nb = src.shape[2] // cin
        cout = w_ref.shape[2] // 4
        M = R * Wb

        # Four tap operands for every column-block group v.  Inside group v the
        # true column is s = nb*B + v, so "s+1" is either lane block v+1 or,
        # for the last block, the next B with block 0 (the pad column is zero).
        taps = [[], [], [], []]
        for v in range(nb):
            lo = v * cin
            if v + 1 < nb:
                lo1, sh = (v + 1) * cin, 0
            else:
                lo1, sh = 0, 1
            taps[0].append(src[0:R, 0:Wb, lo:lo + cin])               # act[r,   s  ]
            taps[1].append(src[0:R, sh:Wb + sh, lo1:lo1 + cin])       # act[r,   s+1]
            taps[2].append(src[1:R + 1, 0:Wb, lo:lo + cin])           # act[r+1, s  ]
            taps[3].append(src[1:R + 1, sh:Wb + sh, lo1:lo1 + cin])   # act[r+1, s+1]

        def flat(pieces):
            x = pieces[0] if nb == 1 else jnp.concatenate(pieces, axis=0)
            return x.reshape(nb * M, cin)

        # One matmul per tap against the (cin, 4*cout) packed weight: all four
        # output sub-pixels land lane-packed in a single f32 accumulator.
        acc = jnp.dot(flat(taps[0]), w_ref[0], preferred_element_type=jnp.float32)
        for t in range(1, 4):
            acc = acc + jnp.dot(flat(taps[t]), w_ref[t],
                                preferred_element_type=jnp.float32)
        yp = jnp.maximum(acc, 0.0)            # (nb*M, 4*cout): lanes = (p, q, ch)

        # Row-interleave the p=0 / p=1 halves (major-dim stack + reshape only);
        # the q sub-pixel stays packed in lanes -> next layer's layout.
        slabs = []
        for v in range(nb):
            blk = yp[v * M:(v + 1) * M, :]
            even = blk[:, 0:2 * cout].reshape(R, Wb, 2 * cout)         # rows 2r
            odd = blk[:, 2 * cout:4 * cout].reshape(R, Wb, 2 * cout)   # rows 2r+1
            slabs.append(jnp.stack([even, odd], axis=1).reshape(2 * R, Wb, 2 * cout))
        return slabs, cout

    # Layer 1: 16 -> 16, (H0, W0) -> (2H0, 2W0); output stays in VMEM (s1).
    slabs, c1 = deconv_relu(s0, w1_ref, c0)
    s1[0:2 * H0, 0:W0, :] = slabs[0]

    # Layer 2: 16 -> 8, -> (4H0, 4W0); output stays in VMEM (s2).
    slabs, c2 = deconv_relu(s1, w2_ref, c1)
    for v in range(2):
        s2[0:4 * H0, 0:W0, 2 * v * c2:(2 * v + 2) * c2] = slabs[v]

    # Layer 3: 8 -> 3, -> (8H0, 8W0); lane-packed output (24 lanes), un-blocked
    # by a free contiguous reshape in the wrapper.
    slabs, c3 = deconv_relu(s2, w3_ref, c2)
    for v in range(4):
        out_ref[:, :, 2 * v * c3:(2 * v + 2) * c3] = slabs[v]


# --------------------------------------------------------------------------
# Wrapper
# --------------------------------------------------------------------------
def decoder_forward(z_nchw, wp1, wp2, wp3):
    N, c0, H0, W0 = z_nchw.shape
    c1 = wp1.shape[2] // 4
    c2 = wp2.shape[2] // 4
    c3 = wp3.shape[2] // 4
    Ho, Wo = 8 * H0, 8 * W0

    x = jnp.transpose(z_nchw, (0, 2, 3, 1)).astype(jnp.float32)   # NCHW -> NHWC (tiny)

    flops = 0
    Hl, Wl, cin = H0, W0, c0
    for cout in (c1, c2, c3):
        flops += 4 * 2 * Hl * Wl * cin * 4 * cout
        Hl, Wl, cin = 2 * Hl, 2 * Wl, cout
    flops *= N
    bytes_accessed = 4 * (N * H0 * W0 * c0 + N * Ho * Wo * c3
                          + wp1.size + wp2.size + wp3.size)

    out = pl.pallas_call(
        _decoder_kernel,
        out_shape=jax.ShapeDtypeStruct((N, Ho, W0, 8 * c3), jnp.float32),
        grid=(N,),
        in_specs=[
            pl.BlockSpec((None, H0, W0, c0), lambda n: (n, 0, 0, 0)),
            pl.BlockSpec(wp1.shape, lambda n: (0, 0, 0)),
            pl.BlockSpec(wp2.shape, lambda n: (0, 0, 0)),
            pl.BlockSpec(wp3.shape, lambda n: (0, 0, 0)),
        ],
        out_specs=pl.BlockSpec((None, Ho, W0, 8 * c3), lambda n: (n, 0, 0, 0)),
        scratch_shapes=[
            pltpu.VMEM((H0 + 1, W0 + 1, c0), jnp.float32),           # padded input
            pltpu.VMEM((2 * H0 + 1, W0 + 1, 2 * c1), jnp.float32),   # layer-1 act
            pltpu.VMEM((4 * H0 + 1, W0 + 1, 4 * c2), jnp.float32),   # layer-2 act
        ],
        compiler_params=pltpu.CompilerParams(dimension_semantics=("parallel",)),
        cost_estimate=pl.CostEstimate(flops=int(flops), transcendentals=0,
                                      bytes_accessed=int(bytes_accessed)),
    )(x, wp1, wp2, wp3)

    y = out.reshape(N, Ho, Wo, c3)            # un-block packed columns (free, contiguous)
    return jnp.transpose(y, (0, 3, 1, 2))     # NHWC -> NCHW


class DecoderPallas:
    """JAX/Pallas equivalent of the PyTorch Decoder (deterministic synthetic weights)."""

    def __init__(self, key):
        k1, k2, k3 = jax.random.split(key, 3)

        def init(k, cin, cout):
            fan_in = cin * 3 * 3
            return (jax.random.normal(k, (cin, cout, 3, 3), jnp.float32)
                    / jnp.sqrt(float(fan_in)))

        # Raw PyTorch-layout weights (kept for the reference check) ...
        self.w1 = init(k1, 16, 16)
        self.w2 = init(k2, 16, 8)
        self.w3 = init(k3, 8, 3)
        # ... and the tap-packed kernel form, built once at init.
        self.wp1 = _pack_deconv_weight(self.w1)
        self.wp2 = _pack_deconv_weight(self.w2)
        self.wp3 = _pack_deconv_weight(self.w3)
        self._fwd = jax.jit(decoder_forward)

    def __call__(self, z_nchw):
        return self._fwd(z_nchw, self.wp1, self.wp2, self.wp3)


# ---- pure-JAX reference (for correctness check only) -----------------------
def _deconv_ref_nchw(x, w):
    # ConvTranspose2d(k=3, s=2, p=1, op=1, bias=False) via dilated correlation.
    wf = jnp.flip(jnp.transpose(w, (1, 0, 2, 3)), axis=(2, 3))   # (Cout, Cin, 3, 3)
    return lax.conv_general_dilated(
        x, wf, window_strides=(1, 1), padding=[(1, 2), (1, 2)],
        lhs_dilation=(2, 2), dimension_numbers=("NCHW", "OIHW", "NCHW"))


def decoder_ref(z, w1, w2, w3):
    x = jax.nn.relu(_deconv_ref_nchw(z, w1))
    x = jax.nn.relu(_deconv_ref_nchw(x, w2))
    x = jax.nn.relu(_deconv_ref_nchw(x, w3))
    return x


if __name__ == "__main__":
    key = jax.random.PRNGKey(0)
    kz, kp = jax.random.split(key)

    # Small latent consistent with the module: N=2, C=16, 8x8 spatial (NCHW).
    z = jax.random.normal(kz, (2, 16, 8, 8), jnp.float32)

    dec = DecoderPallas(kp)
    out = jax.block_until_ready(dec(z))
    assert out.shape == (2, 3, 64, 64), out.shape

    ref = decoder_ref(z, dec.w1, dec.w2, dec.w3)
    assert jnp.allclose(out, ref, rtol=1e-4, atol=1e-4), float(
        jnp.max(jnp.abs(out - ref)))

    print("KERNEL_OK")
</pallas_src>

<mosaic_0001>
module attributes {stable_mosaic.version = 11 : i64} {
  func.func @_decoder_kernel(%arg0: i32, %arg1: memref<1x8x8x16xf32, #tpu.memory_space<vmem>>, %arg2: memref<4x16x64xf32, #tpu.memory_space<vmem>>, %arg3: memref<4x16x32xf32, #tpu.memory_space<vmem>>, %arg4: memref<4x8x12xf32, #tpu.memory_space<vmem>>, %arg5: memref<1x64x8x24xf32, #tpu.memory_space<vmem>>, %arg6: memref<9x9x16xf32, #tpu.memory_space<vmem>>, %arg7: memref<17x9x32xf32, #tpu.memory_space<vmem>>, %arg8: memref<33x9x32xf32, #tpu.memory_space<vmem>>) attributes {dimension_semantics = [#tpu.dimension_semantics<parallel>], iteration_bounds = array<i64: 2>, scalar_prefetch = 0 : i64, scratch_operands = 3 : i64, tpu.core_type = #tpu.core_type<tc>, window_params = [{transform_indices = @transform_0, window_bounds = array<i64: 1, 8, 8, 16>}, {pipeline_mode = #tpu.pipeline_mode<synchronous>, transform_indices = @transform_1, window_bounds = array<i64: 4, 16, 64>}, {pipeline_mode = #tpu.pipeline_mode<synchronous>, transform_indices = @transform_2, window_bounds = array<i64: 4, 16, 32>}, {pipeline_mode = #tpu.pipeline_mode<synchronous>, transform_indices = @transform_3, window_bounds = array<i64: 4, 8, 12>}, {transform_indices = @transform_4, window_bounds = array<i64: 1, 64, 8, 24>}]} {
    %cst = arith.constant 0.000000e+00 : f32
    %0 = vector.broadcast %cst : f32 to vector<9x9x16xf32>
    %c0 = arith.constant 0 : index
    %c0_0 = arith.constant 0 : index
    %c0_1 = arith.constant 0 : index
    %1 = vector.load %arg6[%c0, %c0_0, %c0_1] : memref<9x9x16xf32, #tpu.memory_space<vmem>>, vector<9x9x16xf32>
    tpu.vector_store %arg6[%c0, %c0_0, %c0_1], %0 {strides = array<i32>} : memref<9x9x16xf32, #tpu.memory_space<vmem>>, vector<9x9x16xf32>,
    %cst_2 = arith.constant 0.000000e+00 : f32
    %2 = vector.broadcast %cst_2 : f32 to vector<17x9x32xf32>
    %c0_3 = arith.constant 0 : index
    %c0_4 = arith.constant 0 : index
    %c0_5 = arith.constant 0 : index
    %3 = vector.load %arg7[%c0_3, %c0_4, %c0_5] : memref<17x9x32xf32, #tpu.memory_space<vmem>>, vector<17x9x32xf32>
    tpu.vector_store %arg7[%c0_3, %c0_4, %c0_5], %2 {strides = array<i32>} : memref<17x9x32xf32, #tpu.memory_space<vmem>>, vector<17x9x32xf32>,
    %cst_6 = arith.constant 0.000000e+00 : f32
    %4 = vector.broadcast %cst_6 : f32 to vector<33x9x32xf32>
    %c0_7 = arith.constant 0 : index
    %c0_8 = arith.constant 0 : index
    %c0_9 = arith.constant 0 : index
    %5 = vector.load %arg8[%c0_7, %c0_8, %c0_9] : memref<33x9x32xf32, #tpu.memory_space<vmem>>, vector<33x9x32xf32>
    tpu.vector_store %arg8[%c0_7, %c0_8, %c0_9], %4 {strides = array<i32>} : memref<33x9x32xf32, #tpu.memory_space<vmem>>, vector<33x9x32xf32>,
    %c0_10 = arith.constant 0 : index
    %c0_11 = arith.constant 0 : index
    %c0_12 = arith.constant 0 : index
    %c0_13 = arith.constant 0 : index
    %6 = vector.load %arg1[%c0_10, %c0_11, %c0_12, %c0_13] : memref<1x8x8x16xf32, #tpu.memory_space<vmem>>, vector<1x8x8x16xf32>
    %7 = vector.shape_cast %6 : vector<1x8x8x16xf32> to vector<8x8x16xf32>
    %c0_14 = arith.constant 0 : index
    %c0_15 = arith.constant 0 : index
    %c0_16 = arith.constant 0 : index
    %8 = vector.load %arg6[%c0_14, %c0_15, %c0_16] : memref<9x9x16xf32, #tpu.memory_space<vmem>>, vector<8x8x16xf32>
    tpu.vector_store %arg6[%c0_14, %c0_15, %c0_16], %7 {strides = array<i32>} : memref<9x9x16xf32, #tpu.memory_space<vmem>>, vector<8x8x16xf32>,
    %c0_17 = arith.constant 0 : index
    %c0_18 = arith.constant 0 : index
    %c0_19 = arith.constant 0 : index
    %9 = vector.load %arg6[%c0_17, %c0_18, %c0_19] : memref<9x9x16xf32, #tpu.memory_space<vmem>>, vector<8x8x16xf32>
    %c0_20 = arith.constant 0 : index
    %c1 = arith.constant 1 : index
    %c0_21 = arith.constant 0 : index
    %10 = vector.load %arg6[%c0_20, %c1, %c0_21] : memref<9x9x16xf32, #tpu.memory_space<vmem>>, vector<8x8x16xf32>
    %c1_22 = arith.constant 1 : index
    %c0_23 = arith.constant 0 : index
    %c0_24 = arith.constant 0 : index
    %11 = vector.load %arg6[%c1_22, %c0_23, %c0_24] : memref<9x9x16xf32, #tpu.memory_space<vmem>>, vector<8x8x16xf32>
    %c1_25 = arith.constant 1 : index
    %c1_26 = arith.constant 1 : index
    %c0_27 = arith.constant 0 : index
    %12 = vector.load %arg6[%c1_25, %c1_26, %c0_27] : memref<9x9x16xf32, #tpu.memory_space<vmem>>, vector<8x8x16xf32>
    %13 = vector.shape_cast %9 : vector<8x8x16xf32> to vector<64x16xf32>
    %c0_28 = arith.constant 0 : index
    %c0_29 = arith.constant 0 : index
    %c0_30 = arith.constant 0 : index
    %14 = vector.load %arg2[%c0_28, %c0_29, %c0_30] : memref<4x16x64xf32, #tpu.memory_space<vmem>>, vector<1x16x64xf32>
    %15 = vector.shape_cast %14 : vector<1x16x64xf32> to vector<16x64xf32>
    %cst_31 = arith.constant dense<0.000000e+00> : vector<64x64xf32>
    %16 = tpu.matmul %13, %15, %cst_31 {dimension_numbers = #tpu.dot_dimension_numbers<[1], [0], [0], [1], [0, 0, 1, 1], [], []>} : vector<64x16xf32>, vector<16x64xf32>, vector<64x64xf32> -> vector<64x64xf32>
    %17 = vector.shape_cast %10 : vector<8x8x16xf32> to vector<64x16xf32>
    %c1_32 = arith.constant 1 : index
    %c0_33 = arith.constant 0 : index
    %c0_34 = arith.constant 0 : index
    %18 = vector.load %arg2[%c1_32, %c0_33, %c0_34] : memref<4x16x64xf32, #tpu.memory_space<vmem>>, vector<1x16x64xf32>
    %19 = vector.shape_cast %18 : vector<1x16x64xf32> to vector<16x64xf32>
    %cst_35 = arith.constant dense<0.000000e+00> : vector<64x64xf32>
    %20 = tpu.matmul %17, %19, %cst_35 {dimension_numbers = #tpu.dot_dimension_numbers<[1], [0], [0], [1], [0, 0, 1, 1], [], []>} : vector<64x16xf32>, vector<16x64xf32>, vector<64x64xf32> -> vector<64x64xf32>
    %21 = arith.addf %16, %20 : vector<64x64xf32>
    %22 = vector.shape_cast %11 : vector<8x8x16xf32> to vector<64x16xf32>
    %c2 = arith.constant 2 : index
    %c0_36 = arith.constant 0 : index
    %c0_37 = arith.constant 0 : index
    %23 = vector.load %arg2[%c2, %c0_36, %c0_37] : memref<4x16x64xf32, #tpu.memory_space<vmem>>, vector<1x16x64xf32>
    %24 = vector.shape_cast %23 : vector<1x16x64xf32> to vector<16x64xf32>
    %cst_38 = arith.constant dense<0.000000e+00> : vector<64x64xf32>
    %25 = tpu.matmul %22, %24, %cst_38 {dimension_numbers = #tpu.dot_dimension_numbers<[1], [0], [0], [1], [0, 0, 1, 1], [], []>} : vector<64x16xf32>, vector<16x64xf32>, vector<64x64xf32> -> vector<64x64xf32>
    %26 = arith.addf %21, %25 : vector<64x64xf32>
    %27 = vector.shape_cast %12 : vector<8x8x16xf32> to vector<64x16xf32>
    %c3 = arith.constant 3 : index
    %c0_39 = arith.constant 0 : index
    %c0_40 = arith.constant 0 : index
    %28 = vector.load %arg2[%c3, %c0_39, %c0_40] : memref<4x16x64xf32, #tpu.memory_space<vmem>>, vector<1x16x64xf32>
    %29 = vector.shape_cast %28 : vector<1x16x64xf32> to vector<16x64xf32>
    %cst_41 = arith.constant dense<0.000000e+00> : vector<64x64xf32>
    %30 = tpu.matmul %27, %29, %cst_41 {dimension_numbers = #tpu.dot_dimension_numbers<[1], [0], [0], [1], [0, 0, 1, 1], [], []>} : vector<64x16xf32>, vector<16x64xf32>, vector<64x64xf32> -> vector<64x64xf32>
    %31 = arith.addf %26, %30 : vector<64x64xf32>
    %cst_42 = arith.constant 0.000000e+00 : f32
    %32 = vector.broadcast %cst_42 : f32 to vector<64x64xf32>
    %33 = arith.maximumf %31, %32 : vector<64x64xf32>
    %34 = vector.extract_strided_slice %33 {offsets = [0, 0], sizes = [64, 32], strides = [1, 1]} : vector<64x64xf32> to vector<64x32xf32>
    %35 = vector.shape_cast %34 : vector<64x32xf32> to vector<8x8x32xf32>
    %36 = vector.extract_strided_slice %33 {offsets = [0, 32], sizes = [64, 32], strides = [1, 1]} : vector<64x64xf32> to vector<64x32xf32>
    %37 = vector.shape_cast %36 : vector<64x32xf32> to vector<8x8x32xf32>
    %38 = vector.shape_cast %35 : vector<8x8x32xf32> to vector<8x1x8x32xf32>
    %39 = vector.shape_cast %37 : vector<8x8x32xf32> to vector<8x1x8x32xf32>
    %40 = tpu.concatenate %38, %39 in 1 : vector<8x1x8x32xf32>, vector<8x1x8x32xf32> -> vector<8x2x8x32xf32>
    %41 = vector.shape_cast %40 : vector<8x2x8x32xf32> to vector<16x8x32xf32>
    %c0_43 = arith.constant 0 : index
    %c0_44 = arith.constant 0 : index
    %c0_45 = arith.constant 0 : index
    %42 = vector.load %arg7[%c0_43, %c0_44, %c0_45] : memref<17x9x32xf32, #tpu.memory_space<vmem>>, vector<16x8x32xf32>
    tpu.vector_store %arg7[%c0_43, %c0_44, %c0_45], %41 {strides = array<i32>} : memref<17x9x32xf32, #tpu.memory_space<vmem>>, vector<16x8x32xf32>,
    %c0_46 = arith.constant 0 : index
    %c0_47 = arith.constant 0 : index
    %c0_48 = arith.constant 0 : index
    %43 = vector.load %arg7[%c0_46, %c0_47, %c0_48] : memref<17x9x32xf32, #tpu.memory_space<vmem>>, vector<16x8x16xf32>
    %c0_49 = arith.constant 0 : index
    %c0_50 = arith.constant 0 : index
    %c16 = arith.constant 16 : index
    %44 = vector.load %arg7[%c0_49, %c0_50, %c16] : memref<17x9x32xf32, #tpu.memory_space<vmem>>, vector<16x8x16xf32>
    %c1_51 = arith.constant 1 : index
    %c0_52 = arith.constant 0 : index
    %c0_53 = arith.constant 0 : index
    %45 = vector.load %arg7[%c1_51, %c0_52, %c0_53] : memref<17x9x32xf32, #tpu.memory_space<vmem>>, vector<16x8x16xf32>
    %c1_54 = arith.constant 1 : index
    %c0_55 = arith.constant 0 : index
    %c16_56 = arith.constant 16 : index
    %46 = vector.load %arg7[%c1_54, %c0_55, %c16_56] : memref<17x9x32xf32, #tpu.memory_space<vmem>>, vector<16x8x16xf32>
    %c0_57 = arith.constant 0 : index
    %c0_58 = arith.constant 0 : index
    %c16_59 = arith.constant 16 : index
    %47 = vector.load %arg7[%c0_57, %c0_58, %c16_59] : memref<17x9x32xf32, #tpu.memory_space<vmem>>, vector<16x8x16xf32>
    %c0_60 = arith.constant 0 : index
    %c1_61 = arith.constant 1 : index
    %c0_62 = arith.constant 0 : index
    %48 = vector.load %arg7[%c0_60, %c1_61, %c0_62] : memref<17x9x32xf32, #tpu.memory_space<vmem>>, vector<16x8x16xf32>
    %c1_63 = arith.constant 1 : index
    %c0_64 = arith.constant 0 : index
    %c16_65 = arith.constant 16 : index
    %49 = vector.load %arg7[%c1_63, %c0_64, %c16_65] : memref<17x9x32xf32, #tpu.memory_space<vmem>>, vector<16x8x16xf32>
    %c1_66 = arith.constant 1 : index
    %c1_67 = arith.constant 1 : index
    %c0_68 = arith.constant 0 : index
    %50 = vector.load %arg7[%c1_66, %c1_67, %c0_68] : memref<17x9x32xf32, #tpu.memory_space<vmem>>, vector<16x8x16xf32>
    %51 = tpu.concatenate %43, %47 in 0 : vector<16x8x16xf32>, vector<16x8x16xf32> -> vector<32x8x16xf32>
    %52 = vector.shape_cast %51 : vector<32x8x16xf32> to vector<256x16xf32>
    %c0_69 = arith.constant 0 : index
    %c0_70 = arith.constant 0 : index
    %c0_71 = arith.constant 0 : index
    %53 = vector.load %arg3[%c0_69, %c0_70, %c0_71] : memref<4x16x32xf32, #tpu.memory_space<vmem>>, vector<1x16x32xf32>
    %54 = vector.shape_cast %53 : vector<1x16x32xf32> to vector<16x32xf32>
    %cst_72 = arith.constant dense<0.000000e+00> : vector<256x32xf32>
    %55 = tpu.matmul %52, %54, %cst_72 {dimension_numbers = #tpu.dot_dimension_numbers<[1], [0], [0], [1], [0, 0, 1, 1], [], []>} : vector<256x16xf32>, vector<16x32xf32>, vector<256x32xf32> -> vector<256x32xf32>
    %56 = tpu.concatenate %44, %48 in 0 : vector<16x8x16xf32>, vector<16x8x16xf32> -> vector<32x8x16xf32>
    %57 = vector.shape_cast %56 : vector<32x8x16xf32> to vector<256x16xf32>
    %c1_73 = arith.constant 1 : index
    %c0_74 = arith.constant 0 : index
    %c0_75 = arith.constant 0 : index
    %58 = vector.load %arg3[%c1_73, %c0_74, %c0_75] : memref<4x16x32xf32, #tpu.memory_space<vmem>>, vector<1x16x32xf32>
    %59 = vector.shape_cast %58 : vector<1x16x32xf32> to vector<16x32xf32>
    %cst_76 = arith.constant dense<0.000000e+00> : vector<256x32xf32>
    %60 = tpu.matmul %57, %59, %cst_76 {dimension_numbers = #tpu.dot_dimension_numbers<[1], [0], [0], [1], [0, 0, 1, 1], [], []>} : vector<256x16xf32>, vector<16x32xf32>, vector<256x32xf32> -> vector<256x32xf32>
    %61 = arith.addf %55, %60 : vector<256x32xf32>
    %62 = tpu.concatenate %45, %49 in 0 : vector<16x8x16xf32>, vector<16x8x16xf32> -> vector<32x8x16xf32>
    %63 = vector.shape_cast %62 : vector<32x8x16xf32> to vector<256x16xf32>
    %c2_77 = arith.constant 2 : index
    %c0_78 = arith.constant 0 : index
    %c0_79 = arith.constant 0 : index
    %64 = vector.load %arg3[%c2_77, %c0_78, %c0_79] : memref<4x16x32xf32, #tpu.memory_space<vmem>>, vector<1x16x32xf32>
    %65 = vector.shape_cast %64 : vector<1x16x32xf32> to vector<16x32xf32>
    %cst_80 = arith.constant dense<0.000000e+00> : vector<256x32xf32>
    %66 = tpu.matmul %63, %65, %cst_80 {dimension_numbers = #tpu.dot_dimension_numbers<[1], [0], [0], [1], [0, 0, 1, 1], [], []>} : vector<256x16xf32>, vector<16x32xf32>, vector<256x32xf32> -> vector<256x32xf32>
    %67 = arith.addf %61, %66 : vector<256x32xf32>
    %68 = tpu.concatenate %46, %50 in 0 : vector<16x8x16xf32>, vector<16x8x16xf32> -> vector<32x8x16xf32>
    %69 = vector.shape_cast %68 : vector<32x8x16xf32> to vector<256x16xf32>
    %c3_81 = arith.constant 3 : index
    %c0_82 = arith.constant 0 : index
    %c0_83 = arith.constant 0 : index
    %70 = vector.load %arg3[%c3_81, %c0_82, %c0_83] : memref<4x16x32xf32, #tpu.memory_space<vmem>>, vector<1x16x32xf32>
    %71 = vector.shape_cast %70 : vector<1x16x32xf32> to vector<16x32xf32>
    %cst_84 = arith.constant dense<0.000000e+00> : vector<256x32xf32>
    %72 = tpu.matmul %69, %71, %cst_84 {dimension_numbers = #tpu.dot_dimension_numbers<[1], [0], [0], [1], [0, 0, 1, 1], [], []>} : vector<256x16xf32>, vector<16x32xf32>, vector<256x32xf32> -> vector<256x32xf32>
    %73 = arith.addf %67, %72 : vector<256x32xf32>
    %cst_85 = arith.constant 0.000000e+00 : f32
    %74 = vector.broadcast %cst_85 : f32 to vector<256x32xf32>
    %75 = arith.maximumf %73, %74 : vector<256x32xf32>
    %76 = vector.extract_strided_slice %75 {offsets = [0, 0], sizes = [128, 32], strides = [1, 1]} : vector<256x32xf32> to vector<128x32xf32>
    %77 = vector.extract_strided_slice %76 {offsets = [0, 0], sizes = [128, 16], strides = [1, 1]} : vector<128x32xf32> to vector<128x16xf32>
    %78 = vector.shape_cast %77 : vector<128x16xf32> to vector<16x8x16xf32>
    %79 = vector.extract_strided_slice %76 {offsets = [0, 16], sizes = [128, 16], strides = [1, 1]} : vector<128x32xf32> to vector<128x16xf32>
    %80 = vector.shape_cast %79 : vector<128x16xf32> to vector<16x8x16xf32>
    %81 = vector.shape_cast %78 : vector<16x8x16xf32> to vector<16x1x8x16xf32>
    %82 = vector.shape_cast %80 : vector<16x8x16xf32> to vector<16x1x8x16xf32>
    %83 = tpu.concatenate %81, %82 in 1 : vector<16x1x8x16xf32>, vector<16x1x8x16xf32> -> vector<16x2x8x16xf32>
    %84 = vector.shape_cast %83 : vector<16x2x8x16xf32> to vector<32x8x16xf32>
    %85 = vector.extract_strided_slice %75 {offsets = [128, 0], sizes = [128, 32], strides = [1, 1]} : vector<256x32xf32> to vector<128x32xf32>
    %86 = vector.extract_strided_slice %85 {offsets = [0, 0], sizes = [128, 16], strides = [1, 1]} : vector<128x32xf32> to vector<128x16xf32>
    %87 = vector.shape_cast %86 : vector<128x16xf32> to vector<16x8x16xf32>
    %88 = vector.extract_strided_slice %85 {offsets = [0, 16], sizes = [128, 16], strides = [1, 1]} : vector<128x32xf32> to vector<128x16xf32>
    %89 = vector.shape_cast %88 : vector<128x16xf32> to vector<16x8x16xf32>
    %90 = vector.shape_cast %87 : vector<16x8x16xf32> to vector<16x1x8x16xf32>
    %91 = vector.shape_cast %89 : vector<16x8x16xf32> to vector<16x1x8x16xf32>
    %92 = tpu.concatenate %90, %91 in 1 : vector<16x1x8x16xf32>, vector<16x1x8x16xf32> -> vector<16x2x8x16xf32>
    %93 = vector.shape_cast %92 : vector<16x2x8x16xf32> to vector<32x8x16xf32>
    %c0_86 = arith.constant 0 : index
    %c0_87 = arith.constant 0 : index
    %c0_88 = arith.constant 0 : index
    %94 = vector.load %arg8[%c0_86, %c0_87, %c0_88] : memref<33x9x32xf32, #tpu.memory_space<vmem>>, vector<32x8x16xf32>
    tpu.vector_store %arg8[%c0_86, %c0_87, %c0_88], %84 {strides = array<i32>} : memref<33x9x32xf32, #tpu.memory_space<vmem>>, vector<32x8x16xf32>,
    %c0_89 = arith.constant 0 : index
    %c0_90 = arith.constant 0 : index
    %c16_91 = arith.constant 16 : index
    %95 = vector.load %arg8[%c0_89, %c0_90, %c16_91] : memref<33x9x32xf32, #tpu.memory_space<vmem>>, vector<32x8x16xf32>
    tpu.vector_store %arg8[%c0_89, %c0_90, %c16_91], %93 {strides = array<i32>} : memref<33x9x32xf32, #tpu.memory_space<vmem>>, vector<32x8x16xf32>,
    %c0_92 = arith.constant 0 : index
    %c0_93 = arith.constant 0 : index
    %c0_94 = arith.constant 0 : index
    %96 = vector.load %arg8[%c0_92, %c0_93, %c0_94] : memref<33x9x32xf32, #tpu.memory_space<vmem>>, vector<32x8x8xf32>
    %c0_95 = arith.constant 0 : index
    %c0_96 = arith.constant 0 : index
    %c8 = arith.constant 8 : index
    %97 = vector.load %arg8[%c0_95, %c0_96, %c8] : memref<33x9x32xf32, #tpu.memory_space<vmem>>, vector<32x8x8xf32>
    %c1_97 = arith.constant 1 : index
    %c0_98 = arith.constant 0 : index
    %c0_99 = arith.constant 0 : index
    %98 = vector.load %arg8[%c1_97, %c0_98, %c0_99] : memref<33x9x32xf32, #tpu.memory_space<vmem>>, vector<32x8x8xf32>
    %c1_100 = arith.constant 1 : index
    %c0_101 = arith.constant 0 : index
    %c8_102 = arith.constant 8 : index
    %99 = vector.load %arg8[%c1_100, %c0_101, %c8_102] : memref<33x9x32xf32, #tpu.memory_space<vmem>>, vector<32x8x8xf32>
    %c0_103 = arith.constant 0 : index
    %c0_104 = arith.constant 0 : index
    %c8_105 = arith.constant 8 : index
    %100 = vector.load %arg8[%c0_103, %c0_104, %c8_105] : memref<33x9x32xf32, #tpu.memory_space<vmem>>, vector<32x8x8xf32>
    %c0_106 = arith.constant 0 : index
    %c0_107 = arith.constant 0 : index
    %c16_108 = arith.constant 16 : index
    %101 = vector.load %arg8[%c0_106, %c0_107, %c16_108] : memref<33x9x32xf32, #tpu.memory_space<vmem>>, vector<32x8x8xf32>
    %c1_109 = arith.constant 1 : index
    %c0_110 = arith.constant 0 : index
    %c8_111 = arith.constant 8 : index
    %102 = vector.load %arg8[%c1_109, %c0_110, %c8_111] : memref<33x9x32xf32, #tpu.memory_space<vmem>>, vector<32x8x8xf32>
    %c1_112 = arith.constant 1 : index
    %c0_113 = arith.constant 0 : index
    %c16_114 = arith.constant 16 : index
    %103 = vector.load %arg8[%c1_112, %c0_113, %c16_114] : memref<33x9x32xf32, #tpu.memory_space<vmem>>, vector<32x8x8xf32>
    %c0_115 = arith.constant 0 : index
    %c0_116 = arith.constant 0 : index
    %c16_117 = arith.constant 16 : index
    %104 = vector.load %arg8[%c0_115, %c0_116, %c16_117] : memref<33x9x32xf32, #tpu.memory_space<vmem>>, vector<32x8x8xf32>
    %c0_118 = arith.constant 0 : index
    %c0_119 = arith.constant 0 : index
    %c24 = arith.constant 24 : index
    %105 = vector.load %arg8[%c0_118, %c0_119, %c24] : memref<33x9x32xf32, #tpu.memory_space<vmem>>, vector<32x8x8xf32>
    %c1_120 = arith.constant 1 : index
    %c0_121 = arith.constant 0 : index
    %c16_122 = arith.constant 16 : index
    %106 = vector.load %arg8[%c1_120, %c0_121, %c16_122] : memref<33x9x32xf32, #tpu.memory_space<vmem>>, vector<32x8x8xf32>
    %c1_123 = arith.constant 1 : index
    %c0_124 = arith.constant 0 : index
    %c24_125 = arith.constant 24 : index
    %107 = vector.load %arg8[%c1_123, %c0_124, %c24_125] : memref<33x9x32xf32, #tpu.memory_space<vmem>>, vector<32x8x8xf32>
    %c0_126 = arith.constant 0 : index
    %c0_127 = arith.constant 0 : index
    %c24_128 = arith.constant 24 : index
    %108 = vector.load %arg8[%c0_126, %c0_127, %c24_128] : memref<33x9x32xf32, #tpu.memory_space<vmem>>, vector<32x8x8xf32>
    %c0_129 = arith.constant 0 : index
    %c1_130 = arith.constant 1 : index
    %c0_131 = arith.constant 0 : index
    %109 = vector.load %arg8[%c0_129, %c1_130, %c0_131] : memref<33x9x32xf32, #tpu.memory_space<vmem>>, vector<32x8x8xf32>
    %c1_132 = arith.constant 1 : index
    %c0_133 = arith.constant 0 : index
    %c24_134 = arith.constant 24 : index
    %110 = vector.load %arg8[%c1_132, %c0_133, %c24_134] : memref<33x9x32xf32, #tpu.memory_space<vmem>>, vector<32x8x8xf32>
    %c1_135 = arith.constant 1 : index
    %c1_136 = arith.constant 1 : index
    %c0_137 = arith.constant 0 : index
    %111 = vector.load %arg8[%c1_135, %c1_136, %c0_137] : memref<33x9x32xf32, #tpu.memory_space<vmem>>, vector<32x8x8xf32>
    %112 = tpu.concatenate %96, %100, %104, %108 in 0 : vector<32x8x8xf32>, vector<32x8x8xf32>, vector<32x8x8xf32>, vector<32x8x8xf32> -> vector<128x8x8xf32>
    %113 = vector.shape_cast %112 : vector<128x8x8xf32> to vector<1024x8xf32>
    %c0_138 = arith.constant 0 : index
    %c0_139 = arith.constant 0 : index
    %c0_140 = arith.constant 0 : index
    %114 = vector.load %arg4[%c0_138, %c0_139, %c0_140] : memref<4x8x12xf32, #tpu.memory_space<vmem>>, vector<1x8x12xf32>
    %115 = vector.shape_cast %114 : vector<1x8x12xf32> to vector<8x12xf32>
    %cst_141 = arith.constant dense<0.000000e+00> : vector<1024x12xf32>
    %116 = tpu.matmul %113, %115, %cst_141 {dimension_numbers = #tpu.dot_dimension_numbers<[1], [0], [0], [1], [0, 0, 1, 1], [], []>} : vector<1024x8xf32>, vector<8x12xf32>, vector<1024x12xf32> -> vector<1024x12xf32>
    %117 = tpu.concatenate %97, %101, %105, %109 in 0 : vector<32x8x8xf32>, vector<32x8x8xf32>, vector<32x8x8xf32>, vector<32x8x8xf32> -> vector<128x8x8xf32>
    %118 = vector.shape_cast %117 : vector<128x8x8xf32> to vector<1024x8xf32>
    %c1_142 = arith.constant 1 : index
    %c0_143 = arith.constant 0 : index
    %c0_144 = arith.constant 0 : index
    %119 = vector.load %arg4[%c1_142, %c0_143, %c0_144] : memref<4x8x12xf32, #tpu.memory_space<vmem>>, vector<1x8x12xf32>
    %120 = vector.shape_cast %119 : vector<1x8x12xf32> to vector<8x12xf32>
    %cst_145 = arith.constant dense<0.000000e+00> : vector<1024x12xf32>
    %121 = tpu.matmul %118, %120, %cst_145 {dimension_numbers = #tpu.dot_dimension_numbers<[1], [0], [0], [1], [0, 0, 1, 1], [], []>} : vector<1024x8xf32>, vector<8x12xf32>, vector<1024x12xf32> -> vector<1024x12xf32>
    %122 = arith.addf %116, %121 : vector<1024x12xf32>
    %123 = tpu.concatenate %98, %102, %106, %110 in 0 : vector<32x8x8xf32>, vector<32x8x8xf32>, vector<32x8x8xf32>, vector<32x8x8xf32> -> vector<128x8x8xf32>
    %124 = vector.shape_cast %123 : vector<128x8x8xf32> to vector<1024x8xf32>
    %c2_146 = arith.constant 2 : index
    %c0_147 = arith.constant 0 : index
    %c0_148 = arith.constant 0 : index
    %125 = vector.load %arg4[%c2_146, %c0_147, %c0_148] : memref<4x8x12xf32, #tpu.memory_space<vmem>>, vector<1x8x12xf32>
    %126 = vector.shape_cast %125 : vector<1x8x12xf32> to vector<8x12xf32>
    %cst_149 = arith.constant dense<0.000000e+00> : vector<1024x12xf32>
    %127 = tpu.matmul %124, %126, %cst_149 {dimension_numbers = #tpu.dot_dimension_numbers<[1], [0], [0], [1], [0, 0, 1, 1], [], []>} : vector<1024x8xf32>, vector<8x12xf32>, vector<1024x12xf32> -> vector<1024x12xf32>
    %128 = arith.addf %122, %127 : vector<1024x12xf32>
    %129 = tpu.concatenate %99, %103, %107, %111 in 0 : vector<32x8x8xf32>, vector<32x8x8xf32>, vector<32x8x8xf32>, vector<32x8x8xf32> -> vector<128x8x8xf32>
    %130 = vector.shape_cast %129 : vector<128x8x8xf32> to vector<1024x8xf32>
    %c3_150 = arith.constant 3 : index
    %c0_151 = arith.constant 0 : index
    %c0_152 = arith.constant 0 : index
    %131 = vector.load %arg4[%c3_150, %c0_151, %c0_152] : memref<4x8x12xf32, #tpu.memory_space<vmem>>, vector<1x8x12xf32>
    %132 = vector.shape_cast %131 : vector<1x8x12xf32> to vector<8x12xf32>
    %cst_153 = arith.constant dense<0.000000e+00> : vector<1024x12xf32>
    %133 = tpu.matmul %130, %132, %cst_153 {dimension_numbers = #tpu.dot_dimension_numbers<[1], [0], [0], [1], [0, 0, 1, 1], [], []>} : vector<1024x8xf32>, vector<8x12xf32>, vector<1024x12xf32> -> vector<1024x12xf32>
    %134 = arith.addf %128, %133 : vector<1024x12xf32>
    %cst_154 = arith.constant 0.000000e+00 : f32
    %135 = vector.broadcast %cst_154 : f32 to vector<1024x12xf32>
    %136 = arith.maximumf %134, %135 : vector<1024x12xf32>
    %137 = vector.extract_strided_slice %136 {offsets = [0, 0], sizes = [256, 12], strides = [1, 1]} : vector<1024x12xf32> to vector<256x12xf32>
    %138 = vector.extract_strided_slice %137 {offsets = [0, 0], sizes = [256, 6], strides = [1, 1]} : vector<256x12xf32> to vector<256x6xf32>
    %139 = vector.shape_cast %138 : vector<256x6xf32> to vector<32x8x6xf32>
    %140 = vector.extract_strided_slice %137 {offsets = [0, 6], sizes = [256, 6], strides = [1, 1]} : vector<256x12xf32> to vector<256x6xf32>
    %141 = vector.shape_cast %140 : vector<256x6xf32> to vector<32x8x6xf32>
    %142 = vector.shape_cast %139 : vector<32x8x6xf32> to vector<32x1x8x6xf32>
    %143 = vector.shape_cast %141 : vector<32x8x6xf32> to vector<32x1x8x6xf32>
    %144 = tpu.concatenate %142, %143 in 1 : vector<32x1x8x6xf32>, vector<32x1x8x6xf32> -> vector<32x2x8x6xf32>
    %145 = vector.shape_cast %144 : vector<32x2x8x6xf32> to vector<64x8x6xf32>
    %146 = vector.extract_strided_slice %136 {offsets = [256, 0], sizes = [256, 12], strides = [1, 1]} : vector<1024x12xf32> to vector<256x12xf32>
    %147 = vector.extract_strided_slice %146 {offsets = [0, 0], sizes = [256, 6], strides = [1, 1]} : vector<256x12xf32> to vector<256x6xf32>
    %148 = vector.shape_cast %147 : vector<256x6xf32> to vector<32x8x6xf32>
    %149 = vector.extract_strided_slice %146 {offsets = [0, 6], sizes = [256, 6], strides = [1, 1]} : vector<256x12xf32> to vector<256x6xf32>
    %150 = vector.shape_cast %149 : vector<256x6xf32> to vector<32x8x6xf32>
    %151 = vector.shape_cast %148 : vector<32x8x6xf32> to vector<32x1x8x6xf32>
    %152 = vector.shape_cast %150 : vector<32x8x6xf32> to vector<32x1x8x6xf32>
    %153 = tpu.concatenate %151, %152 in 1 : vector<32x1x8x6xf32>, vector<32x1x8x6xf32> -> vector<32x2x8x6xf32>
    %154 = vector.shape_cast %153 : vector<32x2x8x6xf32> to vector<64x8x6xf32>
    %155 = vector.extract_strided_slice %136 {offsets = [512, 0], sizes = [256, 12], strides = [1, 1]} : vector<1024x12xf32> to vector<256x12xf32>
    %156 = vector.extract_strided_slice %155 {offsets = [0, 0], sizes = [256, 6], strides = [1, 1]} : vector<256x12xf32> to vector<256x6xf32>
    %157 = vector.shape_cast %156 : vector<256x6xf32> to vector<32x8x6xf32>
    %158 = vector.extract_strided_slice %155 {offsets = [0, 6], sizes = [256, 6], strides = [1, 1]} : vector<256x12xf32> to vector<256x6xf32>
    %159 = vector.shape_cast %158 : vector<256x6xf32> to vector<32x8x6xf32>
    %160 = vector.shape_cast %157 : vector<32x8x6xf32> to vector<32x1x8x6xf32>
    %161 = vector.shape_cast %159 : vector<32x8x6xf32> to vector<32x1x8x6xf32>
    %162 = tpu.concatenate %160, %161 in 1 : vector<32x1x8x6xf32>, vector<32x1x8x6xf32> -> vector<32x2x8x6xf32>
    %163 = vector.shape_cast %162 : vector<32x2x8x6xf32> to vector<64x8x6xf32>
    %164 = vector.extract_strided_slice %136 {offsets = [768, 0], sizes = [256, 12], strides = [1, 1]} : vector<1024x12xf32> to vector<256x12xf32>
    %165 = vector.extract_strided_slice %164 {offsets = [0, 0], sizes = [256, 6], strides = [1, 1]} : vector<256x12xf32> to vector<256x6xf32>
    %166 = vector.shape_cast %165 : vector<256x6xf32> to vector<32x8x6xf32>
    %167 = vector.extract_strided_slice %164 {offsets = [0, 6], sizes = [256, 6], strides = [1, 1]} : vector<256x12xf32> to vector<256x6xf32>
    %168 = vector.shape_cast %167 : vector<256x6xf32> to vector<32x8x6xf32>
    %169 = vector.shape_cast %166 : vector<32x8x6xf32> to vector<32x1x8x6xf32>
    %170 = vector.shape_cast %168 : vector<32x8x6xf32> to vector<32x1x8x6xf32>
    %171 = tpu.concatenate %169, %170 in 1 : vector<32x1x8x6xf32>, vector<32x1x8x6xf32> -> vector<32x2x8x6xf32>
    %172 = vector.shape_cast %171 : vector<32x2x8x6xf32> to vector<64x8x6xf32>
    %c0_155 = arith.constant 0 : index
    %c0_156 = arith.constant 0 : index
    %c0_157 = arith.constant 0 : index
    %c0_158 = arith.constant 0 : index
    %173 = vector.load %arg5[%c0_155, %c0_156, %c0_157, %c0_158] : memref<1x64x8x24xf32, #tpu.memory_space<vmem>>, vector<1x64x8x6xf32>
    %174 = vector.shape_cast %173 : vector<1x64x8x6xf32> to vector<64x8x6xf32>
    %175 = vector.shape_cast %145 : vector<64x8x6xf32> to vector<1x64x8x6xf32>
    tpu.vector_store %arg5[%c0_155, %c0_156, %c0_157, %c0_158], %175 {strides = array<i32>} : memref<1x64x8x24xf32, #tpu.memory_space<vmem>>, vector<1x64x8x6xf32>,
    %c0_159 = arith.constant 0 : index
    %c0_160 = arith.constant 0 : index
    %c0_161 = arith.constant 0 : index
    %c6 = arith.constant 6 : index
    %176 = vector.load %arg5[%c0_159, %c0_160, %c0_161, %c6] : memref<1x64x8x24xf32, #tpu.memory_space<vmem>>, vector<1x64x8x6xf32>
    %177 = vector.shape_cast %176 : vector<1x64x8x6xf32> to vector<64x8x6xf32>
    %178 = vector.shape_cast %154 : vector<64x8x6xf32> to vector<1x64x8x6xf32>
    tpu.vector_store %arg5[%c0_159, %c0_160, %c0_161, %c6], %178 {strides = array<i32>} : memref<1x64x8x24xf32, #tpu.memory_space<vmem>>, vector<1x64x8x6xf32>,
    %c0_162 = arith.constant 0 : index
    %c0_163 = arith.constant 0 : index
    %c0_164 = arith.constant 0 : index
    %c12 = arith.constant 12 : index
    %179 = vector.load %arg5[%c0_162, %c0_163, %c0_164, %c12] : memref<1x64x8x24xf32, #tpu.memory_space<vmem>>, vector<1x64x8x6xf32>
    %180 = vector.shape_cast %179 : vector<1x64x8x6xf32> to vector<64x8x6xf32>
    %181 = vector.shape_cast %163 : vector<64x8x6xf32> to vector<1x64x8x6xf32>
    tpu.vector_store %arg5[%c0_162, %c0_163, %c0_164, %c12], %181 {strides = array<i32>} : memref<1x64x8x24xf32, #tpu.memory_space<vmem>>, vector<1x64x8x6xf32>,
    %c0_165 = arith.constant 0 : index
    %c0_166 = arith.constant 0 : index
    %c0_167 = arith.constant 0 : index
    %c18 = arith.constant 18 : index
    %182 = vector.load %arg5[%c0_165, %c0_166, %c0_167, %c18] : memref<1x64x8x24xf32, #tpu.memory_space<vmem>>, vector<1x64x8x6xf32>
    %183 = vector.shape_cast %182 : vector<1x64x8x6xf32> to vector<64x8x6xf32>
    %184 = vector.shape_cast %172 : vector<64x8x6xf32> to vector<1x64x8x6xf32>
    tpu.vector_store %arg5[%c0_165, %c0_166, %c0_167, %c18], %184 {strides = array<i32>} : memref<1x64x8x24xf32, #tpu.memory_space<vmem>>, vector<1x64x8x6xf32>,
    return
  }
  func.func @transform_0(%arg0: i32) -> (i32, i32, i32, i32) {
    %c0_i32 = arith.constant 0 : i32
    %c0_i32_0 = arith.constant 0 : i32
    %c0_i32_1 = arith.constant 0 : i32
    %c0_i32_2 = arith.constant 0 : i32
    return %arg0, %c0_i32, %c0_i32_0, %c0_i32_1 : i32, i32, i32, i32
  }
  func.func @transform_1(%arg0: i32) -> (i32, i32, i32) {
    %c0_i32 = arith.constant 0 : i32
    %c0_i32_0 = arith.constant 0 : i32
    %c0_i32_1 = arith.constant 0 : i32
    %c0_i32_2 = arith.constant 0 : i32
    return %c0_i32, %c0_i32_0, %c0_i32_1 : i32, i32, i32
  }
  func.func @transform_2(%arg0: i32) -> (i32, i32, i32) {
    %c0_i32 = arith.constant 0 : i32
    %c0_i32_0 = arith.constant 0 : i32
    %c0_i32_1 = arith.constant 0 : i32
    %c0_i32_2 = arith.constant 0 : i32
    return %c0_i32, %c0_i32_0, %c0_i32_1 : i32, i32, i32
  }
  func.func @transform_3(%arg0: i32) -> (i32, i32, i32) {
    %c0_i32 = arith.constant 0 : i32
    %c0_i32_0 = arith.constant 0 : i32
    %c0_i32_1 = arith.constant 0 : i32
    %c0_i32_2 = arith.constant 0 : i32
    return %c0_i32, %c0_i32_0, %c0_i32_1 : i32, i32, i32
  }
  func.func @transform_4(%arg0: i32) -> (i32, i32, i32, i32) {
    %c0_i32 = arith.constant 0 : i32
    %c0_i32_0 = arith.constant 0 : i32
    %c0_i32_1 = arith.constant 0 : i32
    %c0_i32_2 = arith.constant 0 : i32
    return %arg0, %c0_i32, %c0_i32_0, %c0_i32_1 : i32, i32, i32, i32
  }
}

</mosaic_0001>

<llo_original>
// kernel: decoder_forward.1
$region0: #{decoder_forward.1}
  #allocation0 [shape = 'u32[]', space=smem, size = 0x4, offset = 0x4, fixed_abs, tag = 'smem constant byte address 0x4 - core index']
  #allocation1 [shape = 'u32[72,128]{1,0:T(1,128)}', space=vmem, size = 0x9000, scoped, tag = 'internal scratch']
  #allocation2 [shape = 'f32[9,9,16]{2,1,0:T(8,128)}', space=vmem, size = 0x12000, scoped, tag = 'scratch operand']
  #allocation3 [shape = 'f32[17,9,32]{2,1,0:T(8,128)}', space=vmem, size = 0x22000, scoped, tag = 'scratch operand']
  #allocation4 [shape = 'f32[33,9,32]{2,1,0:T(8,128)}', space=vmem, size = 0x42000, scoped, tag = 'scratch operand']
  %s0 = inlined_call_operand.hbm [shape: f32[2,8,8,16], index: 0, kind: input, shape index: {}]
  %s1 = inlined_call_operand.hbm [shape: f32[4,16,64], index: 1, kind: input, shape index: {}]
  %s2 = inlined_call_operand.hbm [shape: f32[4,16,32], index: 2, kind: input, shape index: {}]
  %s3 = inlined_call_operand.hbm [shape: f32[4,8,12], index: 3, kind: input, shape index: {}]
  %s4 = inlined_call_operand.vmem [shape: f32[2,64,8,24], index: 4, kind: output, shape index: {}]
  %s5 = sld [smem:[#allocation0]]
  $region65: #{decoder_forward.1} parent=0
    _
  %s7 = ssub.s32 1, %s5
  %s8 = scalar_select 0, %s7, %s5
  $region1: #{decoder_forward.1} parent=0
    #allocation5 [shape = 'u8[65536]{0}', space=vmem, size = 0x10000, scoped, tag = 'input window, operand 0']
    #allocation6 [shape = 's32[2]{0}', space=sflag, size = 0x8, scoped, tag = 'scoped memory for decoder_forward.1']
    #allocation7 [shape = 'u8[32768]{0}', space=vmem, size = 0x8000, scoped, tag = 'input window, operand 1, single buffered']
    #allocation8 [shape = 's32[1]{0}', space=sflag, size = 0x4, scoped, tag = 'scoped memory for decoder_forward.1']
    #allocation9 [shape = 'u8[32768]{0}', space=vmem, size = 0x8000, scoped, tag = 'input window, operand 2, single buffered']
    #allocation10 [shape = 'u8[16384]{0}', space=vmem, size = 0x4000, scoped, tag = 'input window, operand 3, single buffered']
    #allocation11 [shape = 's32[1]{0}', space=sflag, size = 0x4, scoped, tag = 'scoped memory for decoder_forward.1']
    %9 = vsyncpa [#allocation6], 0
    %s10 = scalar_lea.sflag [#allocation6], 1
    %11 = vsyncpa %s10, 0
    %12 = vsyncpa [#allocation8], 0
    %13 = vsyncpa [#allocation11], 0
    loop: start=0, step=1, limit=4
    $region2: #{decoder_forward.1} parent=1 // loop_pre_header
      _
    $region3: #{decoder_forward.1} parent=1 // loop_header
      %s15 = sphi 0, %s19
      %p16 = scmp.ge.s32.totalorder %s15, 4
      %s25 = sphi 0, %s27
      %s28 = sphi 0, %s25
      %s29 = sphi 0, %s28
      %s45 = sphi 0, %s29
      %s49 = sphi 0, %s49
      %s51 = sphi 0, %s49
      %s52 = sphi 0, %s51
      %s66 = sphi 0, %s52
      %s70 = sphi 0, %s70
      %s72 = sphi 0, %s70
      %s73 = sphi 0, %s72
      %s87 = sphi 0, %s73
      %s91 = sphi 0, %s91
      %s93 = sphi 0, %s91
      %s94 = sphi 0, %s93
      %s108 = sphi 0, %s94
      %s114 = sphi 0, %s116
      %s117 = sphi 0, %s114
      %s118 = sphi 0, %s117
      %s134 = sphi 0, %s118
    $region4: #{decoder_forward.1} parent=1 // loop_header_branch
      %18 = sbr.rel (%p16) target = $region8
    $region5: #{decoder_forward.1} parent=1 // loop_body
      %s20 = ssub.s32 %s15, 1
      %s21 = ssub.s32 %s15, 2
      %s22 = sadd.s32 %s15, 1
      %s23 = ssub.s32 %s15, %s22
      %p24 = scmp.eq.s32.totalorder %s23, 0
      %s26 = sadd.s32 %s25, 1
      %s27 = scalar_select %p24, %s25, %s26
      %p30 = pneg %p24
      %p31 = scmp.eq.s32.totalorder %s15, 1
      %p32 = por %p30, %p31
      %p33 = scmp.ne.s32.totalorder %s25, %s28
      %p34 = scmp.eq.s32.totalorder %s15, 0
      %p35 = por %p33, %p34
      %p36 = scmp.ne.s32.totalorder %s25, %s28
      %p37 = scmp.eq.s32.totalorder %s20, 1
      %p38 = por %p36, %p37
      %p39 = scmp.ne.s32.totalorder %s28, %s29
      %p40 = scmp.eq.s32.totalorder %s20, 0
      %p41 = por %p39, %p40
      %p42 = scmp.ne.s32.totalorder %s28, %s29
      %p43 = scmp.eq.s32.totalorder %s21, 1
      %p44 = por %p42, %p43
      %p46 = scmp.ne.s32.totalorder %s29, %s45
      %p47 = scmp.eq.s32.totalorder %s21, 0
      %p48 = por %p46, %p47
      %s50 = sadd.s32 %s49, 1
      %p53 = scmp.eq.s32.totalorder %s15, 1
      %p54 = scmp.ne.s32.totalorder %s49, %s51
      %p55 = scmp.eq.s32.totalorder %s15, 0
      %p56 = por %p54, %p55
      %p57 = scmp.ne.s32.totalorder %s49, %s51
      %p58 = scmp.eq.s32.totalorder %s20, 1
      %p59 = por %p57, %p58
      %p60 = scmp.ne.s32.totalorder %s51, %s52
      %p61 = scmp.eq.s32.totalorder %s20, 0
      %p62 = por %p60, %p61
      %p63 = scmp.ne.s32.totalorder %s51, %s52
      %p64 = scmp.eq.s32.totalorder %s21, 1
      %p65 = por %p63, %p64
      %p67 = scmp.ne.s32.totalorder %s52, %s66
      %p68 = scmp.eq.s32.totalorder %s21, 0
      %p69 = por %p67, %p68
      %s71 = sadd.s32 %s70, 1
      %p74 = scmp.eq.s32.totalorder %s15, 1
      %p75 = scmp.ne.s32.totalorder %s70, %s72
      %p76 = scmp.eq.s32.totalorder %s15, 0
      %p77 = por %p75, %p76
      %p78 = scmp.ne.s32.totalorder %s70, %s72
      %p79 = scmp.eq.s32.totalorder %s20, 1
      %p80 = por %p78, %p79
      %p81 = scmp.ne.s32.totalorder %s72, %s73
      %p82 = scmp.eq.s32.totalorder %s20, 0
      %p83 = por %p81, %p82
      %p84 = scmp.ne.s32.totalorder %s72, %s73
      %p85 = scmp.eq.s32.totalorder %s21, 1
      %p86 = por %p84, %p85
      %p88 = scmp.ne.s32.totalorder %s73, %s87
      %p89 = scmp.eq.s32.totalorder %s21, 0
      %p90 = por %p88, %p89
      %s92 = sadd.s32 %s91, 1
      %p95 = scmp.eq.s32.totalorder %s15, 1
      %p96 = scmp.ne.s32.totalorder %s91, %s93
      %p97 = scmp.eq.s32.totalorder %s15, 0
      %p98 = por %p96, %p97
      %p99 = scmp.ne.s32.totalorder %s91, %s93
      %p100 = scmp.eq.s32.totalorder %s20, 1
      %p101 = por %p99, %p100
      %p102 = scmp.ne.s32.totalorder %s93, %s94
      %p103 = scmp.eq.s32.totalorder %s20, 0
      %p104 = por %p102, %p103
      %p105 = scmp.ne.s32.totalorder %s93, %s94
      %p106 = scmp.eq.s32.totalorder %s21, 1
      %p107 = por %p105, %p106
      %p109 = scmp.ne.s32.totalorder %s94, %s108
      %p110 = scmp.eq.s32.totalorder %s21, 0
      %p111 = por %p109, %p110
      %s112 = ssub.s32 %s15, %s22
      %p113 = scmp.eq.s32.totalorder %s112, 0
      %s115 = sadd.s32 %s114, 1
      %s116 = scalar_select %p113, %s114, %s115
      %p119 = pneg %p113
      %p120 = scmp.eq.s32.totalorder %s15, 1
      %p121 = por %p119, %p120
      %p122 = scmp.ne.s32.totalorder %s114, %s117
      %p123 = scmp.eq.s32.totalorder %s15, 0
      %p124 = por %p122, %p123
      %p125 = scmp.ne.s32.totalorder %s114, %s117
      %p126 = scmp.eq.s32.totalorder %s20, 1
      %p127 = por %p125, %p126
      %p128 = scmp.ne.s32.totalorder %s117, %s118
      %p129 = scmp.eq.s32.totalorder %s20, 0
      %p130 = por %p128, %p129
      %p131 = scmp.ne.s32.totalorder %s117, %s118
      %p132 = scmp.eq.s32.totalorder %s21, 1
      %p133 = por %p131, %p132
      %p135 = scmp.ne.s32.totalorder %s118, %s134
      %p136 = scmp.eq.s32.totalorder %s21, 0
      %p137 = por %p135, %p136
      %p138 = scmp.le.s32.totalorder 1, %s15
      %p139 = scmp.lt.s32.totalorder %s15, 3
      %p140 = pnand %p138, %p139
      %p141 = pneg %p140
      // Predicated region
      $region9: #{decoder_forward.1} parent=5 // pred_check
        _
      $region10: #{decoder_forward.1} parent=5 // pred_check_branch
        %143 = sbr.rel (%p140) target = $region12
      $region11: #{decoder_forward.1} parent=5 // pred_region
        %s144 = ssub.s32 %s15, 1
        // Predicated region
        $region13: #{decoder_forward.1} parent=11 // pred_check
          %p145 = pneg %p62
        $region14: #{decoder_forward.1} parent=11 // pred_check_branch
          %147 = sbr.rel (%p145) target = $region16
        $region15: #{decoder_forward.1} parent=11 // pred_region
          %149 = vsyncadd [#allocation8], 0
          %s150 = sshll.u32 %s1, 4
          %s151 = int_to_ptr.hbm [resolvable:$true] %s150
          %s152 = sshll.u32 [#allocation7], 4
          %s153 = int_to_ptr.vmem [resolvable:$true] %s152
          %158 = dma.hbm_to_vmem [thread:$0]  %s151, 1024, %s153, [#allocation8], 128, 128, 8
        $region16: #{decoder_forward.1} parent=11 // pred_fallthru
          _
        // Predicated region
        $region17: #{decoder_forward.1} parent=11 // pred_check
          %p159 = pneg %p83
        $region18: #{decoder_forward.1} parent=11 // pred_check_branch
          %161 = sbr.rel (%p159) target = $region20
        $region19: #{decoder_forward.1} parent=11 // pred_region
          %163 = vsyncadd [#allocation8], 0
          %s164 = sshll.u32 %s2, 4
          %s165 = int_to_ptr.hbm [resolvable:$true] %s164
          %s166 = sshll.u32 [#allocation9], 4
          %s167 = int_to_ptr.vmem [resolvable:$true] %s166
          %172 = dma.hbm_to_vmem [thread:$0]  %s165, 1024, %s167, [#allocation8], 128, 128, 8
        $region20: #{decoder_forward.1} parent=11 // pred_fallthru
          _
        // Predicated region
        $region21: #{decoder_forward.1} parent=11 // pred_check
          %p173 = pneg %p104
        $region22: #{decoder_forward.1} parent=11 // pred_check_branch
          %175 = sbr.rel (%p173) target = $region24
        $region23: #{decoder_forward.1} parent=11 // pred_region
          %177 = vsyncadd [#allocation11], 0
          %s178 = sshll.u32 %s3, 4
          %s179 = int_to_ptr.hbm [resolvable:$true] %s178
          %s180 = sshll.u32 [#allocation10], 4
          %s181 = int_to_ptr.vmem [resolvable:$true] %s180
          %186 = dma.hbm_to_vmem [thread:$0]  %s179, 512, %s181, [#allocation11], 128, 128, 8
        $region24: #{decoder_forward.1} parent=11 // pred_fallthru
          _
      $region12: #{decoder_forward.1} parent=5 // pred_fallthru
        _
      %p187 = scmp.lt.s32.totalorder %s15, 2
      // Predicated region
      $region25: #{decoder_forward.1} parent=5 // pred_check
        %p188 = pneg %p187
      $region26: #{decoder_forward.1} parent=5 // pred_check_branch
        %190 = sbr.rel (%p188) target = $region28
      $region27: #{decoder_forward.1} parent=5 // pred_region
        // Predicated region
        $region29: #{decoder_forward.1} parent=27 // pred_check
          %p191 = pneg %p35
        $region30: #{decoder_forward.1} parent=27 // pred_check_branch
          %193 = sbr.rel (%p191) target = $region32
        $region31: #{decoder_forward.1} parent=27 // pred_region
          %s194 = sand.u32 %s25, 1
          %s195 = scalar_lea.sflag [#allocation6], %s194
          %s196 = sand.u32 %s25, 1
          %s197 = smul.addr %s196, 64
          %s198 = scalar_lea.vmem [#allocation5], %s197
          %200 = vsyncadd %s195, 0
          %s201 = smul.addr %s15, 8
          %s202 = smul.addr %s201, 8
          %s203 = scalar_lea.hbm %s0, %s202
          %s204 = sshll.u32 %s203, 4
          %s205 = int_to_ptr.hbm [resolvable:$true] %s204
          %s206 = sshll.u32 %s198, 4
          %s207 = int_to_ptr.vmem [resolvable:$true] %s206
          %212 = dma.hbm_to_vmem [thread:$0]  %s205, 1024, %s207, %s195, 128, 128, 8
        $region32: #{decoder_forward.1} parent=27 // pred_fallthru
          _
      $region28: #{decoder_forward.1} parent=5 // pred_fallthru
        _
      %p213 = scmp.le.s32.totalorder 1, %s15
      %p214 = scmp.lt.s32.totalorder %s15, 3
      %p215 = pnand %p213, %p214
      %p216 = pneg %p215
      // Predicated region
      $region33: #{decoder_forward.1} parent=5 // pred_check
        _
      $region34: #{decoder_forward.1} parent=5 // pred_check_branch
        %218 = sbr.rel (%p215) target = $region36
      $region35: #{decoder_forward.1} parent=5 // pred_region
        %s219 = ssub.s32 %s15, 1
        %s220 = sand.u32 %s28, 1
        %s221 = scalar_lea.sflag [#allocation6], %s220
        %s222 = sand.u32 %s28, 1
        %s223 = smul.addr %s222, 64
        %s224 = scalar_lea.vmem [#allocation5], %s223
        // Predicated region
        $region37: #{decoder_forward.1} parent=35 // pred_check
          %p225 = pneg %p41
        $region38: #{decoder_forward.1} parent=35 // pred_check_branch
          %227 = sbr.rel (%p225) target = $region40
        $region39: #{decoder_forward.1} parent=35 // pred_region
          %229 = dma.done %s221, 1024
        $region40: #{decoder_forward.1} parent=35 // pred_fallthru
          _
        // Predicated region
        $region41: #{decoder_forward.1} parent=35 // pred_check
          %p230 = pneg %p62
        $region42: #{decoder_forward.1} parent=35 // pred_check_branch
          %232 = sbr.rel (%p230) target = $region44
        $region43: #{decoder_forward.1} parent=35 // pred_region
          %234 = dma.done [#allocation8], 1024
        $region44: #{decoder_forward.1} parent=35 // pred_fallthru
          _
        // Predicated region
        $region45: #{decoder_forward.1} parent=35 // pred_check
          %p235 = pneg %p83
        $region46: #{decoder_forward.1} parent=35 // pred_check_branch
          %237 = sbr.rel (%p235) target = $region48
        $region47: #{decoder_forward.1} parent=35 // pred_region
          %239 = dma.done [#allocation8], 1024
        $region48: #{decoder_forward.1} parent=35 // pred_fallthru
          _
        // Predicated region
        $region49: #{decoder_forward.1} parent=35 // pred_check
          %p240 = pneg %p104
        $region50: #{decoder_forward.1} parent=35 // pred_check_branch
          %242 = sbr.rel (%p240) target = $region52
        $region51: #{decoder_forward.1} parent=35 // pred_region
          %244 = dma.done [#allocation11], 512
        $region52: #{decoder_forward.1} parent=35 // pred_fallthru
          _
        %s245 = sand.u32 %s28, 1
        %s246 = scalar_lea.sflag [#allocation6], %s245
        %s247 = sand.u32 %s28, 1
        %s248 = smul.addr %s247, 64
        %s249 = scalar_lea.vmem [#allocation5], %s248
        %p250 = pneg %p41
        %p251 = pneg %p38
        %p252 = pneg %p62
        %p253 = pneg %p59
        %p254 = pneg %p83
        %p255 = pneg %p80
        %p256 = pneg %p104
        %p257 = pneg %p101
        %p258 = pneg %p130
        %p259 = pneg %p127
        %p260 = scmp.lt.s32.totalorder %s20, 1
        %s261 = scalar_select %p260, %s20, 1
        %s262 = smul.addr %s261, 64
        %s263 = smul.addr %s262, 8
        %s264 = scalar_lea.vmem %s4, %s263
        %p265 = scmp.lt.s32.totalorder %s20, 1
        %s266 = scalar_select %p265, %s20, 1
        %s267 = smul.addr %s266, 64
        %s268 = smul.addr %s267, 8
        %s269 = scalar_lea.vmem %s4, %s268
        %vm270 = vcmask 130048
        %271 = vst.msk [vmem:[#allocation2] sm:$0xff] %vm270, 0.0
        %vm272 = vcmask 122880
        %273 = vst.msk [vmem:[#allocation2 + $0x8] sm:$0x1] %vm272, 0.0
        %274 = vst.msk [vmem:[#allocation2 + $0x10] sm:$0xff] %vm270, 0.0
        %275 = vst.msk [vmem:[#allocation2 + $0x18] sm:$0x1] %vm272, 0.0
        %276 = vst.msk [vmem:[#allocation2 + $0x20] sm:$0xff] %vm270, 0.0
        %277 = vst.msk [vmem:[#allocation2 + $0x28] sm:$0x1] %vm272, 0.0
        %278 = vst.msk [vmem:[#allocation2 + $0x30] sm:$0xff] %vm270, 0.0
        %279 = vst.msk [vmem:[#allocation2 + $0x38] sm:$0x1] %vm272, 0.0
        %280 = vst.msk [vmem:[#allocation2 + $0x40] sm:$0xff] %vm270, 0.0
        %281 = vst.msk [vmem:[#allocation2 + $0x48] sm:$0x1] %vm272, 0.0
        %282 = vst.msk [vmem:[#allocation2 + $0x50] sm:$0xff] %vm270, 0.0
        %283 = vst.msk [vmem:[#allocation2 + $0x58] sm:$0x1] %vm272, 0.0
        %284 = vst.msk [vmem:[#allocation2 + $0x60] sm:$0xff] %vm270, 0.0
        %285 = vst.msk [vmem:[#allocation2 + $0x68] sm:$0x1] %vm272, 0.0
        %286 = vst.msk [vmem:[#allocation2 + $0x70] sm:$0xff] %vm270, 0.0
        %287 = vst.msk [vmem:[#allocation2 + $0x78] sm:$0x1] %vm272, 0.0
        %288 = vst.msk [vmem:[#allocation2 + $0x80] sm:$0xff] %vm270, 0.0
        %289 = vst.msk [vmem:[#allocation2 + $0x88] sm:$0x1] %vm272, 0.0
        %vm290 = vcmask 261120
        %291 = vst.msk [vmem:[#allocation3] sm:$0xff] %vm290, 0.0
        %vm292 = vcmask 253952
        %293 = vst.msk [vmem:[#allocation3 + $0x8] sm:$0x1] %vm292, 0.0
        %294 = vst.msk [vmem:[#allocation3 + $0x10] sm:$0xff] %vm290, 0.0
        %295 = vst.msk [vmem:[#allocation3 + $0x18] sm:$0x1] %vm292, 0.0
        %296 = vst.msk [vmem:[#allocation3 + $0x20] sm:$0xff] %vm290, 0.0
        %297 = vst.msk [vmem:[#allocation3 + $0x28] sm:$0x1] %vm292, 0.0
        %298 = vst.msk [vmem:[#allocation3 + $0x30] sm:$0xff] %vm290, 0.0
        %299 = vst.msk [vmem:[#allocation3 + $0x38] sm:$0x1] %vm292, 0.0
        %300 = vst.msk [vmem:[#allocation3 + $0x40] sm:$0xff] %vm290, 0.0
        %301 = vst.msk [vmem:[#allocation3 + $0x48] sm:$0x1] %vm292, 0.0
        %302 = vst.msk [vmem:[#allocation3 + $0x50] sm:$0xff] %vm290, 0.0
        %303 = vst.msk [vmem:[#allocation3 + $0x58] sm:$0x1] %vm292, 0.0
        %304 = vst.msk [vmem:[#allocation3 + $0x60] sm:$0xff] %vm290, 0.0
        %305 = vst.msk [vmem:[#allocation3 + $0x68] sm:$0x1] %vm292, 0.0
        %306 = vst.msk [vmem:[#allocation3 + $0x70] sm:$0xff] %vm290, 0.0
        %307 = vst.msk [vmem:[#allocation3 + $0x78] sm:$0x1] %vm292, 0.0
        %308 = vst.msk [vmem:[#allocation3 + $0x80] sm:$0xff] %vm290, 0.0
        %309 = vst.msk [vmem:[#allocation3 + $0x88] sm:$0x1] %vm292, 0.0
        %310 = vst.msk [vmem:[#allocation3 + $0x90] sm:$0xff] %vm290, 0.0
        %311 = vst.msk [vmem:[#allocation3 + $0x98] sm:$0x1] %vm292, 0.0
        %312 = vst.msk [vmem:[#allocation3 + $0xa0] sm:$0xff] %vm290, 0.0
        %313 = vst.msk [vmem:[#allocation3 + $0xa8] sm:$0x1] %vm292, 0.0
        %314 = vst.msk [vmem:[#allocation3 + $0xb0] sm:$0xff] %vm290, 0.0
        %315 = vst.msk [vmem:[#allocation3 + $0xb8] sm:$0x1] %vm292, 0.0
        %316 = vst.msk [vmem:[#allocation3 + $0xc0] sm:$0xff] %vm290, 0.0
        %317 = vst.msk [vmem:[#allocation3 + $0xc8] sm:$0x1] %vm292, 0.0
        %318 = vst.msk [vmem:[#allocation3 + $0xd0] sm:$0xff] %vm290, 0.0
        %319 = vst.msk [vmem:[#allocation3 + $0xd8] sm:$0x1] %vm292, 0.0
        %320 = vst.msk [vmem:[#allocation3 + $0xe0] sm:$0xff] %vm290, 0.0
        %321 = vst.msk [vmem:[#allocation3 + $0xe8] sm:$0x1] %vm292, 0.0
        %322 = vst.msk [vmem:[#allocation3 + $0xf0] sm:$0xff] %vm290, 0.0
        %323 = vst.msk [vmem:[#allocation3 + $0xf8] sm:$0x1] %vm292, 0.0
        %324 = vst.msk [vmem:[#allocation3 + $0x100] sm:$0xff] %vm290, 0.0
        %325 = vst.msk [vmem:[#allocation3 + $0x108] sm:$0x1] %vm292, 0.0
        %326 = vst.msk [vmem:[#allocation4] sm:$0xff] %vm290, 0.0
        %327 = vst.msk [vmem:[#allocation4 + $0x8] sm:$0x1] %vm292, 0.0
        %328 = vst.msk [vmem:[#allocation4 + $0x10] sm:$0xff] %vm290, 0.0
        %329 = vst.msk [vmem:[#allocation4 + $0x18] sm:$0x1] %vm292, 0.0
        %330 = vst.msk [vmem:[#allocation4 + $0x20] sm:$0xff] %vm290, 0.0
        %331 = vst.msk [vmem:[#allocation4 + $0x28] sm:$0x1] %vm292, 0.0
        %332 = vst.msk [vmem:[#allocation4 + $0x30] sm:$0xff] %vm290, 0.0
        %333 = vst.msk [vmem:[#allocation4 + $0x38] sm:$0x1] %vm292, 0.0
        %334 = vst.msk [vmem:[#allocation4 + $0x40] sm:$0xff] %vm290, 0.0
        %335 = vst.msk [vmem:[#allocation4 + $0x48] sm:$0x1] %vm292, 0.0
        %336 = vst.msk [vmem:[#allocation4 + $0x50] sm:$0xff] %vm290, 0.0
        %337 = vst.msk [vmem:[#allocation4 + $0x58] sm:$0x1] %vm292, 0.0
        %338 = vst.msk [vmem:[#allocation4 + $0x60] sm:$0xff] %vm290, 0.0
        %339 = vst.msk [vmem:[#allocation4 + $0x68] sm:$0x1] %vm292, 0.0
        %340 = vst.msk [vmem:[#allocation4 + $0x70] sm:$0xff] %vm290, 0.0
        %341 = vst.msk [vmem:[#allocation4 + $0x78] sm:$0x1] %vm292, 0.0
        %342 = vst.msk [vmem:[#allocation4 + $0x80] sm:$0xff] %vm290, 0.0
        %343 = vst.msk [vmem:[#allocation4 + $0x88] sm:$0x1] %vm292, 0.0
        %344 = vst.msk [vmem:[#allocation4 + $0x90] sm:$0xff] %vm290, 0.0
        %345 = vst.msk [vmem:[#allocation4 + $0x98] sm:$0x1] %vm292, 0.0
        %346 = vst.msk [vmem:[#allocation4 + $0xa0] sm:$0xff] %vm290, 0.0
        %347 = vst.msk [vmem:[#allocation4 + $0xa8] sm:$0x1] %vm292, 0.0
        %348 = vst.msk [vmem:[#allocation4 + $0xb0] sm:$0xff] %vm290, 0.0
        %349 = vst.msk [vmem:[#allocation4 + $0xb8] sm:$0x1] %vm292, 0.0
        %350 = vst.msk [vmem:[#allocation4 + $0xc0] sm:$0xff] %vm290, 0.0
        %351 = vst.msk [vmem:[#allocation4 + $0xc8] sm:$0x1] %vm292, 0.0
        %352 = vst.msk [vmem:[#allocation4 + $0xd0] sm:$0xff] %vm290, 0.0
        %353 = vst.msk [vmem:[#allocation4 + $0xd8] sm:$0x1] %vm292, 0.0
        %354 = vst.msk [vmem:[#allocation4 + $0xe0] sm:$0xff] %vm290, 0.0
        %355 = vst.msk [vmem:[#allocation4 + $0xe8] sm:$0x1] %vm292, 0.0
        %356 = vst.msk [vmem:[#allocation4 + $0xf0] sm:$0xff] %vm290, 0.0
        %357 = vst.msk [vmem:[#allocation4 + $0xf8] sm:$0x1] %vm292, 0.0
        %358 = vst.msk [vmem:[#allocation4 + $0x100] sm:$0xff] %vm290, 0.0
        %359 = vst.msk [vmem:[#allocation4 + $0x108] sm:$0x1] %vm292, 0.0
        %360 = vst.msk [vmem:[#allocation4 + $0x110] sm:$0xff] %vm290, 0.0
        %361 = vst.msk [vmem:[#allocation4 + $0x118] sm:$0x1] %vm292, 0.0
        %362 = vst.msk [vmem:[#allocation4 + $0x120] sm:$0xff] %vm290, 0.0
        %363 = vst.msk [vmem:[#allocation4 + $0x128] sm:$0x1] %vm292, 0.0
        %364 = vst.msk [vmem:[#allocation4 + $0x130] sm:$0xff] %vm290, 0.0
        %365 = vst.msk [vmem:[#allocation4 + $0x138] sm:$0x1] %vm292, 0.0
        %366 = vst.msk [vmem:[#allocation4 + $0x140] sm:$0xff] %vm290, 0.0
        %367 = vst.msk [vmem:[#allocation4 + $0x148] sm:$0x1] %vm292, 0.0
        %368 = vst.msk [vmem:[#allocation4 + $0x150] sm:$0xff] %vm290, 0.0
        %369 = vst.msk [vmem:[#allocation4 + $0x158] sm:$0x1] %vm292, 0.0
        %370 = vst.msk [vmem:[#allocation4 + $0x160] sm:$0xff] %vm290, 0.0
        %371 = vst.msk [vmem:[#allocation4 + $0x168] sm:$0x1] %vm292, 0.0
        %372 = vst.msk [vmem:[#allocation4 + $0x170] sm:$0xff] %vm290, 0.0
        %373 = vst.msk [vmem:[#allocation4 + $0x178] sm:$0x1] %vm292, 0.0
        %374 = vst.msk [vmem:[#allocation4 + $0x180] sm:$0xff] %vm290, 0.0
        %375 = vst.msk [vmem:[#allocation4 + $0x188] sm:$0x1] %vm292, 0.0
        %376 = vst.msk [vmem:[#allocation4 + $0x190] sm:$0xff] %vm290, 0.0
        %377 = vst.msk [vmem:[#allocation4 + $0x198] sm:$0x1] %vm292, 0.0
        %378 = vst.msk [vmem:[#allocation4 + $0x1a0] sm:$0xff] %vm290, 0.0
        %379 = vst.msk [vmem:[#allocation4 + $0x1a8] sm:$0x1] %vm292, 0.0
        %380 = vst.msk [vmem:[#allocation4 + $0x1b0] sm:$0xff] %vm290, 0.0
        %381 = vst.msk [vmem:[#allocation4 + $0x1b8] sm:$0x1] %vm292, 0.0
        %382 = vst.msk [vmem:[#allocation4 + $0x1c0] sm:$0xff] %vm290, 0.0
        %383 = vst.msk [vmem:[#allocation4 + $0x1c8] sm:$0x1] %vm292, 0.0
        %384 = vst.msk [vmem:[#allocation4 + $0x1d0] sm:$0xff] %vm290, 0.0
        %385 = vst.msk [vmem:[#allocation4 + $0x1d8] sm:$0x1] %vm292, 0.0
        %386 = vst.msk [vmem:[#allocation4 + $0x1e0] sm:$0xff] %vm290, 0.0
        %387 = vst.msk [vmem:[#allocation4 + $0x1e8] sm:$0x1] %vm292, 0.0
        %388 = vst.msk [vmem:[#allocation4 + $0x1f0] sm:$0xff] %vm290, 0.0
        %389 = vst.msk [vmem:[#allocation4 + $0x1f8] sm:$0x1] %vm292, 0.0
        %390 = vst.msk [vmem:[#allocation4 + $0x200] sm:$0xff] %vm290, 0.0
        %391 = vst.msk [vmem:[#allocation4 + $0x208] sm:$0x1] %vm292, 0.0
        %v392 = vld [vmem:[%s224] sm:$0xff]
        %v393 = vld [vmem:[%s224 + $0x8] sm:$0xff]
        %v394 = vld [vmem:[%s224 + $0x10] sm:$0xff]
        %v395 = vld [vmem:[%s224 + $0x18] sm:$0xff]
        %v396 = vld [vmem:[%s224 + $0x20] sm:$0xff]
        %v397 = vld [vmem:[%s224 + $0x28] sm:$0xff]
        %v398 = vld [vmem:[%s224 + $0x30] sm:$0xff]
        %v399 = vld [vmem:[%s224 + $0x38] sm:$0xff]
        %400 = vst.msk [vmem:[#allocation2] sm:$0xff] %vm270, %v392
        %401 = vst.msk [vmem:[#allocation2 + $0x10] sm:$0xff] %vm270, %v393
        %402 = vst.msk [vmem:[#allocation2 + $0x20] sm:$0xff] %vm270, %v394
        %403 = vst.msk [vmem:[#allocation2 + $0x30] sm:$0xff] %vm270, %v395
        %404 = vst.msk [vmem:[#allocation2 + $0x40] sm:$0xff] %vm270, %v396
        %405 = vst.msk [vmem:[#allocation2 + $0x50] sm:$0xff] %vm270, %v397
        %406 = vst.msk [vmem:[#allocation2 + $0x60] sm:$0xff] %vm270, %v398
        %407 = vst.msk [vmem:[#allocation2 + $0x70] sm:$0xff] %vm270, %v399
        %v408 = vld [vmem:[#allocation2] sm:$0xff]
        %v409 = vld [vmem:[#allocation2 + $0x10] sm:$0xff]
        %v410 = vld [vmem:[#allocation2 + $0x20] sm:$0xff]
        %v411 = vld [vmem:[#allocation2 + $0x30] sm:$0xff]
        %v412 = vld [vmem:[#allocation2 + $0x40] sm:$0xff]
        %v413 = vld [vmem:[#allocation2 + $0x50] sm:$0xff]
        %v414 = vld [vmem:[#allocation2 + $0x60] sm:$0xff]
        %v415 = vld [vmem:[#allocation2 + $0x70] sm:$0xff]
        %v416 = vld [vmem:[#allocation2 + $0x1] sm:$0xff]
        %v417 = vld [vmem:[#allocation2 + $0x11] sm:$0xff]
        %v418 = vld [vmem:[#allocation2 + $0x21] sm:$0xff]
        %v419 = vld [vmem:[#allocation2 + $0x31] sm:$0xff]
        %v420 = vld [vmem:[#allocation2 + $0x41] sm:$0xff]
        %v421 = vld [vmem:[#allocation2 + $0x51] sm:$0xff]
        %v422 = vld [vmem:[#allocation2 + $0x61] sm:$0xff]
        %v423 = vld [vmem:[#allocation2 + $0x71] sm:$0xff]
        %s424 = scalar_lea.vmem [#allocation2], 16
        %v425 = vld [vmem:[%s424] sm:$0xff]
        %v426 = vld [vmem:[%s424 + $0x10] sm:$0xff]
        %v427 = vld [vmem:[%s424 + $0x20] sm:$0xff]
        %v428 = vld [vmem:[%s424 + $0x30] sm:$0xff]
        %v429 = vld [vmem:[%s424 + $0x40] sm:$0xff]
        %v430 = vld [vmem:[%s424 + $0x50] sm:$0xff]
        %v431 = vld [vmem:[%s424 + $0x60] sm:$0xff]
        %v432 = vld [vmem:[%s424 + $0x70] sm:$0xff]
        %v433 = vld [vmem:[%s424 + $0x1] sm:$0xff]
        %v434 = vld [vmem:[%s424 + $0x11] sm:$0xff]
        %v435 = vld [vmem:[%s424 + $0x21] sm:$0xff]
        %v436 = vld [vmem:[%s424 + $0x31] sm:$0xff]
        %v437 = vld [vmem:[%s424 + $0x41] sm:$0xff]
        %v438 = vld [vmem:[%s424 + $0x51] sm:$0xff]
        %v439 = vld [vmem:[%s424 + $0x61] sm:$0xff]
        %v440 = vld [vmem:[%s424 + $0x71] sm:$0xff]
        %v441 = vld [vmem:[#allocation7] sm:$0xff]
        %v442 = vld [vmem:[#allocation7 + $0x8] sm:$0xff]
        %s443 = scalar_lea.vmem [#allocation7], 16
        %v444 = vld [vmem:[%s443] sm:$0xff]
        %v445 = vld [vmem:[%s443 + $0x8] sm:$0xff]
        %v447 = vsel %vm270, %v416, 0
        %v450 = vsel %vm270, %v417, 0
        %v453 = vsel %vm270, %v418, 0
        %v456 = vsel %vm270, %v419, 0
        %v459 = vsel %vm270, %v420, 0
        %v462 = vsel %vm270, %v421, 0
        %v465 = vsel %vm270, %v422, 0
        %v468 = vsel %vm270, %v423, 0
        %470 = vmatpush.msra.mxu0 0.0
        %471 = vmatpush.msra.mxu0 0.0
        %472 = vmatpush.msra.mxu0 0.0
        %473 = vmatpush.msra.mxu0 0.0
        %474 = vmatpush.msra.mxu0 0.0
        %475 = vmatpush.msra.mxu0 0.0
        %476 = vmatpush.msra.mxu0 0.0
        %477 = vmatpush.msra.mxu0 0.0
        %478 = vmatpush.msra.mxu0 0.0
        %479 = vmatpush.msra.mxu0 0.0
        %480 = vmatpush.msra.mxu0 0.0
        %481 = vmatpush.msra.mxu0 0.0
        %482 = vmatpush.msra.mxu0 0.0
        %483 = vmatpush.msra.mxu0 0.0
        %484 = vmatpush.msra.mxu0 %v445
        %485 = vmatpush.msra.mxu0 %v444
        %486 = vmatmul.f32.gmra.mxu0 %v447
        %v487 = vpop.f32.mrf.mxu0
        %v488 = vadd.f32 0.0, %v487
        %489 = vmatmul.f32.gmra.mxu0 %v450
        %v490 = vpop.f32.mrf.mxu0
        %v491 = vadd.f32 0.0, %v490
        %492 = vmatmul.f32.gmra.mxu0 %v453
        %v493 = vpop.f32.mrf.mxu0
        %v494 = vadd.f32 0.0, %v493
        %495 = vmatmul.f32.gmra.mxu0 %v456
        %v496 = vpop.f32.mrf.mxu0
        %v497 = vadd.f32 0.0, %v496
        %498 = vmatmul.f32.gmra.mxu0 %v459
        %v499 = vpop.f32.mrf.mxu0
        %v500 = vadd.f32 0.0, %v499
        %501 = vmatmul.f32.gmra.mxu0 %v462
        %v502 = vpop.f32.mrf.mxu0
        %v503 = vadd.f32 0.0, %v502
        %504 = vmatmul.f32.gmra.mxu0 %v465
        %v505 = vpop.f32.mrf.mxu0
        %v506 = vadd.f32 0.0, %v505
        %507 = vmatmul.f32.gmra.mxu0 %v468
        %v508 = vpop.f32.mrf.mxu0
        %v509 = vadd.f32 0.0, %v508
        %510 = vdwg.mxu0
        %v512 = vsel %vm270, %v408, 0
        %v515 = vsel %vm270, %v409, 0
        %v518 = vsel %vm270, %v410, 0
        %v521 = vsel %vm270, %v411, 0
        %v524 = vsel %vm270, %v412, 0
        %v527 = vsel %vm270, %v413, 0
        %v530 = vsel %vm270, %v414, 0
        %v533 = vsel %vm270, %v415, 0
        %535 = vmatpush.msra.mxu0 0.0
        %536 = vmatpush.msra.mxu0 0.0
        %537 = vmatpush.msra.mxu0 0.0
        %538 = vmatpush.msra.mxu0 0.0
        %539 = vmatpush.msra.mxu0 0.0
        %540 = vmatpush.msra.mxu0 0.0
        %541 = vmatpush.msra.mxu0 0.0
        %542 = vmatpush.msra.mxu0 0.0
        %543 = vmatpush.msra.mxu0 0.0
        %544 = vmatpush.msra.mxu0 0.0
        %545 = vmatpush.msra.mxu0 0.0
        %546 = vmatpush.msra.mxu0 0.0
        %547 = vmatpush.msra.mxu0 0.0
        %548 = vmatpush.msra.mxu0 0.0
        %549 = vmatpush.msra.mxu0 %v442
        %550 = vmatpush.msra.mxu0 %v441
        %551 = vmatmul.f32.gmra.mxu0 %v512
        %v552 = vpop.f32.mrf.mxu0
        %v553 = vadd.f32 %v488, %v552
        %554 = vmatmul.f32.gmra.mxu0 %v515
        %v555 = vpop.f32.mrf.mxu0
        %v556 = vadd.f32 %v491, %v555
        %557 = vmatmul.f32.gmra.mxu0 %v518
        %v558 = vpop.f32.mrf.mxu0
        %v559 = vadd.f32 %v494, %v558
        %560 = vmatmul.f32.gmra.mxu0 %v521
        %v561 = vpop.f32.mrf.mxu0
        %v562 = vadd.f32 %v497, %v561
        %563 = vmatmul.f32.gmra.mxu0 %v524
        %v564 = vpop.f32.mrf.mxu0
        %v565 = vadd.f32 %v500, %v564
        %566 = vmatmul.f32.gmra.mxu0 %v527
        %v567 = vpop.f32.mrf.mxu0
        %v568 = vadd.f32 %v503, %v567
        %569 = vmatmul.f32.gmra.mxu0 %v530
        %v570 = vpop.f32.mrf.mxu0
        %v571 = vadd.f32 %v506, %v570
        %572 = vmatmul.f32.gmra.mxu0 %v533
        %v573 = vpop.f32.mrf.mxu0
        %v574 = vadd.f32 %v509, %v573
        %575 = vdwg.mxu0
        %s576 = scalar_lea.vmem [#allocation7], 32
        %v577 = vld [vmem:[%s576] sm:$0xff]
        %v578 = vld [vmem:[%s576 + $0x8] sm:$0xff]
        %v580 = vsel %vm270, %v425, 0
        %v583 = vsel %vm270, %v426, 0
        %v586 = vsel %vm270, %v427, 0
        %v589 = vsel %vm270, %v428, 0
        %v592 = vsel %vm270, %v429, 0
        %v595 = vsel %vm270, %v430, 0
        %v598 = vsel %vm270, %v431, 0
        %v601 = vsel %vm270, %v432, 0
        %603 = vmatpush.msra.mxu0 0.0
        %604 = vmatpush.msra.mxu0 0.0
        %605 = vmatpush.msra.mxu0 0.0
        %606 = vmatpush.msra.mxu0 0.0
        %607 = vmatpush.msra.mxu0 0.0
        %608 = vmatpush.msra.mxu0 0.0
        %609 = vmatpush.msra.mxu0 0.0
        %610 = vmatpush.msra.mxu0 0.0
        %611 = vmatpush.msra.mxu0 0.0
        %612 = vmatpush.msra.mxu0 0.0
        %613 = vmatpush.msra.mxu0 0.0
        %614 = vmatpush.msra.mxu0 0.0
        %615 = vmatpush.msra.mxu0 0.0
        %616 = vmatpush.msra.mxu0 0.0
        %617 = vmatpush.msra.mxu0 %v578
        %618 = vmatpush.msra.mxu0 %v577
        %619 = vmatmul.f32.gmra.mxu0 %v580
        %v620 = vpop.f32.mrf.mxu0
        %v621 = vadd.f32 0.0, %v620
        %622 = vmatmul.f32.gmra.mxu0 %v583
        %v623 = vpop.f32.mrf.mxu0
        %v624 = vadd.f32 0.0, %v623
        %625 = vmatmul.f32.gmra.mxu0 %v586
        %v626 = vpop.f32.mrf.mxu0
        %v627 = vadd.f32 0.0, %v626
        %628 = vmatmul.f32.gmra.mxu0 %v589
        %v629 = vpop.f32.mrf.mxu0
        %v630 = vadd.f32 0.0, %v629
        %631 = vmatmul.f32.gmra.mxu0 %v592
        %v632 = vpop.f32.mrf.mxu0
        %v633 = vadd.f32 0.0, %v632
        %634 = vmatmul.f32.gmra.mxu0 %v595
        %v635 = vpop.f32.mrf.mxu0
        %v636 = vadd.f32 0.0, %v635
        %637 = vmatmul.f32.gmra.mxu0 %v598
        %v638 = vpop.f32.mrf.mxu0
        %v639 = vadd.f32 0.0, %v638
        %640 = vmatmul.f32.gmra.mxu0 %v601
        %v641 = vpop.f32.mrf.mxu0
        %v642 = vadd.f32 0.0, %v641
        %643 = vdwg.mxu0
        %v644 = vadd.f32 %v553, %v621
        %v645 = vadd.f32 %v556, %v624
        %v646 = vadd.f32 %v559, %v627
        %v647 = vadd.f32 %v562, %v630
        %v648 = vadd.f32 %v565, %v633
        %v649 = vadd.f32 %v568, %v636
        %v650 = vadd.f32 %v571, %v639
        %v651 = vadd.f32 %v574, %v642
        %s652 = scalar_lea.vmem [#allocation7], 48
        %v653 = vld [vmem:[%s652] sm:$0xff]
        %v654 = vld [vmem:[%s652 + $0x8] sm:$0xff]
        %v656 = vsel %vm270, %v433, 0
        %v659 = vsel %vm270, %v434, 0
        %v662 = vsel %vm270, %v435, 0
        %v665 = vsel %vm270, %v436, 0
        %v668 = vsel %vm270, %v437, 0
        %v671 = vsel %vm270, %v438, 0
        %v674 = vsel %vm270, %v439, 0
        %v677 = vsel %vm270, %v440, 0
        %679 = vmatpush.msra.mxu0 0.0
        %680 = vmatpush.msra.mxu0 0.0
        %681 = vmatpush.msra.mxu0 0.0
        %682 = vmatpush.msra.mxu0 0.0
        %683 = vmatpush.msra.mxu0 0.0
        %684 = vmatpush.msra.mxu0 0.0
        %685 = vmatpush.msra.mxu0 0.0
        %686 = vmatpush.msra.mxu0 0.0
        %687 = vmatpush.msra.mxu0 0.0
        %688 = vmatpush.msra.mxu0 0.0
        %689 = vmatpush.msra.mxu0 0.0
        %690 = vmatpush.msra.mxu0 0.0
        %691 = vmatpush.msra.mxu0 0.0
        %692 = vmatpush.msra.mxu0 0.0
        %693 = vmatpush.msra.mxu0 %v654
        %694 = vmatpush.msra.mxu0 %v653
        %695 = vmatmul.f32.gmra.mxu0 %v656
        %v696 = vpop.f32.mrf.mxu0
        %v697 = vadd.f32 0.0, %v696
        %698 = vmatmul.f32.gmra.mxu0 %v659
        %v699 = vpop.f32.mrf.mxu0
        %v700 = vadd.f32 0.0, %v699
        %701 = vmatmul.f32.gmra.mxu0 %v662
        %v702 = vpop.f32.mrf.mxu0
        %v703 = vadd.f32 0.0, %v702
        %704 = vmatmul.f32.gmra.mxu0 %v665
        %v705 = vpop.f32.mrf.mxu0
        %v706 = vadd.f32 0.0, %v705
        %707 = vmatmul.f32.gmra.mxu0 %v668
        %v708 = vpop.f32.mrf.mxu0
        %v709 = vadd.f32 0.0, %v708
        %710 = vmatmul.f32.gmra.mxu0 %v671
        %v711 = vpop.f32.mrf.mxu0
        %v712 = vadd.f32 0.0, %v711
        %713 = vmatmul.f32.gmra.mxu0 %v674
        %v714 = vpop.f32.mrf.mxu0
        %v715 = vadd.f32 0.0, %v714
        %716 = vmatmul.f32.gmra.mxu0 %v677
        %v717 = vpop.f32.mrf.mxu0
        %v718 = vadd.f32 0.0, %v717
        %719 = vdwg.mxu0
        %v720 = vadd.f32 %v644, %v697
        %v721 = vadd.f32 %v645, %v700
        %v722 = vadd.f32 %v646, %v703
        %v723 = vadd.f32 %v647, %v706
        %v724 = vadd.f32 %v648, %v709
        %v725 = vadd.f32 %v649, %v712
        %v726 = vadd.f32 %v650, %v715
        %v727 = vadd.f32 %v651, %v718
        %v728 = vmax.f32 %v720, 0.0
        %v729 = vmax.f32 %v721, 0.0
        %v730 = vmax.f32 %v722, 0.0
        %v731 = vmax.f32 %v723, 0.0
        %v732 = vmax.f32 %v724, 0.0
        %v733 = vmax.f32 %v725, 0.0
        %v734 = vmax.f32 %v726, 0.0
        %v735 = vmax.f32 %v727, 0.0
        %744 = vrot.lane.b32.xlu0 %v728, 96
        %v745 = vpop.permute.xlu0 %744
        %746 = vrot.lane.b32.xlu0 %v729, 96
        %v747 = vpop.permute.xlu0 %746
        %748 = vrot.lane.b32.xlu0 %v730, 96
        %v749 = vpop.permute.xlu0 %748
        %750 = vrot.lane.b32.xlu0 %v731, 96
        %v751 = vpop.permute.xlu0 %750
        %752 = vrot.lane.b32.xlu0 %v732, 96
        %v753 = vpop.permute.xlu0 %752
        %754 = vrot.lane.b32.xlu0 %v733, 96
        %v755 = vpop.permute.xlu0 %754
        %756 = vrot.lane.b32.xlu0 %v734, 96
        %v757 = vpop.permute.xlu0 %756
        %758 = vrot.lane.b32.xlu0 %v735, 96
        %v759 = vpop.permute.xlu0 %758
        %768 = vst.msk [vmem:[#allocation3] sm:$0xff] %vm290, %v728
        %769 = vst.msk [vmem:[#allocation3 + $0x10] sm:$0xff] %vm290, %v745
        %770 = vst.msk [vmem:[#allocation3 + $0x20] sm:$0xff] %vm290, %v729
        %771 = vst.msk [vmem:[#allocation3 + $0x30] sm:$0xff] %vm290, %v747
        %772 = vst.msk [vmem:[#allocation3 + $0x40] sm:$0xff] %vm290, %v730
        %773 = vst.msk [vmem:[#allocation3 + $0x50] sm:$0xff] %vm290, %v749
        %774 = vst.msk [vmem:[#allocation3 + $0x60] sm:$0xff] %vm290, %v731
        %775 = vst.msk [vmem:[#allocation3 + $0x70] sm:$0xff] %vm290, %v751
        %776 = vst.msk [vmem:[#allocation3 + $0x80] sm:$0xff] %vm290, %v732
        %777 = vst.msk [vmem:[#allocation3 + $0x90] sm:$0xff] %vm290, %v753
        %778 = vst.msk [vmem:[#allocation3 + $0xa0] sm:$0xff] %vm290, %v733
        %779 = vst.msk [vmem:[#allocation3 + $0xb0] sm:$0xff] %vm290, %v755
        %780 = vst.msk [vmem:[#allocation3 + $0xc0] sm:$0xff] %vm290, %v734
        %781 = vst.msk [vmem:[#allocation3 + $0xd0] sm:$0xff] %vm290, %v757
        %782 = vst.msk [vmem:[#allocation3 + $0xe0] sm:$0xff] %vm290, %v735
        %783 = vst.msk [vmem:[#allocation3 + $0xf0] sm:$0xff] %vm290, %v759
        %v784 = vld [vmem:[#allocation3] sm:$0xff]
        %v785 = vld [vmem:[#allocation3 + $0x10] sm:$0xff]
        %v786 = vld [vmem:[#allocation3 + $0x20] sm:$0xff]
        %v787 = vld [vmem:[#allocation3 + $0x30] sm:$0xff]
        %v788 = vld [vmem:[#allocation3 + $0x40] sm:$0xff]
        %v789 = vld [vmem:[#allocation3 + $0x50] sm:$0xff]
        %v790 = vld [vmem:[#allocation3 + $0x60] sm:$0xff]
        %v791 = vld [vmem:[#allocation3 + $0x70] sm:$0xff]
        %v792 = vld [vmem:[#allocation3 + $0x80] sm:$0xff]
        %v793 = vld [vmem:[#allocation3 + $0x90] sm:$0xff]
        %v794 = vld [vmem:[#allocation3 + $0xa0] sm:$0xff]
        %v795 = vld [vmem:[#allocation3 + $0xb0] sm:$0xff]
        %v796 = vld [vmem:[#allocation3 + $0xc0] sm:$0xff]
        %v797 = vld [vmem:[#allocation3 + $0xd0] sm:$0xff]
        %v798 = vld [vmem:[#allocation3 + $0xe0] sm:$0xff]
        %v799 = vld [vmem:[#allocation3 + $0xf0] sm:$0xff]
        %s800 = scalar_lea.vmem [#allocation3], 16
        %v801 = vld [vmem:[%s800] sm:$0xff]
        %v802 = vld [vmem:[%s800 + $0x10] sm:$0xff]
        %v803 = vld [vmem:[%s800 + $0x20] sm:$0xff]
        %v804 = vld [vmem:[%s800 + $0x30] sm:$0xff]
        %v805 = vld [vmem:[%s800 + $0x40] sm:$0xff]
        %v806 = vld [vmem:[%s800 + $0x50] sm:$0xff]
        %v807 = vld [vmem:[%s800 + $0x60] sm:$0xff]
        %v808 = vld [vmem:[%s800 + $0x70] sm:$0xff]
        %v809 = vld [vmem:[%s800 + $0x80] sm:$0xff]
        %v810 = vld [vmem:[%s800 + $0x90] sm:$0xff]
        %v811 = vld [vmem:[%s800 + $0xa0] sm:$0xff]
        %v812 = vld [vmem:[%s800 + $0xb0] sm:$0xff]
        %v813 = vld [vmem:[%s800 + $0xc0] sm:$0xff]
        %v814 = vld [vmem:[%s800 + $0xd0] sm:$0xff]
        %v815 = vld [vmem:[%s800 + $0xe0] sm:$0xff]
        %v816 = vld [vmem:[%s800 + $0xf0] sm:$0xff]
        %v817 = vld [vmem:[#allocation3 + $0x1] sm:$0xff]
        %v818 = vld [vmem:[#allocation3 + $0x11] sm:$0xff]
        %v819 = vld [vmem:[#allocation3 + $0x21] sm:$0xff]
        %v820 = vld [vmem:[#allocation3 + $0x31] sm:$0xff]
        %v821 = vld [vmem:[#allocation3 + $0x41] sm:$0xff]
        %v822 = vld [vmem:[#allocation3 + $0x51] sm:$0xff]
        %v823 = vld [vmem:[#allocation3 + $0x61] sm:$0xff]
        %v824 = vld [vmem:[#allocation3 + $0x71] sm:$0xff]
        %v825 = vld [vmem:[#allocation3 + $0x81] sm:$0xff]
        %v826 = vld [vmem:[#allocation3 + $0x91] sm:$0xff]
        %v827 = vld [vmem:[#allocation3 + $0xa1] sm:$0xff]
        %v828 = vld [vmem:[#allocation3 + $0xb1] sm:$0xff]
        %v829 = vld [vmem:[#allocation3 + $0xc1] sm:$0xff]
        %v830 = vld [vmem:[#allocation3 + $0xd1] sm:$0xff]
        %v831 = vld [vmem:[#allocation3 + $0xe1] sm:$0xff]
        %v832 = vld [vmem:[#allocation3 + $0xf1] sm:$0xff]
        %v833 = vld [vmem:[%s800 + $0x1] sm:$0xff]
        %v834 = vld [vmem:[%s800 + $0x11] sm:$0xff]
        %v835 = vld [vmem:[%s800 + $0x21] sm:$0xff]
        %v836 = vld [vmem:[%s800 + $0x31] sm:$0xff]
        %v837 = vld [vmem:[%s800 + $0x41] sm:$0xff]
        %v838 = vld [vmem:[%s800 + $0x51] sm:$0xff]
        %v839 = vld [vmem:[%s800 + $0x61] sm:$0xff]
        %v840 = vld [vmem:[%s800 + $0x71] sm:$0xff]
        %v841 = vld [vmem:[%s800 + $0x81] sm:$0xff]
        %v842 = vld [vmem:[%s800 + $0x91] sm:$0xff]
        %v843 = vld [vmem:[%s800 + $0xa1] sm:$0xff]
        %v844 = vld [vmem:[%s800 + $0xb1] sm:$0xff]
        %v845 = vld [vmem:[%s800 + $0xc1] sm:$0xff]
        %v846 = vld [vmem:[%s800 + $0xd1] sm:$0xff]
        %v847 = vld [vmem:[%s800 + $0xe1] sm:$0xff]
        %v848 = vld [vmem:[%s800 + $0xf1] sm:$0xff]
        %865 = vrot.lane.b32.xlu0 %v784, 112
        %v866 = vpop.permute.xlu0 %865
        %867 = vrot.lane.b32.xlu0 %v785, 112
        %v868 = vpop.permute.xlu0 %867
        %869 = vrot.lane.b32.xlu0 %v786, 112
        %v870 = vpop.permute.xlu0 %869
        %871 = vrot.lane.b32.xlu0 %v787, 112
        %v872 = vpop.permute.xlu0 %871
        %873 = vrot.lane.b32.xlu0 %v788, 112
        %v874 = vpop.permute.xlu0 %873
        %875 = vrot.lane.b32.xlu0 %v789, 112
        %v876 = vpop.permute.xlu0 %875
        %877 = vrot.lane.b32.xlu0 %v790, 112
        %v878 = vpop.permute.xlu0 %877
        %879 = vrot.lane.b32.xlu0 %v791, 112
        %v880 = vpop.permute.xlu0 %879
        %881 = vrot.lane.b32.xlu0 %v792, 112
        %v882 = vpop.permute.xlu0 %881
        %883 = vrot.lane.b32.xlu0 %v793, 112
        %v884 = vpop.permute.xlu0 %883
        %885 = vrot.lane.b32.xlu0 %v794, 112
        %v886 = vpop.permute.xlu0 %885
        %887 = vrot.lane.b32.xlu0 %v795, 112
        %v888 = vpop.permute.xlu0 %887
        %889 = vrot.lane.b32.xlu0 %v796, 112
        %v890 = vpop.permute.xlu0 %889
        %891 = vrot.lane.b32.xlu0 %v797, 112
        %v892 = vpop.permute.xlu0 %891
        %893 = vrot.lane.b32.xlu0 %v798, 112
        %v894 = vpop.permute.xlu0 %893
        %895 = vrot.lane.b32.xlu0 %v799, 112
        %v896 = vpop.permute.xlu0 %895
        %v897 = vld [vmem:[#allocation9] sm:$0xff]
        %v898 = vld [vmem:[#allocation9 + $0x8] sm:$0xff]
        %915 = vrot.lane.b32.xlu0 %v817, 16
        %v916 = vpop.permute.xlu0 %915
        %917 = vrot.lane.b32.xlu0 %v818, 16
        %v918 = vpop.permute.xlu0 %917
        %919 = vrot.lane.b32.xlu0 %v819, 16
        %v920 = vpop.permute.xlu0 %919
        %921 = vrot.lane.b32.xlu0 %v820, 16
        %v922 = vpop.permute.xlu0 %921
        %923 = vrot.lane.b32.xlu0 %v821, 16
        %v924 = vpop.permute.xlu0 %923
        %925 = vrot.lane.b32.xlu0 %v822, 16
        %v926 = vpop.permute.xlu0 %925
        %927 = vrot.lane.b32.xlu0 %v823, 16
        %v928 = vpop.permute.xlu0 %927
        %929 = vrot.lane.b32.xlu0 %v824, 16
        %v930 = vpop.permute.xlu0 %929
        %931 = vrot.lane.b32.xlu0 %v825, 16
        %v932 = vpop.permute.xlu0 %931
        %933 = vrot.lane.b32.xlu0 %v826, 16
        %v934 = vpop.permute.xlu0 %933
        %935 = vrot.lane.b32.xlu0 %v827, 16
        %v936 = vpop.permute.xlu0 %935
        %937 = vrot.lane.b32.xlu0 %v828, 16
        %v938 = vpop.permute.xlu0 %937
        %939 = vrot.lane.b32.xlu0 %v829, 16
        %v940 = vpop.permute.xlu0 %939
        %941 = vrot.lane.b32.xlu0 %v830, 16
        %v942 = vpop.permute.xlu0 %941
        %943 = vrot.lane.b32.xlu0 %v831, 16
        %v944 = vpop.permute.xlu0 %943
        %945 = vrot.lane.b32.xlu0 %v832, 16
        %v946 = vpop.permute.xlu0 %945
        %s947 = scalar_lea.vmem [#allocation9], 16
        %v948 = vld [vmem:[%s947] sm:$0xff]
        %v949 = vld [vmem:[%s947 + $0x8] sm:$0xff]
        %950 = vrot.lane.b32.xlu0 %v916, 112
        %v951 = vpop.permute.xlu0 %950
        %952 = vrot.lane.b32.xlu0 %v918, 112
        %v953 = vpop.permute.xlu0 %952
        %954 = vrot.lane.b32.xlu0 %v920, 112
        %v955 = vpop.permute.xlu0 %954
        %956 = vrot.lane.b32.xlu0 %v922, 112
        %v957 = vpop.permute.xlu0 %956
        %958 = vrot.lane.b32.xlu0 %v924, 112
        %v959 = vpop.permute.xlu0 %958
        %960 = vrot.lane.b32.xlu0 %v926, 112
        %v961 = vpop.permute.xlu0 %960
        %962 = vrot.lane.b32.xlu0 %v928, 112
        %v963 = vpop.permute.xlu0 %962
        %964 = vrot.lane.b32.xlu0 %v930, 112
        %v965 = vpop.permute.xlu0 %964
        %966 = vrot.lane.b32.xlu0 %v932, 112
        %v967 = vpop.permute.xlu0 %966
        %968 = vrot.lane.b32.xlu0 %v934, 112
        %v969 = vpop.permute.xlu0 %968
        %970 = vrot.lane.b32.xlu0 %v936, 112
        %v971 = vpop.permute.xlu0 %970
        %972 = vrot.lane.b32.xlu0 %v938, 112
        %v973 = vpop.permute.xlu0 %972
        %974 = vrot.lane.b32.xlu0 %v940, 112
        %v975 = vpop.permute.xlu0 %974
        %976 = vrot.lane.b32.xlu0 %v942, 112
        %v977 = vpop.permute.xlu0 %976
        %978 = vrot.lane.b32.xlu0 %v944, 112
        %v979 = vpop.permute.xlu0 %978
        %980 = vrot.lane.b32.xlu0 %v946, 112
        %v981 = vpop.permute.xlu0 %980
        %v982 = vsel %vm270, %v866, 0
        %v984 = vsel %vm270, %v868, 0
        %v986 = vsel %vm270, %v870, 0
        %v988 = vsel %vm270, %v872, 0
        %v990 = vsel %vm270, %v874, 0
        %v992 = vsel %vm270, %v876, 0
        %v994 = vsel %vm270, %v878, 0
        %v996 = vsel %vm270, %v880, 0
        %v998 = vsel %vm270, %v882, 0
        %v1000 = vsel %vm270, %v884, 0
        %v1002 = vsel %vm270, %v886, 0
        %v1004 = vsel %vm270, %v888, 0
        %v1006 = vsel %vm270, %v890, 0
        %v1008 = vsel %vm270, %v892, 0
        %v1010 = vsel %vm270, %v894, 0
        %v1012 = vsel %vm270, %v896, 0
        %v1014 = vsel %vm270, %v951, 0
        %v1016 = vsel %vm270, %v953, 0
        %v1018 = vsel %vm270, %v955, 0
        %v1020 = vsel %vm270, %v957, 0
        %v1022 = vsel %vm270, %v959, 0
        %v1024 = vsel %vm270, %v961, 0
        %v1026 = vsel %vm270, %v963, 0
        %v1028 = vsel %vm270, %v965, 0
        %v1030 = vsel %vm270, %v967, 0
        %v1032 = vsel %vm270, %v969, 0
        %v1034 = vsel %vm270, %v971, 0
        %v1036 = vsel %vm270, %v973, 0
        %v1038 = vsel %vm270, %v975, 0
        %v1040 = vsel %vm270, %v977, 0
        %v1042 = vsel %vm270, %v979, 0
        %v1044 = vsel %vm270, %v981, 0
        %1046 = vmatpush.msra.mxu0 0.0
        %1047 = vmatpush.msra.mxu0 0.0
        %1048 = vmatpush.msra.mxu0 0.0
        %1049 = vmatpush.msra.mxu0 0.0
        %1050 = vmatpush.msra.mxu0 0.0
        %1051 = vmatpush.msra.mxu0 0.0
        %1052 = vmatpush.msra.mxu0 0.0
        %1053 = vmatpush.msra.mxu0 0.0
        %1054 = vmatpush.msra.mxu0 0.0
        %1055 = vmatpush.msra.mxu0 0.0
        %1056 = vmatpush.msra.mxu0 0.0
        %1057 = vmatpush.msra.mxu0 0.0
        %1058 = vmatpush.msra.mxu0 0.0
        %1059 = vmatpush.msra.mxu0 0.0
        %1060 = vmatpush.msra.mxu0 %v949
        %1061 = vmatpush.msra.mxu0 %v948
        %1062 = vmatmul.f32.gmra.mxu0 %v982
        %v1063 = vpop.f32.mrf.mxu0
        %v1064 = vadd.f32 0.0, %v1063
        %1065 = vmatmul.f32.gmra.mxu0 %v984
        %v1066 = vpop.f32.mrf.mxu0
        %v1067 = vadd.f32 0.0, %v1066
        %1068 = vmatmul.f32.gmra.mxu0 %v986
        %v1069 = vpop.f32.mrf.mxu0
        %v1070 = vadd.f32 0.0, %v1069
        %1071 = vmatmul.f32.gmra.mxu0 %v988
        %v1072 = vpop.f32.mrf.mxu0
        %v1073 = vadd.f32 0.0, %v1072
        %1074 = vmatmul.f32.gmra.mxu0 %v990
        %v1075 = vpop.f32.mrf.mxu0
        %v1076 = vadd.f32 0.0, %v1075
        %1077 = vmatmul.f32.gmra.mxu0 %v992
        %v1078 = vpop.f32.mrf.mxu0
        %v1079 = vadd.f32 0.0, %v1078
        %1080 = vmatmul.f32.gmra.mxu0 %v994
        %v1081 = vpop.f32.mrf.mxu0
        %v1082 = vadd.f32 0.0, %v1081
        %1083 = vmatmul.f32.gmra.mxu0 %v996
        %v1084 = vpop.f32.mrf.mxu0
        %v1085 = vadd.f32 0.0, %v1084
        %1086 = vmatmul.f32.gmra.mxu0 %v998
        %v1087 = vpop.f32.mrf.mxu0
        %v1088 = vadd.f32 0.0, %v1087
        %1089 = vmatmul.f32.gmra.mxu0 %v1000
        %v1090 = vpop.f32.mrf.mxu0
        %v1091 = vadd.f32 0.0, %v1090
        %1092 = vmatmul.f32.gmra.mxu0 %v1002
        %v1093 = vpop.f32.mrf.mxu0
        %v1094 = vadd.f32 0.0, %v1093
        %1095 = vmatmul.f32.gmra.mxu0 %v1004
        %v1096 = vpop.f32.mrf.mxu0
        %v1097 = vadd.f32 0.0, %v1096
        %1098 = vmatmul.f32.gmra.mxu0 %v1006
        %v1099 = vpop.f32.mrf.mxu0
        %v1100 = vadd.f32 0.0, %v1099
        %1101 = vmatmul.f32.gmra.mxu0 %v1008
        %v1102 = vpop.f32.mrf.mxu0
        %v1103 = vadd.f32 0.0, %v1102
        %1104 = vmatmul.f32.gmra.mxu0 %v1010
        %v1105 = vpop.f32.mrf.mxu0
        %v1106 = vadd.f32 0.0, %v1105
        %1107 = vmatmul.f32.gmra.mxu0 %v1012
        %v1108 = vpop.f32.mrf.mxu0
        %v1109 = vadd.f32 0.0, %v1108
        %1110 = vmatmul.f32.gmra.mxu0 %v1014
        %v1111 = vpop.f32.mrf.mxu0
        %v1112 = vadd.f32 0.0, %v1111
        %1113 = vmatmul.f32.gmra.mxu0 %v1016
        %v1114 = vpop.f32.mrf.mxu0
        %v1115 = vadd.f32 0.0, %v1114
        %1116 = vmatmul.f32.gmra.mxu0 %v1018
        %v1117 = vpop.f32.mrf.mxu0
        %v1118 = vadd.f32 0.0, %v1117
        %1119 = vmatmul.f32.gmra.mxu0 %v1020
        %v1120 = vpop.f32.mrf.mxu0
        %v1121 = vadd.f32 0.0, %v1120
        %1122 = vmatmul.f32.gmra.mxu0 %v1022
        %v1123 = vpop.f32.mrf.mxu0
        %v1124 = vadd.f32 0.0, %v1123
        %1125 = vmatmul.f32.gmra.mxu0 %v1024
        %v1126 = vpop.f32.mrf.mxu0
        %v1127 = vadd.f32 0.0, %v1126
        %1128 = vmatmul.f32.gmra.mxu0 %v1026
        %v1129 = vpop.f32.mrf.mxu0
        %v1130 = vadd.f32 0.0, %v1129
        %1131 = vmatmul.f32.gmra.mxu0 %v1028
        %v1132 = vpop.f32.mrf.mxu0
        %v1133 = vadd.f32 0.0, %v1132
        %1134 = vmatmul.f32.gmra.mxu0 %v1030
        %v1135 = vpop.f32.mrf.mxu0
        %v1136 = vadd.f32 0.0, %v1135
        %1137 = vmatmul.f32.gmra.mxu0 %v1032
        %v1138 = vpop.f32.mrf.mxu0
        %v1139 = vadd.f32 0.0, %v1138
        %1140 = vmatmul.f32.gmra.mxu0 %v1034
        %v1141 = vpop.f32.mrf.mxu0
        %v1142 = vadd.f32 0.0, %v1141
        %1143 = vmatmul.f32.gmra.mxu0 %v1036
        %v1144 = vpop.f32.mrf.mxu0
        %v1145 = vadd.f32 0.0, %v1144
        %1146 = vmatmul.f32.gmra.mxu0 %v1038
        %v1147 = vpop.f32.mrf.mxu0
        %v1148 = vadd.f32 0.0, %v1147
        %1149 = vmatmul.f32.gmra.mxu0 %v1040
        %v1150 = vpop.f32.mrf.mxu0
        %v1151 = vadd.f32 0.0, %v1150
        %1152 = vmatmul.f32.gmra.mxu0 %v1042
        %v1153 = vpop.f32.mrf.mxu0
        %v1154 = vadd.f32 0.0, %v1153
        %1155 = vmatmul.f32.gmra.mxu0 %v1044
        %v1156 = vpop.f32.mrf.mxu0
        %v1157 = vadd.f32 0.0, %v1156
        %1158 = vdwg.mxu0
        %v1159 = vsel %vm270, %v784, 0
        %v1161 = vsel %vm270, %v785, 0
        %v1163 = vsel %vm270, %v786, 0
        %v1165 = vsel %vm270, %v787, 0
        %v1167 = vsel %vm270, %v788, 0
        %v1169 = vsel %vm270, %v789, 0
        %v1171 = vsel %vm270, %v790, 0
        %v1173 = vsel %vm270, %v791, 0
        %v1175 = vsel %vm270, %v792, 0
        %v1177 = vsel %vm270, %v793, 0
        %v1179 = vsel %vm270, %v794, 0
        %v1181 = vsel %vm270, %v795, 0
        %v1183 = vsel %vm270, %v796, 0
        %v1185 = vsel %vm270, %v797, 0
        %v1187 = vsel %vm270, %v798, 0
        %v1189 = vsel %vm270, %v799, 0
        %1191 = vmatpush.msra.mxu0 0.0
        %1192 = vmatpush.msra.mxu0 0.0
        %1193 = vmatpush.msra.mxu0 0.0
        %1194 = vmatpush.msra.mxu0 0.0
        %1195 = vmatpush.msra.mxu0 0.0
        %1196 = vmatpush.msra.mxu0 0.0
        %1197 = vmatpush.msra.mxu0 0.0
        %1198 = vmatpush.msra.mxu0 0.0
        %1199 = vmatpush.msra.mxu0 0.0
        %1200 = vmatpush.msra.mxu0 0.0
        %1201 = vmatpush.msra.mxu0 0.0
        %1202 = vmatpush.msra.mxu0 0.0
        %1203 = vmatpush.msra.mxu0 0.0
        %1204 = vmatpush.msra.mxu0 0.0
        %1205 = vmatpush.msra.mxu0 %v898
        %1206 = vmatpush.msra.mxu0 %v897
        %1207 = vmatmul.f32.gmra.mxu0 %v1159
        %v1208 = vpop.f32.mrf.mxu0
        %v1209 = vadd.f32 %v1064, %v1208
        %1210 = vmatmul.f32.gmra.mxu0 %v1161
        %v1211 = vpop.f32.mrf.mxu0
        %v1212 = vadd.f32 %v1067, %v1211
        %1213 = vmatmul.f32.gmra.mxu0 %v1163
        %v1214 = vpop.f32.mrf.mxu0
        %v1215 = vadd.f32 %v1070, %v1214
        %1216 = vmatmul.f32.gmra.mxu0 %v1165
        %v1217 = vpop.f32.mrf.mxu0
        %v1218 = vadd.f32 %v1073, %v1217
        %1219 = vmatmul.f32.gmra.mxu0 %v1167
        %v1220 = vpop.f32.mrf.mxu0
        %v1221 = vadd.f32 %v1076, %v1220
        %1222 = vmatmul.f32.gmra.mxu0 %v1169
        %v1223 = vpop.f32.mrf.mxu0
        %v1224 = vadd.f32 %v1079, %v1223
        %1225 = vmatmul.f32.gmra.mxu0 %v1171
        %v1226 = vpop.f32.mrf.mxu0
        %v1227 = vadd.f32 %v1082, %v1226
        %1228 = vmatmul.f32.gmra.mxu0 %v1173
        %v1229 = vpop.f32.mrf.mxu0
        %v1230 = vadd.f32 %v1085, %v1229
        %1231 = vmatmul.f32.gmra.mxu0 %v1175
        %v1232 = vpop.f32.mrf.mxu0
        %v1233 = vadd.f32 %v1088, %v1232
        %1234 = vmatmul.f32.gmra.mxu0 %v1177
        %v1235 = vpop.f32.mrf.mxu0
        %v1236 = vadd.f32 %v1091, %v1235
        %1237 = vmatmul.f32.gmra.mxu0 %v1179
        %v1238 = vpop.f32.mrf.mxu0
        %v1239 = vadd.f32 %v1094, %v1238
        %1240 = vmatmul.f32.gmra.mxu0 %v1181
        %v1241 = vpop.f32.mrf.mxu0
        %v1242 = vadd.f32 %v1097, %v1241
        %1243 = vmatmul.f32.gmra.mxu0 %v1183
        %v1244 = vpop.f32.mrf.mxu0
        %v1245 = vadd.f32 %v1100, %v1244
        %1246 = vmatmul.f32.gmra.mxu0 %v1185
        %v1247 = vpop.f32.mrf.mxu0
        %v1248 = vadd.f32 %v1103, %v1247
        %1249 = vmatmul.f32.gmra.mxu0 %v1187
        %v1250 = vpop.f32.mrf.mxu0
        %v1251 = vadd.f32 %v1106, %v1250
        %1252 = vmatmul.f32.gmra.mxu0 %v1189
        %v1253 = vpop.f32.mrf.mxu0
        %v1254 = vadd.f32 %v1109, %v1253
        %1255 = vmatmul.f32.gmra.mxu0 %v982
        %v1256 = vpop.f32.mrf.mxu0
        %v1257 = vadd.f32 %v1112, %v1256
        %1258 = vmatmul.f32.gmra.mxu0 %v984
        %v1259 = vpop.f32.mrf.mxu0
        %v1260 = vadd.f32 %v1115, %v1259
        %1261 = vmatmul.f32.gmra.mxu0 %v986
        %v1262 = vpop.f32.mrf.mxu0
        %v1263 = vadd.f32 %v1118, %v1262
        %1264 = vmatmul.f32.gmra.mxu0 %v988
        %v1265 = vpop.f32.mrf.mxu0
        %v1266 = vadd.f32 %v1121, %v1265
        %1267 = vmatmul.f32.gmra.mxu0 %v990
        %v1268 = vpop.f32.mrf.mxu0
        %v1269 = vadd.f32 %v1124, %v1268
        %1270 = vmatmul.f32.gmra.mxu0 %v992
        %v1271 = vpop.f32.mrf.mxu0
        %v1272 = vadd.f32 %v1127, %v1271
        %1273 = vmatmul.f32.gmra.mxu0 %v994
        %v1274 = vpop.f32.mrf.mxu0
        %v1275 = vadd.f32 %v1130, %v1274
        %1276 = vmatmul.f32.gmra.mxu0 %v996
        %v1277 = vpop.f32.mrf.mxu0
        %v1278 = vadd.f32 %v1133, %v1277
        %1279 = vmatmul.f32.gmra.mxu0 %v998
        %v1280 = vpop.f32.mrf.mxu0
        %v1281 = vadd.f32 %v1136, %v1280
        %1282 = vmatmul.f32.gmra.mxu0 %v1000
        %v1283 = vpop.f32.mrf.mxu0
        %v1284 = vadd.f32 %v1139, %v1283
        %1285 = vmatmul.f32.gmra.mxu0 %v1002
        %v1286 = vpop.f32.mrf.mxu0
        %v1287 = vadd.f32 %v1142, %v1286
        %1288 = vmatmul.f32.gmra.mxu0 %v1004
        %v1289 = vpop.f32.mrf.mxu0
        %v1290 = vadd.f32 %v1145, %v1289
        %1291 = vmatmul.f32.gmra.mxu0 %v1006
        %v1292 = vpop.f32.mrf.mxu0
        %v1293 = vadd.f32 %v1148, %v1292
        %1294 = vmatmul.f32.gmra.mxu0 %v1008
        %v1295 = vpop.f32.mrf.mxu0
        %v1296 = vadd.f32 %v1151, %v1295
        %1297 = vmatmul.f32.gmra.mxu0 %v1010
        %v1298 = vpop.f32.mrf.mxu0
        %v1299 = vadd.f32 %v1154, %v1298
        %1300 = vmatmul.f32.gmra.mxu0 %v1012
        %v1301 = vpop.f32.mrf.mxu0
        %v1302 = vadd.f32 %v1157, %v1301
        %1303 = vdwg.mxu0
        %1320 = vrot.lane.b32.xlu0 %v801, 112
        %v1321 = vpop.permute.xlu0 %1320
        %1322 = vrot.lane.b32.xlu0 %v802, 112
        %v1323 = vpop.permute.xlu0 %1322
        %1324 = vrot.lane.b32.xlu0 %v803, 112
        %v1325 = vpop.permute.xlu0 %1324
        %1326 = vrot.lane.b32.xlu0 %v804, 112
        %v1327 = vpop.permute.xlu0 %1326
        %1328 = vrot.lane.b32.xlu0 %v805, 112
        %v1329 = vpop.permute.xlu0 %1328
        %1330 = vrot.lane.b32.xlu0 %v806, 112
        %v1331 = vpop.permute.xlu0 %1330
        %1332 = vrot.lane.b32.xlu0 %v807, 112
        %v1333 = vpop.permute.xlu0 %1332
        %1334 = vrot.lane.b32.xlu0 %v808, 112
        %v1335 = vpop.permute.xlu0 %1334
        %1336 = vrot.lane.b32.xlu0 %v809, 112
        %v1337 = vpop.permute.xlu0 %1336
        %1338 = vrot.lane.b32.xlu0 %v810, 112
        %v1339 = vpop.permute.xlu0 %1338
        %1340 = vrot.lane.b32.xlu0 %v811, 112
        %v1341 = vpop.permute.xlu0 %1340
        %1342 = vrot.lane.b32.xlu0 %v812, 112
        %v1343 = vpop.permute.xlu0 %1342
        %1344 = vrot.lane.b32.xlu0 %v813, 112
        %v1345 = vpop.permute.xlu0 %1344
        %1346 = vrot.lane.b32.xlu0 %v814, 112
        %v1347 = vpop.permute.xlu0 %1346
        %1348 = vrot.lane.b32.xlu0 %v815, 112
        %v1349 = vpop.permute.xlu0 %1348
        %1350 = vrot.lane.b32.xlu0 %v816, 112
        %v1351 = vpop.permute.xlu0 %1350
        %s1352 = scalar_lea.vmem [#allocation9], 32
        %v1353 = vld [vmem:[%s1352] sm:$0xff]
        %v1354 = vld [vmem:[%s1352 + $0x8] sm:$0xff]
        %v1355 = vsel %vm270, %v801, 0
        %v1357 = vsel %vm270, %v802, 0
        %v1359 = vsel %vm270, %v803, 0
        %v1361 = vsel %vm270, %v804, 0
        %v1363 = vsel %vm270, %v805, 0
        %v1365 = vsel %vm270, %v806, 0
        %v1367 = vsel %vm270, %v807, 0
        %v1369 = vsel %vm270, %v808, 0
        %v1371 = vsel %vm270, %v809, 0
        %v1373 = vsel %vm270, %v810, 0
        %v1375 = vsel %vm270, %v811, 0
        %v1377 = vsel %vm270, %v812, 0
        %v1379 = vsel %vm270, %v813, 0
        %v1381 = vsel %vm270, %v814, 0
        %v1383 = vsel %vm270, %v815, 0
        %v1385 = vsel %vm270, %v816, 0
        %v1387 = vsel %vm270, %v1321, 0
        %v1389 = vsel %vm270, %v1323, 0
        %v1391 = vsel %vm270, %v1325, 0
        %v1393 = vsel %vm270, %v1327, 0
        %v1395 = vsel %vm270, %v1329, 0
        %v1397 = vsel %vm270, %v1331, 0
        %v1399 = vsel %vm270, %v1333, 0
        %v1401 = vsel %vm270, %v1335, 0
        %v1403 = vsel %vm270, %v1337, 0
        %v1405 = vsel %vm270, %v1339, 0
        %v1407 = vsel %vm270, %v1341, 0
        %v1409 = vsel %vm270, %v1343, 0
        %v1411 = vsel %vm270, %v1345, 0
        %v1413 = vsel %vm270, %v1347, 0
        %v1415 = vsel %vm270, %v1349, 0
        %v1417 = vsel %vm270, %v1351, 0
        %1419 = vmatpush.msra.mxu0 0.0
        %1420 = vmatpush.msra.mxu0 0.0
        %1421 = vmatpush.msra.mxu0 0.0
        %1422 = vmatpush.msra.mxu0 0.0
        %1423 = vmatpush.msra.mxu0 0.0
        %1424 = vmatpush.msra.mxu0 0.0
        %1425 = vmatpush.msra.mxu0 0.0
        %1426 = vmatpush.msra.mxu0 0.0
        %1427 = vmatpush.msra.mxu0 0.0
        %1428 = vmatpush.msra.mxu0 0.0
        %1429 = vmatpush.msra.mxu0 0.0
        %1430 = vmatpush.msra.mxu0 0.0
        %1431 = vmatpush.msra.mxu0 0.0
        %1432 = vmatpush.msra.mxu0 0.0
        %1433 = vmatpush.msra.mxu0 %v1354
        %1434 = vmatpush.msra.mxu0 %v1353
        %1435 = vmatmul.f32.gmra.mxu0 %v1355
        %v1436 = vpop.f32.mrf.mxu0
        %v1437 = vadd.f32 0.0, %v1436
        %1438 = vmatmul.f32.gmra.mxu0 %v1357
        %v1439 = vpop.f32.mrf.mxu0
        %v1440 = vadd.f32 0.0, %v1439
        %1441 = vmatmul.f32.gmra.mxu0 %v1359
        %v1442 = vpop.f32.mrf.mxu0
        %v1443 = vadd.f32 0.0, %v1442
        %1444 = vmatmul.f32.gmra.mxu0 %v1361
        %v1445 = vpop.f32.mrf.mxu0
        %v1446 = vadd.f32 0.0, %v1445
        %1447 = vmatmul.f32.gmra.mxu0 %v1363
        %v1448 = vpop.f32.mrf.mxu0
        %v1449 = vadd.f32 0.0, %v1448
        %1450 = vmatmul.f32.gmra.mxu0 %v1365
        %v1451 = vpop.f32.mrf.mxu0
        %v1452 = vadd.f32 0.0, %v1451
        %1453 = vmatmul.f32.gmra.mxu0 %v1367
        %v1454 = vpop.f32.mrf.mxu0
        %v1455 = vadd.f32 0.0, %v1454
        %1456 = vmatmul.f32.gmra.mxu0 %v1369
        %v1457 = vpop.f32.mrf.mxu0
        %v1458 = vadd.f32 0.0, %v1457
        %1459 = vmatmul.f32.gmra.mxu0 %v1371
        %v1460 = vpop.f32.mrf.mxu0
        %v1461 = vadd.f32 0.0, %v1460
        %1462 = vmatmul.f32.gmra.mxu0 %v1373
        %v1463 = vpop.f32.mrf.mxu0
        %v1464 = vadd.f32 0.0, %v1463
        %1465 = vmatmul.f32.gmra.mxu0 %v1375
        %v1466 = vpop.f32.mrf.mxu0
        %v1467 = vadd.f32 0.0, %v1466
        %1468 = vmatmul.f32.gmra.mxu0 %v1377
        %v1469 = vpop.f32.mrf.mxu0
        %v1470 = vadd.f32 0.0, %v1469
        %1471 = vmatmul.f32.gmra.mxu0 %v1379
        %v1472 = vpop.f32.mrf.mxu0
        %v1473 = vadd.f32 0.0, %v1472
        %1474 = vmatmul.f32.gmra.mxu0 %v1381
        %v1475 = vpop.f32.mrf.mxu0
        %v1476 = vadd.f32 0.0, %v1475
        %1477 = vmatmul.f32.gmra.mxu0 %v1383
        %v1478 = vpop.f32.mrf.mxu0
        %v1479 = vadd.f32 0.0, %v1478
        %1480 = vmatmul.f32.gmra.mxu0 %v1385
        %v1481 = vpop.f32.mrf.mxu0
        %v1482 = vadd.f32 0.0, %v1481
        %1483 = vmatmul.f32.gmra.mxu0 %v1387
        %v1484 = vpop.f32.mrf.mxu0
        %v1485 = vadd.f32 0.0, %v1484
        %1486 = vmatmul.f32.gmra.mxu0 %v1389
        %v1487 = vpop.f32.mrf.mxu0
        %v1488 = vadd.f32 0.0, %v1487
        %1489 = vmatmul.f32.gmra.mxu0 %v1391
        %v1490 = vpop.f32.mrf.mxu0
        %v1491 = vadd.f32 0.0, %v1490
        %1492 = vmatmul.f32.gmra.mxu0 %v1393
        %v1493 = vpop.f32.mrf.mxu0
        %v1494 = vadd.f32 0.0, %v1493
        %1495 = vmatmul.f32.gmra.mxu0 %v1395
        %v1496 = vpop.f32.mrf.mxu0
        %v1497 = vadd.f32 0.0, %v1496
        %1498 = vmatmul.f32.gmra.mxu0 %v1397
        %v1499 = vpop.f32.mrf.mxu0
        %v1500 = vadd.f32 0.0, %v1499
        %1501 = vmatmul.f32.gmra.mxu0 %v1399
        %v1502 = vpop.f32.mrf.mxu0
        %v1503 = vadd.f32 0.0, %v1502
        %1504 = vmatmul.f32.gmra.mxu0 %v1401
        %v1505 = vpop.f32.mrf.mxu0
        %v1506 = vadd.f32 0.0, %v1505
        %1507 = vmatmul.f32.gmra.mxu0 %v1403
        %v1508 = vpop.f32.mrf.mxu0
        %v1509 = vadd.f32 0.0, %v1508
        %1510 = vmatmul.f32.gmra.mxu0 %v1405
        %v1511 = vpop.f32.mrf.mxu0
        %v1512 = vadd.f32 0.0, %v1511
        %1513 = vmatmul.f32.gmra.mxu0 %v1407
        %v1514 = vpop.f32.mrf.mxu0
        %v1515 = vadd.f32 0.0, %v1514
        %1516 = vmatmul.f32.gmra.mxu0 %v1409
        %v1517 = vpop.f32.mrf.mxu0
        %v1518 = vadd.f32 0.0, %v1517
        %1519 = vmatmul.f32.gmra.mxu0 %v1411
        %v1520 = vpop.f32.mrf.mxu0
        %v1521 = vadd.f32 0.0, %v1520
        %1522 = vmatmul.f32.gmra.mxu0 %v1413
        %v1523 = vpop.f32.mrf.mxu0
        %v1524 = vadd.f32 0.0, %v1523
        %1525 = vmatmul.f32.gmra.mxu0 %v1415
        %v1526 = vpop.f32.mrf.mxu0
        %v1527 = vadd.f32 0.0, %v1526
        %1528 = vmatmul.f32.gmra.mxu0 %v1417
        %v1529 = vpop.f32.mrf.mxu0
        %v1530 = vadd.f32 0.0, %v1529
        %1531 = vdwg.mxu0
        %v1532 = vadd.f32 %v1209, %v1437
        %v1533 = vadd.f32 %v1212, %v1440
        %v1534 = vadd.f32 %v1215, %v1443
        %v1535 = vadd.f32 %v1218, %v1446
        %v1536 = vadd.f32 %v1221, %v1449
        %v1537 = vadd.f32 %v1224, %v1452
        %v1538 = vadd.f32 %v1227, %v1455
        %v1539 = vadd.f32 %v1230, %v1458
        %v1540 = vadd.f32 %v1233, %v1461
        %v1541 = vadd.f32 %v1236, %v1464
        %v1542 = vadd.f32 %v1239, %v1467
        %v1543 = vadd.f32 %v1242, %v1470
        %v1544 = vadd.f32 %v1245, %v1473
        %v1545 = vadd.f32 %v1248, %v1476
        %v1546 = vadd.f32 %v1251, %v1479
        %v1547 = vadd.f32 %v1254, %v1482
        %v1548 = vadd.f32 %v1257, %v1485
        %v1549 = vadd.f32 %v1260, %v1488
        %v1550 = vadd.f32 %v1263, %v1491
        %v1551 = vadd.f32 %v1266, %v1494
        %v1552 = vadd.f32 %v1269, %v1497
        %v1553 = vadd.f32 %v1272, %v1500
        %v1554 = vadd.f32 %v1275, %v1503
        %v1555 = vadd.f32 %v1278, %v1506
        %v1556 = vadd.f32 %v1281, %v1509
        %v1557 = vadd.f32 %v1284, %v1512
        %v1558 = vadd.f32 %v1287, %v1515
        %v1559 = vadd.f32 %v1290, %v1518
        %v1560 = vadd.f32 %v1293, %v1521
        %v1561 = vadd.f32 %v1296, %v1524
        %v1562 = vadd.f32 %v1299, %v1527
        %v1563 = vadd.f32 %v1302, %v1530
        %1580 = vrot.lane.b32.xlu0 %v833, 16
        %v1581 = vpop.permute.xlu0 %1580
        %1582 = vrot.lane.b32.xlu0 %v834, 16
        %v1583 = vpop.permute.xlu0 %1582
        %1584 = vrot.lane.b32.xlu0 %v835, 16
        %v1585 = vpop.permute.xlu0 %1584
        %1586 = vrot.lane.b32.xlu0 %v836, 16
        %v1587 = vpop.permute.xlu0 %1586
        %1588 = vrot.lane.b32.xlu0 %v837, 16
        %v1589 = vpop.permute.xlu0 %1588
        %1590 = vrot.lane.b32.xlu0 %v838, 16
        %v1591 = vpop.permute.xlu0 %1590
        %1592 = vrot.lane.b32.xlu0 %v839, 16
        %v1593 = vpop.permute.xlu0 %1592
        %1594 = vrot.lane.b32.xlu0 %v840, 16
        %v1595 = vpop.permute.xlu0 %1594
        %1596 = vrot.lane.b32.xlu0 %v841, 16
        %v1597 = vpop.permute.xlu0 %1596
        %1598 = vrot.lane.b32.xlu0 %v842, 16
        %v1599 = vpop.permute.xlu0 %1598
        %1600 = vrot.lane.b32.xlu0 %v843, 16
        %v1601 = vpop.permute.xlu0 %1600
        %1602 = vrot.lane.b32.xlu0 %v844, 16
        %v1603 = vpop.permute.xlu0 %1602
        %1604 = vrot.lane.b32.xlu0 %v845, 16
        %v1605 = vpop.permute.xlu0 %1604
        %1606 = vrot.lane.b32.xlu0 %v846, 16
        %v1607 = vpop.permute.xlu0 %1606
        %1608 = vrot.lane.b32.xlu0 %v847, 16
        %v1609 = vpop.permute.xlu0 %1608
        %1610 = vrot.lane.b32.xlu0 %v848, 16
        %v1611 = vpop.permute.xlu0 %1610
        %s1612 = scalar_lea.vmem [#allocation9], 48
        %v1613 = vld [vmem:[%s1612] sm:$0xff]
        %v1614 = vld [vmem:[%s1612 + $0x8] sm:$0xff]
        %1615 = vrot.lane.b32.xlu0 %v1581, 112
        %v1616 = vpop.permute.xlu0 %1615
        %1617 = vrot.lane.b32.xlu0 %v1583, 112
        %v1618 = vpop.permute.xlu0 %1617
        %1619 = vrot.lane.b32.xlu0 %v1585, 112
        %v1620 = vpop.permute.xlu0 %1619
        %1621 = vrot.lane.b32.xlu0 %v1587, 112
        %v1622 = vpop.permute.xlu0 %1621
        %1623 = vrot.lane.b32.xlu0 %v1589, 112
        %v1624 = vpop.permute.xlu0 %1623
        %1625 = vrot.lane.b32.xlu0 %v1591, 112
        %v1626 = vpop.permute.xlu0 %1625
        %1627 = vrot.lane.b32.xlu0 %v1593, 112
        %v1628 = vpop.permute.xlu0 %1627
        %1629 = vrot.lane.b32.xlu0 %v1595, 112
        %v1630 = vpop.permute.xlu0 %1629
        %1631 = vrot.lane.b32.xlu0 %v1597, 112
        %v1632 = vpop.permute.xlu0 %1631
        %1633 = vrot.lane.b32.xlu0 %v1599, 112
        %v1634 = vpop.permute.xlu0 %1633
        %1635 = vrot.lane.b32.xlu0 %v1601, 112
        %v1636 = vpop.permute.xlu0 %1635
        %1637 = vrot.lane.b32.xlu0 %v1603, 112
        %v1638 = vpop.permute.xlu0 %1637
        %1639 = vrot.lane.b32.xlu0 %v1605, 112
        %v1640 = vpop.permute.xlu0 %1639
        %1641 = vrot.lane.b32.xlu0 %v1607, 112
        %v1642 = vpop.permute.xlu0 %1641
        %1643 = vrot.lane.b32.xlu0 %v1609, 112
        %v1644 = vpop.permute.xlu0 %1643
        %1645 = vrot.lane.b32.xlu0 %v1611, 112
        %v1646 = vpop.permute.xlu0 %1645
        %v1647 = vsel %vm270, %v1616, 0
        %v1649 = vsel %vm270, %v1618, 0
        %v1651 = vsel %vm270, %v1620, 0
        %v1653 = vsel %vm270, %v1622, 0
        %v1655 = vsel %vm270, %v1624, 0
        %v1657 = vsel %vm270, %v1626, 0
        %v1659 = vsel %vm270, %v1628, 0
        %v1661 = vsel %vm270, %v1630, 0
        %v1663 = vsel %vm270, %v1632, 0
        %v1665 = vsel %vm270, %v1634, 0
        %v1667 = vsel %vm270, %v1636, 0
        %v1669 = vsel %vm270, %v1638, 0
        %v1671 = vsel %vm270, %v1640, 0
        %v1673 = vsel %vm270, %v1642, 0
        %v1675 = vsel %vm270, %v1644, 0
        %v1677 = vsel %vm270, %v1646, 0
        %1679 = vmatpush.msra.mxu0 0.0
        %1680 = vmatpush.msra.mxu0 0.0
        %1681 = vmatpush.msra.mxu0 0.0
        %1682 = vmatpush.msra.mxu0 0.0
        %1683 = vmatpush.msra.mxu0 0.0
        %1684 = vmatpush.msra.mxu0 0.0
        %1685 = vmatpush.msra.mxu0 0.0
        %1686 = vmatpush.msra.mxu0 0.0
        %1687 = vmatpush.msra.mxu0 0.0
        %1688 = vmatpush.msra.mxu0 0.0
        %1689 = vmatpush.msra.mxu0 0.0
        %1690 = vmatpush.msra.mxu0 0.0
        %1691 = vmatpush.msra.mxu0 0.0
        %1692 = vmatpush.msra.mxu0 0.0
        %1693 = vmatpush.msra.mxu0 %v1614
        %1694 = vmatpush.msra.mxu0 %v1613
        %1695 = vmatmul.f32.gmra.mxu0 %v1387
        %v1696 = vpop.f32.mrf.mxu0
        %v1697 = vadd.f32 0.0, %v1696
        %1698 = vmatmul.f32.gmra.mxu0 %v1389
        %v1699 = vpop.f32.mrf.mxu0
        %v1700 = vadd.f32 0.0, %v1699
        %1701 = vmatmul.f32.gmra.mxu0 %v1391
        %v1702 = vpop.f32.mrf.mxu0
        %v1703 = vadd.f32 0.0, %v1702
        %1704 = vmatmul.f32.gmra.mxu0 %v1393
        %v1705 = vpop.f32.mrf.mxu0
        %v1706 = vadd.f32 0.0, %v1705
        %1707 = vmatmul.f32.gmra.mxu0 %v1395
        %v1708 = vpop.f32.mrf.mxu0
        %v1709 = vadd.f32 0.0, %v1708
        %1710 = vmatmul.f32.gmra.mxu0 %v1397
        %v1711 = vpop.f32.mrf.mxu0
        %v1712 = vadd.f32 0.0, %v1711
        %1713 = vmatmul.f32.gmra.mxu0 %v1399
        %v1714 = vpop.f32.mrf.mxu0
        %v1715 = vadd.f32 0.0, %v1714
        %1716 = vmatmul.f32.gmra.mxu0 %v1401
        %v1717 = vpop.f32.mrf.mxu0
        %v1718 = vadd.f32 0.0, %v1717
        %1719 = vmatmul.f32.gmra.mxu0 %v1403
        %v1720 = vpop.f32.mrf.mxu0
        %v1721 = vadd.f32 0.0, %v1720
        %1722 = vmatmul.f32.gmra.mxu0 %v1405
        %v1723 = vpop.f32.mrf.mxu0
        %v1724 = vadd.f32 0.0, %v1723
        %1725 = vmatmul.f32.gmra.mxu0 %v1407
        %v1726 = vpop.f32.mrf.mxu0
        %v1727 = vadd.f32 0.0, %v1726
        %1728 = vmatmul.f32.gmra.mxu0 %v1409
        %v1729 = vpop.f32.mrf.mxu0
        %v1730 = vadd.f32 0.0, %v1729
        %1731 = vmatmul.f32.gmra.mxu0 %v1411
        %v1732 = vpop.f32.mrf.mxu0
        %v1733 = vadd.f32 0.0, %v1732
        %1734 = vmatmul.f32.gmra.mxu0 %v1413
        %v1735 = vpop.f32.mrf.mxu0
        %v1736 = vadd.f32 0.0, %v1735
        %1737 = vmatmul.f32.gmra.mxu0 %v1415
        %v1738 = vpop.f32.mrf.mxu0
        %v1739 = vadd.f32 0.0, %v1738
        %1740 = vmatmul.f32.gmra.mxu0 %v1417
        %v1741 = vpop.f32.mrf.mxu0
        %v1742 = vadd.f32 0.0, %v1741
        %1743 = vmatmul.f32.gmra.mxu0 %v1647
        %v1744 = vpop.f32.mrf.mxu0
        %v1745 = vadd.f32 0.0, %v1744
        %1746 = vmatmul.f32.gmra.mxu0 %v1649
        %v1747 = vpop.f32.mrf.mxu0
        %v1748 = vadd.f32 0.0, %v1747
        %1749 = vmatmul.f32.gmra.mxu0 %v1651
        %v1750 = vpop.f32.mrf.mxu0
        %v1751 = vadd.f32 0.0, %v1750
        %1752 = vmatmul.f32.gmra.mxu0 %v1653
        %v1753 = vpop.f32.mrf.mxu0
        %v1754 = vadd.f32 0.0, %v1753
        %1755 = vmatmul.f32.gmra.mxu0 %v1655
        %v1756 = vpop.f32.mrf.mxu0
        %v1757 = vadd.f32 0.0, %v1756
        %1758 = vmatmul.f32.gmra.mxu0 %v1657
        %v1759 = vpop.f32.mrf.mxu0
        %v1760 = vadd.f32 0.0, %v1759
        %1761 = vmatmul.f32.gmra.mxu0 %v1659
        %v1762 = vpop.f32.mrf.mxu0
        %v1763 = vadd.f32 0.0, %v1762
        %1764 = vmatmul.f32.gmra.mxu0 %v1661
        %v1765 = vpop.f32.mrf.mxu0
        %v1766 = vadd.f32 0.0, %v1765
        %1767 = vmatmul.f32.gmra.mxu0 %v1663
        %v1768 = vpop.f32.mrf.mxu0
        %v1769 = vadd.f32 0.0, %v1768
        %1770 = vmatmul.f32.gmra.mxu0 %v1665
        %v1771 = vpop.f32.mrf.mxu0
        %v1772 = vadd.f32 0.0, %v1771
        %1773 = vmatmul.f32.gmra.mxu0 %v1667
        %v1774 = vpop.f32.mrf.mxu0
        %v1775 = vadd.f32 0.0, %v1774
        %1776 = vmatmul.f32.gmra.mxu0 %v1669
        %v1777 = vpop.f32.mrf.mxu0
        %v1778 = vadd.f32 0.0, %v1777
        %1779 = vmatmul.f32.gmra.mxu0 %v1671
        %v1780 = vpop.f32.mrf.mxu0
        %v1781 = vadd.f32 0.0, %v1780
        %1782 = vmatmul.f32.gmra.mxu0 %v1673
        %v1783 = vpop.f32.mrf.mxu0
        %v1784 = vadd.f32 0.0, %v1783
        %1785 = vmatmul.f32.gmra.mxu0 %v1675
        %v1786 = vpop.f32.mrf.mxu0
        %v1787 = vadd.f32 0.0, %v1786
        %1788 = vmatmul.f32.gmra.mxu0 %v1677
        %v1789 = vpop.f32.mrf.mxu0
        %v1790 = vadd.f32 0.0, %v1789
        %1791 = vdwg.mxu0
        %v1792 = vadd.f32 %v1532, %v1697
        %v1793 = vadd.f32 %v1533, %v1700
        %v1794 = vadd.f32 %v1534, %v1703
        %v1795 = vadd.f32 %v1535, %v1706
        %v1796 = vadd.f32 %v1536, %v1709
        %v1797 = vadd.f32 %v1537, %v1712
        %v1798 = vadd.f32 %v1538, %v1715
        %v1799 = vadd.f32 %v1539, %v1718
        %v1800 = vadd.f32 %v1540, %v1721
        %v1801 = vadd.f32 %v1541, %v1724
        %v1802 = vadd.f32 %v1542, %v1727
        %v1803 = vadd.f32 %v1543, %v1730
        %v1804 = vadd.f32 %v1544, %v1733
        %v1805 = vadd.f32 %v1545, %v1736
        %v1806 = vadd.f32 %v1546, %v1739
        %v1807 = vadd.f32 %v1547, %v1742
        %v1808 = vadd.f32 %v1548, %v1745
        %v1809 = vadd.f32 %v1549, %v1748
        %v1810 = vadd.f32 %v1550, %v1751
        %v1811 = vadd.f32 %v1551, %v1754
        %v1812 = vadd.f32 %v1552, %v1757
        %v1813 = vadd.f32 %v1553, %v1760
        %v1814 = vadd.f32 %v1554, %v1763
        %v1815 = vadd.f32 %v1555, %v1766
        %v1816 = vadd.f32 %v1556, %v1769
        %v1817 = vadd.f32 %v1557, %v1772
        %v1818 = vadd.f32 %v1558, %v1775
        %v1819 = vadd.f32 %v1559, %v1778
        %v1820 = vadd.f32 %v1560, %v1781
        %v1821 = vadd.f32 %v1561, %v1784
        %v1822 = vadd.f32 %v1562, %v1787
        %v1823 = vadd.f32 %v1563, %v1790
        %v1824 = vmax.f32 %v1792, 0.0
        %v1825 = vmax.f32 %v1793, 0.0
        %v1826 = vmax.f32 %v1794, 0.0
        %v1827 = vmax.f32 %v1795, 0.0
        %v1828 = vmax.f32 %v1796, 0.0
        %v1829 = vmax.f32 %v1797, 0.0
        %v1830 = vmax.f32 %v1798, 0.0
        %v1831 = vmax.f32 %v1799, 0.0
        %v1832 = vmax.f32 %v1800, 0.0
        %v1833 = vmax.f32 %v1801, 0.0
        %v1834 = vmax.f32 %v1802, 0.0
        %v1835 = vmax.f32 %v1803, 0.0
        %v1836 = vmax.f32 %v1804, 0.0
        %v1837 = vmax.f32 %v1805, 0.0
        %v1838 = vmax.f32 %v1806, 0.0
        %v1839 = vmax.f32 %v1807, 0.0
        %v1840 = vmax.f32 %v1808, 0.0
        %v1841 = vmax.f32 %v1809, 0.0
        %v1842 = vmax.f32 %v1810, 0.0
        %v1843 = vmax.f32 %v1811, 0.0
        %v1844 = vmax.f32 %v1812, 0.0
        %v1845 = vmax.f32 %v1813, 0.0
        %v1846 = vmax.f32 %v1814, 0.0
        %v1847 = vmax.f32 %v1815, 0.0
        %v1848 = vmax.f32 %v1816, 0.0
        %v1849 = vmax.f32 %v1817, 0.0
        %v1850 = vmax.f32 %v1818, 0.0
        %v1851 = vmax.f32 %v1819, 0.0
        %v1852 = vmax.f32 %v1820, 0.0
        %v1853 = vmax.f32 %v1821, 0.0
        %v1854 = vmax.f32 %v1822, 0.0
        %v1855 = vmax.f32 %v1823, 0.0
        %1872 = vrot.lane.b32.xlu0 %v1824, 112
        %v1873 = vpop.permute.xlu0 %1872
        %1874 = vrot.lane.b32.xlu0 %v1825, 112
        %v1875 = vpop.permute.xlu0 %1874
        %1876 = vrot.lane.b32.xlu0 %v1826, 112
        %v1877 = vpop.permute.xlu0 %1876
        %1878 = vrot.lane.b32.xlu0 %v1827, 112
        %v1879 = vpop.permute.xlu0 %1878
        %1880 = vrot.lane.b32.xlu0 %v1828, 112
        %v1881 = vpop.permute.xlu0 %1880
        %1882 = vrot.lane.b32.xlu0 %v1829, 112
        %v1883 = vpop.permute.xlu0 %1882
        %1884 = vrot.lane.b32.xlu0 %v1830, 112
        %v1885 = vpop.permute.xlu0 %1884
        %1886 = vrot.lane.b32.xlu0 %v1831, 112
        %v1887 = vpop.permute.xlu0 %1886
        %1888 = vrot.lane.b32.xlu0 %v1832, 112
        %v1889 = vpop.permute.xlu0 %1888
        %1890 = vrot.lane.b32.xlu0 %v1833, 112
        %v1891 = vpop.permute.xlu0 %1890
        %1892 = vrot.lane.b32.xlu0 %v1834, 112
        %v1893 = vpop.permute.xlu0 %1892
        %1894 = vrot.lane.b32.xlu0 %v1835, 112
        %v1895 = vpop.permute.xlu0 %1894
        %1896 = vrot.lane.b32.xlu0 %v1836, 112
        %v1897 = vpop.permute.xlu0 %1896
        %1898 = vrot.lane.b32.xlu0 %v1837, 112
        %v1899 = vpop.permute.xlu0 %1898
        %1900 = vrot.lane.b32.xlu0 %v1838, 112
        %v1901 = vpop.permute.xlu0 %1900
        %1902 = vrot.lane.b32.xlu0 %v1839, 112
        %v1903 = vpop.permute.xlu0 %1902
        %1936 = vrot.lane.b32.xlu0 %v1840, 112
        %v1937 = vpop.permute.xlu0 %1936
        %1938 = vrot.lane.b32.xlu0 %v1841, 112
        %v1939 = vpop.permute.xlu0 %1938
        %1940 = vrot.lane.b32.xlu0 %v1842, 112
        %v1941 = vpop.permute.xlu0 %1940
        %1942 = vrot.lane.b32.xlu0 %v1843, 112
        %v1943 = vpop.permute.xlu0 %1942
        %1944 = vrot.lane.b32.xlu0 %v1844, 112
        %v1945 = vpop.permute.xlu0 %1944
        %1946 = vrot.lane.b32.xlu0 %v1845, 112
        %v1947 = vpop.permute.xlu0 %1946
        %1948 = vrot.lane.b32.xlu0 %v1846, 112
        %v1949 = vpop.permute.xlu0 %1948
        %1950 = vrot.lane.b32.xlu0 %v1847, 112
        %v1951 = vpop.permute.xlu0 %1950
        %1952 = vrot.lane.b32.xlu0 %v1848, 112
        %v1953 = vpop.permute.xlu0 %1952
        %1954 = vrot.lane.b32.xlu0 %v1849, 112
        %v1955 = vpop.permute.xlu0 %1954
        %1956 = vrot.lane.b32.xlu0 %v1850, 112
        %v1957 = vpop.permute.xlu0 %1956
        %1958 = vrot.lane.b32.xlu0 %v1851, 112
        %v1959 = vpop.permute.xlu0 %1958
        %1960 = vrot.lane.b32.xlu0 %v1852, 112
        %v1961 = vpop.permute.xlu0 %1960
        %1962 = vrot.lane.b32.xlu0 %v1853, 112
        %v1963 = vpop.permute.xlu0 %1962
        %1964 = vrot.lane.b32.xlu0 %v1854, 112
        %v1965 = vpop.permute.xlu0 %1964
        %1966 = vrot.lane.b32.xlu0 %v1855, 112
        %v1967 = vpop.permute.xlu0 %1966
        %1968 = vst.msk [vmem:[#allocation4] sm:$0xff] %vm270, %v1824
        %1969 = vst.msk [vmem:[#allocation4 + $0x10] sm:$0xff] %vm270, %v1873
        %1970 = vst.msk [vmem:[#allocation4 + $0x20] sm:$0xff] %vm270, %v1825
        %1971 = vst.msk [vmem:[#allocation4 + $0x30] sm:$0xff] %vm270, %v1875
        %1972 = vst.msk [vmem:[#allocation4 + $0x40] sm:$0xff] %vm270, %v1826
        %1973 = vst.msk [vmem:[#allocation4 + $0x50] sm:$0xff] %vm270, %v1877
        %1974 = vst.msk [vmem:[#allocation4 + $0x60] sm:$0xff] %vm270, %v1827
        %1975 = vst.msk [vmem:[#allocation4 + $0x70] sm:$0xff] %vm270, %v1879
        %1976 = vst.msk [vmem:[#allocation4 + $0x80] sm:$0xff] %vm270, %v1828
        %1977 = vst.msk [vmem:[#allocation4 + $0x90] sm:$0xff] %vm270, %v1881
        %1978 = vst.msk [vmem:[#allocation4 + $0xa0] sm:$0xff] %vm270, %v1829
        %1979 = vst.msk [vmem:[#allocation4 + $0xb0] sm:$0xff] %vm270, %v1883
        %1980 = vst.msk [vmem:[#allocation4 + $0xc0] sm:$0xff] %vm270, %v1830
        %1981 = vst.msk [vmem:[#allocation4 + $0xd0] sm:$0xff] %vm270, %v1885
        %1982 = vst.msk [vmem:[#allocation4 + $0xe0] sm:$0xff] %vm270, %v1831
        %1983 = vst.msk [vmem:[#allocation4 + $0xf0] sm:$0xff] %vm270, %v1887
        %1984 = vst.msk [vmem:[#allocation4 + $0x100] sm:$0xff] %vm270, %v1832
        %1985 = vst.msk [vmem:[#allocation4 + $0x110] sm:$0xff] %vm270, %v1889
        %1986 = vst.msk [vmem:[#allocation4 + $0x120] sm:$0xff] %vm270, %v1833
        %1987 = vst.msk [vmem:[#allocation4 + $0x130] sm:$0xff] %vm270, %v1891
        %1988 = vst.msk [vmem:[#allocation4 + $0x140] sm:$0xff] %vm270, %v1834
        %1989 = vst.msk [vmem:[#allocation4 + $0x150] sm:$0xff] %vm270, %v1893
        %1990 = vst.msk [vmem:[#allocation4 + $0x160] sm:$0xff] %vm270, %v1835
        %1991 = vst.msk [vmem:[#allocation4 + $0x170] sm:$0xff] %vm270, %v1895
        %1992 = vst.msk [vmem:[#allocation4 + $0x180] sm:$0xff] %vm270, %v1836
        %1993 = vst.msk [vmem:[#allocation4 + $0x190] sm:$0xff] %vm270, %v1897
        %1994 = vst.msk [vmem:[#allocation4 + $0x1a0] sm:$0xff] %vm270, %v1837
        %1995 = vst.msk [vmem:[#allocation4 + $0x1b0] sm:$0xff] %vm270, %v1899
        %1996 = vst.msk [vmem:[#allocation4 + $0x1c0] sm:$0xff] %vm270, %v1838
        %1997 = vst.msk [vmem:[#allocation4 + $0x1d0] sm:$0xff] %vm270, %v1901
        %1998 = vst.msk [vmem:[#allocation4 + $0x1e0] sm:$0xff] %vm270, %v1839
        %1999 = vst.msk [vmem:[#allocation4 + $0x1f0] sm:$0xff] %vm270, %v1903
        %2000 = vrot.lane.b32.xlu0 %v1840, 16
        %v2001 = vpop.permute.xlu0 %2000
        %2002 = vrot.lane.b32.xlu0 %v1937, 16
        %v2003 = vpop.permute.xlu0 %2002
        %2004 = vrot.lane.b32.xlu0 %v1841, 16
        %v2005 = vpop.permute.xlu0 %2004
        %2006 = vrot.lane.b32.xlu0 %v1939, 16
        %v2007 = vpop.permute.xlu0 %2006
        %2008 = vrot.lane.b32.xlu0 %v1842, 16
        %v2009 = vpop.permute.xlu0 %2008
        %2010 = vrot.lane.b32.xlu0 %v1941, 16
        %v2011 = vpop.permute.xlu0 %2010
        %2012 = vrot.lane.b32.xlu0 %v1843, 16
        %v2013 = vpop.permute.xlu0 %2012
        %2014 = vrot.lane.b32.xlu0 %v1943, 16
        %v2015 = vpop.permute.xlu0 %2014
        %2016 = vrot.lane.b32.xlu0 %v1844, 16
        %v2017 = vpop.permute.xlu0 %2016
        %2018 = vrot.lane.b32.xlu0 %v1945, 16
        %v2019 = vpop.permute.xlu0 %2018
        %2020 = vrot.lane.b32.xlu0 %v1845, 16
        %v2021 = vpop.permute.xlu0 %2020
        %2022 = vrot.lane.b32.xlu0 %v1947, 16
        %v2023 = vpop.permute.xlu0 %2022
        %2024 = vrot.lane.b32.xlu0 %v1846, 16
        %v2025 = vpop.permute.xlu0 %2024
        %2026 = vrot.lane.b32.xlu0 %v1949, 16
        %v2027 = vpop.permute.xlu0 %2026
        %2028 = vrot.lane.b32.xlu0 %v1847, 16
        %v2029 = vpop.permute.xlu0 %2028
        %2030 = vrot.lane.b32.xlu0 %v1951, 16
        %v2031 = vpop.permute.xlu0 %2030
        %2032 = vrot.lane.b32.xlu0 %v1848, 16
        %v2033 = vpop.permute.xlu0 %2032
        %2034 = vrot.lane.b32.xlu0 %v1953, 16
        %v2035 = vpop.permute.xlu0 %2034
        %2036 = vrot.lane.b32.xlu0 %v1849, 16
        %v2037 = vpop.permute.xlu0 %2036
        %2038 = vrot.lane.b32.xlu0 %v1955, 16
        %v2039 = vpop.permute.xlu0 %2038
        %2040 = vrot.lane.b32.xlu0 %v1850, 16
        %v2041 = vpop.permute.xlu0 %2040
        %2042 = vrot.lane.b32.xlu0 %v1957, 16
        %v2043 = vpop.permute.xlu0 %2042
        %2044 = vrot.lane.b32.xlu0 %v1851, 16
        %v2045 = vpop.permute.xlu0 %2044
        %2046 = vrot.lane.b32.xlu0 %v1959, 16
        %v2047 = vpop.permute.xlu0 %2046
        %2048 = vrot.lane.b32.xlu0 %v1852, 16
        %v2049 = vpop.permute.xlu0 %2048
        %2050 = vrot.lane.b32.xlu0 %v1961, 16
        %v2051 = vpop.permute.xlu0 %2050
        %2052 = vrot.lane.b32.xlu0 %v1853, 16
        %v2053 = vpop.permute.xlu0 %2052
        %2054 = vrot.lane.b32.xlu0 %v1963, 16
        %v2055 = vpop.permute.xlu0 %2054
        %2056 = vrot.lane.b32.xlu0 %v1854, 16
        %v2057 = vpop.permute.xlu0 %2056
        %2058 = vrot.lane.b32.xlu0 %v1965, 16
        %v2059 = vpop.permute.xlu0 %2058
        %2060 = vrot.lane.b32.xlu0 %v1855, 16
        %v2061 = vpop.permute.xlu0 %2060
        %2062 = vrot.lane.b32.xlu0 %v1967, 16
        %v2063 = vpop.permute.xlu0 %2062
        %vm2096 = vcmask 261248
        %2097 = vst.msk [vmem:[#allocation4] sm:$0xff] %vm2096, %v2001
        %2098 = vst.msk [vmem:[#allocation4 + $0x10] sm:$0xff] %vm2096, %v2003
        %2099 = vst.msk [vmem:[#allocation4 + $0x20] sm:$0xff] %vm2096, %v2005
        %2100 = vst.msk [vmem:[#allocation4 + $0x30] sm:$0xff] %vm2096, %v2007
        %2101 = vst.msk [vmem:[#allocation4 + $0x40] sm:$0xff] %vm2096, %v2009
        %2102 = vst.msk [vmem:[#allocation4 + $0x50] sm:$0xff] %vm2096, %v2011
        %2103 = vst.msk [vmem:[#allocation4 + $0x60] sm:$0xff] %vm2096, %v2013
        %2104 = vst.msk [vmem:[#allocation4 + $0x70] sm:$0xff] %vm2096, %v2015
        %2105 = vst.msk [vmem:[#allocation4 + $0x80] sm:$0xff] %vm2096, %v2017
        %2106 = vst.msk [vmem:[#allocation4 + $0x90] sm:$0xff] %vm2096, %v2019
        %2107 = vst.msk [vmem:[#allocation4 + $0xa0] sm:$0xff] %vm2096, %v2021
        %2108 = vst.msk [vmem:[#allocation4 + $0xb0] sm:$0xff] %vm2096, %v2023
        %2109 = vst.msk [vmem:[#allocation4 + $0xc0] sm:$0xff] %vm2096, %v2025
        %2110 = vst.msk [vmem:[#allocation4 + $0xd0] sm:$0xff] %vm2096, %v2027
        %2111 = vst.msk [vmem:[#allocation4 + $0xe0] sm:$0xff] %vm2096, %v2029
        %2112 = vst.msk [vmem:[#allocation4 + $0xf0] sm:$0xff] %vm2096, %v2031
        %2113 = vst.msk [vmem:[#allocation4 + $0x100] sm:$0xff] %vm2096, %v2033
        %2114 = vst.msk [vmem:[#allocation4 + $0x110] sm:$0xff] %vm2096, %v2035
        %2115 = vst.msk [vmem:[#allocation4 + $0x120] sm:$0xff] %vm2096, %v2037
        %2116 = vst.msk [vmem:[#allocation4 + $0x130] sm:$0xff] %vm2096, %v2039
        %2117 = vst.msk [vmem:[#allocation4 + $0x140] sm:$0xff] %vm2096, %v2041
        %2118 = vst.msk [vmem:[#allocation4 + $0x150] sm:$0xff] %vm2096, %v2043
        %2119 = vst.msk [vmem:[#allocation4 + $0x160] sm:$0xff] %vm2096, %v2045
        %2120 = vst.msk [vmem:[#allocation4 + $0x170] sm:$0xff] %vm2096, %v2047
        %2121 = vst.msk [vmem:[#allocation4 + $0x180] sm:$0xff] %vm2096, %v2049
        %2122 = vst.msk [vmem:[#allocation4 + $0x190] sm:$0xff] %vm2096, %v2051
        %2123 = vst.msk [vmem:[#allocation4 + $0x1a0] sm:$0xff] %vm2096, %v2053
        %2124 = vst.msk [vmem:[#allocation4 + $0x1b0] sm:$0xff] %vm2096, %v2055
        %2125 = vst.msk [vmem:[#allocation4 + $0x1c0] sm:$0xff] %vm2096, %v2057
        %2126 = vst.msk [vmem:[#allocation4 + $0x1d0] sm:$0xff] %vm2096, %v2059
        %2127 = vst.msk [vmem:[#allocation4 + $0x1e0] sm:$0xff] %vm2096, %v2061
        %2128 = vst.msk [vmem:[#allocation4 + $0x1f0] sm:$0xff] %vm2096, %v2063
        %v2129 = vld [vmem:[#allocation4] sm:$0xff]
        %v2130 = vld [vmem:[#allocation4 + $0x10] sm:$0xff]
        %v2131 = vld [vmem:[#allocation4 + $0x20] sm:$0xff]
        %v2132 = vld [vmem:[#allocation4 + $0x30] sm:$0xff]
        %v2133 = vld [vmem:[#allocation4 + $0x40] sm:$0xff]
        %v2134 = vld [vmem:[#allocation4 + $0x50] sm:$0xff]
        %v2135 = vld [vmem:[#allocation4 + $0x60] sm:$0xff]
        %v2136 = vld [vmem:[#allocation4 + $0x70] sm:$0xff]
        %v2137 = vld [vmem:[#allocation4 + $0x80] sm:$0xff]
        %v2138 = vld [vmem:[#allocation4 + $0x90] sm:$0xff]
        %v2139 = vld [vmem:[#allocation4 + $0xa0] sm:$0xff]
        %v2140 = vld [vmem:[#allocation4 + $0xb0] sm:$0xff]
        %v2141 = vld [vmem:[#allocation4 + $0xc0] sm:$0xff]
        %v2142 = vld [vmem:[#allocation4 + $0xd0] sm:$0xff]
        %v2143 = vld [vmem:[#allocation4 + $0xe0] sm:$0xff]
        %v2144 = vld [vmem:[#allocation4 + $0xf0] sm:$0xff]
        %v2145 = vld [vmem:[#allocation4 + $0x100] sm:$0xff]
        %v2146 = vld [vmem:[#allocation4 + $0x110] sm:$0xff]
        %v2147 = vld [vmem:[#allocation4 + $0x120] sm:$0xff]
        %v2148 = vld [vmem:[#allocation4 + $0x130] sm:$0xff]
        %v2149 = vld [vmem:[#allocation4 + $0x140] sm:$0xff]
        %v2150 = vld [vmem:[#allocation4 + $0x150] sm:$0xff]
        %v2151 = vld [vmem:[#allocation4 + $0x160] sm:$0xff]
        %v2152 = vld [vmem:[#allocation4 + $0x170] sm:$0xff]
        %v2153 = vld [vmem:[#allocation4 + $0x180] sm:$0xff]
        %v2154 = vld [vmem:[#allocation4 + $0x190] sm:$0xff]
        %v2155 = vld [vmem:[#allocation4 + $0x1a0] sm:$0xff]
        %v2156 = vld [vmem:[#allocation4 + $0x1b0] sm:$0xff]
        %v2157 = vld [vmem:[#allocation4 + $0x1c0] sm:$0xff]
        %v2158 = vld [vmem:[#allocation4 + $0x1d0] sm:$0xff]
        %v2159 = vld [vmem:[#allocation4 + $0x1e0] sm:$0xff]
        %v2160 = vld [vmem:[#allocation4 + $0x1f0] sm:$0xff]
        %s2161 = scalar_lea.vmem [#allocation4], 16
        %v2162 = vld [vmem:[%s2161] sm:$0xff]
        %v2163 = vld [vmem:[%s2161 + $0x10] sm:$0xff]
        %v2164 = vld [vmem:[%s2161 + $0x20] sm:$0xff]
        %v2165 = vld [vmem:[%s2161 + $0x30] sm:$0xff]
        %v2166 = vld [vmem:[%s2161 + $0x40] sm:$0xff]
        %v2167 = vld [vmem:[%s2161 + $0x50] sm:$0xff]
        %v2168 = vld [vmem:[%s2161 + $0x60] sm:$0xff]
        %v2169 = vld [vmem:[%s2161 + $0x70] sm:$0xff]
        %v2170 = vld [vmem:[%s2161 + $0x80] sm:$0xff]
        %v2171 = vld [vmem:[%s2161 + $0x90] sm:$0xff]
        %v2172 = vld [vmem:[%s2161 + $0xa0] sm:$0xff]
        %v2173 = vld [vmem:[%s2161 + $0xb0] sm:$0xff]
        %v2174 = vld [vmem:[%s2161 + $0xc0] sm:$0xff]
        %v2175 = vld [vmem:[%s2161 + $0xd0] sm:$0xff]
        %v2176 = vld [vmem:[%s2161 + $0xe0] sm:$0xff]
        %v2177 = vld [vmem:[%s2161 + $0xf0] sm:$0xff]
        %v2178 = vld [vmem:[%s2161 + $0x100] sm:$0xff]
        %v2179 = vld [vmem:[%s2161 + $0x110] sm:$0xff]
        %v2180 = vld [vmem:[%s2161 + $0x120] sm:$0xff]
        %v2181 = vld [vmem:[%s2161 + $0x130] sm:$0xff]
        %v2182 = vld [vmem:[%s2161 + $0x140] sm:$0xff]
        %v2183 = vld [vmem:[%s2161 + $0x150] sm:$0xff]
        %v2184 = vld [vmem:[%s2161 + $0x160] sm:$0xff]
        %v2185 = vld [vmem:[%s2161 + $0x170] sm:$0xff]
        %v2186 = vld [vmem:[%s2161 + $0x180] sm:$0xff]
        %v2187 = vld [vmem:[%s2161 + $0x190] sm:$0xff]
        %v2188 = vld [vmem:[%s2161 + $0x1a0] sm:$0xff]
        %v2189 = vld [vmem:[%s2161 + $0x1b0] sm:$0xff]
        %v2190 = vld [vmem:[%s2161 + $0x1c0] sm:$0xff]
        %v2191 = vld [vmem:[%s2161 + $0x1d0] sm:$0xff]
        %v2192 = vld [vmem:[%s2161 + $0x1e0] sm:$0xff]
        %v2193 = vld [vmem:[%s2161 + $0x1f0] sm:$0xff]
        %v2194 = vld [vmem:[#allocation4 + $0x1] sm:$0xff]
        %v2195 = vld [vmem:[#allocation4 + $0x11] sm:$0xff]
        %v2196 = vld [vmem:[#allocation4 + $0x21] sm:$0xff]
        %v2197 = vld [vmem:[#allocation4 + $0x31] sm:$0xff]
        %v2198 = vld [vmem:[#allocation4 + $0x41] sm:$0xff]
        %v2199 = vld [vmem:[#allocation4 + $0x51] sm:$0xff]
        %v2200 = vld [vmem:[#allocation4 + $0x61] sm:$0xff]
        %v2201 = vld [vmem:[#allocation4 + $0x71] sm:$0xff]
        %v2202 = vld [vmem:[#allocation4 + $0x81] sm:$0xff]
        %v2203 = vld [vmem:[#allocation4 + $0x91] sm:$0xff]
        %v2204 = vld [vmem:[#allocation4 + $0xa1] sm:$0xff]
        %v2205 = vld [vmem:[#allocation4 + $0xb1] sm:$0xff]
        %v2206 = vld [vmem:[#allocation4 + $0xc1] sm:$0xff]
        %v2207 = vld [vmem:[#allocation4 + $0xd1] sm:$0xff]
        %v2208 = vld [vmem:[#allocation4 + $0xe1] sm:$0xff]
        %v2209 = vld [vmem:[#allocation4 + $0xf1] sm:$0xff]
        %v2210 = vld [vmem:[#allocation4 + $0x101] sm:$0xff]
        %v2211 = vld [vmem:[#allocation4 + $0x111] sm:$0xff]
        %v2212 = vld [vmem:[#allocation4 + $0x121] sm:$0xff]
        %v2213 = vld [vmem:[#allocation4 + $0x131] sm:$0xff]
        %v2214 = vld [vmem:[#allocation4 + $0x141] sm:$0xff]
        %v2215 = vld [vmem:[#allocation4 + $0x151] sm:$0xff]
        %v2216 = vld [vmem:[#allocation4 + $0x161] sm:$0xff]
        %v2217 = vld [vmem:[#allocation4 + $0x171] sm:$0xff]
        %v2218 = vld [vmem:[#allocation4 + $0x181] sm:$0xff]
        %v2219 = vld [vmem:[#allocation4 + $0x191] sm:$0xff]
        %v2220 = vld [vmem:[#allocation4 + $0x1a1] sm:$0xff]
        %v2221 = vld [vmem:[#allocation4 + $0x1b1] sm:$0xff]
        %v2222 = vld [vmem:[#allocation4 + $0x1c1] sm:$0xff]
        %v2223 = vld [vmem:[#allocation4 + $0x1d1] sm:$0xff]
        %v2224 = vld [vmem:[#allocation4 + $0x1e1] sm:$0xff]
        %v2225 = vld [vmem:[#allocation4 + $0x1f1] sm:$0xff]
        %v2226 = vld [vmem:[%s2161 + $0x1] sm:$0xff]
        %v2227 = vld [vmem:[%s2161 + $0x11] sm:$0xff]
        %v2228 = vld [vmem:[%s2161 + $0x21] sm:$0xff]
        %v2229 = vld [vmem:[%s2161 + $0x31] sm:$0xff]
        %v2230 = vld [vmem:[%s2161 + $0x41] sm:$0xff]
        %v2231 = vld [vmem:[%s2161 + $0x51] sm:$0xff]
        %v2232 = vld [vmem:[%s2161 + $0x61] sm:$0xff]
        %v2233 = vld [vmem:[%s2161 + $0x71] sm:$0xff]
        %v2234 = vld [vmem:[%s2161 + $0x81] sm:$0xff]
        %v2235 = vld [vmem:[%s2161 + $0x91] sm:$0xff]
        %v2236 = vld [vmem:[%s2161 + $0xa1] sm:$0xff]
        %v2237 = vld [vmem:[%s2161 + $0xb1] sm:$0xff]
        %v2238 = vld [vmem:[%s2161 + $0xc1] sm:$0xff]
        %v2239 = vld [vmem:[%s2161 + $0xd1] sm:$0xff]
        %v2240 = vld [vmem:[%s2161 + $0xe1] sm:$0xff]
        %v2241 = vld [vmem:[%s2161 + $0xf1] sm:$0xff]
        %v2242 = vld [vmem:[%s2161 + $0x101] sm:$0xff]
        %v2243 = vld [vmem:[%s2161 + $0x111] sm:$0xff]
        %v2244 = vld [vmem:[%s2161 + $0x121] sm:$0xff]
        %v2245 = vld [vmem:[%s2161 + $0x131] sm:$0xff]
        %v2246 = vld [vmem:[%s2161 + $0x141] sm:$0xff]
        %v2247 = vld [vmem:[%s2161 + $0x151] sm:$0xff]
        %v2248 = vld [vmem:[%s2161 + $0x161] sm:$0xff]
        %v2249 = vld [vmem:[%s2161 + $0x171] sm:$0xff]
        %v2250 = vld [vmem:[%s2161 + $0x181] sm:$0xff]
        %v2251 = vld [vmem:[%s2161 + $0x191] sm:$0xff]
        %v2252 = vld [vmem:[%s2161 + $0x1a1] sm:$0xff]
        %v2253 = vld [vmem:[%s2161 + $0x1b1] sm:$0xff]
        %v2254 = vld [vmem:[%s2161 + $0x1c1] sm:$0xff]
        %v2255 = vld [vmem:[%s2161 + $0x1d1] sm:$0xff]
        %v2256 = vld [vmem:[%s2161 + $0x1e1] sm:$0xff]
        %v2257 = vld [vmem:[%s2161 + $0x1f1] sm:$0xff]
        %2290 = vrot.lane.b32.xlu0 %v2129, 120
        %v2291 = vpop.permute.xlu0 %2290
        %2292 = vrot.lane.b32.xlu0 %v2130, 120
        %v2293 = vpop.permute.xlu0 %2292
        %2294 = vrot.lane.b32.xlu0 %v2131, 120
        %v2295 = vpop.permute.xlu0 %2294
        %2296 = vrot.lane.b32.xlu0 %v2132, 120
        %v2297 = vpop.permute.xlu0 %2296
        %2298 = vrot.lane.b32.xlu0 %v2133, 120
        %v2299 = vpop.permute.xlu0 %2298
        %2300 = vrot.lane.b32.xlu0 %v2134, 120
        %v2301 = vpop.permute.xlu0 %2300
        %2302 = vrot.lane.b32.xlu0 %v2135, 120
        %v2303 = vpop.permute.xlu0 %2302
        %2304 = vrot.lane.b32.xlu0 %v2136, 120
        %v2305 = vpop.permute.xlu0 %2304
        %2306 = vrot.lane.b32.xlu0 %v2137, 120
        %v2307 = vpop.permute.xlu0 %2306
        %2308 = vrot.lane.b32.xlu0 %v2138, 120
        %v2309 = vpop.permute.xlu0 %2308
        %2310 = vrot.lane.b32.xlu0 %v2139, 120
        %v2311 = vpop.permute.xlu0 %2310
        %2312 = vrot.lane.b32.xlu0 %v2140, 120
        %v2313 = vpop.permute.xlu0 %2312
        %2314 = vrot.lane.b32.xlu0 %v2141, 120
        %v2315 = vpop.permute.xlu0 %2314
        %2316 = vrot.lane.b32.xlu0 %v2142, 120
        %v2317 = vpop.permute.xlu0 %2316
        %2318 = vrot.lane.b32.xlu0 %v2143, 120
        %v2319 = vpop.permute.xlu0 %2318
        %2320 = vrot.lane.b32.xlu0 %v2144, 120
        %v2321 = vpop.permute.xlu0 %2320
        %2322 = vrot.lane.b32.xlu0 %v2145, 120
        %v2323 = vpop.permute.xlu0 %2322
        %2324 = vrot.lane.b32.xlu0 %v2146, 120
        %v2325 = vpop.permute.xlu0 %2324
        %2326 = vrot.lane.b32.xlu0 %v2147, 120
        %v2327 = vpop.permute.xlu0 %2326
        %2328 = vrot.lane.b32.xlu0 %v2148, 120
        %v2329 = vpop.permute.xlu0 %2328
        %2330 = vrot.lane.b32.xlu0 %v2149, 120
        %v2331 = vpop.permute.xlu0 %2330
        %2332 = vrot.lane.b32.xlu0 %v2150, 120
        %v2333 = vpop.permute.xlu0 %2332
        %2334 = vrot.lane.b32.xlu0 %v2151, 120
        %v2335 = vpop.permute.xlu0 %2334
        %2336 = vrot.lane.b32.xlu0 %v2152, 120
        %v2337 = vpop.permute.xlu0 %2336
        %2338 = vrot.lane.b32.xlu0 %v2153, 120
        %v2339 = vpop.permute.xlu0 %2338
        %2340 = vrot.lane.b32.xlu0 %v2154, 120
        %v2341 = vpop.permute.xlu0 %2340
        %2342 = vrot.lane.b32.xlu0 %v2155, 120
        %v2343 = vpop.permute.xlu0 %2342
        %2344 = vrot.lane.b32.xlu0 %v2156, 120
        %v2345 = vpop.permute.xlu0 %2344
        %2346 = vrot.lane.b32.xlu0 %v2157, 120
        %v2347 = vpop.permute.xlu0 %2346
        %2348 = vrot.lane.b32.xlu0 %v2158, 120
        %v2349 = vpop.permute.xlu0 %2348
        %2350 = vrot.lane.b32.xlu0 %v2159, 120
        %v2351 = vpop.permute.xlu0 %2350
        %2352 = vrot.lane.b32.xlu0 %v2160, 120
        %v2353 = vpop.permute.xlu0 %2352
        %2354 = vrot.lane.b32.xlu0 %v2129, 112
        %v2355 = vpop.permute.xlu0 %2354
        %2356 = vrot.lane.b32.xlu0 %v2130, 112
        %v2357 = vpop.permute.xlu0 %2356
        %2358 = vrot.lane.b32.xlu0 %v2131, 112
        %v2359 = vpop.permute.xlu0 %2358
        %2360 = vrot.lane.b32.xlu0 %v2132, 112
        %v2361 = vpop.permute.xlu0 %2360
        %2362 = vrot.lane.b32.xlu0 %v2133, 112
        %v2363 = vpop.permute.xlu0 %2362
        %2364 = vrot.lane.b32.xlu0 %v2134, 112
        %v2365 = vpop.permute.xlu0 %2364
        %2366 = vrot.lane.b32.xlu0 %v2135, 112
        %v2367 = vpop.permute.xlu0 %2366
        %2368 = vrot.lane.b32.xlu0 %v2136, 112
        %v2369 = vpop.permute.xlu0 %2368
        %2370 = vrot.lane.b32.xlu0 %v2137, 112
        %v2371 = vpop.permute.xlu0 %2370
        %2372 = vrot.lane.b32.xlu0 %v2138, 112
        %v2373 = vpop.permute.xlu0 %2372
        %2374 = vrot.lane.b32.xlu0 %v2139, 112
        %v2375 = vpop.permute.xlu0 %2374
        %2376 = vrot.lane.b32.xlu0 %v2140, 112
        %v2377 = vpop.permute.xlu0 %2376
        %2378 = vrot.lane.b32.xlu0 %v2141, 112
        %v2379 = vpop.permute.xlu0 %2378
        %2380 = vrot.lane.b32.xlu0 %v2142, 112
        %v2381 = vpop.permute.xlu0 %2380
        %2382 = vrot.lane.b32.xlu0 %v2143, 112
        %v2383 = vpop.permute.xlu0 %2382
        %2384 = vrot.lane.b32.xlu0 %v2144, 112
        %v2385 = vpop.permute.xlu0 %2384
        %2386 = vrot.lane.b32.xlu0 %v2145, 112
        %v2387 = vpop.permute.xlu0 %2386
        %2388 = vrot.lane.b32.xlu0 %v2146, 112
        %v2389 = vpop.permute.xlu0 %2388
        %2390 = vrot.lane.b32.xlu0 %v2147, 112
        %v2391 = vpop.permute.xlu0 %2390
        %2392 = vrot.lane.b32.xlu0 %v2148, 112
        %v2393 = vpop.permute.xlu0 %2392
        %2394 = vrot.lane.b32.xlu0 %v2149, 112
        %v2395 = vpop.permute.xlu0 %2394
        %2396 = vrot.lane.b32.xlu0 %v2150, 112
        %v2397 = vpop.permute.xlu0 %2396
        %2398 = vrot.lane.b32.xlu0 %v2151, 112
        %v2399 = vpop.permute.xlu0 %2398
        %2400 = vrot.lane.b32.xlu0 %v2152, 112
        %v2401 = vpop.permute.xlu0 %2400
        %2402 = vrot.lane.b32.xlu0 %v2153, 112
        %v2403 = vpop.permute.xlu0 %2402
        %2404 = vrot.lane.b32.xlu0 %v2154, 112
        %v2405 = vpop.permute.xlu0 %2404
        %2406 = vrot.lane.b32.xlu0 %v2155, 112
        %v2407 = vpop.permute.xlu0 %2406
        %2408 = vrot.lane.b32.xlu0 %v2156, 112
        %v2409 = vpop.permute.xlu0 %2408
        %2410 = vrot.lane.b32.xlu0 %v2157, 112
        %v2411 = vpop.permute.xlu0 %2410
        %2412 = vrot.lane.b32.xlu0 %v2158, 112
        %v2413 = vpop.permute.xlu0 %2412
        %2414 = vrot.lane.b32.xlu0 %v2159, 112
        %v2415 = vpop.permute.xlu0 %2414
        %2416 = vrot.lane.b32.xlu0 %v2160, 112
        %v2417 = vpop.permute.xlu0 %2416
        %2418 = vrot.lane.b32.xlu0 %v2129, 104
        %v2419 = vpop.permute.xlu0 %2418
        %2420 = vrot.lane.b32.xlu0 %v2130, 104
        %v2421 = vpop.permute.xlu0 %2420
        %2422 = vrot.lane.b32.xlu0 %v2131, 104
        %v2423 = vpop.permute.xlu0 %2422
        %2424 = vrot.lane.b32.xlu0 %v2132, 104
        %v2425 = vpop.permute.xlu0 %2424
        %2426 = vrot.lane.b32.xlu0 %v2133, 104
        %v2427 = vpop.permute.xlu0 %2426
        %2428 = vrot.lane.b32.xlu0 %v2134, 104
        %v2429 = vpop.permute.xlu0 %2428
        %2430 = vrot.lane.b32.xlu0 %v2135, 104
        %v2431 = vpop.permute.xlu0 %2430
        %2432 = vrot.lane.b32.xlu0 %v2136, 104
        %v2433 = vpop.permute.xlu0 %2432
        %2434 = vrot.lane.b32.xlu0 %v2137, 104
        %v2435 = vpop.permute.xlu0 %2434
        %2436 = vrot.lane.b32.xlu0 %v2138, 104
        %v2437 = vpop.permute.xlu0 %2436
        %2438 = vrot.lane.b32.xlu0 %v2139, 104
        %v2439 = vpop.permute.xlu0 %2438
        %2440 = vrot.lane.b32.xlu0 %v2140, 104
        %v2441 = vpop.permute.xlu0 %2440
        %2442 = vrot.lane.b32.xlu0 %v2141, 104
        %v2443 = vpop.permute.xlu0 %2442
        %2444 = vrot.lane.b32.xlu0 %v2142, 104
        %v2445 = vpop.permute.xlu0 %2444
        %2446 = vrot.lane.b32.xlu0 %v2143, 104
        %v2447 = vpop.permute.xlu0 %2446
        %2448 = vrot.lane.b32.xlu0 %v2144, 104
        %v2449 = vpop.permute.xlu0 %2448
        %2450 = vrot.lane.b32.xlu0 %v2145, 104
        %v2451 = vpop.permute.xlu0 %2450
        %2452 = vrot.lane.b32.xlu0 %v2146, 104
        %v2453 = vpop.permute.xlu0 %2452
        %2454 = vrot.lane.b32.xlu0 %v2147, 104
        %v2455 = vpop.permute.xlu0 %2454
        %2456 = vrot.lane.b32.xlu0 %v2148, 104
        %v2457 = vpop.permute.xlu0 %2456
        %2458 = vrot.lane.b32.xlu0 %v2149, 104
        %v2459 = vpop.permute.xlu0 %2458
        %2460 = vrot.lane.b32.xlu0 %v2150, 104
        %v2461 = vpop.permute.xlu0 %2460
        %2462 = vrot.lane.b32.xlu0 %v2151, 104
        %v2463 = vpop.permute.xlu0 %2462
        %2464 = vrot.lane.b32.xlu0 %v2152, 104
        %v2465 = vpop.permute.xlu0 %2464
        %2466 = vrot.lane.b32.xlu0 %v2153, 104
        %v2467 = vpop.permute.xlu0 %2466
        %2468 = vrot.lane.b32.xlu0 %v2154, 104
        %v2469 = vpop.permute.xlu0 %2468
        %2470 = vrot.lane.b32.xlu0 %v2155, 104
        %v2471 = vpop.permute.xlu0 %2470
        %2472 = vrot.lane.b32.xlu0 %v2156, 104
        %v2473 = vpop.permute.xlu0 %2472
        %2474 = vrot.lane.b32.xlu0 %v2157, 104
        %v2475 = vpop.permute.xlu0 %2474
        %2476 = vrot.lane.b32.xlu0 %v2158, 104
        %v2477 = vpop.permute.xlu0 %2476
        %2478 = vrot.lane.b32.xlu0 %v2159, 104
        %v2479 = vpop.permute.xlu0 %2478
        %2480 = vrot.lane.b32.xlu0 %v2160, 104
        %v2481 = vpop.permute.xlu0 %2480
        %v2482 = vld [vmem:[#allocation10] sm:$0xff]
        %2515 = vrot.lane.b32.xlu0 %v2194, 8
        %v2516 = vpop.permute.xlu0 %2515
        %2517 = vrot.lane.b32.xlu0 %v2195, 8
        %v2518 = vpop.permute.xlu0 %2517
        %2519 = vrot.lane.b32.xlu0 %v2196, 8
        %v2520 = vpop.permute.xlu0 %2519
        %2521 = vrot.lane.b32.xlu0 %v2197, 8
        %v2522 = vpop.permute.xlu0 %2521
        %2523 = vrot.lane.b32.xlu0 %v2198, 8
        %v2524 = vpop.permute.xlu0 %2523
        %2525 = vrot.lane.b32.xlu0 %v2199, 8
        %v2526 = vpop.permute.xlu0 %2525
        %2527 = vrot.lane.b32.xlu0 %v2200, 8
        %v2528 = vpop.permute.xlu0 %2527
        %2529 = vrot.lane.b32.xlu0 %v2201, 8
        %v2530 = vpop.permute.xlu0 %2529
        %2531 = vrot.lane.b32.xlu0 %v2202, 8
        %v2532 = vpop.permute.xlu0 %2531
        %2533 = vrot.lane.b32.xlu0 %v2203, 8
        %v2534 = vpop.permute.xlu0 %2533
        %2535 = vrot.lane.b32.xlu0 %v2204, 8
        %v2536 = vpop.permute.xlu0 %2535
        %2537 = vrot.lane.b32.xlu0 %v2205, 8
        %v2538 = vpop.permute.xlu0 %2537
        %2539 = vrot.lane.b32.xlu0 %v2206, 8
        %v2540 = vpop.permute.xlu0 %2539
        %2541 = vrot.lane.b32.xlu0 %v2207, 8
        %v2542 = vpop.permute.xlu0 %2541
        %2543 = vrot.lane.b32.xlu0 %v2208, 8
        %v2544 = vpop.permute.xlu0 %2543
        %2545 = vrot.lane.b32.xlu0 %v2209, 8
        %v2546 = vpop.permute.xlu0 %2545
        %2547 = vrot.lane.b32.xlu0 %v2210, 8
        %v2548 = vpop.permute.xlu0 %2547
        %2549 = vrot.lane.b32.xlu0 %v2211, 8
        %v2550 = vpop.permute.xlu0 %2549
        %2551 = vrot.lane.b32.xlu0 %v2212, 8
        %v2552 = vpop.permute.xlu0 %2551
        %2553 = vrot.lane.b32.xlu0 %v2213, 8
        %v2554 = vpop.permute.xlu0 %2553
        %2555 = vrot.lane.b32.xlu0 %v2214, 8
        %v2556 = vpop.permute.xlu0 %2555
        %2557 = vrot.lane.b32.xlu0 %v2215, 8
        %v2558 = vpop.permute.xlu0 %2557
        %2559 = vrot.lane.b32.xlu0 %v2216, 8
        %v2560 = vpop.permute.xlu0 %2559
        %2561 = vrot.lane.b32.xlu0 %v2217, 8
        %v2562 = vpop.permute.xlu0 %2561
        %2563 = vrot.lane.b32.xlu0 %v2218, 8
        %v2564 = vpop.permute.xlu0 %2563
        %2565 = vrot.lane.b32.xlu0 %v2219, 8
        %v2566 = vpop.permute.xlu0 %2565
        %2567 = vrot.lane.b32.xlu0 %v2220, 8
        %v2568 = vpop.permute.xlu0 %2567
        %2569 = vrot.lane.b32.xlu0 %v2221, 8
        %v2570 = vpop.permute.xlu0 %2569
        %2571 = vrot.lane.b32.xlu0 %v2222, 8
        %v2572 = vpop.permute.xlu0 %2571
        %2573 = vrot.lane.b32.xlu0 %v2223, 8
        %v2574 = vpop.permute.xlu0 %2573
        %2575 = vrot.lane.b32.xlu0 %v2224, 8
        %v2576 = vpop.permute.xlu0 %2575
        %2577 = vrot.lane.b32.xlu0 %v2225, 8
        %v2578 = vpop.permute.xlu0 %2577
        %s2579 = scalar_lea.vmem [#allocation10], 8
        %v2580 = vld [vmem:[%s2579] sm:$0xff]
        %2581 = vrot.lane.b32.xlu0 %v2291, 120
        %v2582 = vpop.permute.xlu0 %2581
        %2583 = vrot.lane.b32.xlu0 %v2293, 120
        %v2584 = vpop.permute.xlu0 %2583
        %2585 = vrot.lane.b32.xlu0 %v2295, 120
        %v2586 = vpop.permute.xlu0 %2585
        %2587 = vrot.lane.b32.xlu0 %v2297, 120
        %v2588 = vpop.permute.xlu0 %2587
        %2589 = vrot.lane.b32.xlu0 %v2299, 120
        %v2590 = vpop.permute.xlu0 %2589
        %2591 = vrot.lane.b32.xlu0 %v2301, 120
        %v2592 = vpop.permute.xlu0 %2591
        %2593 = vrot.lane.b32.xlu0 %v2303, 120
        %v2594 = vpop.permute.xlu0 %2593
        %2595 = vrot.lane.b32.xlu0 %v2305, 120
        %v2596 = vpop.permute.xlu0 %2595
        %2597 = vrot.lane.b32.xlu0 %v2307, 120
        %v2598 = vpop.permute.xlu0 %2597
        %2599 = vrot.lane.b32.xlu0 %v2309, 120
        %v2600 = vpop.permute.xlu0 %2599
        %2601 = vrot.lane.b32.xlu0 %v2311, 120
        %v2602 = vpop.permute.xlu0 %2601
        %2603 = vrot.lane.b32.xlu0 %v2313, 120
        %v2604 = vpop.permute.xlu0 %2603
        %2605 = vrot.lane.b32.xlu0 %v2315, 120
        %v2606 = vpop.permute.xlu0 %2605
        %2607 = vrot.lane.b32.xlu0 %v2317, 120
        %v2608 = vpop.permute.xlu0 %2607
        %2609 = vrot.lane.b32.xlu0 %v2319, 120
        %v2610 = vpop.permute.xlu0 %2609
        %2611 = vrot.lane.b32.xlu0 %v2321, 120
        %v2612 = vpop.permute.xlu0 %2611
        %2613 = vrot.lane.b32.xlu0 %v2323, 120
        %v2614 = vpop.permute.xlu0 %2613
        %2615 = vrot.lane.b32.xlu0 %v2325, 120
        %v2616 = vpop.permute.xlu0 %2615
        %2617 = vrot.lane.b32.xlu0 %v2327, 120
        %v2618 = vpop.permute.xlu0 %2617
        %2619 = vrot.lane.b32.xlu0 %v2329, 120
        %v2620 = vpop.permute.xlu0 %2619
        %2621 = vrot.lane.b32.xlu0 %v2331, 120
        %v2622 = vpop.permute.xlu0 %2621
        %2623 = vrot.lane.b32.xlu0 %v2333, 120
        %v2624 = vpop.permute.xlu0 %2623
        %2625 = vrot.lane.b32.xlu0 %v2335, 120
        %v2626 = vpop.permute.xlu0 %2625
        %2627 = vrot.lane.b32.xlu0 %v2337, 120
        %v2628 = vpop.permute.xlu0 %2627
        %2629 = vrot.lane.b32.xlu0 %v2339, 120
        %v2630 = vpop.permute.xlu0 %2629
        %2631 = vrot.lane.b32.xlu0 %v2341, 120
        %v2632 = vpop.permute.xlu0 %2631
        %2633 = vrot.lane.b32.xlu0 %v2343, 120
        %v2634 = vpop.permute.xlu0 %2633
        %2635 = vrot.lane.b32.xlu0 %v2345, 120
        %v2636 = vpop.permute.xlu0 %2635
        %2637 = vrot.lane.b32.xlu0 %v2347, 120
        %v2638 = vpop.permute.xlu0 %2637
        %2639 = vrot.lane.b32.xlu0 %v2349, 120
        %v2640 = vpop.permute.xlu0 %2639
        %2641 = vrot.lane.b32.xlu0 %v2351, 120
        %v2642 = vpop.permute.xlu0 %2641
        %2643 = vrot.lane.b32.xlu0 %v2353, 120
        %v2644 = vpop.permute.xlu0 %2643
        %2645 = vrot.lane.b32.xlu0 %v2355, 120
        %v2646 = vpop.permute.xlu0 %2645
        %2647 = vrot.lane.b32.xlu0 %v2357, 120
        %v2648 = vpop.permute.xlu0 %2647
        %2649 = vrot.lane.b32.xlu0 %v2359, 120
        %v2650 = vpop.permute.xlu0 %2649
        %2651 = vrot.lane.b32.xlu0 %v2361, 120
        %v2652 = vpop.permute.xlu0 %2651
        %2653 = vrot.lane.b32.xlu0 %v2363, 120
        %v2654 = vpop.permute.xlu0 %2653
        %2655 = vrot.lane.b32.xlu0 %v2365, 120
        %v2656 = vpop.permute.xlu0 %2655
        %2657 = vrot.lane.b32.xlu0 %v2367, 120
        %v2658 = vpop.permute.xlu0 %2657
        %2659 = vrot.lane.b32.xlu0 %v2369, 120
        %v2660 = vpop.permute.xlu0 %2659
        %2661 = vrot.lane.b32.xlu0 %v2371, 120
        %v2662 = vpop.permute.xlu0 %2661
        %2663 = vrot.lane.b32.xlu0 %v2373, 120
        %v2664 = vpop.permute.xlu0 %2663
        %2665 = vrot.lane.b32.xlu0 %v2375, 120
        %v2666 = vpop.permute.xlu0 %2665
        %2667 = vrot.lane.b32.xlu0 %v2377, 120
        %v2668 = vpop.permute.xlu0 %2667
        %2669 = vrot.lane.b32.xlu0 %v2379, 120
        %v2670 = vpop.permute.xlu0 %2669
        %2671 = vrot.lane.b32.xlu0 %v2381, 120
        %v2672 = vpop.permute.xlu0 %2671
        %2673 = vrot.lane.b32.xlu0 %v2383, 120
        %v2674 = vpop.permute.xlu0 %2673
        %2675 = vrot.lane.b32.xlu0 %v2385, 120
        %v2676 = vpop.permute.xlu0 %2675
        %2677 = vrot.lane.b32.xlu0 %v2387, 120
        %v2678 = vpop.permute.xlu0 %2677
        %2679 = vrot.lane.b32.xlu0 %v2389, 120
        %v2680 = vpop.permute.xlu0 %2679
        %2681 = vrot.lane.b32.xlu0 %v2391, 120
        %v2682 = vpop.permute.xlu0 %2681
        %2683 = vrot.lane.b32.xlu0 %v2393, 120
        %v2684 = vpop.permute.xlu0 %2683
        %2685 = vrot.lane.b32.xlu0 %v2395, 120
        %v2686 = vpop.permute.xlu0 %2685
        %2687 = vrot.lane.b32.xlu0 %v2397, 120
        %v2688 = vpop.permute.xlu0 %2687
        %2689 = vrot.lane.b32.xlu0 %v2399, 120
        %v2690 = vpop.permute.xlu0 %2689
        %2691 = vrot.lane.b32.xlu0 %v2401, 120
        %v2692 = vpop.permute.xlu0 %2691
        %2693 = vrot.lane.b32.xlu0 %v2403, 120
        %v2694 = vpop.permute.xlu0 %2693
        %2695 = vrot.lane.b32.xlu0 %v2405, 120
        %v2696 = vpop.permute.xlu0 %2695
        %2697 = vrot.lane.b32.xlu0 %v2407, 120
        %v2698 = vpop.permute.xlu0 %2697
        %2699 = vrot.lane.b32.xlu0 %v2409, 120
        %v2700 = vpop.permute.xlu0 %2699
        %2701 = vrot.lane.b32.xlu0 %v2411, 120
        %v2702 = vpop.permute.xlu0 %2701
        %2703 = vrot.lane.b32.xlu0 %v2413, 120
        %v2704 = vpop.permute.xlu0 %2703
        %2705 = vrot.lane.b32.xlu0 %v2415, 120
        %v2706 = vpop.permute.xlu0 %2705
        %2707 = vrot.lane.b32.xlu0 %v2417, 120
        %v2708 = vpop.permute.xlu0 %2707
        %2709 = vrot.lane.b32.xlu0 %v2516, 120
        %v2710 = vpop.permute.xlu0 %2709
        %2711 = vrot.lane.b32.xlu0 %v2518, 120
        %v2712 = vpop.permute.xlu0 %2711
        %2713 = vrot.lane.b32.xlu0 %v2520, 120
        %v2714 = vpop.permute.xlu0 %2713
        %2715 = vrot.lane.b32.xlu0 %v2522, 120
        %v2716 = vpop.permute.xlu0 %2715
        %2717 = vrot.lane.b32.xlu0 %v2524, 120
        %v2718 = vpop.permute.xlu0 %2717
        %2719 = vrot.lane.b32.xlu0 %v2526, 120
        %v2720 = vpop.permute.xlu0 %2719
        %2721 = vrot.lane.b32.xlu0 %v2528, 120
        %v2722 = vpop.permute.xlu0 %2721
        %2723 = vrot.lane.b32.xlu0 %v2530, 120
        %v2724 = vpop.permute.xlu0 %2723
        %2725 = vrot.lane.b32.xlu0 %v2532, 120
        %v2726 = vpop.permute.xlu0 %2725
        %2727 = vrot.lane.b32.xlu0 %v2534, 120
        %v2728 = vpop.permute.xlu0 %2727
        %2729 = vrot.lane.b32.xlu0 %v2536, 120
        %v2730 = vpop.permute.xlu0 %2729
        %2731 = vrot.lane.b32.xlu0 %v2538, 120
        %v2732 = vpop.permute.xlu0 %2731
        %2733 = vrot.lane.b32.xlu0 %v2540, 120
        %v2734 = vpop.permute.xlu0 %2733
        %2735 = vrot.lane.b32.xlu0 %v2542, 120
        %v2736 = vpop.permute.xlu0 %2735
        %2737 = vrot.lane.b32.xlu0 %v2544, 120
        %v2738 = vpop.permute.xlu0 %2737
        %2739 = vrot.lane.b32.xlu0 %v2546, 120
        %v2740 = vpop.permute.xlu0 %2739
        %2741 = vrot.lane.b32.xlu0 %v2548, 120
        %v2742 = vpop.permute.xlu0 %2741
        %2743 = vrot.lane.b32.xlu0 %v2550, 120
        %v2744 = vpop.permute.xlu0 %2743
        %2745 = vrot.lane.b32.xlu0 %v2552, 120
        %v2746 = vpop.permute.xlu0 %2745
        %2747 = vrot.lane.b32.xlu0 %v2554, 120
        %v2748 = vpop.permute.xlu0 %2747
        %2749 = vrot.lane.b32.xlu0 %v2556, 120
        %v2750 = vpop.permute.xlu0 %2749
        %2751 = vrot.lane.b32.xlu0 %v2558, 120
        %v2752 = vpop.permute.xlu0 %2751
        %2753 = vrot.lane.b32.xlu0 %v2560, 120
        %v2754 = vpop.permute.xlu0 %2753
        %2755 = vrot.lane.b32.xlu0 %v2562, 120
        %v2756 = vpop.permute.xlu0 %2755
        %2757 = vrot.lane.b32.xlu0 %v2564, 120
        %v2758 = vpop.permute.xlu0 %2757
        %2759 = vrot.lane.b32.xlu0 %v2566, 120
        %v2760 = vpop.permute.xlu0 %2759
        %2761 = vrot.lane.b32.xlu0 %v2568, 120
        %v2762 = vpop.permute.xlu0 %2761
        %2763 = vrot.lane.b32.xlu0 %v2570, 120
        %v2764 = vpop.permute.xlu0 %2763
        %2765 = vrot.lane.b32.xlu0 %v2572, 120
        %v2766 = vpop.permute.xlu0 %2765
        %2767 = vrot.lane.b32.xlu0 %v2574, 120
        %v2768 = vpop.permute.xlu0 %2767
        %2769 = vrot.lane.b32.xlu0 %v2576, 120
        %v2770 = vpop.permute.xlu0 %2769
        %2771 = vrot.lane.b32.xlu0 %v2578, 120
        %v2772 = vpop.permute.xlu0 %2771
        %vm2773 = vcmask 64512
        %v2774 = vsel %vm2773, %v2291, 0
        %v2776 = vsel %vm2773, %v2293, 0
        %v2778 = vsel %vm2773, %v2295, 0
        %v2780 = vsel %vm2773, %v2297, 0
        %v2782 = vsel %vm2773, %v2299, 0
        %v2784 = vsel %vm2773, %v2301, 0
        %v2786 = vsel %vm2773, %v2303, 0
        %v2788 = vsel %vm2773, %v2305, 0
        %v2790 = vsel %vm2773, %v2307, 0
        %v2792 = vsel %vm2773, %v2309, 0
        %v2794 = vsel %vm2773, %v2311, 0
        %v2796 = vsel %vm2773, %v2313, 0
        %v2798 = vsel %vm2773, %v2315, 0
        %v2800 = vsel %vm2773, %v2317, 0
        %v2802 = vsel %vm2773, %v2319, 0
        %v2804 = vsel %vm2773, %v2321, 0
        %v2806 = vsel %vm2773, %v2323, 0
        %v2808 = vsel %vm2773, %v2325, 0
        %v2810 = vsel %vm2773, %v2327, 0
        %v2812 = vsel %vm2773, %v2329, 0
        %v2814 = vsel %vm2773, %v2331, 0
        %v2816 = vsel %vm2773, %v2333, 0
        %v2818 = vsel %vm2773, %v2335, 0
        %v2820 = vsel %vm2773, %v2337, 0
        %v2822 = vsel %vm2773, %v2339, 0
        %v2824 = vsel %vm2773, %v2341, 0
        %v2826 = vsel %vm2773, %v2343, 0
        %v2828 = vsel %vm2773, %v2345, 0
        %v2830 = vsel %vm2773, %v2347, 0
        %v2832 = vsel %vm2773, %v2349, 0
        %v2834 = vsel %vm2773, %v2351, 0
        %v2836 = vsel %vm2773, %v2353, 0
        %v2838 = vsel %vm2773, %v2582, 0
        %v2840 = vsel %vm2773, %v2584, 0
        %v2842 = vsel %vm2773, %v2586, 0
        %v2844 = vsel %vm2773, %v2588, 0
        %v2846 = vsel %vm2773, %v2590, 0
        %v2848 = vsel %vm2773, %v2592, 0
        %v2850 = vsel %vm2773, %v2594, 0
        %v2852 = vsel %vm2773, %v2596, 0
        %v2854 = vsel %vm2773, %v2598, 0
        %v2856 = vsel %vm2773, %v2600, 0
        %v2858 = vsel %vm2773, %v2602, 0
        %v2860 = vsel %vm2773, %v2604, 0
        %v2862 = vsel %vm2773, %v2606, 0
        %v2864 = vsel %vm2773, %v2608, 0
        %v2866 = vsel %vm2773, %v2610, 0
        %v2868 = vsel %vm2773, %v2612, 0
        %v2870 = vsel %vm2773, %v2614, 0
        %v2872 = vsel %vm2773, %v2616, 0
        %v2874 = vsel %vm2773, %v2618, 0
        %v2876 = vsel %vm2773, %v2620, 0
        %v2878 = vsel %vm2773, %v2622, 0
        %v2880 = vsel %vm2773, %v2624, 0
        %v2882 = vsel %vm2773, %v2626, 0
        %v2884 = vsel %vm2773, %v2628, 0
        %v2886 = vsel %vm2773, %v2630, 0
        %v2888 = vsel %vm2773, %v2632, 0
        %v2890 = vsel %vm2773, %v2634, 0
        %v2892 = vsel %vm2773, %v2636, 0
        %v2894 = vsel %vm2773, %v2638, 0
        %v2896 = vsel %vm2773, %v2640, 0
        %v2898 = vsel %vm2773, %v2642, 0
        %v2900 = vsel %vm2773, %v2644, 0
        %v2902 = vsel %vm2773, %v2646, 0
        %v2904 = vsel %vm2773, %v2648, 0
        %v2906 = vsel %vm2773, %v2650, 0
        %v2908 = vsel %vm2773, %v2652, 0
        %v2910 = vsel %vm2773, %v2654, 0
        %v2912 = vsel %vm2773, %v2656, 0
        %v2914 = vsel %vm2773, %v2658, 0
        %v2916 = vsel %vm2773, %v2660, 0
        %v2918 = vsel %vm2773, %v2662, 0
        %v2920 = vsel %vm2773, %v2664, 0
        %v2922 = vsel %vm2773, %v2666, 0
        %v2924 = vsel %vm2773, %v2668, 0
        %v2926 = vsel %vm2773, %v2670, 0
        %v2928 = vsel %vm2773, %v2672, 0
        %v2930 = vsel %vm2773, %v2674, 0
        %v2932 = vsel %vm2773, %v2676, 0
        %v2934 = vsel %vm2773, %v2678, 0
        %v2936 = vsel %vm2773, %v2680, 0
        %v2938 = vsel %vm2773, %v2682, 0
        %v2940 = vsel %vm2773, %v2684, 0
        %v2942 = vsel %vm2773, %v2686, 0
        %v2944 = vsel %vm2773, %v2688, 0
        %v2946 = vsel %vm2773, %v2690, 0
        %v2948 = vsel %vm2773, %v2692, 0
        %v2950 = vsel %vm2773, %v2694, 0
        %v2952 = vsel %vm2773, %v2696, 0
        %v2954 = vsel %vm2773, %v2698, 0
        %v2956 = vsel %vm2773, %v2700, 0
        %v2958 = vsel %vm2773, %v2702, 0
        %v2960 = vsel %vm2773, %v2704, 0
        %v2962 = vsel %vm2773, %v2706, 0
        %v2964 = vsel %vm2773, %v2708, 0
        %v2966 = vsel %vm2773, %v2710, 0
        %v2968 = vsel %vm2773, %v2712, 0
        %v2970 = vsel %vm2773, %v2714, 0
        %v2972 = vsel %vm2773, %v2716, 0
        %v2974 = vsel %vm2773, %v2718, 0
        %v2976 = vsel %vm2773, %v2720, 0
        %v2978 = vsel %vm2773, %v2722, 0
        %v2980 = vsel %vm2773, %v2724, 0
        %v2982 = vsel %vm2773, %v2726, 0
        %v2984 = vsel %vm2773, %v2728, 0
        %v2986 = vsel %vm2773, %v2730, 0
        %v2988 = vsel %vm2773, %v2732, 0
        %v2990 = vsel %vm2773, %v2734, 0
        %v2992 = vsel %vm2773, %v2736, 0
        %v2994 = vsel %vm2773, %v2738, 0
        %v2996 = vsel %vm2773, %v2740, 0
        %v2998 = vsel %vm2773, %v2742, 0
        %v3000 = vsel %vm2773, %v2744, 0
        %v3002 = vsel %vm2773, %v2746, 0
        %v3004 = vsel %vm2773, %v2748, 0
        %v3006 = vsel %vm2773, %v2750, 0
        %v3008 = vsel %vm2773, %v2752, 0
        %v3010 = vsel %vm2773, %v2754, 0
        %v3012 = vsel %vm2773, %v2756, 0
        %v3014 = vsel %vm2773, %v2758, 0
        %v3016 = vsel %vm2773, %v2760, 0
        %v3018 = vsel %vm2773, %v2762, 0
        %v3020 = vsel %vm2773, %v2764, 0
        %v3022 = vsel %vm2773, %v2766, 0
        %v3024 = vsel %vm2773, %v2768, 0
        %v3026 = vsel %vm2773, %v2770, 0
        %v3028 = vsel %vm2773, %v2772, 0
        %3030 = vmatpush.msra.mxu0 0.0
        %3031 = vmatpush.msra.mxu0 0.0
        %3032 = vmatpush.msra.mxu0 0.0
        %3033 = vmatpush.msra.mxu0 0.0
        %3034 = vmatpush.msra.mxu0 0.0
        %3035 = vmatpush.msra.mxu0 0.0
        %3036 = vmatpush.msra.mxu0 0.0
        %3037 = vmatpush.msra.mxu0 0.0
        %3038 = vmatpush.msra.mxu0 0.0
        %3039 = vmatpush.msra.mxu0 0.0
        %3040 = vmatpush.msra.mxu0 0.0
        %3041 = vmatpush.msra.mxu0 0.0
        %3042 = vmatpush.msra.mxu0 0.0
        %3043 = vmatpush.msra.mxu0 0.0
        %3044 = vmatpush.msra.mxu0 0.0
        %3045 = vmatpush.msra.mxu0 %v2580
        %3046 = vmatmul.f32.gmra.mxu0 %v2774
        %v3047 = vpop.f32.mrf.mxu0
        %v3048 = vadd.f32 0.0, %v3047
        %3049 = vmatmul.f32.gmra.mxu0 %v2776
        %v3050 = vpop.f32.mrf.mxu0
        %v3051 = vadd.f32 0.0, %v3050
        %3052 = vmatmul.f32.gmra.mxu0 %v2778
        %v3053 = vpop.f32.mrf.mxu0
        %v3054 = vadd.f32 0.0, %v3053
        %3055 = vmatmul.f32.gmra.mxu0 %v2780
        %v3056 = vpop.f32.mrf.mxu0
        %v3057 = vadd.f32 0.0, %v3056
        %3058 = vmatmul.f32.gmra.mxu0 %v2782
        %v3059 = vpop.f32.mrf.mxu0
        %v3060 = vadd.f32 0.0, %v3059
        %3061 = vmatmul.f32.gmra.mxu0 %v2784
        %v3062 = vpop.f32.mrf.mxu0
        %v3063 = vadd.f32 0.0, %v3062
        %3064 = vmatmul.f32.gmra.mxu0 %v2786
        %v3065 = vpop.f32.mrf.mxu0
        %v3066 = vadd.f32 0.0, %v3065
        %3067 = vmatmul.f32.gmra.mxu0 %v2788
        %v3068 = vpop.f32.mrf.mxu0
        %v3069 = vadd.f32 0.0, %v3068
        %3070 = vmatmul.f32.gmra.mxu0 %v2790
        %v3071 = vpop.f32.mrf.mxu0
        %v3072 = vadd.f32 0.0, %v3071
        %3073 = vmatmul.f32.gmra.mxu0 %v2792
        %v3074 = vpop.f32.mrf.mxu0
        %v3075 = vadd.f32 0.0, %v3074
        %3076 = vmatmul.f32.gmra.mxu0 %v2794
        %v3077 = vpop.f32.mrf.mxu0
        %v3078 = vadd.f32 0.0, %v3077
        %3079 = vmatmul.f32.gmra.mxu0 %v2796
        %v3080 = vpop.f32.mrf.mxu0
        %v3081 = vadd.f32 0.0, %v3080
        %3082 = vmatmul.f32.gmra.mxu0 %v2798
        %v3083 = vpop.f32.mrf.mxu0
        %v3084 = vadd.f32 0.0, %v3083
        %3085 = vmatmul.f32.gmra.mxu0 %v2800
        %v3086 = vpop.f32.mrf.mxu0
        %v3087 = vadd.f32 0.0, %v3086
        %3088 = vmatmul.f32.gmra.mxu0 %v2802
        %v3089 = vpop.f32.mrf.mxu0
        %v3090 = vadd.f32 0.0, %v3089
        %3091 = vmatmul.f32.gmra.mxu0 %v2804
        %v3092 = vpop.f32.mrf.mxu0
        %v3093 = vadd.f32 0.0, %v3092
        %3094 = vmatmul.f32.gmra.mxu0 %v2806
        %v3095 = vpop.f32.mrf.mxu0
        %v3096 = vadd.f32 0.0, %v3095
        %3097 = vmatmul.f32.gmra.mxu0 %v2808
        %v3098 = vpop.f32.mrf.mxu0
        %v3099 = vadd.f32 0.0, %v3098
        %3100 = vmatmul.f32.gmra.mxu0 %v2810
        %v3101 = vpop.f32.mrf.mxu0
        %v3102 = vadd.f32 0.0, %v3101
        %3103 = vmatmul.f32.gmra.mxu0 %v2812
        %v3104 = vpop.f32.mrf.mxu0
        %v3105 = vadd.f32 0.0, %v3104
        %3106 = vmatmul.f32.gmra.mxu0 %v2814
        %v3107 = vpop.f32.mrf.mxu0
        %v3108 = vadd.f32 0.0, %v3107
        %3109 = vmatmul.f32.gmra.mxu0 %v2816
        %v3110 = vpop.f32.mrf.mxu0
        %v3111 = vadd.f32 0.0, %v3110
        %3112 = vmatmul.f32.gmra.mxu0 %v2818
        %v3113 = vpop.f32.mrf.mxu0
        %v3114 = vadd.f32 0.0, %v3113
        %3115 = vmatmul.f32.gmra.mxu0 %v2820
        %v3116 = vpop.f32.mrf.mxu0
        %v3117 = vadd.f32 0.0, %v3116
        %3118 = vmatmul.f32.gmra.mxu0 %v2822
        %v3119 = vpop.f32.mrf.mxu0
        %v3120 = vadd.f32 0.0, %v3119
        %3121 = vmatmul.f32.gmra.mxu0 %v2824
        %v3122 = vpop.f32.mrf.mxu0
        %v3123 = vadd.f32 0.0, %v3122
        %3124 = vmatmul.f32.gmra.mxu0 %v2826
        %v3125 = vpop.f32.mrf.mxu0
        %v3126 = vadd.f32 0.0, %v3125
        %3127 = vmatmul.f32.gmra.mxu0 %v2828
        %v3128 = vpop.f32.mrf.mxu0
        %v3129 = vadd.f32 0.0, %v3128
        %3130 = vmatmul.f32.gmra.mxu0 %v2830
        %v3131 = vpop.f32.mrf.mxu0
        %v3132 = vadd.f32 0.0, %v3131
        %3133 = vmatmul.f32.gmra.mxu0 %v2832
        %v3134 = vpop.f32.mrf.mxu0
        %v3135 = vadd.f32 0.0, %v3134
        %3136 = vmatmul.f32.gmra.mxu0 %v2834
        %v3137 = vpop.f32.mrf.mxu0
        %v3138 = vadd.f32 0.0, %v3137
        %3139 = vmatmul.f32.gmra.mxu0 %v2836
        %v3140 = vpop.f32.mrf.mxu0
        %v3141 = vadd.f32 0.0, %v3140
        %3142 = vmatmul.f32.gmra.mxu0 %v2838
        %v3143 = vpop.f32.mrf.mxu0
        %v3144 = vadd.f32 0.0, %v3143
        %3145 = vmatmul.f32.gmra.mxu0 %v2840
        %v3146 = vpop.f32.mrf.mxu0
        %v3147 = vadd.f32 0.0, %v3146
        %3148 = vmatmul.f32.gmra.mxu0 %v2842
        %v3149 = vpop.f32.mrf.mxu0
        %v3150 = vadd.f32 0.0, %v3149
        %3151 = vmatmul.f32.gmra.mxu0 %v2844
        %v3152 = vpop.f32.mrf.mxu0
        %v3153 = vadd.f32 0.0, %v3152
        %3154 = vmatmul.f32.gmra.mxu0 %v2846
        %v3155 = vpop.f32.mrf.mxu0
        %v3156 = vadd.f32 0.0, %v3155
        %3157 = vmatmul.f32.gmra.mxu0 %v2848
        %v3158 = vpop.f32.mrf.mxu0
        %v3159 = vadd.f32 0.0, %v3158
        %3160 = vmatmul.f32.gmra.mxu0 %v2850
        %v3161 = vpop.f32.mrf.mxu0
        %v3162 = vadd.f32 0.0, %v3161
        %3163 = vmatmul.f32.gmra.mxu0 %v2852
        %v3164 = vpop.f32.mrf.mxu0
        %v3165 = vadd.f32 0.0, %v3164
        %3166 = vmatmul.f32.gmra.mxu0 %v2854
        %v3167 = vpop.f32.mrf.mxu0
        %v3168 = vadd.f32 0.0, %v3167
        %3169 = vmatmul.f32.gmra.mxu0 %v2856
        %v3170 = vpop.f32.mrf.mxu0
        %v3171 = vadd.f32 0.0, %v3170
        %3172 = vmatmul.f32.gmra.mxu0 %v2858
        %v3173 = vpop.f32.mrf.mxu0
        %v3174 = vadd.f32 0.0, %v3173
        %3175 = vmatmul.f32.gmra.mxu0 %v2860
        %v3176 = vpop.f32.mrf.mxu0
        %v3177 = vadd.f32 0.0, %v3176
        %3178 = vmatmul.f32.gmra.mxu0 %v2862
        %v3179 = vpop.f32.mrf.mxu0
        %v3180 = vadd.f32 0.0, %v3179
        %3181 = vmatmul.f32.gmra.mxu0 %v2864
        %v3182 = vpop.f32.mrf.mxu0
        %v3183 = vadd.f32 0.0, %v3182
        %3184 = vmatmul.f32.gmra.mxu0 %v2866
        %v3185 = vpop.f32.mrf.mxu0
        %v3186 = vadd.f32 0.0, %v3185
        %3187 = vmatmul.f32.gmra.mxu0 %v2868
        %v3188 = vpop.f32.mrf.mxu0
        %v3189 = vadd.f32 0.0, %v3188
        %3190 = vmatmul.f32.gmra.mxu0 %v2870
        %v3191 = vpop.f32.mrf.mxu0
        %v3192 = vadd.f32 0.0, %v3191
        %3193 = vmatmul.f32.gmra.mxu0 %v2872
        %v3194 = vpop.f32.mrf.mxu0
        %v3195 = vadd.f32 0.0, %v3194
        %3196 = vmatmul.f32.gmra.mxu0 %v2874
        %v3197 = vpop.f32.mrf.mxu0
        %v3198 = vadd.f32 0.0, %v3197
        %3199 = vmatmul.f32.gmra.mxu0 %v2876
        %v3200 = vpop.f32.mrf.mxu0
        %v3201 = vadd.f32 0.0, %v3200
        %3202 = vmatmul.f32.gmra.mxu0 %v2878
        %v3203 = vpop.f32.mrf.mxu0
        %v3204 = vadd.f32 0.0, %v3203
        %3205 = vmatmul.f32.gmra.mxu0 %v2880
        %v3206 = vpop.f32.mrf.mxu0
        %v3207 = vadd.f32 0.0, %v3206
        %3208 = vmatmul.f32.gmra.mxu0 %v2882
        %v3209 = vpop.f32.mrf.mxu0
        %v3210 = vadd.f32 0.0, %v3209
        %3211 = vmatmul.f32.gmra.mxu0 %v2884
        %v3212 = vpop.f32.mrf.mxu0
        %v3213 = vadd.f32 0.0, %v3212
        %3214 = vmatmul.f32.gmra.mxu0 %v2886
        %v3215 = vpop.f32.mrf.mxu0
        %v3216 = vadd.f32 0.0, %v3215
        %3217 = vmatmul.f32.gmra.mxu0 %v2888
        %v3218 = vpop.f32.mrf.mxu0
        %v3219 = vadd.f32 0.0, %v3218
        %3220 = vmatmul.f32.gmra.mxu0 %v2890
        %v3221 = vpop.f32.mrf.mxu0
        %v3222 = vadd.f32 0.0, %v3221
        %3223 = vmatmul.f32.gmra.mxu0 %v2892
        %v3224 = vpop.f32.mrf.mxu0
        %v3225 = vadd.f32 0.0, %v3224
        %3226 = vmatmul.f32.gmra.mxu0 %v2894
        %v3227 = vpop.f32.mrf.mxu0
        %v3228 = vadd.f32 0.0, %v3227
        %3229 = vmatmul.f32.gmra.mxu0 %v2896
        %v3230 = vpop.f32.mrf.mxu0
        %v3231 = vadd.f32 0.0, %v3230
        %3232 = vmatmul.f32.gmra.mxu0 %v2898
        %v3233 = vpop.f32.mrf.mxu0
        %v3234 = vadd.f32 0.0, %v3233
        %3235 = vmatmul.f32.gmra.mxu0 %v2900
        %v3236 = vpop.f32.mrf.mxu0
        %v3237 = vadd.f32 0.0, %v3236
        %3238 = vmatmul.f32.gmra.mxu0 %v2902
        %v3239 = vpop.f32.mrf.mxu0
        %v3240 = vadd.f32 0.0, %v3239
        %3241 = vmatmul.f32.gmra.mxu0 %v2904
        %v3242 = vpop.f32.mrf.mxu0
        %v3243 = vadd.f32 0.0, %v3242
        %3244 = vmatmul.f32.gmra.mxu0 %v2906
        %v3245 = vpop.f32.mrf.mxu0
        %v3246 = vadd.f32 0.0, %v3245
        %3247 = vmatmul.f32.gmra.mxu0 %v2908
        %v3248 = vpop.f32.mrf.mxu0
        %v3249 = vadd.f32 0.0, %v3248
        %3250 = vmatmul.f32.gmra.mxu0 %v2910
        %v3251 = vpop.f32.mrf.mxu0
        %v3252 = vadd.f32 0.0, %v3251
        %3253 = vmatmul.f32.gmra.mxu0 %v2912
        %v3254 = vpop.f32.mrf.mxu0
        %v3255 = vadd.f32 0.0, %v3254
        %3256 = vmatmul.f32.gmra.mxu0 %v2914
        %v3257 = vpop.f32.mrf.mxu0
        %v3258 = vadd.f32 0.0, %v3257
        %3259 = vmatmul.f32.gmra.mxu0 %v2916
        %v3260 = vpop.f32.mrf.mxu0
        %v3261 = vadd.f32 0.0, %v3260
        %3262 = vmatmul.f32.gmra.mxu0 %v2918
        %v3263 = vpop.f32.mrf.mxu0
        %v3264 = vadd.f32 0.0, %v3263
        %3265 = vmatmul.f32.gmra.mxu0 %v2920
        %v3266 = vpop.f32.mrf.mxu0
        %v3267 = vadd.f32 0.0, %v3266
        %3268 = vmatmul.f32.gmra.mxu0 %v2922
        %v3269 = vpop.f32.mrf.mxu0
        %v3270 = vadd.f32 0.0, %v3269
        %3271 = vmatmul.f32.gmra.mxu0 %v2924
        %v3272 = vpop.f32.mrf.mxu0
        %v3273 = vadd.f32 0.0, %v3272
        %3274 = vmatmul.f32.gmra.mxu0 %v2926
        %v3275 = vpop.f32.mrf.mxu0
        %v3276 = vadd.f32 0.0, %v3275
        %3277 = vmatmul.f32.gmra.mxu0 %v2928
        %v3278 = vpop.f32.mrf.mxu0
        %v3279 = vadd.f32 0.0, %v3278
        %3280 = vmatmul.f32.gmra.mxu0 %v2930
        %v3281 = vpop.f32.mrf.mxu0
        %v3282 = vadd.f32 0.0, %v3281
        %3283 = vmatmul.f32.gmra.mxu0 %v2932
        %v3284 = vpop.f32.mrf.mxu0
        %v3285 = vadd.f32 0.0, %v3284
        %3286 = vmatmul.f32.gmra.mxu0 %v2934
        %v3287 = vpop.f32.mrf.mxu0
        %v3288 = vadd.f32 0.0, %v3287
        %3289 = vmatmul.f32.gmra.mxu0 %v2936
        %v3290 = vpop.f32.mrf.mxu0
        %v3291 = vadd.f32 0.0, %v3290
        %3292 = vmatmul.f32.gmra.mxu0 %v2938
        %v3293 = vpop.f32.mrf.mxu0
        %v3294 = vadd.f32 0.0, %v3293
        %3295 = vmatmul.f32.gmra.mxu0 %v2940
        %v3296 = vpop.f32.mrf.mxu0
        %v3297 = vadd.f32 0.0, %v3296
        %3298 = vmatmul.f32.gmra.mxu0 %v2942
        %v3299 = vpop.f32.mrf.mxu0
        %v3300 = vadd.f32 0.0, %v3299
        %3301 = vmatmul.f32.gmra.mxu0 %v2944
        %v3302 = vpop.f32.mrf.mxu0
        %v3303 = vadd.f32 0.0, %v3302
        %3304 = vmatmul.f32.gmra.mxu0 %v2946
        %v3305 = vpop.f32.mrf.mxu0
        %v3306 = vadd.f32 0.0, %v3305
        %3307 = vmatmul.f32.gmra.mxu0 %v2948
        %v3308 = vpop.f32.mrf.mxu0
        %v3309 = vadd.f32 0.0, %v3308
        %3310 = vmatmul.f32.gmra.mxu0 %v2950
        %v3311 = vpop.f32.mrf.mxu0
        %v3312 = vadd.f32 0.0, %v3311
        %3313 = vmatmul.f32.gmra.mxu0 %v2952
        %v3314 = vpop.f32.mrf.mxu0
        %v3315 = vadd.f32 0.0, %v3314
        %3316 = vmatmul.f32.gmra.mxu0 %v2954
        %v3317 = vpop.f32.mrf.mxu0
        %v3318 = vadd.f32 0.0, %v3317
        %3319 = vmatmul.f32.gmra.mxu0 %v2956
        %v3320 = vpop.f32.mrf.mxu0
        %v3321 = vadd.f32 0.0, %v3320
        %3322 = vmatmul.f32.gmra.mxu0 %v2958
        %v3323 = vpop.f32.mrf.mxu0
        %v3324 = vadd.f32 0.0, %v3323
        %3325 = vmatmul.f32.gmra.mxu0 %v2960
        %v3326 = vpop.f32.mrf.mxu0
        %v3327 = vadd.f32 0.0, %v3326
        %3328 = vmatmul.f32.gmra.mxu0 %v2962
        %v3329 = vpop.f32.mrf.mxu0
        %v3330 = vadd.f32 0.0, %v3329
        %3331 = vmatmul.f32.gmra.mxu0 %v2964
        %v3332 = vpop.f32.mrf.mxu0
        %v3333 = vadd.f32 0.0, %v3332
        %3334 = vmatmul.f32.gmra.mxu0 %v2966
        %v3335 = vpop.f32.mrf.mxu0
        %v3336 = vadd.f32 0.0, %v3335
        %3337 = vmatmul.f32.gmra.mxu0 %v2968
        %v3338 = vpop.f32.mrf.mxu0
        %v3339 = vadd.f32 0.0, %v3338
        %3340 = vmatmul.f32.gmra.mxu0 %v2970
        %v3341 = vpop.f32.mrf.mxu0
        %v3342 = vadd.f32 0.0, %v3341
        %3343 = vmatmul.f32.gmra.mxu0 %v2972
        %v3344 = vpop.f32.mrf.mxu0
        %v3345 = vadd.f32 0.0, %v3344
        %3346 = vmatmul.f32.gmra.mxu0 %v2974
        %v3347 = vpop.f32.mrf.mxu0
        %v3348 = vadd.f32 0.0, %v3347
        %3349 = vmatmul.f32.gmra.mxu0 %v2976
        %v3350 = vpop.f32.mrf.mxu0
        %v3351 = vadd.f32 0.0, %v3350
        %3352 = vmatmul.f32.gmra.mxu0 %v2978
        %v3353 = vpop.f32.mrf.mxu0
        %v3354 = vadd.f32 0.0, %v3353
        %3355 = vmatmul.f32.gmra.mxu0 %v2980
        %v3356 = vpop.f32.mrf.mxu0
        %v3357 = vadd.f32 0.0, %v3356
        %3358 = vmatmul.f32.gmra.mxu0 %v2982
        %v3359 = vpop.f32.mrf.mxu0
        %v3360 = vadd.f32 0.0, %v3359
        %3361 = vmatmul.f32.gmra.mxu0 %v2984
        %v3362 = vpop.f32.mrf.mxu0
        %v3363 = vadd.f32 0.0, %v3362
        %3364 = vmatmul.f32.gmra.mxu0 %v2986
        %v3365 = vpop.f32.mrf.mxu0
        %v3366 = vadd.f32 0.0, %v3365
        %3367 = vmatmul.f32.gmra.mxu0 %v2988
        %v3368 = vpop.f32.mrf.mxu0
        %v3369 = vadd.f32 0.0, %v3368
        %3370 = vmatmul.f32.gmra.mxu0 %v2990
        %v3371 = vpop.f32.mrf.mxu0
        %v3372 = vadd.f32 0.0, %v3371
        %3373 = vmatmul.f32.gmra.mxu0 %v2992
        %v3374 = vpop.f32.mrf.mxu0
        %v3375 = vadd.f32 0.0, %v3374
        %3376 = vmatmul.f32.gmra.mxu0 %v2994
        %v3377 = vpop.f32.mrf.mxu0
        %v3378 = vadd.f32 0.0, %v3377
        %3379 = vmatmul.f32.gmra.mxu0 %v2996
        %v3380 = vpop.f32.mrf.mxu0
        %v3381 = vadd.f32 0.0, %v3380
        %3382 = vmatmul.f32.gmra.mxu0 %v2998
        %v3383 = vpop.f32.mrf.mxu0
        %v3384 = vadd.f32 0.0, %v3383
        %3385 = vmatmul.f32.gmra.mxu0 %v3000
        %v3386 = vpop.f32.mrf.mxu0
        %v3387 = vadd.f32 0.0, %v3386
        %3388 = vmatmul.f32.gmra.mxu0 %v3002
        %v3389 = vpop.f32.mrf.mxu0
        %v3390 = vadd.f32 0.0, %v3389
        %3391 = vmatmul.f32.gmra.mxu0 %v3004
        %v3392 = vpop.f32.mrf.mxu0
        %v3393 = vadd.f32 0.0, %v3392
        %3394 = vmatmul.f32.gmra.mxu0 %v3006
        %v3395 = vpop.f32.mrf.mxu0
        %v3396 = vadd.f32 0.0, %v3395
        %3397 = vmatmul.f32.gmra.mxu0 %v3008
        %v3398 = vpop.f32.mrf.mxu0
        %v3399 = vadd.f32 0.0, %v3398
        %3400 = vmatmul.f32.gmra.mxu0 %v3010
        %v3401 = vpop.f32.mrf.mxu0
        %v3402 = vadd.f32 0.0, %v3401
        %3403 = vmatmul.f32.gmra.mxu0 %v3012
        %v3404 = vpop.f32.mrf.mxu0
        %v3405 = vadd.f32 0.0, %v3404
        %3406 = vmatmul.f32.gmra.mxu0 %v3014
        %v3407 = vpop.f32.mrf.mxu0
        %v3408 = vadd.f32 0.0, %v3407
        %3409 = vmatmul.f32.gmra.mxu0 %v3016
        %v3410 = vpop.f32.mrf.mxu0
        %v3411 = vadd.f32 0.0, %v3410
        %3412 = vmatmul.f32.gmra.mxu0 %v3018
        %v3413 = vpop.f32.mrf.mxu0
        %v3414 = vadd.f32 0.0, %v3413
        %3415 = vmatmul.f32.gmra.mxu0 %v3020
        %v3416 = vpop.f32.mrf.mxu0
        %v3417 = vadd.f32 0.0, %v3416
        %3418 = vmatmul.f32.gmra.mxu0 %v3022
        %v3419 = vpop.f32.mrf.mxu0
        %v3420 = vadd.f32 0.0, %v3419
        %3421 = vmatmul.f32.gmra.mxu0 %v3024
        %v3422 = vpop.f32.mrf.mxu0
        %v3423 = vadd.f32 0.0, %v3422
        %3424 = vmatmul.f32.gmra.mxu0 %v3026
        %v3425 = vpop.f32.mrf.mxu0
        %v3426 = vadd.f32 0.0, %v3425
        %3427 = vmatmul.f32.gmra.mxu0 %v3028
        %v3428 = vpop.f32.mrf.mxu0
        %v3429 = vadd.f32 0.0, %v3428
        %3430 = vdwg.mxu0
        %v3431 = vsel %vm2773, %v2129, 0
        %v3433 = vsel %vm2773, %v2130, 0
        %v3435 = vsel %vm2773, %v2131, 0
        %v3437 = vsel %vm2773, %v2132, 0
        %v3439 = vsel %vm2773, %v2133, 0
        %v3441 = vsel %vm2773, %v2134, 0
        %v3443 = vsel %vm2773, %v2135, 0
        %v3445 = vsel %vm2773, %v2136, 0
        %v3447 = vsel %vm2773, %v2137, 0
        %v3449 = vsel %vm2773, %v2138, 0
        %v3451 = vsel %vm2773, %v2139, 0
        %v3453 = vsel %vm2773, %v2140, 0
        %v3455 = vsel %vm2773, %v2141, 0
        %v3457 = vsel %vm2773, %v2142, 0
        %v3459 = vsel %vm2773, %v2143, 0
        %v3461 = vsel %vm2773, %v2144, 0
        %v3463 = vsel %vm2773, %v2145, 0
        %v3465 = vsel %vm2773, %v2146, 0
        %v3467 = vsel %vm2773, %v2147, 0
        %v3469 = vsel %vm2773, %v2148, 0
        %v3471 = vsel %vm2773, %v2149, 0
        %v3473 = vsel %vm2773, %v2150, 0
        %v3475 = vsel %vm2773, %v2151, 0
        %v3477 = vsel %vm2773, %v2152, 0
        %v3479 = vsel %vm2773, %v2153, 0
        %v3481 = vsel %vm2773, %v2154, 0
        %v3483 = vsel %vm2773, %v2155, 0
        %v3485 = vsel %vm2773, %v2156, 0
        %v3487 = vsel %vm2773, %v2157, 0
        %v3489 = vsel %vm2773, %v2158, 0
        %v3491 = vsel %vm2773, %v2159, 0
        %v3493 = vsel %vm2773, %v2160, 0
        %v3495 = vsel %vm2773, %v2355, 0
        %v3497 = vsel %vm2773, %v2357, 0
        %v3499 = vsel %vm2773, %v2359, 0
        %v3501 = vsel %vm2773, %v2361, 0
        %v3503 = vsel %vm2773, %v2363, 0
        %v3505 = vsel %vm2773, %v2365, 0
        %v3507 = vsel %vm2773, %v2367, 0
        %v3509 = vsel %vm2773, %v2369, 0
        %v3511 = vsel %vm2773, %v2371, 0
        %v3513 = vsel %vm2773, %v2373, 0
        %v3515 = vsel %vm2773, %v2375, 0
        %v3517 = vsel %vm2773, %v2377, 0
        %v3519 = vsel %vm2773, %v2379, 0
        %v3521 = vsel %vm2773, %v2381, 0
        %v3523 = vsel %vm2773, %v2383, 0
        %v3525 = vsel %vm2773, %v2385, 0
        %v3527 = vsel %vm2773, %v2387, 0
        %v3529 = vsel %vm2773, %v2389, 0
        %v3531 = vsel %vm2773, %v2391, 0
        %v3533 = vsel %vm2773, %v2393, 0
        %v3535 = vsel %vm2773, %v2395, 0
        %v3537 = vsel %vm2773, %v2397, 0
        %v3539 = vsel %vm2773, %v2399, 0
        %v3541 = vsel %vm2773, %v2401, 0
        %v3543 = vsel %vm2773, %v2403, 0
        %v3545 = vsel %vm2773, %v2405, 0
        %v3547 = vsel %vm2773, %v2407, 0
        %v3549 = vsel %vm2773, %v2409, 0
        %v3551 = vsel %vm2773, %v2411, 0
        %v3553 = vsel %vm2773, %v2413, 0
        %v3555 = vsel %vm2773, %v2415, 0
        %v3557 = vsel %vm2773, %v2417, 0
        %v3559 = vsel %vm2773, %v2419, 0
        %v3561 = vsel %vm2773, %v2421, 0
        %v3563 = vsel %vm2773, %v2423, 0
        %v3565 = vsel %vm2773, %v2425, 0
        %v3567 = vsel %vm2773, %v2427, 0
        %v3569 = vsel %vm2773, %v2429, 0
        %v3571 = vsel %vm2773, %v2431, 0
        %v3573 = vsel %vm2773, %v2433, 0
        %v3575 = vsel %vm2773, %v2435, 0
        %v3577 = vsel %vm2773, %v2437, 0
        %v3579 = vsel %vm2773, %v2439, 0
        %v3581 = vsel %vm2773, %v2441, 0
        %v3583 = vsel %vm2773, %v2443, 0
        %v3585 = vsel %vm2773, %v2445, 0
        %v3587 = vsel %vm2773, %v2447, 0
        %v3589 = vsel %vm2773, %v2449, 0
        %v3591 = vsel %vm2773, %v2451, 0
        %v3593 = vsel %vm2773, %v2453, 0
        %v3595 = vsel %vm2773, %v2455, 0
        %v3597 = vsel %vm2773, %v2457, 0
        %v3599 = vsel %vm2773, %v2459, 0
        %v3601 = vsel %vm2773, %v2461, 0
        %v3603 = vsel %vm2773, %v2463, 0
        %v3605 = vsel %vm2773, %v2465, 0
        %v3607 = vsel %vm2773, %v2467, 0
        %v3609 = vsel %vm2773, %v2469, 0
        %v3611 = vsel %vm2773, %v2471, 0
        %v3613 = vsel %vm2773, %v2473, 0
        %v3615 = vsel %vm2773, %v2475, 0
        %v3617 = vsel %vm2773, %v2477, 0
        %v3619 = vsel %vm2773, %v2479, 0
        %v3621 = vsel %vm2773, %v2481, 0
        %3623 = vmatpush.msra.mxu0 0.0
        %3624 = vmatpush.msra.mxu0 0.0
        %3625 = vmatpush.msra.mxu0 0.0
        %3626 = vmatpush.msra.mxu0 0.0
        %3627 = vmatpush.msra.mxu0 0.0
        %3628 = vmatpush.msra.mxu0 0.0
        %3629 = vmatpush.msra.mxu0 0.0
        %3630 = vmatpush.msra.mxu0 0.0
        %3631 = vmatpush.msra.mxu0 0.0
        %3632 = vmatpush.msra.mxu0 0.0
        %3633 = vmatpush.msra.mxu0 0.0
        %3634 = vmatpush.msra.mxu0 0.0
        %3635 = vmatpush.msra.mxu0 0.0
        %3636 = vmatpush.msra.mxu0 0.0
        %3637 = vmatpush.msra.mxu0 0.0
        %3638 = vmatpush.msra.mxu0 %v2482
        %3639 = vmatmul.f32.gmra.mxu0 %v3431
        %v3640 = vpop.f32.mrf.mxu0
        %v3641 = vadd.f32 %v3048, %v3640
        %3642 = vmatmul.f32.gmra.mxu0 %v3433
        %v3643 = vpop.f32.mrf.mxu0
        %v3644 = vadd.f32 %v3051, %v3643
        %3645 = vmatmul.f32.gmra.mxu0 %v3435
        %v3646 = vpop.f32.mrf.mxu0
        %v3647 = vadd.f32 %v3054, %v3646
        %3648 = vmatmul.f32.gmra.mxu0 %v3437
        %v3649 = vpop.f32.mrf.mxu0
        %v3650 = vadd.f32 %v3057, %v3649
        %3651 = vmatmul.f32.gmra.mxu0 %v3439
        %v3652 = vpop.f32.mrf.mxu0
        %v3653 = vadd.f32 %v3060, %v3652
        %3654 = vmatmul.f32.gmra.mxu0 %v3441
        %v3655 = vpop.f32.mrf.mxu0
        %v3656 = vadd.f32 %v3063, %v3655
        %3657 = vmatmul.f32.gmra.mxu0 %v3443
        %v3658 = vpop.f32.mrf.mxu0
        %v3659 = vadd.f32 %v3066, %v3658
        %3660 = vmatmul.f32.gmra.mxu0 %v3445
        %v3661 = vpop.f32.mrf.mxu0
        %v3662 = vadd.f32 %v3069, %v3661
        %3663 = vmatmul.f32.gmra.mxu0 %v3447
        %v3664 = vpop.f32.mrf.mxu0
        %v3665 = vadd.f32 %v3072, %v3664
        %3666 = vmatmul.f32.gmra.mxu0 %v3449
        %v3667 = vpop.f32.mrf.mxu0
        %v3668 = vadd.f32 %v3075, %v3667
        %3669 = vmatmul.f32.gmra.mxu0 %v3451
        %v3670 = vpop.f32.mrf.mxu0
        %v3671 = vadd.f32 %v3078, %v3670
        %3672 = vmatmul.f32.gmra.mxu0 %v3453
        %v3673 = vpop.f32.mrf.mxu0
        %v3674 = vadd.f32 %v3081, %v3673
        %3675 = vmatmul.f32.gmra.mxu0 %v3455
        %v3676 = vpop.f32.mrf.mxu0
        %v3677 = vadd.f32 %v3084, %v3676
        %3678 = vmatmul.f32.gmra.mxu0 %v3457
        %v3679 = vpop.f32.mrf.mxu0
        %v3680 = vadd.f32 %v3087, %v3679
        %3681 = vmatmul.f32.gmra.mxu0 %v3459
        %v3682 = vpop.f32.mrf.mxu0
        %v3683 = vadd.f32 %v3090, %v3682
        %3684 = vmatmul.f32.gmra.mxu0 %v3461
        %v3685 = vpop.f32.mrf.mxu0
        %v3686 = vadd.f32 %v3093, %v3685
        %3687 = vmatmul.f32.gmra.mxu0 %v3463
        %v3688 = vpop.f32.mrf.mxu0
        %v3689 = vadd.f32 %v3096, %v3688
        %3690 = vmatmul.f32.gmra.mxu0 %v3465
        %v3691 = vpop.f32.mrf.mxu0
        %v3692 = vadd.f32 %v3099, %v3691
        %3693 = vmatmul.f32.gmra.mxu0 %v3467
        %v3694 = vpop.f32.mrf.mxu0
        %v3695 = vadd.f32 %v3102, %v3694
        %3696 = vmatmul.f32.gmra.mxu0 %v3469
        %v3697 = vpop.f32.mrf.mxu0
        %v3698 = vadd.f32 %v3105, %v3697
        %3699 = vmatmul.f32.gmra.mxu0 %v3471
        %v3700 = vpop.f32.mrf.mxu0
        %v3701 = vadd.f32 %v3108, %v3700
        %3702 = vmatmul.f32.gmra.mxu0 %v3473
        %v3703 = vpop.f32.mrf.mxu0
        %v3704 = vadd.f32 %v3111, %v3703
        %3705 = vmatmul.f32.gmra.mxu0 %v3475
        %v3706 = vpop.f32.mrf.mxu0
        %v3707 = vadd.f32 %v3114, %v3706
        %3708 = vmatmul.f32.gmra.mxu0 %v3477
        %v3709 = vpop.f32.mrf.mxu0
        %v3710 = vadd.f32 %v3117, %v3709
        %3711 = vmatmul.f32.gmra.mxu0 %v3479
        %v3712 = vpop.f32.mrf.mxu0
        %v3713 = vadd.f32 %v3120, %v3712
        %3714 = vmatmul.f32.gmra.mxu0 %v3481
        %v3715 = vpop.f32.mrf.mxu0
        %v3716 = vadd.f32 %v3123, %v3715
        %3717 = vmatmul.f32.gmra.mxu0 %v3483
        %v3718 = vpop.f32.mrf.mxu0
        %v3719 = vadd.f32 %v3126, %v3718
        %3720 = vmatmul.f32.gmra.mxu0 %v3485
        %v3721 = vpop.f32.mrf.mxu0
        %v3722 = vadd.f32 %v3129, %v3721
        %3723 = vmatmul.f32.gmra.mxu0 %v3487
        %v3724 = vpop.f32.mrf.mxu0
        %v3725 = vadd.f32 %v3132, %v3724
        %3726 = vmatmul.f32.gmra.mxu0 %v3489
        %v3727 = vpop.f32.mrf.mxu0
        %v3728 = vadd.f32 %v3135, %v3727
        %3729 = vmatmul.f32.gmra.mxu0 %v3491
        %v3730 = vpop.f32.mrf.mxu0
        %v3731 = vadd.f32 %v3138, %v3730
        %3732 = vmatmul.f32.gmra.mxu0 %v3493
        %v3733 = vpop.f32.mrf.mxu0
        %v3734 = vadd.f32 %v3141, %v3733
        %3735 = vmatmul.f32.gmra.mxu0 %v2774
        %v3736 = vpop.f32.mrf.mxu0
        %v3737 = vadd.f32 %v3144, %v3736
        %3738 = vmatmul.f32.gmra.mxu0 %v2776
        %v3739 = vpop.f32.mrf.mxu0
        %v3740 = vadd.f32 %v3147, %v3739
        %3741 = vmatmul.f32.gmra.mxu0 %v2778
        %v3742 = vpop.f32.mrf.mxu0
        %v3743 = vadd.f32 %v3150, %v3742
        %3744 = vmatmul.f32.gmra.mxu0 %v2780
        %v3745 = vpop.f32.mrf.mxu0
        %v3746 = vadd.f32 %v3153, %v3745
        %3747 = vmatmul.f32.gmra.mxu0 %v2782
        %v3748 = vpop.f32.mrf.mxu0
        %v3749 = vadd.f32 %v3156, %v3748
        %3750 = vmatmul.f32.gmra.mxu0 %v2784
        %v3751 = vpop.f32.mrf.mxu0
        %v3752 = vadd.f32 %v3159, %v3751
        %3753 = vmatmul.f32.gmra.mxu0 %v2786
        %v3754 = vpop.f32.mrf.mxu0
        %v3755 = vadd.f32 %v3162, %v3754
        %3756 = vmatmul.f32.gmra.mxu0 %v2788
        %v3757 = vpop.f32.mrf.mxu0
        %v3758 = vadd.f32 %v3165, %v3757
        %3759 = vmatmul.f32.gmra.mxu0 %v2790
        %v3760 = vpop.f32.mrf.mxu0
        %v3761 = vadd.f32 %v3168, %v3760
        %3762 = vmatmul.f32.gmra.mxu0 %v2792
        %v3763 = vpop.f32.mrf.mxu0
        %v3764 = vadd.f32 %v3171, %v3763
        %3765 = vmatmul.f32.gmra.mxu0 %v2794
        %v3766 = vpop.f32.mrf.mxu0
        %v3767 = vadd.f32 %v3174, %v3766
        %3768 = vmatmul.f32.gmra.mxu0 %v2796
        %v3769 = vpop.f32.mrf.mxu0
        %v3770 = vadd.f32 %v3177, %v3769
        %3771 = vmatmul.f32.gmra.mxu0 %v2798
        %v3772 = vpop.f32.mrf.mxu0
        %v3773 = vadd.f32 %v3180, %v3772
        %3774 = vmatmul.f32.gmra.mxu0 %v2800
        %v3775 = vpop.f32.mrf.mxu0
        %v3776 = vadd.f32 %v3183, %v3775
        %3777 = vmatmul.f32.gmra.mxu0 %v2802
        %v3778 = vpop.f32.mrf.mxu0
        %v3779 = vadd.f32 %v3186, %v3778
        %3780 = vmatmul.f32.gmra.mxu0 %v2804
        %v3781 = vpop.f32.mrf.mxu0
        %v3782 = vadd.f32 %v3189, %v3781
        %3783 = vmatmul.f32.gmra.mxu0 %v2806
        %v3784 = vpop.f32.mrf.mxu0
        %v3785 = vadd.f32 %v3192, %v3784
        %3786 = vmatmul.f32.gmra.mxu0 %v2808
        %v3787 = vpop.f32.mrf.mxu0
        %v3788 = vadd.f32 %v3195, %v3787
        %3789 = vmatmul.f32.gmra.mxu0 %v2810
        %v3790 = vpop.f32.mrf.mxu0
        %v3791 = vadd.f32 %v3198, %v3790
        %3792 = vmatmul.f32.gmra.mxu0 %v2812
        %v3793 = vpop.f32.mrf.mxu0
        %v3794 = vadd.f32 %v3201, %v3793
        %3795 = vmatmul.f32.gmra.mxu0 %v2814
        %v3796 = vpop.f32.mrf.mxu0
        %v3797 = vadd.f32 %v3204, %v3796
        %3798 = vmatmul.f32.gmra.mxu0 %v2816
        %v3799 = vpop.f32.mrf.mxu0
        %v3800 = vadd.f32 %v3207, %v3799
        %3801 = vmatmul.f32.gmra.mxu0 %v2818
        %v3802 = vpop.f32.mrf.mxu0
        %v3803 = vadd.f32 %v3210, %v3802
        %3804 = vmatmul.f32.gmra.mxu0 %v2820
        %v3805 = vpop.f32.mrf.mxu0
        %v3806 = vadd.f32 %v3213, %v3805
        %3807 = vmatmul.f32.gmra.mxu0 %v2822
        %v3808 = vpop.f32.mrf.mxu0
        %v3809 = vadd.f32 %v3216, %v3808
        %3810 = vmatmul.f32.gmra.mxu0 %v2824
        %v3811 = vpop.f32.mrf.mxu0
        %v3812 = vadd.f32 %v3219, %v3811
        %3813 = vmatmul.f32.gmra.mxu0 %v2826
        %v3814 = vpop.f32.mrf.mxu0
        %v3815 = vadd.f32 %v3222, %v3814
        %3816 = vmatmul.f32.gmra.mxu0 %v2828
        %v3817 = vpop.f32.mrf.mxu0
        %v3818 = vadd.f32 %v3225, %v3817
        %3819 = vmatmul.f32.gmra.mxu0 %v2830
        %v3820 = vpop.f32.mrf.mxu0
        %v3821 = vadd.f32 %v3228, %v3820
        %3822 = vmatmul.f32.gmra.mxu0 %v2832
        %v3823 = vpop.f32.mrf.mxu0
        %v3824 = vadd.f32 %v3231, %v3823
        %3825 = vmatmul.f32.gmra.mxu0 %v2834
        %v3826 = vpop.f32.mrf.mxu0
        %v3827 = vadd.f32 %v3234, %v3826
        %3828 = vmatmul.f32.gmra.mxu0 %v2836
        %v3829 = vpop.f32.mrf.mxu0
        %v3830 = vadd.f32 %v3237, %v3829
        %3831 = vmatmul.f32.gmra.mxu0 %v3495
        %v3832 = vpop.f32.mrf.mxu0
        %v3833 = vadd.f32 %v3240, %v3832
        %3834 = vmatmul.f32.gmra.mxu0 %v3497
        %v3835 = vpop.f32.mrf.mxu0
        %v3836 = vadd.f32 %v3243, %v3835
        %3837 = vmatmul.f32.gmra.mxu0 %v3499
        %v3838 = vpop.f32.mrf.mxu0
        %v3839 = vadd.f32 %v3246, %v3838
        %3840 = vmatmul.f32.gmra.mxu0 %v3501
        %v3841 = vpop.f32.mrf.mxu0
        %v3842 = vadd.f32 %v3249, %v3841
        %3843 = vmatmul.f32.gmra.mxu0 %v3503
        %v3844 = vpop.f32.mrf.mxu0
        %v3845 = vadd.f32 %v3252, %v3844
        %3846 = vmatmul.f32.gmra.mxu0 %v3505
        %v3847 = vpop.f32.mrf.mxu0
        %v3848 = vadd.f32 %v3255, %v3847
        %3849 = vmatmul.f32.gmra.mxu0 %v3507
        %v3850 = vpop.f32.mrf.mxu0
        %v3851 = vadd.f32 %v3258, %v3850
        %3852 = vmatmul.f32.gmra.mxu0 %v3509
        %v3853 = vpop.f32.mrf.mxu0
        %v3854 = vadd.f32 %v3261, %v3853
        %3855 = vmatmul.f32.gmra.mxu0 %v3511
        %v3856 = vpop.f32.mrf.mxu0
        %v3857 = vadd.f32 %v3264, %v3856
        %3858 = vmatmul.f32.gmra.mxu0 %v3513
        %v3859 = vpop.f32.mrf.mxu0
        %v3860 = vadd.f32 %v3267, %v3859
        %3861 = vmatmul.f32.gmra.mxu0 %v3515
        %v3862 = vpop.f32.mrf.mxu0
        %v3863 = vadd.f32 %v3270, %v3862
        %3864 = vmatmul.f32.gmra.mxu0 %v3517
        %v3865 = vpop.f32.mrf.mxu0
        %v3866 = vadd.f32 %v3273, %v3865
        %3867 = vmatmul.f32.gmra.mxu0 %v3519
        %v3868 = vpop.f32.mrf.mxu0
        %v3869 = vadd.f32 %v3276, %v3868
        %3870 = vmatmul.f32.gmra.mxu0 %v3521
        %v3871 = vpop.f32.mrf.mxu0
        %v3872 = vadd.f32 %v3279, %v3871
        %3873 = vmatmul.f32.gmra.mxu0 %v3523
        %v3874 = vpop.f32.mrf.mxu0
        %v3875 = vadd.f32 %v3282, %v3874
        %3876 = vmatmul.f32.gmra.mxu0 %v3525
        %v3877 = vpop.f32.mrf.mxu0
        %v3878 = vadd.f32 %v3285, %v3877
        %3879 = vmatmul.f32.gmra.mxu0 %v3527
        %v3880 = vpop.f32.mrf.mxu0
        %v3881 = vadd.f32 %v3288, %v3880
        %3882 = vmatmul.f32.gmra.mxu0 %v3529
        %v3883 = vpop.f32.mrf.mxu0
        %v3884 = vadd.f32 %v3291, %v3883
        %3885 = vmatmul.f32.gmra.mxu0 %v3531
        %v3886 = vpop.f32.mrf.mxu0
        %v3887 = vadd.f32 %v3294, %v3886
        %3888 = vmatmul.f32.gmra.mxu0 %v3533
        %v3889 = vpop.f32.mrf.mxu0
        %v3890 = vadd.f32 %v3297, %v3889
        %3891 = vmatmul.f32.gmra.mxu0 %v3535
        %v3892 = vpop.f32.mrf.mxu0
        %v3893 = vadd.f32 %v3300, %v3892
        %3894 = vmatmul.f32.gmra.mxu0 %v3537
        %v3895 = vpop.f32.mrf.mxu0
        %v3896 = vadd.f32 %v3303, %v3895
        %3897 = vmatmul.f32.gmra.mxu0 %v3539
        %v3898 = vpop.f32.mrf.mxu0
        %v3899 = vadd.f32 %v3306, %v3898
        %3900 = vmatmul.f32.gmra.mxu0 %v3541
        %v3901 = vpop.f32.mrf.mxu0
        %v3902 = vadd.f32 %v3309, %v3901
        %3903 = vmatmul.f32.gmra.mxu0 %v3543
        %v3904 = vpop.f32.mrf.mxu0
        %v3905 = vadd.f32 %v3312, %v3904
        %3906 = vmatmul.f32.gmra.mxu0 %v3545
        %v3907 = vpop.f32.mrf.mxu0
        %v3908 = vadd.f32 %v3315, %v3907
        %3909 = vmatmul.f32.gmra.mxu0 %v3547
        %v3910 = vpop.f32.mrf.mxu0
        %v3911 = vadd.f32 %v3318, %v3910
        %3912 = vmatmul.f32.gmra.mxu0 %v3549
        %v3913 = vpop.f32.mrf.mxu0
        %v3914 = vadd.f32 %v3321, %v3913
        %3915 = vmatmul.f32.gmra.mxu0 %v3551
        %v3916 = vpop.f32.mrf.mxu0
        %v3917 = vadd.f32 %v3324, %v3916
        %3918 = vmatmul.f32.gmra.mxu0 %v3553
        %v3919 = vpop.f32.mrf.mxu0
        %v3920 = vadd.f32 %v3327, %v3919
        %3921 = vmatmul.f32.gmra.mxu0 %v3555
        %v3922 = vpop.f32.mrf.mxu0
        %v3923 = vadd.f32 %v3330, %v3922
        %3924 = vmatmul.f32.gmra.mxu0 %v3557
        %v3925 = vpop.f32.mrf.mxu0
        %v3926 = vadd.f32 %v3333, %v3925
        %3927 = vmatmul.f32.gmra.mxu0 %v3559
        %v3928 = vpop.f32.mrf.mxu0
        %v3929 = vadd.f32 %v3336, %v3928
        %3930 = vmatmul.f32.gmra.mxu0 %v3561
        %v3931 = vpop.f32.mrf.mxu0
        %v3932 = vadd.f32 %v3339, %v3931
        %3933 = vmatmul.f32.gmra.mxu0 %v3563
        %v3934 = vpop.f32.mrf.mxu0
        %v3935 = vadd.f32 %v3342, %v3934
        %3936 = vmatmul.f32.gmra.mxu0 %v3565
        %v3937 = vpop.f32.mrf.mxu0
        %v3938 = vadd.f32 %v3345, %v3937
        %3939 = vmatmul.f32.gmra.mxu0 %v3567
        %v3940 = vpop.f32.mrf.mxu0
        %v3941 = vadd.f32 %v3348, %v3940
        %3942 = vmatmul.f32.gmra.mxu0 %v3569
        %v3943 = vpop.f32.mrf.mxu0
        %v3944 = vadd.f32 %v3351, %v3943
        %3945 = vmatmul.f32.gmra.mxu0 %v3571
        %v3946 = vpop.f32.mrf.mxu0
        %v3947 = vadd.f32 %v3354, %v3946
        %3948 = vmatmul.f32.gmra.mxu0 %v3573
        %v3949 = vpop.f32.mrf.mxu0
        %v3950 = vadd.f32 %v3357, %v3949
        %3951 = vmatmul.f32.gmra.mxu0 %v3575
        %v3952 = vpop.f32.mrf.mxu0
        %v3953 = vadd.f32 %v3360, %v3952
        %3954 = vmatmul.f32.gmra.mxu0 %v3577
        %v3955 = vpop.f32.mrf.mxu0
        %v3956 = vadd.f32 %v3363, %v3955
        %3957 = vmatmul.f32.gmra.mxu0 %v3579
        %v3958 = vpop.f32.mrf.mxu0
        %v3959 = vadd.f32 %v3366, %v3958
        %3960 = vmatmul.f32.gmra.mxu0 %v3581
        %v3961 = vpop.f32.mrf.mxu0
        %v3962 = vadd.f32 %v3369, %v3961
        %3963 = vmatmul.f32.gmra.mxu0 %v3583
        %v3964 = vpop.f32.mrf.mxu0
        %v3965 = vadd.f32 %v3372, %v3964
        %3966 = vmatmul.f32.gmra.mxu0 %v3585
        %v3967 = vpop.f32.mrf.mxu0
        %v3968 = vadd.f32 %v3375, %v3967
        %3969 = vmatmul.f32.gmra.mxu0 %v3587
        %v3970 = vpop.f32.mrf.mxu0
        %v3971 = vadd.f32 %v3378, %v3970
        %3972 = vmatmul.f32.gmra.mxu0 %v3589
        %v3973 = vpop.f32.mrf.mxu0
        %v3974 = vadd.f32 %v3381, %v3973
        %3975 = vmatmul.f32.gmra.mxu0 %v3591
        %v3976 = vpop.f32.mrf.mxu0
        %v3977 = vadd.f32 %v3384, %v3976
        %3978 = vmatmul.f32.gmra.mxu0 %v3593
        %v3979 = vpop.f32.mrf.mxu0
        %v3980 = vadd.f32 %v3387, %v3979
        %3981 = vmatmul.f32.gmra.mxu0 %v3595
        %v3982 = vpop.f32.mrf.mxu0
        %v3983 = vadd.f32 %v3390, %v3982
        %3984 = vmatmul.f32.gmra.mxu0 %v3597
        %v3985 = vpop.f32.mrf.mxu0
        %v3986 = vadd.f32 %v3393, %v3985
        %3987 = vmatmul.f32.gmra.mxu0 %v3599
        %v3988 = vpop.f32.mrf.mxu0
        %v3989 = vadd.f32 %v3396, %v3988
        %3990 = vmatmul.f32.gmra.mxu0 %v3601
        %v3991 = vpop.f32.mrf.mxu0
        %v3992 = vadd.f32 %v3399, %v3991
        %3993 = vmatmul.f32.gmra.mxu0 %v3603
        %v3994 = vpop.f32.mrf.mxu0
        %v3995 = vadd.f32 %v3402, %v3994
        %3996 = vmatmul.f32.gmra.mxu0 %v3605
        %v3997 = vpop.f32.mrf.mxu0
        %v3998 = vadd.f32 %v3405, %v3997
        %3999 = vmatmul.f32.gmra.mxu0 %v3607
        %v4000 = vpop.f32.mrf.mxu0
        %v4001 = vadd.f32 %v3408, %v4000
        %4002 = vmatmul.f32.gmra.mxu0 %v3609
        %v4003 = vpop.f32.mrf.mxu0
        %v4004 = vadd.f32 %v3411, %v4003
        %4005 = vmatmul.f32.gmra.mxu0 %v3611
        %v4006 = vpop.f32.mrf.mxu0
        %v4007 = vadd.f32 %v3414, %v4006
        %4008 = vmatmul.f32.gmra.mxu0 %v3613
        %v4009 = vpop.f32.mrf.mxu0
        %v4010 = vadd.f32 %v3417, %v4009
        %4011 = vmatmul.f32.gmra.mxu0 %v3615
        %v4012 = vpop.f32.mrf.mxu0
        %v4013 = vadd.f32 %v3420, %v4012
        %4014 = vmatmul.f32.gmra.mxu0 %v3617
        %v4015 = vpop.f32.mrf.mxu0
        %v4016 = vadd.f32 %v3423, %v4015
        %4017 = vmatmul.f32.gmra.mxu0 %v3619
        %v4018 = vpop.f32.mrf.mxu0
        %v4019 = vadd.f32 %v3426, %v4018
        %4020 = vmatmul.f32.gmra.mxu0 %v3621
        %v4021 = vpop.f32.mrf.mxu0
        %v4022 = vadd.f32 %v3429, %v4021
        %4023 = vdwg.mxu0
        %4056 = vrot.lane.b32.xlu0 %v2162, 120
        %v4057 = vpop.permute.xlu0 %4056
        %4058 = vrot.lane.b32.xlu0 %v2163, 120
        %v4059 = vpop.permute.xlu0 %4058
        %4060 = vrot.lane.b32.xlu0 %v2164, 120
        %v4061 = vpop.permute.xlu0 %4060
        %4062 = vrot.lane.b32.xlu0 %v2165, 120
        %v4063 = vpop.permute.xlu0 %4062
        %4064 = vrot.lane.b32.xlu0 %v2166, 120
        %v4065 = vpop.permute.xlu0 %4064
        %4066 = vrot.lane.b32.xlu0 %v2167, 120
        %v4067 = vpop.permute.xlu0 %4066
        %4068 = vrot.lane.b32.xlu0 %v2168, 120
        %v4069 = vpop.permute.xlu0 %4068
        %4070 = vrot.lane.b32.xlu0 %v2169, 120
        %v4071 = vpop.permute.xlu0 %4070
        %4072 = vrot.lane.b32.xlu0 %v2170, 120
        %v4073 = vpop.permute.xlu0 %4072
        %4074 = vrot.lane.b32.xlu0 %v2171, 120
        %v4075 = vpop.permute.xlu0 %4074
        %4076 = vrot.lane.b32.xlu0 %v2172, 120
        %v4077 = vpop.permute.xlu0 %4076
        %4078 = vrot.lane.b32.xlu0 %v2173, 120
        %v4079 = vpop.permute.xlu0 %4078
        %4080 = vrot.lane.b32.xlu0 %v2174, 120
        %v4081 = vpop.permute.xlu0 %4080
        %4082 = vrot.lane.b32.xlu0 %v2175, 120
        %v4083 = vpop.permute.xlu0 %4082
        %4084 = vrot.lane.b32.xlu0 %v2176, 120
        %v4085 = vpop.permute.xlu0 %4084
        %4086 = vrot.lane.b32.xlu0 %v2177, 120
        %v4087 = vpop.permute.xlu0 %4086
        %4088 = vrot.lane.b32.xlu0 %v2178, 120
        %v4089 = vpop.permute.xlu0 %4088
        %4090 = vrot.lane.b32.xlu0 %v2179, 120
        %v4091 = vpop.permute.xlu0 %4090
        %4092 = vrot.lane.b32.xlu0 %v2180, 120
        %v4093 = vpop.permute.xlu0 %4092
        %4094 = vrot.lane.b32.xlu0 %v2181, 120
        %v4095 = vpop.permute.xlu0 %4094
        %4096 = vrot.lane.b32.xlu0 %v2182, 120
        %v4097 = vpop.permute.xlu0 %4096
        %4098 = vrot.lane.b32.xlu0 %v2183, 120
        %v4099 = vpop.permute.xlu0 %4098
        %4100 = vrot.lane.b32.xlu0 %v2184, 120
        %v4101 = vpop.permute.xlu0 %4100
        %4102 = vrot.lane.b32.xlu0 %v2185, 120
        %v4103 = vpop.permute.xlu0 %4102
        %4104 = vrot.lane.b32.xlu0 %v2186, 120
        %v4105 = vpop.permute.xlu0 %4104
        %4106 = vrot.lane.b32.xlu0 %v2187, 120
        %v4107 = vpop.permute.xlu0 %4106
        %4108 = vrot.lane.b32.xlu0 %v2188, 120
        %v4109 = vpop.permute.xlu0 %4108
        %4110 = vrot.lane.b32.xlu0 %v2189, 120
        %v4111 = vpop.permute.xlu0 %4110
        %4112 = vrot.lane.b32.xlu0 %v2190, 120
        %v4113 = vpop.permute.xlu0 %4112
        %4114 = vrot.lane.b32.xlu0 %v2191, 120
        %v4115 = vpop.permute.xlu0 %4114
        %4116 = vrot.lane.b32.xlu0 %v2192, 120
        %v4117 = vpop.permute.xlu0 %4116
        %4118 = vrot.lane.b32.xlu0 %v2193, 120
        %v4119 = vpop.permute.xlu0 %4118
        %4120 = vrot.lane.b32.xlu0 %v2162, 112
        %v4121 = vpop.permute.xlu0 %4120
        %4122 = vrot.lane.b32.xlu0 %v2163, 112
        %v4123 = vpop.permute.xlu0 %4122
        %4124 = vrot.lane.b32.xlu0 %v2164, 112
        %v4125 = vpop.permute.xlu0 %4124
        %4126 = vrot.lane.b32.xlu0 %v2165, 112
        %v4127 = vpop.permute.xlu0 %4126
        %4128 = vrot.lane.b32.xlu0 %v2166, 112
        %v4129 = vpop.permute.xlu0 %4128
        %4130 = vrot.lane.b32.xlu0 %v2167, 112
        %v4131 = vpop.permute.xlu0 %4130
        %4132 = vrot.lane.b32.xlu0 %v2168, 112
        %v4133 = vpop.permute.xlu0 %4132
        %4134 = vrot.lane.b32.xlu0 %v2169, 112
        %v4135 = vpop.permute.xlu0 %4134
        %4136 = vrot.lane.b32.xlu0 %v2170, 112
        %v4137 = vpop.permute.xlu0 %4136
        %4138 = vrot.lane.b32.xlu0 %v2171, 112
        %v4139 = vpop.permute.xlu0 %4138
        %4140 = vrot.lane.b32.xlu0 %v2172, 112
        %v4141 = vpop.permute.xlu0 %4140
        %4142 = vrot.lane.b32.xlu0 %v2173, 112
        %v4143 = vpop.permute.xlu0 %4142
        %4144 = vrot.lane.b32.xlu0 %v2174, 112
        %v4145 = vpop.permute.xlu0 %4144
        %4146 = vrot.lane.b32.xlu0 %v2175, 112
        %v4147 = vpop.permute.xlu0 %4146
        %4148 = vrot.lane.b32.xlu0 %v2176, 112
        %v4149 = vpop.permute.xlu0 %4148
        %4150 = vrot.lane.b32.xlu0 %v2177, 112
        %v4151 = vpop.permute.xlu0 %4150
        %4152 = vrot.lane.b32.xlu0 %v2178, 112
        %v4153 = vpop.permute.xlu0 %4152
        %4154 = vrot.lane.b32.xlu0 %v2179, 112
        %v4155 = vpop.permute.xlu0 %4154
        %4156 = vrot.lane.b32.xlu0 %v2180, 112
        %v4157 = vpop.permute.xlu0 %4156
        %4158 = vrot.lane.b32.xlu0 %v2181, 112
        %v4159 = vpop.permute.xlu0 %4158
        %4160 = vrot.lane.b32.xlu0 %v2182, 112
        %v4161 = vpop.permute.xlu0 %4160
        %4162 = vrot.lane.b32.xlu0 %v2183, 112
        %v4163 = vpop.permute.xlu0 %4162
        %4164 = vrot.lane.b32.xlu0 %v2184, 112
        %v4165 = vpop.permute.xlu0 %4164
        %4166 = vrot.lane.b32.xlu0 %v2185, 112
        %v4167 = vpop.permute.xlu0 %4166
        %4168 = vrot.lane.b32.xlu0 %v2186, 112
        %v4169 = vpop.permute.xlu0 %4168
        %4170 = vrot.lane.b32.xlu0 %v2187, 112
        %v4171 = vpop.permute.xlu0 %4170
        %4172 = vrot.lane.b32.xlu0 %v2188, 112
        %v4173 = vpop.permute.xlu0 %4172
        %4174 = vrot.lane.b32.xlu0 %v2189, 112
        %v4175 = vpop.permute.xlu0 %4174
        %4176 = vrot.lane.b32.xlu0 %v2190, 112
        %v4177 = vpop.permute.xlu0 %4176
        %4178 = vrot.lane.b32.xlu0 %v2191, 112
        %v4179 = vpop.permute.xlu0 %4178
        %4180 = vrot.lane.b32.xlu0 %v2192, 112
        %v4181 = vpop.permute.xlu0 %4180
        %4182 = vrot.lane.b32.xlu0 %v2193, 112
        %v4183 = vpop.permute.xlu0 %4182
        %4184 = vrot.lane.b32.xlu0 %v2162, 104
        %v4185 = vpop.permute.xlu0 %4184
        %4186 = vrot.lane.b32.xlu0 %v2163, 104
        %v4187 = vpop.permute.xlu0 %4186
        %4188 = vrot.lane.b32.xlu0 %v2164, 104
        %v4189 = vpop.permute.xlu0 %4188
        %4190 = vrot.lane.b32.xlu0 %v2165, 104
        %v4191 = vpop.permute.xlu0 %4190
        %4192 = vrot.lane.b32.xlu0 %v2166, 104
        %v4193 = vpop.permute.xlu0 %4192
        %4194 = vrot.lane.b32.xlu0 %v2167, 104
        %v4195 = vpop.permute.xlu0 %4194
        %4196 = vrot.lane.b32.xlu0 %v2168, 104
        %v4197 = vpop.permute.xlu0 %4196
        %4198 = vrot.lane.b32.xlu0 %v2169, 104
        %v4199 = vpop.permute.xlu0 %4198
        %4200 = vrot.lane.b32.xlu0 %v2170, 104
        %v4201 = vpop.permute.xlu0 %4200
        %4202 = vrot.lane.b32.xlu0 %v2171, 104
        %v4203 = vpop.permute.xlu0 %4202
        %4204 = vrot.lane.b32.xlu0 %v2172, 104
        %v4205 = vpop.permute.xlu0 %4204
        %4206 = vrot.lane.b32.xlu0 %v2173, 104
        %v4207 = vpop.permute.xlu0 %4206
        %4208 = vrot.lane.b32.xlu0 %v2174, 104
        %v4209 = vpop.permute.xlu0 %4208
        %4210 = vrot.lane.b32.xlu0 %v2175, 104
        %v4211 = vpop.permute.xlu0 %4210
        %4212 = vrot.lane.b32.xlu0 %v2176, 104
        %v4213 = vpop.permute.xlu0 %4212
        %4214 = vrot.lane.b32.xlu0 %v2177, 104
        %v4215 = vpop.permute.xlu0 %4214
        %4216 = vrot.lane.b32.xlu0 %v2178, 104
        %v4217 = vpop.permute.xlu0 %4216
        %4218 = vrot.lane.b32.xlu0 %v2179, 104
        %v4219 = vpop.permute.xlu0 %4218
        %4220 = vrot.lane.b32.xlu0 %v2180, 104
        %v4221 = vpop.permute.xlu0 %4220
        %4222 = vrot.lane.b32.xlu0 %v2181, 104
        %v4223 = vpop.permute.xlu0 %4222
        %4224 = vrot.lane.b32.xlu0 %v2182, 104
        %v4225 = vpop.permute.xlu0 %4224
        %4226 = vrot.lane.b32.xlu0 %v2183, 104
        %v4227 = vpop.permute.xlu0 %4226
        %4228 = vrot.lane.b32.xlu0 %v2184, 104
        %v4229 = vpop.permute.xlu0 %4228
        %4230 = vrot.lane.b32.xlu0 %v2185, 104
        %v4231 = vpop.permute.xlu0 %4230
        %4232 = vrot.lane.b32.xlu0 %v2186, 104
        %v4233 = vpop.permute.xlu0 %4232
        %4234 = vrot.lane.b32.xlu0 %v2187, 104
        %v4235 = vpop.permute.xlu0 %4234
        %4236 = vrot.lane.b32.xlu0 %v2188, 104
        %v4237 = vpop.permute.xlu0 %4236
        %4238 = vrot.lane.b32.xlu0 %v2189, 104
        %v4239 = vpop.permute.xlu0 %4238
        %4240 = vrot.lane.b32.xlu0 %v2190, 104
        %v4241 = vpop.permute.xlu0 %4240
        %4242 = vrot.lane.b32.xlu0 %v2191, 104
        %v4243 = vpop.permute.xlu0 %4242
        %4244 = vrot.lane.b32.xlu0 %v2192, 104
        %v4245 = vpop.permute.xlu0 %4244
        %4246 = vrot.lane.b32.xlu0 %v2193, 104
        %v4247 = vpop.permute.xlu0 %4246
        %s4248 = scalar_lea.vmem [#allocation10], 16
        %v4249 = vld [vmem:[%s4248] sm:$0xff]
        %v4250 = vsel %vm2773, %v2162, 0
        %v4252 = vsel %vm2773, %v2163, 0
        %v4254 = vsel %vm2773, %v2164, 0
        %v4256 = vsel %vm2773, %v2165, 0
        %v4258 = vsel %vm2773, %v2166, 0
        %v4260 = vsel %vm2773, %v2167, 0
        %v4262 = vsel %vm2773, %v2168, 0
        %v4264 = vsel %vm2773, %v2169, 0
        %v4266 = vsel %vm2773, %v2170, 0
        %v4268 = vsel %vm2773, %v2171, 0
        %v4270 = vsel %vm2773, %v2172, 0
        %v4272 = vsel %vm2773, %v2173, 0
        %v4274 = vsel %vm2773, %v2174, 0
        %v4276 = vsel %vm2773, %v2175, 0
        %v4278 = vsel %vm2773, %v2176, 0
        %v4280 = vsel %vm2773, %v2177, 0
        %v4282 = vsel %vm2773, %v2178, 0
        %v4284 = vsel %vm2773, %v2179, 0
        %v4286 = vsel %vm2773, %v2180, 0
        %v4288 = vsel %vm2773, %v2181, 0
        %v4290 = vsel %vm2773, %v2182, 0
        %v4292 = vsel %vm2773, %v2183, 0
        %v4294 = vsel %vm2773, %v2184, 0
        %v4296 = vsel %vm2773, %v2185, 0
        %v4298 = vsel %vm2773, %v2186, 0
        %v4300 = vsel %vm2773, %v2187, 0
        %v4302 = vsel %vm2773, %v2188, 0
        %v4304 = vsel %vm2773, %v2189, 0
        %v4306 = vsel %vm2773, %v2190, 0
        %v4308 = vsel %vm2773, %v2191, 0
        %v4310 = vsel %vm2773, %v2192, 0
        %v4312 = vsel %vm2773, %v2193, 0
        %v4314 = vsel %vm2773, %v4057, 0
        %v4316 = vsel %vm2773, %v4059, 0
        %v4318 = vsel %vm2773, %v4061, 0
        %v4320 = vsel %vm2773, %v4063, 0
        %v4322 = vsel %vm2773, %v4065, 0
        %v4324 = vsel %vm2773, %v4067, 0
        %v4326 = vsel %vm2773, %v4069, 0
        %v4328 = vsel %vm2773, %v4071, 0
        %v4330 = vsel %vm2773, %v4073, 0
        %v4332 = vsel %vm2773, %v4075, 0
        %v4334 = vsel %vm2773, %v4077, 0
        %v4336 = vsel %vm2773, %v4079, 0
        %v4338 = vsel %vm2773, %v4081, 0
        %v4340 = vsel %vm2773, %v4083, 0
        %v4342 = vsel %vm2773, %v4085, 0
        %v4344 = vsel %vm2773, %v4087, 0
        %v4346 = vsel %vm2773, %v4089, 0
        %v4348 = vsel %vm2773, %v4091, 0
        %v4350 = vsel %vm2773, %v4093, 0
        %v4352 = vsel %vm2773, %v4095, 0
        %v4354 = vsel %vm2773, %v4097, 0
        %v4356 = vsel %vm2773, %v4099, 0
        %v4358 = vsel %vm2773, %v4101, 0
        %v4360 = vsel %vm2773, %v4103, 0
        %v4362 = vsel %vm2773, %v4105, 0
        %v4364 = vsel %vm2773, %v4107, 0
        %v4366 = vsel %vm2773, %v4109, 0
        %v4368 = vsel %vm2773, %v4111, 0
        %v4370 = vsel %vm2773, %v4113, 0
        %v4372 = vsel %vm2773, %v4115, 0
        %v4374 = vsel %vm2773, %v4117, 0
        %v4376 = vsel %vm2773, %v4119, 0
        %v4378 = vsel %vm2773, %v4121, 0
        %v4380 = vsel %vm2773, %v4123, 0
        %v4382 = vsel %vm2773, %v4125, 0
        %v4384 = vsel %vm2773, %v4127, 0
        %v4386 = vsel %vm2773, %v4129, 0
        %v4388 = vsel %vm2773, %v4131, 0
        %v4390 = vsel %vm2773, %v4133, 0
        %v4392 = vsel %vm2773, %v4135, 0
        %v4394 = vsel %vm2773, %v4137, 0
        %v4396 = vsel %vm2773, %v4139, 0
        %v4398 = vsel %vm2773, %v4141, 0
        %v4400 = vsel %vm2773, %v4143, 0
        %v4402 = vsel %vm2773, %v4145, 0
        %v4404 = vsel %vm2773, %v4147, 0
        %v4406 = vsel %vm2773, %v4149, 0
        %v4408 = vsel %vm2773, %v4151, 0
        %v4410 = vsel %vm2773, %v4153, 0
        %v4412 = vsel %vm2773, %v4155, 0
        %v4414 = vsel %vm2773, %v4157, 0
        %v4416 = vsel %vm2773, %v4159, 0
        %v4418 = vsel %vm2773, %v4161, 0
        %v4420 = vsel %vm2773, %v4163, 0
        %v4422 = vsel %vm2773, %v4165, 0
        %v4424 = vsel %vm2773, %v4167, 0
        %v4426 = vsel %vm2773, %v4169, 0
        %v4428 = vsel %vm2773, %v4171, 0
        %v4430 = vsel %vm2773, %v4173, 0
        %v4432 = vsel %vm2773, %v4175, 0
        %v4434 = vsel %vm2773, %v4177, 0
        %v4436 = vsel %vm2773, %v4179, 0
        %v4438 = vsel %vm2773, %v4181, 0
        %v4440 = vsel %vm2773, %v4183, 0
        %v4442 = vsel %vm2773, %v4185, 0
        %v4444 = vsel %vm2773, %v4187, 0
        %v4446 = vsel %vm2773, %v4189, 0
        %v4448 = vsel %vm2773, %v4191, 0
        %v4450 = vsel %vm2773, %v4193, 0
        %v4452 = vsel %vm2773, %v4195, 0
        %v4454 = vsel %vm2773, %v4197, 0
        %v4456 = vsel %vm2773, %v4199, 0
        %v4458 = vsel %vm2773, %v4201, 0
        %v4460 = vsel %vm2773, %v4203, 0
        %v4462 = vsel %vm2773, %v4205, 0
        %v4464 = vsel %vm2773, %v4207, 0
        %v4466 = vsel %vm2773, %v4209, 0
        %v4468 = vsel %vm2773, %v4211, 0
        %v4470 = vsel %vm2773, %v4213, 0
        %v4472 = vsel %vm2773, %v4215, 0
        %v4474 = vsel %vm2773, %v4217, 0
        %v4476 = vsel %vm2773, %v4219, 0
        %v4478 = vsel %vm2773, %v4221, 0
        %v4480 = vsel %vm2773, %v4223, 0
        %v4482 = vsel %vm2773, %v4225, 0
        %v4484 = vsel %vm2773, %v4227, 0
        %v4486 = vsel %vm2773, %v4229, 0
        %v4488 = vsel %vm2773, %v4231, 0
        %v4490 = vsel %vm2773, %v4233, 0
        %v4492 = vsel %vm2773, %v4235, 0
        %v4494 = vsel %vm2773, %v4237, 0
        %v4496 = vsel %vm2773, %v4239, 0
        %v4498 = vsel %vm2773, %v4241, 0
        %v4500 = vsel %vm2773, %v4243, 0
        %v4502 = vsel %vm2773, %v4245, 0
        %v4504 = vsel %vm2773, %v4247, 0
        %4506 = vmatpush.msra.mxu0 0.0
        %4507 = vmatpush.msra.mxu0 0.0
        %4508 = vmatpush.msra.mxu0 0.0
        %4509 = vmatpush.msra.mxu0 0.0
        %4510 = vmatpush.msra.mxu0 0.0
        %4511 = vmatpush.msra.mxu0 0.0
        %4512 = vmatpush.msra.mxu0 0.0
        %4513 = vmatpush.msra.mxu0 0.0
        %4514 = vmatpush.msra.mxu0 0.0
        %4515 = vmatpush.msra.mxu0 0.0
        %4516 = vmatpush.msra.mxu0 0.0
        %4517 = vmatpush.msra.mxu0 0.0
        %4518 = vmatpush.msra.mxu0 0.0
        %4519 = vmatpush.msra.mxu0 0.0
        %4520 = vmatpush.msra.mxu0 0.0
        %4521 = vmatpush.msra.mxu0 %v4249
        %4522 = vmatmul.f32.gmra.mxu0 %v4250
        %v4523 = vpop.f32.mrf.mxu0
        %v4524 = vadd.f32 0.0, %v4523
        %4525 = vmatmul.f32.gmra.mxu0 %v4252
        %v4526 = vpop.f32.mrf.mxu0
        %v4527 = vadd.f32 0.0, %v4526
        %4528 = vmatmul.f32.gmra.mxu0 %v4254
        %v4529 = vpop.f32.mrf.mxu0
        %v4530 = vadd.f32 0.0, %v4529
        %4531 = vmatmul.f32.gmra.mxu0 %v4256
        %v4532 = vpop.f32.mrf.mxu0
        %v4533 = vadd.f32 0.0, %v4532
        %4534 = vmatmul.f32.gmra.mxu0 %v4258
        %v4535 = vpop.f32.mrf.mxu0
        %v4536 = vadd.f32 0.0, %v4535
        %4537 = vmatmul.f32.gmra.mxu0 %v4260
        %v4538 = vpop.f32.mrf.mxu0
        %v4539 = vadd.f32 0.0, %v4538
        %4540 = vmatmul.f32.gmra.mxu0 %v4262
        %v4541 = vpop.f32.mrf.mxu0
        %v4542 = vadd.f32 0.0, %v4541
        %4543 = vmatmul.f32.gmra.mxu0 %v4264
        %v4544 = vpop.f32.mrf.mxu0
        %v4545 = vadd.f32 0.0, %v4544
        %4546 = vmatmul.f32.gmra.mxu0 %v4266
        %v4547 = vpop.f32.mrf.mxu0
        %v4548 = vadd.f32 0.0, %v4547
        %4549 = vmatmul.f32.gmra.mxu0 %v4268
        %v4550 = vpop.f32.mrf.mxu0
        %v4551 = vadd.f32 0.0, %v4550
        %4552 = vmatmul.f32.gmra.mxu0 %v4270
        %v4553 = vpop.f32.mrf.mxu0
        %v4554 = vadd.f32 0.0, %v4553
        %4555 = vmatmul.f32.gmra.mxu0 %v4272
        %v4556 = vpop.f32.mrf.mxu0
        %v4557 = vadd.f32 0.0, %v4556
        %4558 = vmatmul.f32.gmra.mxu0 %v4274
        %v4559 = vpop.f32.mrf.mxu0
        %v4560 = vadd.f32 0.0, %v4559
        %4561 = vmatmul.f32.gmra.mxu0 %v4276
        %v4562 = vpop.f32.mrf.mxu0
        %v4563 = vadd.f32 0.0, %v4562
        %4564 = vmatmul.f32.gmra.mxu0 %v4278
        %v4565 = vpop.f32.mrf.mxu0
        %v4566 = vadd.f32 0.0, %v4565
        %4567 = vmatmul.f32.gmra.mxu0 %v4280
        %v4568 = vpop.f32.mrf.mxu0
        %v4569 = vadd.f32 0.0, %v4568
        %4570 = vmatmul.f32.gmra.mxu0 %v4282
        %v4571 = vpop.f32.mrf.mxu0
        %v4572 = vadd.f32 0.0, %v4571
        %4573 = vmatmul.f32.gmra.mxu0 %v4284
        %v4574 = vpop.f32.mrf.mxu0
        %v4575 = vadd.f32 0.0, %v4574
        %4576 = vmatmul.f32.gmra.mxu0 %v4286
        %v4577 = vpop.f32.mrf.mxu0
        %v4578 = vadd.f32 0.0, %v4577
        %4579 = vmatmul.f32.gmra.mxu0 %v4288
        %v4580 = vpop.f32.mrf.mxu0
        %v4581 = vadd.f32 0.0, %v4580
        %4582 = vmatmul.f32.gmra.mxu0 %v4290
        %v4583 = vpop.f32.mrf.mxu0
        %v4584 = vadd.f32 0.0, %v4583
        %4585 = vmatmul.f32.gmra.mxu0 %v4292
        %v4586 = vpop.f32.mrf.mxu0
        %v4587 = vadd.f32 0.0, %v4586
        %4588 = vmatmul.f32.gmra.mxu0 %v4294
        %v4589 = vpop.f32.mrf.mxu0
        %v4590 = vadd.f32 0.0, %v4589
        %4591 = vmatmul.f32.gmra.mxu0 %v4296
        %v4592 = vpop.f32.mrf.mxu0
        %v4593 = vadd.f32 0.0, %v4592
        %4594 = vmatmul.f32.gmra.mxu0 %v4298
        %v4595 = vpop.f32.mrf.mxu0
        %v4596 = vadd.f32 0.0, %v4595
        %4597 = vmatmul.f32.gmra.mxu0 %v4300
        %v4598 = vpop.f32.mrf.mxu0
        %v4599 = vadd.f32 0.0, %v4598
        %4600 = vmatmul.f32.gmra.mxu0 %v4302
        %v4601 = vpop.f32.mrf.mxu0
        %v4602 = vadd.f32 0.0, %v4601
        %4603 = vmatmul.f32.gmra.mxu0 %v4304
        %v4604 = vpop.f32.mrf.mxu0
        %v4605 = vadd.f32 0.0, %v4604
        %4606 = vmatmul.f32.gmra.mxu0 %v4306
        %v4607 = vpop.f32.mrf.mxu0
        %v4608 = vadd.f32 0.0, %v4607
        %4609 = vmatmul.f32.gmra.mxu0 %v4308
        %v4610 = vpop.f32.mrf.mxu0
        %v4611 = vadd.f32 0.0, %v4610
        %4612 = vmatmul.f32.gmra.mxu0 %v4310
        %v4613 = vpop.f32.mrf.mxu0
        %v4614 = vadd.f32 0.0, %v4613
        %4615 = vmatmul.f32.gmra.mxu0 %v4312
        %v4616 = vpop.f32.mrf.mxu0
        %v4617 = vadd.f32 0.0, %v4616
        %4618 = vmatmul.f32.gmra.mxu0 %v4314
        %v4619 = vpop.f32.mrf.mxu0
        %v4620 = vadd.f32 0.0, %v4619
        %4621 = vmatmul.f32.gmra.mxu0 %v4316
        %v4622 = vpop.f32.mrf.mxu0
        %v4623 = vadd.f32 0.0, %v4622
        %4624 = vmatmul.f32.gmra.mxu0 %v4318
        %v4625 = vpop.f32.mrf.mxu0
        %v4626 = vadd.f32 0.0, %v4625
        %4627 = vmatmul.f32.gmra.mxu0 %v4320
        %v4628 = vpop.f32.mrf.mxu0
        %v4629 = vadd.f32 0.0, %v4628
        %4630 = vmatmul.f32.gmra.mxu0 %v4322
        %v4631 = vpop.f32.mrf.mxu0
        %v4632 = vadd.f32 0.0, %v4631
        %4633 = vmatmul.f32.gmra.mxu0 %v4324
        %v4634 = vpop.f32.mrf.mxu0
        %v4635 = vadd.f32 0.0, %v4634
        %4636 = vmatmul.f32.gmra.mxu0 %v4326
        %v4637 = vpop.f32.mrf.mxu0
        %v4638 = vadd.f32 0.0, %v4637
        %4639 = vmatmul.f32.gmra.mxu0 %v4328
        %v4640 = vpop.f32.mrf.mxu0
        %v4641 = vadd.f32 0.0, %v4640
        %4642 = vmatmul.f32.gmra.mxu0 %v4330
        %v4643 = vpop.f32.mrf.mxu0
        %v4644 = vadd.f32 0.0, %v4643
        %4645 = vmatmul.f32.gmra.mxu0 %v4332
        %v4646 = vpop.f32.mrf.mxu0
        %v4647 = vadd.f32 0.0, %v4646
        %4648 = vmatmul.f32.gmra.mxu0 %v4334
        %v4649 = vpop.f32.mrf.mxu0
        %v4650 = vadd.f32 0.0, %v4649
        %4651 = vmatmul.f32.gmra.mxu0 %v4336
        %v4652 = vpop.f32.mrf.mxu0
        %v4653 = vadd.f32 0.0, %v4652
        %4654 = vmatmul.f32.gmra.mxu0 %v4338
        %v4655 = vpop.f32.mrf.mxu0
        %v4656 = vadd.f32 0.0, %v4655
        %4657 = vmatmul.f32.gmra.mxu0 %v4340
        %v4658 = vpop.f32.mrf.mxu0
        %v4659 = vadd.f32 0.0, %v4658
        %4660 = vmatmul.f32.gmra.mxu0 %v4342
        %v4661 = vpop.f32.mrf.mxu0
        %v4662 = vadd.f32 0.0, %v4661
        %4663 = vmatmul.f32.gmra.mxu0 %v4344
        %v4664 = vpop.f32.mrf.mxu0
        %v4665 = vadd.f32 0.0, %v4664
        %4666 = vmatmul.f32.gmra.mxu0 %v4346
        %v4667 = vpop.f32.mrf.mxu0
        %v4668 = vadd.f32 0.0, %v4667
        %4669 = vmatmul.f32.gmra.mxu0 %v4348
        %v4670 = vpop.f32.mrf.mxu0
        %v4671 = vadd.f32 0.0, %v4670
        %4672 = vmatmul.f32.gmra.mxu0 %v4350
        %v4673 = vpop.f32.mrf.mxu0
        %v4674 = vadd.f32 0.0, %v4673
        %4675 = vmatmul.f32.gmra.mxu0 %v4352
        %v4676 = vpop.f32.mrf.mxu0
        %v4677 = vadd.f32 0.0, %v4676
        %4678 = vmatmul.f32.gmra.mxu0 %v4354
        %v4679 = vpop.f32.mrf.mxu0
        %v4680 = vadd.f32 0.0, %v4679
        %4681 = vmatmul.f32.gmra.mxu0 %v4356
        %v4682 = vpop.f32.mrf.mxu0
        %v4683 = vadd.f32 0.0, %v4682
        %4684 = vmatmul.f32.gmra.mxu0 %v4358
        %v4685 = vpop.f32.mrf.mxu0
        %v4686 = vadd.f32 0.0, %v4685
        %4687 = vmatmul.f32.gmra.mxu0 %v4360
        %v4688 = vpop.f32.mrf.mxu0
        %v4689 = vadd.f32 0.0, %v4688
        %4690 = vmatmul.f32.gmra.mxu0 %v4362
        %v4691 = vpop.f32.mrf.mxu0
        %v4692 = vadd.f32 0.0, %v4691
        %4693 = vmatmul.f32.gmra.mxu0 %v4364
        %v4694 = vpop.f32.mrf.mxu0
        %v4695 = vadd.f32 0.0, %v4694
        %4696 = vmatmul.f32.gmra.mxu0 %v4366
        %v4697 = vpop.f32.mrf.mxu0
        %v4698 = vadd.f32 0.0, %v4697
        %4699 = vmatmul.f32.gmra.mxu0 %v4368
        %v4700 = vpop.f32.mrf.mxu0
        %v4701 = vadd.f32 0.0, %v4700
        %4702 = vmatmul.f32.gmra.mxu0 %v4370
        %v4703 = vpop.f32.mrf.mxu0
        %v4704 = vadd.f32 0.0, %v4703
        %4705 = vmatmul.f32.gmra.mxu0 %v4372
        %v4706 = vpop.f32.mrf.mxu0
        %v4707 = vadd.f32 0.0, %v4706
        %4708 = vmatmul.f32.gmra.mxu0 %v4374
        %v4709 = vpop.f32.mrf.mxu0
        %v4710 = vadd.f32 0.0, %v4709
        %4711 = vmatmul.f32.gmra.mxu0 %v4376
        %v4712 = vpop.f32.mrf.mxu0
        %v4713 = vadd.f32 0.0, %v4712
        %4714 = vmatmul.f32.gmra.mxu0 %v4378
        %v4715 = vpop.f32.mrf.mxu0
        %v4716 = vadd.f32 0.0, %v4715
        %4717 = vmatmul.f32.gmra.mxu0 %v4380
        %v4718 = vpop.f32.mrf.mxu0
        %v4719 = vadd.f32 0.0, %v4718
        %4720 = vmatmul.f32.gmra.mxu0 %v4382
        %v4721 = vpop.f32.mrf.mxu0
        %v4722 = vadd.f32 0.0, %v4721
        %4723 = vmatmul.f32.gmra.mxu0 %v4384
        %v4724 = vpop.f32.mrf.mxu0
        %v4725 = vadd.f32 0.0, %v4724
        %4726 = vmatmul.f32.gmra.mxu0 %v4386
        %v4727 = vpop.f32.mrf.mxu0
        %v4728 = vadd.f32 0.0, %v4727
        %4729 = vmatmul.f32.gmra.mxu0 %v4388
        %v4730 = vpop.f32.mrf.mxu0
        %v4731 = vadd.f32 0.0, %v4730
        %4732 = vmatmul.f32.gmra.mxu0 %v4390
        %v4733 = vpop.f32.mrf.mxu0
        %v4734 = vadd.f32 0.0, %v4733
        %4735 = vmatmul.f32.gmra.mxu0 %v4392
        %v4736 = vpop.f32.mrf.mxu0
        %v4737 = vadd.f32 0.0, %v4736
        %4738 = vmatmul.f32.gmra.mxu0 %v4394
        %v4739 = vpop.f32.mrf.mxu0
        %v4740 = vadd.f32 0.0, %v4739
        %4741 = vmatmul.f32.gmra.mxu0 %v4396
        %v4742 = vpop.f32.mrf.mxu0
        %v4743 = vadd.f32 0.0, %v4742
        %4744 = vmatmul.f32.gmra.mxu0 %v4398
        %v4745 = vpop.f32.mrf.mxu0
        %v4746 = vadd.f32 0.0, %v4745
        %4747 = vmatmul.f32.gmra.mxu0 %v4400
        %v4748 = vpop.f32.mrf.mxu0
        %v4749 = vadd.f32 0.0, %v4748
        %4750 = vmatmul.f32.gmra.mxu0 %v4402
        %v4751 = vpop.f32.mrf.mxu0
        %v4752 = vadd.f32 0.0, %v4751
        %4753 = vmatmul.f32.gmra.mxu0 %v4404
        %v4754 = vpop.f32.mrf.mxu0
        %v4755 = vadd.f32 0.0, %v4754
        %4756 = vmatmul.f32.gmra.mxu0 %v4406
        %v4757 = vpop.f32.mrf.mxu0
        %v4758 = vadd.f32 0.0, %v4757
        %4759 = vmatmul.f32.gmra.mxu0 %v4408
        %v4760 = vpop.f32.mrf.mxu0
        %v4761 = vadd.f32 0.0, %v4760
        %4762 = vmatmul.f32.gmra.mxu0 %v4410
        %v4763 = vpop.f32.mrf.mxu0
        %v4764 = vadd.f32 0.0, %v4763
        %4765 = vmatmul.f32.gmra.mxu0 %v4412
        %v4766 = vpop.f32.mrf.mxu0
        %v4767 = vadd.f32 0.0, %v4766
        %4768 = vmatmul.f32.gmra.mxu0 %v4414
        %v4769 = vpop.f32.mrf.mxu0
        %v4770 = vadd.f32 0.0, %v4769
        %4771 = vmatmul.f32.gmra.mxu0 %v4416
        %v4772 = vpop.f32.mrf.mxu0
        %v4773 = vadd.f32 0.0, %v4772
        %4774 = vmatmul.f32.gmra.mxu0 %v4418
        %v4775 = vpop.f32.mrf.mxu0
        %v4776 = vadd.f32 0.0, %v4775
        %4777 = vmatmul.f32.gmra.mxu0 %v4420
        %v4778 = vpop.f32.mrf.mxu0
        %v4779 = vadd.f32 0.0, %v4778
        %4780 = vmatmul.f32.gmra.mxu0 %v4422
        %v4781 = vpop.f32.mrf.mxu0
        %v4782 = vadd.f32 0.0, %v4781
        %4783 = vmatmul.f32.gmra.mxu0 %v4424
        %v4784 = vpop.f32.mrf.mxu0
        %v4785 = vadd.f32 0.0, %v4784
        %4786 = vmatmul.f32.gmra.mxu0 %v4426
        %v4787 = vpop.f32.mrf.mxu0
        %v4788 = vadd.f32 0.0, %v4787
        %4789 = vmatmul.f32.gmra.mxu0 %v4428
        %v4790 = vpop.f32.mrf.mxu0
        %v4791 = vadd.f32 0.0, %v4790
        %4792 = vmatmul.f32.gmra.mxu0 %v4430
        %v4793 = vpop.f32.mrf.mxu0
        %v4794 = vadd.f32 0.0, %v4793
        %4795 = vmatmul.f32.gmra.mxu0 %v4432
        %v4796 = vpop.f32.mrf.mxu0
        %v4797 = vadd.f32 0.0, %v4796
        %4798 = vmatmul.f32.gmra.mxu0 %v4434
        %v4799 = vpop.f32.mrf.mxu0
        %v4800 = vadd.f32 0.0, %v4799
        %4801 = vmatmul.f32.gmra.mxu0 %v4436
        %v4802 = vpop.f32.mrf.mxu0
        %v4803 = vadd.f32 0.0, %v4802
        %4804 = vmatmul.f32.gmra.mxu0 %v4438
        %v4805 = vpop.f32.mrf.mxu0
        %v4806 = vadd.f32 0.0, %v4805
        %4807 = vmatmul.f32.gmra.mxu0 %v4440
        %v4808 = vpop.f32.mrf.mxu0
        %v4809 = vadd.f32 0.0, %v4808
        %4810 = vmatmul.f32.gmra.mxu0 %v4442
        %v4811 = vpop.f32.mrf.mxu0
        %v4812 = vadd.f32 0.0, %v4811
        %4813 = vmatmul.f32.gmra.mxu0 %v4444
        %v4814 = vpop.f32.mrf.mxu0
        %v4815 = vadd.f32 0.0, %v4814
        %4816 = vmatmul.f32.gmra.mxu0 %v4446
        %v4817 = vpop.f32.mrf.mxu0
        %v4818 = vadd.f32 0.0, %v4817
        %4819 = vmatmul.f32.gmra.mxu0 %v4448
        %v4820 = vpop.f32.mrf.mxu0
        %v4821 = vadd.f32 0.0, %v4820
        %4822 = vmatmul.f32.gmra.mxu0 %v4450
        %v4823 = vpop.f32.mrf.mxu0
        %v4824 = vadd.f32 0.0, %v4823
        %4825 = vmatmul.f32.gmra.mxu0 %v4452
        %v4826 = vpop.f32.mrf.mxu0
        %v4827 = vadd.f32 0.0, %v4826
        %4828 = vmatmul.f32.gmra.mxu0 %v4454
        %v4829 = vpop.f32.mrf.mxu0
        %v4830 = vadd.f32 0.0, %v4829
        %4831 = vmatmul.f32.gmra.mxu0 %v4456
        %v4832 = vpop.f32.mrf.mxu0
        %v4833 = vadd.f32 0.0, %v4832
        %4834 = vmatmul.f32.gmra.mxu0 %v4458
        %v4835 = vpop.f32.mrf.mxu0
        %v4836 = vadd.f32 0.0, %v4835
        %4837 = vmatmul.f32.gmra.mxu0 %v4460
        %v4838 = vpop.f32.mrf.mxu0
        %v4839 = vadd.f32 0.0, %v4838
        %4840 = vmatmul.f32.gmra.mxu0 %v4462
        %v4841 = vpop.f32.mrf.mxu0
        %v4842 = vadd.f32 0.0, %v4841
        %4843 = vmatmul.f32.gmra.mxu0 %v4464
        %v4844 = vpop.f32.mrf.mxu0
        %v4845 = vadd.f32 0.0, %v4844
        %4846 = vmatmul.f32.gmra.mxu0 %v4466
        %v4847 = vpop.f32.mrf.mxu0
        %v4848 = vadd.f32 0.0, %v4847
        %4849 = vmatmul.f32.gmra.mxu0 %v4468
        %v4850 = vpop.f32.mrf.mxu0
        %v4851 = vadd.f32 0.0, %v4850
        %4852 = vmatmul.f32.gmra.mxu0 %v4470
        %v4853 = vpop.f32.mrf.mxu0
        %v4854 = vadd.f32 0.0, %v4853
        %4855 = vmatmul.f32.gmra.mxu0 %v4472
        %v4856 = vpop.f32.mrf.mxu0
        %v4857 = vadd.f32 0.0, %v4856
        %4858 = vmatmul.f32.gmra.mxu0 %v4474
        %v4859 = vpop.f32.mrf.mxu0
        %v4860 = vadd.f32 0.0, %v4859
        %4861 = vmatmul.f32.gmra.mxu0 %v4476
        %v4862 = vpop.f32.mrf.mxu0
        %v4863 = vadd.f32 0.0, %v4862
        %4864 = vmatmul.f32.gmra.mxu0 %v4478
        %v4865 = vpop.f32.mrf.mxu0
        %v4866 = vadd.f32 0.0, %v4865
        %4867 = vmatmul.f32.gmra.mxu0 %v4480
        %v4868 = vpop.f32.mrf.mxu0
        %v4869 = vadd.f32 0.0, %v4868
        %4870 = vmatmul.f32.gmra.mxu0 %v4482
        %v4871 = vpop.f32.mrf.mxu0
        %v4872 = vadd.f32 0.0, %v4871
        %4873 = vmatmul.f32.gmra.mxu0 %v4484
        %v4874 = vpop.f32.mrf.mxu0
        %v4875 = vadd.f32 0.0, %v4874
        %4876 = vmatmul.f32.gmra.mxu0 %v4486
        %v4877 = vpop.f32.mrf.mxu0
        %v4878 = vadd.f32 0.0, %v4877
        %4879 = vmatmul.f32.gmra.mxu0 %v4488
        %v4880 = vpop.f32.mrf.mxu0
        %v4881 = vadd.f32 0.0, %v4880
        %4882 = vmatmul.f32.gmra.mxu0 %v4490
        %v4883 = vpop.f32.mrf.mxu0
        %v4884 = vadd.f32 0.0, %v4883
        %4885 = vmatmul.f32.gmra.mxu0 %v4492
        %v4886 = vpop.f32.mrf.mxu0
        %v4887 = vadd.f32 0.0, %v4886
        %4888 = vmatmul.f32.gmra.mxu0 %v4494
        %v4889 = vpop.f32.mrf.mxu0
        %v4890 = vadd.f32 0.0, %v4889
        %4891 = vmatmul.f32.gmra.mxu0 %v4496
        %v4892 = vpop.f32.mrf.mxu0
        %v4893 = vadd.f32 0.0, %v4892
        %4894 = vmatmul.f32.gmra.mxu0 %v4498
        %v4895 = vpop.f32.mrf.mxu0
        %v4896 = vadd.f32 0.0, %v4895
        %4897 = vmatmul.f32.gmra.mxu0 %v4500
        %v4898 = vpop.f32.mrf.mxu0
        %v4899 = vadd.f32 0.0, %v4898
        %4900 = vmatmul.f32.gmra.mxu0 %v4502
        %v4901 = vpop.f32.mrf.mxu0
        %v4902 = vadd.f32 0.0, %v4901
        %4903 = vmatmul.f32.gmra.mxu0 %v4504
        %v4904 = vpop.f32.mrf.mxu0
        %v4905 = vadd.f32 0.0, %v4904
        %4906 = vdwg.mxu0
        %v4907 = vadd.f32 %v3641, %v4524
        %v4908 = vadd.f32 %v3644, %v4527
        %v4909 = vadd.f32 %v3647, %v4530
        %v4910 = vadd.f32 %v3650, %v4533
        %v4911 = vadd.f32 %v3653, %v4536
        %v4912 = vadd.f32 %v3656, %v4539
        %v4913 = vadd.f32 %v3659, %v4542
        %v4914 = vadd.f32 %v3662, %v4545
        %v4915 = vadd.f32 %v3665, %v4548
        %v4916 = vadd.f32 %v3668, %v4551
        %v4917 = vadd.f32 %v3671, %v4554
        %v4918 = vadd.f32 %v3674, %v4557
        %v4919 = vadd.f32 %v3677, %v4560
        %v4920 = vadd.f32 %v3680, %v4563
        %v4921 = vadd.f32 %v3683, %v4566
        %v4922 = vadd.f32 %v3686, %v4569
        %v4923 = vadd.f32 %v3689, %v4572
        %v4924 = vadd.f32 %v3692, %v4575
        %v4925 = vadd.f32 %v3695, %v4578
        %v4926 = vadd.f32 %v3698, %v4581
        %v4927 = vadd.f32 %v3701, %v4584
        %v4928 = vadd.f32 %v3704, %v4587
        %v4929 = vadd.f32 %v3707, %v4590
        %v4930 = vadd.f32 %v3710, %v4593
        %v4931 = vadd.f32 %v3713, %v4596
        %v4932 = vadd.f32 %v3716, %v4599
        %v4933 = vadd.f32 %v3719, %v4602
        %v4934 = vadd.f32 %v3722, %v4605
        %v4935 = vadd.f32 %v3725, %v4608
        %v4936 = vadd.f32 %v3728, %v4611
        %v4937 = vadd.f32 %v3731, %v4614
        %v4938 = vadd.f32 %v3734, %v4617
        %v4939 = vadd.f32 %v3737, %v4620
        %v4940 = vadd.f32 %v3740, %v4623
        %v4941 = vadd.f32 %v3743, %v4626
        %v4942 = vadd.f32 %v3746, %v4629
        %v4943 = vadd.f32 %v3749, %v4632
        %v4944 = vadd.f32 %v3752, %v4635
        %v4945 = vadd.f32 %v3755, %v4638
        %v4946 = vadd.f32 %v3758, %v4641
        %v4947 = vadd.f32 %v3761, %v4644
        %v4948 = vadd.f32 %v3764, %v4647
        %v4949 = vadd.f32 %v3767, %v4650
        %v4950 = vadd.f32 %v3770, %v4653
        %v4951 = vadd.f32 %v3773, %v4656
        %v4952 = vadd.f32 %v3776, %v4659
        %v4953 = vadd.f32 %v3779, %v4662
        %v4954 = vadd.f32 %v3782, %v4665
        %v4955 = vadd.f32 %v3785, %v4668
        %v4956 = vadd.f32 %v3788, %v4671
        %v4957 = vadd.f32 %v3791, %v4674
        %v4958 = vadd.f32 %v3794, %v4677
        %v4959 = vadd.f32 %v3797, %v4680
        %v4960 = vadd.f32 %v3800, %v4683
        %v4961 = vadd.f32 %v3803, %v4686
        %v4962 = vadd.f32 %v3806, %v4689
        %v4963 = vadd.f32 %v3809, %v4692
        %v4964 = vadd.f32 %v3812, %v4695
        %v4965 = vadd.f32 %v3815, %v4698
        %v4966 = vadd.f32 %v3818, %v4701
        %v4967 = vadd.f32 %v3821, %v4704
        %v4968 = vadd.f32 %v3824, %v4707
        %v4969 = vadd.f32 %v3827, %v4710
        %v4970 = vadd.f32 %v3830, %v4713
        %v4971 = vadd.f32 %v3833, %v4716
        %v4972 = vadd.f32 %v3836, %v4719
        %v4973 = vadd.f32 %v3839, %v4722
        %v4974 = vadd.f32 %v3842, %v4725
        %v4975 = vadd.f32 %v3845, %v4728
        %v4976 = vadd.f32 %v3848, %v4731
        %v4977 = vadd.f32 %v3851, %v4734
        %v4978 = vadd.f32 %v3854, %v4737
        %v4979 = vadd.f32 %v3857, %v4740
        %v4980 = vadd.f32 %v3860, %v4743
        %v4981 = vadd.f32 %v3863, %v4746
        %v4982 = vadd.f32 %v3866, %v4749
        %v4983 = vadd.f32 %v3869, %v4752
        %v4984 = vadd.f32 %v3872, %v4755
        %v4985 = vadd.f32 %v3875, %v4758
        %v4986 = vadd.f32 %v3878, %v4761
        %v4987 = vadd.f32 %v3881, %v4764
        %v4988 = vadd.f32 %v3884, %v4767
        %v4989 = vadd.f32 %v3887, %v4770
        %v4990 = vadd.f32 %v3890, %v4773
        %v4991 = vadd.f32 %v3893, %v4776
        %v4992 = vadd.f32 %v3896, %v4779
        %v4993 = vadd.f32 %v3899, %v4782
        %v4994 = vadd.f32 %v3902, %v4785
        %v4995 = vadd.f32 %v3905, %v4788
        %v4996 = vadd.f32 %v3908, %v4791
        %v4997 = vadd.f32 %v3911, %v4794
        %v4998 = vadd.f32 %v3914, %v4797
        %v4999 = vadd.f32 %v3917, %v4800
        %v5000 = vadd.f32 %v3920, %v4803
        %v5001 = vadd.f32 %v3923, %v4806
        %v5002 = vadd.f32 %v3926, %v4809
        %v5003 = vadd.f32 %v3929, %v4812
        %v5004 = vadd.f32 %v3932, %v4815
        %v5005 = vadd.f32 %v3935, %v4818
        %v5006 = vadd.f32 %v3938, %v4821
        %v5007 = vadd.f32 %v3941, %v4824
        %v5008 = vadd.f32 %v3944, %v4827
        %v5009 = vadd.f32 %v3947, %v4830
        %v5010 = vadd.f32 %v3950, %v4833
        %v5011 = vadd.f32 %v3953, %v4836
        %v5012 = vadd.f32 %v3956, %v4839
        %v5013 = vadd.f32 %v3959, %v4842
        %v5014 = vadd.f32 %v3962, %v4845
        %v5015 = vadd.f32 %v3965, %v4848
        %v5016 = vadd.f32 %v3968, %v4851
        %v5017 = vadd.f32 %v3971, %v4854
        %v5018 = vadd.f32 %v3974, %v4857
        %v5019 = vadd.f32 %v3977, %v4860
        %v5020 = vadd.f32 %v3980, %v4863
        %v5021 = vadd.f32 %v3983, %v4866
        %v5022 = vadd.f32 %v3986, %v4869
        %v5023 = vadd.f32 %v3989, %v4872
        %v5024 = vadd.f32 %v3992, %v4875
        %v5025 = vadd.f32 %v3995, %v4878
        %v5026 = vadd.f32 %v3998, %v4881
        %v5027 = vadd.f32 %v4001, %v4884
        %v5028 = vadd.f32 %v4004, %v4887
        %v5029 = vadd.f32 %v4007, %v4890
        %v5030 = vadd.f32 %v4010, %v4893
        %v5031 = vadd.f32 %v4013, %v4896
        %v5032 = vadd.f32 %v4016, %v4899
        %v5033 = vadd.f32 %v4019, %v4902
        %v5034 = vadd.f32 %v4022, %v4905
        %5067 = vrot.lane.b32.xlu0 %v2226, 8
        %v5068 = vpop.permute.xlu0 %5067
        %5069 = vrot.lane.b32.xlu0 %v2227, 8
        %v5070 = vpop.permute.xlu0 %5069
        %5071 = vrot.lane.b32.xlu0 %v2228, 8
        %v5072 = vpop.permute.xlu0 %5071
        %5073 = vrot.lane.b32.xlu0 %v2229, 8
        %v5074 = vpop.permute.xlu0 %5073
        %5075 = vrot.lane.b32.xlu0 %v2230, 8
        %v5076 = vpop.permute.xlu0 %5075
        %5077 = vrot.lane.b32.xlu0 %v2231, 8
        %v5078 = vpop.permute.xlu0 %5077
        %5079 = vrot.lane.b32.xlu0 %v2232, 8
        %v5080 = vpop.permute.xlu0 %5079
        %5081 = vrot.lane.b32.xlu0 %v2233, 8
        %v5082 = vpop.permute.xlu0 %5081
        %5083 = vrot.lane.b32.xlu0 %v2234, 8
        %v5084 = vpop.permute.xlu0 %5083
        %5085 = vrot.lane.b32.xlu0 %v2235, 8
        %v5086 = vpop.permute.xlu0 %5085
        %5087 = vrot.lane.b32.xlu0 %v2236, 8
        %v5088 = vpop.permute.xlu0 %5087
        %5089 = vrot.lane.b32.xlu0 %v2237, 8
        %v5090 = vpop.permute.xlu0 %5089
        %5091 = vrot.lane.b32.xlu0 %v2238, 8
        %v5092 = vpop.permute.xlu0 %5091
        %5093 = vrot.lane.b32.xlu0 %v2239, 8
        %v5094 = vpop.permute.xlu0 %5093
        %5095 = vrot.lane.b32.xlu0 %v2240, 8
        %v5096 = vpop.permute.xlu0 %5095
        %5097 = vrot.lane.b32.xlu0 %v2241, 8
        %v5098 = vpop.permute.xlu0 %5097
        %5099 = vrot.lane.b32.xlu0 %v2242, 8
        %v5100 = vpop.permute.xlu0 %5099
        %5101 = vrot.lane.b32.xlu0 %v2243, 8
        %v5102 = vpop.permute.xlu0 %5101
        %5103 = vrot.lane.b32.xlu0 %v2244, 8
        %v5104 = vpop.permute.xlu0 %5103
        %5105 = vrot.lane.b32.xlu0 %v2245, 8
        %v5106 = vpop.permute.xlu0 %5105
        %5107 = vrot.lane.b32.xlu0 %v2246, 8
        %v5108 = vpop.permute.xlu0 %5107
        %5109 = vrot.lane.b32.xlu0 %v2247, 8
        %v5110 = vpop.permute.xlu0 %5109
        %5111 = vrot.lane.b32.xlu0 %v2248, 8
        %v5112 = vpop.permute.xlu0 %5111
        %5113 = vrot.lane.b32.xlu0 %v2249, 8
        %v5114 = vpop.permute.xlu0 %5113
        %5115 = vrot.lane.b32.xlu0 %v2250, 8
        %v5116 = vpop.permute.xlu0 %5115
        %5117 = vrot.lane.b32.xlu0 %v2251, 8
        %v5118 = vpop.permute.xlu0 %5117
        %5119 = vrot.lane.b32.xlu0 %v2252, 8
        %v5120 = vpop.permute.xlu0 %5119
        %5121 = vrot.lane.b32.xlu0 %v2253, 8
        %v5122 = vpop.permute.xlu0 %5121
        %5123 = vrot.lane.b32.xlu0 %v2254, 8
        %v5124 = vpop.permute.xlu0 %5123
        %5125 = vrot.lane.b32.xlu0 %v2255, 8
        %v5126 = vpop.permute.xlu0 %5125
        %5127 = vrot.lane.b32.xlu0 %v2256, 8
        %v5128 = vpop.permute.xlu0 %5127
        %5129 = vrot.lane.b32.xlu0 %v2257, 8
        %v5130 = vpop.permute.xlu0 %5129
        %s5131 = scalar_lea.vmem [#allocation10], 24
        %v5132 = vld [vmem:[%s5131] sm:$0xff]
        %5133 = vrot.lane.b32.xlu0 %v4057, 120
        %v5134 = vpop.permute.xlu0 %5133
        %5135 = vrot.lane.b32.xlu0 %v4059, 120
        %v5136 = vpop.permute.xlu0 %5135
        %5137 = vrot.lane.b32.xlu0 %v4061, 120
        %v5138 = vpop.permute.xlu0 %5137
        %5139 = vrot.lane.b32.xlu0 %v4063, 120
        %v5140 = vpop.permute.xlu0 %5139
        %5141 = vrot.lane.b32.xlu0 %v4065, 120
        %v5142 = vpop.permute.xlu0 %5141
        %5143 = vrot.lane.b32.xlu0 %v4067, 120
        %v5144 = vpop.permute.xlu0 %5143
        %5145 = vrot.lane.b32.xlu0 %v4069, 120
        %v5146 = vpop.permute.xlu0 %5145
        %5147 = vrot.lane.b32.xlu0 %v4071, 120
        %v5148 = vpop.permute.xlu0 %5147
        %5149 = vrot.lane.b32.xlu0 %v4073, 120
        %v5150 = vpop.permute.xlu0 %5149
        %5151 = vrot.lane.b32.xlu0 %v4075, 120
        %v5152 = vpop.permute.xlu0 %5151
        %5153 = vrot.lane.b32.xlu0 %v4077, 120
        %v5154 = vpop.permute.xlu0 %5153
        %5155 = vrot.lane.b32.xlu0 %v4079, 120
        %v5156 = vpop.permute.xlu0 %5155
        %5157 = vrot.lane.b32.xlu0 %v4081, 120
        %v5158 = vpop.permute.xlu0 %5157
        %5159 = vrot.lane.b32.xlu0 %v4083, 120
        %v5160 = vpop.permute.xlu0 %5159
        %5161 = vrot.lane.b32.xlu0 %v4085, 120
        %v5162 = vpop.permute.xlu0 %5161
        %5163 = vrot.lane.b32.xlu0 %v4087, 120
        %v5164 = vpop.permute.xlu0 %5163
        %5165 = vrot.lane.b32.xlu0 %v4089, 120
        %v5166 = vpop.permute.xlu0 %5165
        %5167 = vrot.lane.b32.xlu0 %v4091, 120
        %v5168 = vpop.permute.xlu0 %5167
        %5169 = vrot.lane.b32.xlu0 %v4093, 120
        %v5170 = vpop.permute.xlu0 %5169
        %5171 = vrot.lane.b32.xlu0 %v4095, 120
        %v5172 = vpop.permute.xlu0 %5171
        %5173 = vrot.lane.b32.xlu0 %v4097, 120
        %v5174 = vpop.permute.xlu0 %5173
        %5175 = vrot.lane.b32.xlu0 %v4099, 120
        %v5176 = vpop.permute.xlu0 %5175
        %5177 = vrot.lane.b32.xlu0 %v4101, 120
        %v5178 = vpop.permute.xlu0 %5177
        %5179 = vrot.lane.b32.xlu0 %v4103, 120
        %v5180 = vpop.permute.xlu0 %5179
        %5181 = vrot.lane.b32.xlu0 %v4105, 120
        %v5182 = vpop.permute.xlu0 %5181
        %5183 = vrot.lane.b32.xlu0 %v4107, 120
        %v5184 = vpop.permute.xlu0 %5183
        %5185 = vrot.lane.b32.xlu0 %v4109, 120
        %v5186 = vpop.permute.xlu0 %5185
        %5187 = vrot.lane.b32.xlu0 %v4111, 120
        %v5188 = vpop.permute.xlu0 %5187
        %5189 = vrot.lane.b32.xlu0 %v4113, 120
        %v5190 = vpop.permute.xlu0 %5189
        %5191 = vrot.lane.b32.xlu0 %v4115, 120
        %v5192 = vpop.permute.xlu0 %5191
        %5193 = vrot.lane.b32.xlu0 %v4117, 120
        %v5194 = vpop.permute.xlu0 %5193
        %5195 = vrot.lane.b32.xlu0 %v4119, 120
        %v5196 = vpop.permute.xlu0 %5195
        %5197 = vrot.lane.b32.xlu0 %v4121, 120
        %v5198 = vpop.permute.xlu0 %5197
        %5199 = vrot.lane.b32.xlu0 %v4123, 120
        %v5200 = vpop.permute.xlu0 %5199
        %5201 = vrot.lane.b32.xlu0 %v4125, 120
        %v5202 = vpop.permute.xlu0 %5201
        %5203 = vrot.lane.b32.xlu0 %v4127, 120
        %v5204 = vpop.permute.xlu0 %5203
        %5205 = vrot.lane.b32.xlu0 %v4129, 120
        %v5206 = vpop.permute.xlu0 %5205
        %5207 = vrot.lane.b32.xlu0 %v4131, 120
        %v5208 = vpop.permute.xlu0 %5207
        %5209 = vrot.lane.b32.xlu0 %v4133, 120
        %v5210 = vpop.permute.xlu0 %5209
        %5211 = vrot.lane.b32.xlu0 %v4135, 120
        %v5212 = vpop.permute.xlu0 %5211
        %5213 = vrot.lane.b32.xlu0 %v4137, 120
        %v5214 = vpop.permute.xlu0 %5213
        %5215 = vrot.lane.b32.xlu0 %v4139, 120
        %v5216 = vpop.permute.xlu0 %5215
        %5217 = vrot.lane.b32.xlu0 %v4141, 120
        %v5218 = vpop.permute.xlu0 %5217
        %5219 = vrot.lane.b32.xlu0 %v4143, 120
        %v5220 = vpop.permute.xlu0 %5219
        %5221 = vrot.lane.b32.xlu0 %v4145, 120
        %v5222 = vpop.permute.xlu0 %5221
        %5223 = vrot.lane.b32.xlu0 %v4147, 120
        %v5224 = vpop.permute.xlu0 %5223
        %5225 = vrot.lane.b32.xlu0 %v4149, 120
        %v5226 = vpop.permute.xlu0 %5225
        %5227 = vrot.lane.b32.xlu0 %v4151, 120
        %v5228 = vpop.permute.xlu0 %5227
        %5229 = vrot.lane.b32.xlu0 %v4153, 120
        %v5230 = vpop.permute.xlu0 %5229
        %5231 = vrot.lane.b32.xlu0 %v4155, 120
        %v5232 = vpop.permute.xlu0 %5231
        %5233 = vrot.lane.b32.xlu0 %v4157, 120
        %v5234 = vpop.permute.xlu0 %5233
        %5235 = vrot.lane.b32.xlu0 %v4159, 120
        %v5236 = vpop.permute.xlu0 %5235
        %5237 = vrot.lane.b32.xlu0 %v4161, 120
        %v5238 = vpop.permute.xlu0 %5237
        %5239 = vrot.lane.b32.xlu0 %v4163, 120
        %v5240 = vpop.permute.xlu0 %5239
        %5241 = vrot.lane.b32.xlu0 %v4165, 120
        %v5242 = vpop.permute.xlu0 %5241
        %5243 = vrot.lane.b32.xlu0 %v4167, 120
        %v5244 = vpop.permute.xlu0 %5243
        %5245 = vrot.lane.b32.xlu0 %v4169, 120
        %v5246 = vpop.permute.xlu0 %5245
        %5247 = vrot.lane.b32.xlu0 %v4171, 120
        %v5248 = vpop.permute.xlu0 %5247
        %5249 = vrot.lane.b32.xlu0 %v4173, 120
        %v5250 = vpop.permute.xlu0 %5249
        %5251 = vrot.lane.b32.xlu0 %v4175, 120
        %v5252 = vpop.permute.xlu0 %5251
        %5253 = vrot.lane.b32.xlu0 %v4177, 120
        %v5254 = vpop.permute.xlu0 %5253
        %5255 = vrot.lane.b32.xlu0 %v4179, 120
        %v5256 = vpop.permute.xlu0 %5255
        %5257 = vrot.lane.b32.xlu0 %v4181, 120
        %v5258 = vpop.permute.xlu0 %5257
        %5259 = vrot.lane.b32.xlu0 %v4183, 120
        %v5260 = vpop.permute.xlu0 %5259
        %5261 = vrot.lane.b32.xlu0 %v5068, 120
        %v5262 = vpop.permute.xlu0 %5261
        %5263 = vrot.lane.b32.xlu0 %v5070, 120
        %v5264 = vpop.permute.xlu0 %5263
        %5265 = vrot.lane.b32.xlu0 %v5072, 120
        %v5266 = vpop.permute.xlu0 %5265
        %5267 = vrot.lane.b32.xlu0 %v5074, 120
        %v5268 = vpop.permute.xlu0 %5267
        %5269 = vrot.lane.b32.xlu0 %v5076, 120
        %v5270 = vpop.permute.xlu0 %5269
        %5271 = vrot.lane.b32.xlu0 %v5078, 120
        %v5272 = vpop.permute.xlu0 %5271
        %5273 = vrot.lane.b32.xlu0 %v5080, 120
        %v5274 = vpop.permute.xlu0 %5273
        %5275 = vrot.lane.b32.xlu0 %v5082, 120
        %v5276 = vpop.permute.xlu0 %5275
        %5277 = vrot.lane.b32.xlu0 %v5084, 120
        %v5278 = vpop.permute.xlu0 %5277
        %5279 = vrot.lane.b32.xlu0 %v5086, 120
        %v5280 = vpop.permute.xlu0 %5279
        %5281 = vrot.lane.b32.xlu0 %v5088, 120
        %v5282 = vpop.permute.xlu0 %5281
        %5283 = vrot.lane.b32.xlu0 %v5090, 120
        %v5284 = vpop.permute.xlu0 %5283
        %5285 = vrot.lane.b32.xlu0 %v5092, 120
        %v5286 = vpop.permute.xlu0 %5285
        %5287 = vrot.lane.b32.xlu0 %v5094, 120
        %v5288 = vpop.permute.xlu0 %5287
        %5289 = vrot.lane.b32.xlu0 %v5096, 120
        %v5290 = vpop.permute.xlu0 %5289
        %5291 = vrot.lane.b32.xlu0 %v5098, 120
        %v5292 = vpop.permute.xlu0 %5291
        %5293 = vrot.lane.b32.xlu0 %v5100, 120
        %v5294 = vpop.permute.xlu0 %5293
        %5295 = vrot.lane.b32.xlu0 %v5102, 120
        %v5296 = vpop.permute.xlu0 %5295
        %5297 = vrot.lane.b32.xlu0 %v5104, 120
        %v5298 = vpop.permute.xlu0 %5297
        %5299 = vrot.lane.b32.xlu0 %v5106, 120
        %v5300 = vpop.permute.xlu0 %5299
        %5301 = vrot.lane.b32.xlu0 %v5108, 120
        %v5302 = vpop.permute.xlu0 %5301
        %5303 = vrot.lane.b32.xlu0 %v5110, 120
        %v5304 = vpop.permute.xlu0 %5303
        %5305 = vrot.lane.b32.xlu0 %v5112, 120
        %v5306 = vpop.permute.xlu0 %5305
        %5307 = vrot.lane.b32.xlu0 %v5114, 120
        %v5308 = vpop.permute.xlu0 %5307
        %5309 = vrot.lane.b32.xlu0 %v5116, 120
        %v5310 = vpop.permute.xlu0 %5309
        %5311 = vrot.lane.b32.xlu0 %v5118, 120
        %v5312 = vpop.permute.xlu0 %5311
        %5313 = vrot.lane.b32.xlu0 %v5120, 120
        %v5314 = vpop.permute.xlu0 %5313
        %5315 = vrot.lane.b32.xlu0 %v5122, 120
        %v5316 = vpop.permute.xlu0 %5315
        %5317 = vrot.lane.b32.xlu0 %v5124, 120
        %v5318 = vpop.permute.xlu0 %5317
        %5319 = vrot.lane.b32.xlu0 %v5126, 120
        %v5320 = vpop.permute.xlu0 %5319
        %5321 = vrot.lane.b32.xlu0 %v5128, 120
        %v5322 = vpop.permute.xlu0 %5321
        %5323 = vrot.lane.b32.xlu0 %v5130, 120
        %v5324 = vpop.permute.xlu0 %5323
        %v5325 = vsel %vm2773, %v5134, 0
        %v5327 = vsel %vm2773, %v5136, 0
        %v5329 = vsel %vm2773, %v5138, 0
        %v5331 = vsel %vm2773, %v5140, 0
        %v5333 = vsel %vm2773, %v5142, 0
        %v5335 = vsel %vm2773, %v5144, 0
        %v5337 = vsel %vm2773, %v5146, 0
        %v5339 = vsel %vm2773, %v5148, 0
        %v5341 = vsel %vm2773, %v5150, 0
        %v5343 = vsel %vm2773, %v5152, 0
        %v5345 = vsel %vm2773, %v5154, 0
        %v5347 = vsel %vm2773, %v5156, 0
        %v5349 = vsel %vm2773, %v5158, 0
        %v5351 = vsel %vm2773, %v5160, 0
        %v5353 = vsel %vm2773, %v5162, 0
        %v5355 = vsel %vm2773, %v5164, 0
        %v5357 = vsel %vm2773, %v5166, 0
        %v5359 = vsel %vm2773, %v5168, 0
        %v5361 = vsel %vm2773, %v5170, 0
        %v5363 = vsel %vm2773, %v5172, 0
        %v5365 = vsel %vm2773, %v5174, 0
        %v5367 = vsel %vm2773, %v5176, 0
        %v5369 = vsel %vm2773, %v5178, 0
        %v5371 = vsel %vm2773, %v5180, 0
        %v5373 = vsel %vm2773, %v5182, 0
        %v5375 = vsel %vm2773, %v5184, 0
        %v5377 = vsel %vm2773, %v5186, 0
        %v5379 = vsel %vm2773, %v5188, 0
        %v5381 = vsel %vm2773, %v5190, 0
        %v5383 = vsel %vm2773, %v5192, 0
        %v5385 = vsel %vm2773, %v5194, 0
        %v5387 = vsel %vm2773, %v5196, 0
        %v5389 = vsel %vm2773, %v5198, 0
        %v5391 = vsel %vm2773, %v5200, 0
        %v5393 = vsel %vm2773, %v5202, 0
        %v5395 = vsel %vm2773, %v5204, 0
        %v5397 = vsel %vm2773, %v5206, 0
        %v5399 = vsel %vm2773, %v5208, 0
        %v5401 = vsel %vm2773, %v5210, 0
        %v5403 = vsel %vm2773, %v5212, 0
        %v5405 = vsel %vm2773, %v5214, 0
        %v5407 = vsel %vm2773, %v5216, 0
        %v5409 = vsel %vm2773, %v5218, 0
        %v5411 = vsel %vm2773, %v5220, 0
        %v5413 = vsel %vm2773, %v5222, 0
        %v5415 = vsel %vm2773, %v5224, 0
        %v5417 = vsel %vm2773, %v5226, 0
        %v5419 = vsel %vm2773, %v5228, 0
        %v5421 = vsel %vm2773, %v5230, 0
        %v5423 = vsel %vm2773, %v5232, 0
        %v5425 = vsel %vm2773, %v5234, 0
        %v5427 = vsel %vm2773, %v5236, 0
        %v5429 = vsel %vm2773, %v5238, 0
        %v5431 = vsel %vm2773, %v5240, 0
        %v5433 = vsel %vm2773, %v5242, 0
        %v5435 = vsel %vm2773, %v5244, 0
        %v5437 = vsel %vm2773, %v5246, 0
        %v5439 = vsel %vm2773, %v5248, 0
        %v5441 = vsel %vm2773, %v5250, 0
        %v5443 = vsel %vm2773, %v5252, 0
        %v5445 = vsel %vm2773, %v5254, 0
        %v5447 = vsel %vm2773, %v5256, 0
        %v5449 = vsel %vm2773, %v5258, 0
        %v5451 = vsel %vm2773, %v5260, 0
        %v5453 = vsel %vm2773, %v5262, 0
        %v5455 = vsel %vm2773, %v5264, 0
        %v5457 = vsel %vm2773, %v5266, 0
        %v5459 = vsel %vm2773, %v5268, 0
        %v5461 = vsel %vm2773, %v5270, 0
        %v5463 = vsel %vm2773, %v5272, 0
        %v5465 = vsel %vm2773, %v5274, 0
        %v5467 = vsel %vm2773, %v5276, 0
        %v5469 = vsel %vm2773, %v5278, 0
        %v5471 = vsel %vm2773, %v5280, 0
        %v5473 = vsel %vm2773, %v5282, 0
        %v5475 = vsel %vm2773, %v5284, 0
        %v5477 = vsel %vm2773, %v5286, 0
        %v5479 = vsel %vm2773, %v5288, 0
        %v5481 = vsel %vm2773, %v5290, 0
        %v5483 = vsel %vm2773, %v5292, 0
        %v5485 = vsel %vm2773, %v5294, 0
        %v5487 = vsel %vm2773, %v5296, 0
        %v5489 = vsel %vm2773, %v5298, 0
        %v5491 = vsel %vm2773, %v5300, 0
        %v5493 = vsel %vm2773, %v5302, 0
        %v5495 = vsel %vm2773, %v5304, 0
        %v5497 = vsel %vm2773, %v5306, 0
        %v5499 = vsel %vm2773, %v5308, 0
        %v5501 = vsel %vm2773, %v5310, 0
        %v5503 = vsel %vm2773, %v5312, 0
        %v5505 = vsel %vm2773, %v5314, 0
        %v5507 = vsel %vm2773, %v5316, 0
        %v5509 = vsel %vm2773, %v5318, 0
        %v5511 = vsel %vm2773, %v5320, 0
        %v5513 = vsel %vm2773, %v5322, 0
        %v5515 = vsel %vm2773, %v5324, 0
        %5517 = vmatpush.msra.mxu0 0.0
        %5518 = vmatpush.msra.mxu0 0.0
        %5519 = vmatpush.msra.mxu0 0.0
        %5520 = vmatpush.msra.mxu0 0.0
        %5521 = vmatpush.msra.mxu0 0.0
        %5522 = vmatpush.msra.mxu0 0.0
        %5523 = vmatpush.msra.mxu0 0.0
        %5524 = vmatpush.msra.mxu0 0.0
        %5525 = vmatpush.msra.mxu0 0.0
        %5526 = vmatpush.msra.mxu0 0.0
        %5527 = vmatpush.msra.mxu0 0.0
        %5528 = vmatpush.msra.mxu0 0.0
        %5529 = vmatpush.msra.mxu0 0.0
        %5530 = vmatpush.msra.mxu0 0.0
        %5531 = vmatpush.msra.mxu0 0.0
        %5532 = vmatpush.msra.mxu0 %v5132
        %5533 = vmatmul.f32.gmra.mxu0 %v4314
        %v5534 = vpop.f32.mrf.mxu0
        %v5535 = vadd.f32 0.0, %v5534
        %5536 = vmatmul.f32.gmra.mxu0 %v4316
        %v5537 = vpop.f32.mrf.mxu0
        %v5538 = vadd.f32 0.0, %v5537
        %5539 = vmatmul.f32.gmra.mxu0 %v4318
        %v5540 = vpop.f32.mrf.mxu0
        %v5541 = vadd.f32 0.0, %v5540
        %5542 = vmatmul.f32.gmra.mxu0 %v4320
        %v5543 = vpop.f32.mrf.mxu0
        %v5544 = vadd.f32 0.0, %v5543
        %5545 = vmatmul.f32.gmra.mxu0 %v4322
        %v5546 = vpop.f32.mrf.mxu0
        %v5547 = vadd.f32 0.0, %v5546
        %5548 = vmatmul.f32.gmra.mxu0 %v4324
        %v5549 = vpop.f32.mrf.mxu0
        %v5550 = vadd.f32 0.0, %v5549
        %5551 = vmatmul.f32.gmra.mxu0 %v4326
        %v5552 = vpop.f32.mrf.mxu0
        %v5553 = vadd.f32 0.0, %v5552
        %5554 = vmatmul.f32.gmra.mxu0 %v4328
        %v5555 = vpop.f32.mrf.mxu0
        %v5556 = vadd.f32 0.0, %v5555
        %5557 = vmatmul.f32.gmra.mxu0 %v4330
        %v5558 = vpop.f32.mrf.mxu0
        %v5559 = vadd.f32 0.0, %v5558
        %5560 = vmatmul.f32.gmra.mxu0 %v4332
        %v5561 = vpop.f32.mrf.mxu0
        %v5562 = vadd.f32 0.0, %v5561
        %5563 = vmatmul.f32.gmra.mxu0 %v4334
        %v5564 = vpop.f32.mrf.mxu0
        %v5565 = vadd.f32 0.0, %v5564
        %5566 = vmatmul.f32.gmra.mxu0 %v4336
        %v5567 = vpop.f32.mrf.mxu0
        %v5568 = vadd.f32 0.0, %v5567
        %5569 = vmatmul.f32.gmra.mxu0 %v4338
        %v5570 = vpop.f32.mrf.mxu0
        %v5571 = vadd.f32 0.0, %v5570
        %5572 = vmatmul.f32.gmra.mxu0 %v4340
        %v5573 = vpop.f32.mrf.mxu0
        %v5574 = vadd.f32 0.0, %v5573
        %5575 = vmatmul.f32.gmra.mxu0 %v4342
        %v5576 = vpop.f32.mrf.mxu0
        %v5577 = vadd.f32 0.0, %v5576
        %5578 = vmatmul.f32.gmra.mxu0 %v4344
        %v5579 = vpop.f32.mrf.mxu0
        %v5580 = vadd.f32 0.0, %v5579
        %5581 = vmatmul.f32.gmra.mxu0 %v4346
        %v5582 = vpop.f32.mrf.mxu0
        %v5583 = vadd.f32 0.0, %v5582
        %5584 = vmatmul.f32.gmra.mxu0 %v4348
        %v5585 = vpop.f32.mrf.mxu0
        %v5586 = vadd.f32 0.0, %v5585
        %5587 = vmatmul.f32.gmra.mxu0 %v4350
        %v5588 = vpop.f32.mrf.mxu0
        %v5589 = vadd.f32 0.0, %v5588
        %5590 = vmatmul.f32.gmra.mxu0 %v4352
        %v5591 = vpop.f32.mrf.mxu0
        %v5592 = vadd.f32 0.0, %v5591
        %5593 = vmatmul.f32.gmra.mxu0 %v4354
        %v5594 = vpop.f32.mrf.mxu0
        %v5595 = vadd.f32 0.0, %v5594
        %5596 = vmatmul.f32.gmra.mxu0 %v4356
        %v5597 = vpop.f32.mrf.mxu0
        %v5598 = vadd.f32 0.0, %v5597
        %5599 = vmatmul.f32.gmra.mxu0 %v4358
        %v5600 = vpop.f32.mrf.mxu0
        %v5601 = vadd.f32 0.0, %v5600
        %5602 = vmatmul.f32.gmra.mxu0 %v4360
        %v5603 = vpop.f32.mrf.mxu0
        %v5604 = vadd.f32 0.0, %v5603
        %5605 = vmatmul.f32.gmra.mxu0 %v4362
        %v5606 = vpop.f32.mrf.mxu0
        %v5607 = vadd.f32 0.0, %v5606
        %5608 = vmatmul.f32.gmra.mxu0 %v4364
        %v5609 = vpop.f32.mrf.mxu0
        %v5610 = vadd.f32 0.0, %v5609
        %5611 = vmatmul.f32.gmra.mxu0 %v4366
        %v5612 = vpop.f32.mrf.mxu0
        %v5613 = vadd.f32 0.0, %v5612
        %5614 = vmatmul.f32.gmra.mxu0 %v4368
        %v5615 = vpop.f32.mrf.mxu0
        %v5616 = vadd.f32 0.0, %v5615
        %5617 = vmatmul.f32.gmra.mxu0 %v4370
        %v5618 = vpop.f32.mrf.mxu0
        %v5619 = vadd.f32 0.0, %v5618
        %5620 = vmatmul.f32.gmra.mxu0 %v4372
        %v5621 = vpop.f32.mrf.mxu0
        %v5622 = vadd.f32 0.0, %v5621
        %5623 = vmatmul.f32.gmra.mxu0 %v4374
        %v5624 = vpop.f32.mrf.mxu0
        %v5625 = vadd.f32 0.0, %v5624
        %5626 = vmatmul.f32.gmra.mxu0 %v4376
        %v5627 = vpop.f32.mrf.mxu0
        %v5628 = vadd.f32 0.0, %v5627
        %5629 = vmatmul.f32.gmra.mxu0 %v5325
        %v5630 = vpop.f32.mrf.mxu0
        %v5631 = vadd.f32 0.0, %v5630
        %5632 = vmatmul.f32.gmra.mxu0 %v5327
        %v5633 = vpop.f32.mrf.mxu0
        %v5634 = vadd.f32 0.0, %v5633
        %5635 = vmatmul.f32.gmra.mxu0 %v5329
        %v5636 = vpop.f32.mrf.mxu0
        %v5637 = vadd.f32 0.0, %v5636
        %5638 = vmatmul.f32.gmra.mxu0 %v5331
        %v5639 = vpop.f32.mrf.mxu0
        %v5640 = vadd.f32 0.0, %v5639
        %5641 = vmatmul.f32.gmra.mxu0 %v5333
        %v5642 = vpop.f32.mrf.mxu0
        %v5643 = vadd.f32 0.0, %v5642
        %5644 = vmatmul.f32.gmra.mxu0 %v5335
        %v5645 = vpop.f32.mrf.mxu0
        %v5646 = vadd.f32 0.0, %v5645
        %5647 = vmatmul.f32.gmra.mxu0 %v5337
        %v5648 = vpop.f32.mrf.mxu0
        %v5649 = vadd.f32 0.0, %v5648
        %5650 = vmatmul.f32.gmra.mxu0 %v5339
        %v5651 = vpop.f32.mrf.mxu0
        %v5652 = vadd.f32 0.0, %v5651
        %5653 = vmatmul.f32.gmra.mxu0 %v5341
        %v5654 = vpop.f32.mrf.mxu0
        %v5655 = vadd.f32 0.0, %v5654
        %5656 = vmatmul.f32.gmra.mxu0 %v5343
        %v5657 = vpop.f32.mrf.mxu0
        %v5658 = vadd.f32 0.0, %v5657
        %5659 = vmatmul.f32.gmra.mxu0 %v5345
        %v5660 = vpop.f32.mrf.mxu0
        %v5661 = vadd.f32 0.0, %v5660
        %5662 = vmatmul.f32.gmra.mxu0 %v5347
        %v5663 = vpop.f32.mrf.mxu0
        %v5664 = vadd.f32 0.0, %v5663
        %5665 = vmatmul.f32.gmra.mxu0 %v5349
        %v5666 = vpop.f32.mrf.mxu0
        %v5667 = vadd.f32 0.0, %v5666
        %5668 = vmatmul.f32.gmra.mxu0 %v5351
        %v5669 = vpop.f32.mrf.mxu0
        %v5670 = vadd.f32 0.0, %v5669
        %5671 = vmatmul.f32.gmra.mxu0 %v5353
        %v5672 = vpop.f32.mrf.mxu0
        %v5673 = vadd.f32 0.0, %v5672
        %5674 = vmatmul.f32.gmra.mxu0 %v5355
        %v5675 = vpop.f32.mrf.mxu0
        %v5676 = vadd.f32 0.0, %v5675
        %5677 = vmatmul.f32.gmra.mxu0 %v5357
        %v5678 = vpop.f32.mrf.mxu0
        %v5679 = vadd.f32 0.0, %v5678
        %5680 = vmatmul.f32.gmra.mxu0 %v5359
        %v5681 = vpop.f32.mrf.mxu0
        %v5682 = vadd.f32 0.0, %v5681
        %5683 = vmatmul.f32.gmra.mxu0 %v5361
        %v5684 = vpop.f32.mrf.mxu0
        %v5685 = vadd.f32 0.0, %v5684
        %5686 = vmatmul.f32.gmra.mxu0 %v5363
        %v5687 = vpop.f32.mrf.mxu0
        %v5688 = vadd.f32 0.0, %v5687
        %5689 = vmatmul.f32.gmra.mxu0 %v5365
        %v5690 = vpop.f32.mrf.mxu0
        %v5691 = vadd.f32 0.0, %v5690
        %5692 = vmatmul.f32.gmra.mxu0 %v5367
        %v5693 = vpop.f32.mrf.mxu0
        %v5694 = vadd.f32 0.0, %v5693
        %5695 = vmatmul.f32.gmra.mxu0 %v5369
        %v5696 = vpop.f32.mrf.mxu0
        %v5697 = vadd.f32 0.0, %v5696
        %5698 = vmatmul.f32.gmra.mxu0 %v5371
        %v5699 = vpop.f32.mrf.mxu0
        %v5700 = vadd.f32 0.0, %v5699
        %5701 = vmatmul.f32.gmra.mxu0 %v5373
        %v5702 = vpop.f32.mrf.mxu0
        %v5703 = vadd.f32 0.0, %v5702
        %5704 = vmatmul.f32.gmra.mxu0 %v5375
        %v5705 = vpop.f32.mrf.mxu0
        %v5706 = vadd.f32 0.0, %v5705
        %5707 = vmatmul.f32.gmra.mxu0 %v5377
        %v5708 = vpop.f32.mrf.mxu0
        %v5709 = vadd.f32 0.0, %v5708
        %5710 = vmatmul.f32.gmra.mxu0 %v5379
        %v5711 = vpop.f32.mrf.mxu0
        %v5712 = vadd.f32 0.0, %v5711
        %5713 = vmatmul.f32.gmra.mxu0 %v5381
        %v5714 = vpop.f32.mrf.mxu0
        %v5715 = vadd.f32 0.0, %v5714
        %5716 = vmatmul.f32.gmra.mxu0 %v5383
        %v5717 = vpop.f32.mrf.mxu0
        %v5718 = vadd.f32 0.0, %v5717
        %5719 = vmatmul.f32.gmra.mxu0 %v5385
        %v5720 = vpop.f32.mrf.mxu0
        %v5721 = vadd.f32 0.0, %v5720
        %5722 = vmatmul.f32.gmra.mxu0 %v5387
        %v5723 = vpop.f32.mrf.mxu0
        %v5724 = vadd.f32 0.0, %v5723
        %5725 = vmatmul.f32.gmra.mxu0 %v5389
        %v5726 = vpop.f32.mrf.mxu0
        %v5727 = vadd.f32 0.0, %v5726
        %5728 = vmatmul.f32.gmra.mxu0 %v5391
        %v5729 = vpop.f32.mrf.mxu0
        %v5730 = vadd.f32 0.0, %v5729
        %5731 = vmatmul.f32.gmra.mxu0 %v5393
        %v5732 = vpop.f32.mrf.mxu0
        %v5733 = vadd.f32 0.0, %v5732
        %5734 = vmatmul.f32.gmra.mxu0 %v5395
        %v5735 = vpop.f32.mrf.mxu0
        %v5736 = vadd.f32 0.0, %v5735
        %5737 = vmatmul.f32.gmra.mxu0 %v5397
        %v5738 = vpop.f32.mrf.mxu0
        %v5739 = vadd.f32 0.0, %v5738
        %5740 = vmatmul.f32.gmra.mxu0 %v5399
        %v5741 = vpop.f32.mrf.mxu0
        %v5742 = vadd.f32 0.0, %v5741
        %5743 = vmatmul.f32.gmra.mxu0 %v5401
        %v5744 = vpop.f32.mrf.mxu0
        %v5745 = vadd.f32 0.0, %v5744
        %5746 = vmatmul.f32.gmra.mxu0 %v5403
        %v5747 = vpop.f32.mrf.mxu0
        %v5748 = vadd.f32 0.0, %v5747
        %5749 = vmatmul.f32.gmra.mxu0 %v5405
        %v5750 = vpop.f32.mrf.mxu0
        %v5751 = vadd.f32 0.0, %v5750
        %5752 = vmatmul.f32.gmra.mxu0 %v5407
        %v5753 = vpop.f32.mrf.mxu0
        %v5754 = vadd.f32 0.0, %v5753
        %5755 = vmatmul.f32.gmra.mxu0 %v5409
        %v5756 = vpop.f32.mrf.mxu0
        %v5757 = vadd.f32 0.0, %v5756
        %5758 = vmatmul.f32.gmra.mxu0 %v5411
        %v5759 = vpop.f32.mrf.mxu0
        %v5760 = vadd.f32 0.0, %v5759
        %5761 = vmatmul.f32.gmra.mxu0 %v5413
        %v5762 = vpop.f32.mrf.mxu0
        %v5763 = vadd.f32 0.0, %v5762
        %5764 = vmatmul.f32.gmra.mxu0 %v5415
        %v5765 = vpop.f32.mrf.mxu0
        %v5766 = vadd.f32 0.0, %v5765
        %5767 = vmatmul.f32.gmra.mxu0 %v5417
        %v5768 = vpop.f32.mrf.mxu0
        %v5769 = vadd.f32 0.0, %v5768
        %5770 = vmatmul.f32.gmra.mxu0 %v5419
        %v5771 = vpop.f32.mrf.mxu0
        %v5772 = vadd.f32 0.0, %v5771
        %5773 = vmatmul.f32.gmra.mxu0 %v5421
        %v5774 = vpop.f32.mrf.mxu0
        %v5775 = vadd.f32 0.0, %v5774
        %5776 = vmatmul.f32.gmra.mxu0 %v5423
        %v5777 = vpop.f32.mrf.mxu0
        %v5778 = vadd.f32 0.0, %v5777
        %5779 = vmatmul.f32.gmra.mxu0 %v5425
        %v5780 = vpop.f32.mrf.mxu0
        %v5781 = vadd.f32 0.0, %v5780
        %5782 = vmatmul.f32.gmra.mxu0 %v5427
        %v5783 = vpop.f32.mrf.mxu0
        %v5784 = vadd.f32 0.0, %v5783
        %5785 = vmatmul.f32.gmra.mxu0 %v5429
        %v5786 = vpop.f32.mrf.mxu0
        %v5787 = vadd.f32 0.0, %v5786
        %5788 = vmatmul.f32.gmra.mxu0 %v5431
        %v5789 = vpop.f32.mrf.mxu0
        %v5790 = vadd.f32 0.0, %v5789
        %5791 = vmatmul.f32.gmra.mxu0 %v5433
        %v5792 = vpop.f32.mrf.mxu0
        %v5793 = vadd.f32 0.0, %v5792
        %5794 = vmatmul.f32.gmra.mxu0 %v5435
        %v5795 = vpop.f32.mrf.mxu0
        %v5796 = vadd.f32 0.0, %v5795
        %5797 = vmatmul.f32.gmra.mxu0 %v5437
        %v5798 = vpop.f32.mrf.mxu0
        %v5799 = vadd.f32 0.0, %v5798
        %5800 = vmatmul.f32.gmra.mxu0 %v5439
        %v5801 = vpop.f32.mrf.mxu0
        %v5802 = vadd.f32 0.0, %v5801
        %5803 = vmatmul.f32.gmra.mxu0 %v5441
        %v5804 = vpop.f32.mrf.mxu0
        %v5805 = vadd.f32 0.0, %v5804
        %5806 = vmatmul.f32.gmra.mxu0 %v5443
        %v5807 = vpop.f32.mrf.mxu0
        %v5808 = vadd.f32 0.0, %v5807
        %5809 = vmatmul.f32.gmra.mxu0 %v5445
        %v5810 = vpop.f32.mrf.mxu0
        %v5811 = vadd.f32 0.0, %v5810
        %5812 = vmatmul.f32.gmra.mxu0 %v5447
        %v5813 = vpop.f32.mrf.mxu0
        %v5814 = vadd.f32 0.0, %v5813
        %5815 = vmatmul.f32.gmra.mxu0 %v5449
        %v5816 = vpop.f32.mrf.mxu0
        %v5817 = vadd.f32 0.0, %v5816
        %5818 = vmatmul.f32.gmra.mxu0 %v5451
        %v5819 = vpop.f32.mrf.mxu0
        %v5820 = vadd.f32 0.0, %v5819
        %5821 = vmatmul.f32.gmra.mxu0 %v5453
        %v5822 = vpop.f32.mrf.mxu0
        %v5823 = vadd.f32 0.0, %v5822
        %5824 = vmatmul.f32.gmra.mxu0 %v5455
        %v5825 = vpop.f32.mrf.mxu0
        %v5826 = vadd.f32 0.0, %v5825
        %5827 = vmatmul.f32.gmra.mxu0 %v5457
        %v5828 = vpop.f32.mrf.mxu0
        %v5829 = vadd.f32 0.0, %v5828
        %5830 = vmatmul.f32.gmra.mxu0 %v5459
        %v5831 = vpop.f32.mrf.mxu0
        %v5832 = vadd.f32 0.0, %v5831
        %5833 = vmatmul.f32.gmra.mxu0 %v5461
        %v5834 = vpop.f32.mrf.mxu0
        %v5835 = vadd.f32 0.0, %v5834
        %5836 = vmatmul.f32.gmra.mxu0 %v5463
        %v5837 = vpop.f32.mrf.mxu0
        %v5838 = vadd.f32 0.0, %v5837
        %5839 = vmatmul.f32.gmra.mxu0 %v5465
        %v5840 = vpop.f32.mrf.mxu0
        %v5841 = vadd.f32 0.0, %v5840
        %5842 = vmatmul.f32.gmra.mxu0 %v5467
        %v5843 = vpop.f32.mrf.mxu0
        %v5844 = vadd.f32 0.0, %v5843
        %5845 = vmatmul.f32.gmra.mxu0 %v5469
        %v5846 = vpop.f32.mrf.mxu0
        %v5847 = vadd.f32 0.0, %v5846
        %5848 = vmatmul.f32.gmra.mxu0 %v5471
        %v5849 = vpop.f32.mrf.mxu0
        %v5850 = vadd.f32 0.0, %v5849
        %5851 = vmatmul.f32.gmra.mxu0 %v5473
        %v5852 = vpop.f32.mrf.mxu0
        %v5853 = vadd.f32 0.0, %v5852
        %5854 = vmatmul.f32.gmra.mxu0 %v5475
        %v5855 = vpop.f32.mrf.mxu0
        %v5856 = vadd.f32 0.0, %v5855
        %5857 = vmatmul.f32.gmra.mxu0 %v5477
        %v5858 = vpop.f32.mrf.mxu0
        %v5859 = vadd.f32 0.0, %v5858
        %5860 = vmatmul.f32.gmra.mxu0 %v5479
        %v5861 = vpop.f32.mrf.mxu0
        %v5862 = vadd.f32 0.0, %v5861
        %5863 = vmatmul.f32.gmra.mxu0 %v5481
        %v5864 = vpop.f32.mrf.mxu0
        %v5865 = vadd.f32 0.0, %v5864
        %5866 = vmatmul.f32.gmra.mxu0 %v5483
        %v5867 = vpop.f32.mrf.mxu0
        %v5868 = vadd.f32 0.0, %v5867
        %5869 = vmatmul.f32.gmra.mxu0 %v5485
        %v5870 = vpop.f32.mrf.mxu0
        %v5871 = vadd.f32 0.0, %v5870
        %5872 = vmatmul.f32.gmra.mxu0 %v5487
        %v5873 = vpop.f32.mrf.mxu0
        %v5874 = vadd.f32 0.0, %v5873
        %5875 = vmatmul.f32.gmra.mxu0 %v5489
        %v5876 = vpop.f32.mrf.mxu0
        %v5877 = vadd.f32 0.0, %v5876
        %5878 = vmatmul.f32.gmra.mxu0 %v5491
        %v5879 = vpop.f32.mrf.mxu0
        %v5880 = vadd.f32 0.0, %v5879
        %5881 = vmatmul.f32.gmra.mxu0 %v5493
        %v5882 = vpop.f32.mrf.mxu0
        %v5883 = vadd.f32 0.0, %v5882
        %5884 = vmatmul.f32.gmra.mxu0 %v5495
        %v5885 = vpop.f32.mrf.mxu0
        %v5886 = vadd.f32 0.0, %v5885
        %5887 = vmatmul.f32.gmra.mxu0 %v5497
        %v5888 = vpop.f32.mrf.mxu0
        %v5889 = vadd.f32 0.0, %v5888
        %5890 = vmatmul.f32.gmra.mxu0 %v5499
        %v5891 = vpop.f32.mrf.mxu0
        %v5892 = vadd.f32 0.0, %v5891
        %5893 = vmatmul.f32.gmra.mxu0 %v5501
        %v5894 = vpop.f32.mrf.mxu0
        %v5895 = vadd.f32 0.0, %v5894
        %5896 = vmatmul.f32.gmra.mxu0 %v5503
        %v5897 = vpop.f32.mrf.mxu0
        %v5898 = vadd.f32 0.0, %v5897
        %5899 = vmatmul.f32.gmra.mxu0 %v5505
        %v5900 = vpop.f32.mrf.mxu0
        %v5901 = vadd.f32 0.0, %v5900
        %5902 = vmatmul.f32.gmra.mxu0 %v5507
        %v5903 = vpop.f32.mrf.mxu0
        %v5904 = vadd.f32 0.0, %v5903
        %5905 = vmatmul.f32.gmra.mxu0 %v5509
        %v5906 = vpop.f32.mrf.mxu0
        %v5907 = vadd.f32 0.0, %v5906
        %5908 = vmatmul.f32.gmra.mxu0 %v5511
        %v5909 = vpop.f32.mrf.mxu0
        %v5910 = vadd.f32 0.0, %v5909
        %5911 = vmatmul.f32.gmra.mxu0 %v5513
        %v5912 = vpop.f32.mrf.mxu0
        %v5913 = vadd.f32 0.0, %v5912
        %5914 = vmatmul.f32.gmra.mxu0 %v5515
        %v5915 = vpop.f32.mrf.mxu0
        %v5916 = vadd.f32 0.0, %v5915
        %5917 = vdwg.mxu0
        %v5918 = vadd.f32 %v4907, %v5535
        %v5919 = vadd.f32 %v4908, %v5538
        %v5920 = vadd.f32 %v4909, %v5541
        %v5921 = vadd.f32 %v4910, %v5544
        %v5922 = vadd.f32 %v4911, %v5547
        %v5923 = vadd.f32 %v4912, %v5550
        %v5924 = vadd.f32 %v4913, %v5553
        %v5925 = vadd.f32 %v4914, %v5556
        %v5926 = vadd.f32 %v4915, %v5559
        %v5927 = vadd.f32 %v4916, %v5562
        %v5928 = vadd.f32 %v4917, %v5565
        %v5929 = vadd.f32 %v4918, %v5568
        %v5930 = vadd.f32 %v4919, %v5571
        %v5931 = vadd.f32 %v4920, %v5574
        %v5932 = vadd.f32 %v4921, %v5577
        %v5933 = vadd.f32 %v4922, %v5580
        %v5934 = vadd.f32 %v4923, %v5583
        %v5935 = vadd.f32 %v4924, %v5586
        %v5936 = vadd.f32 %v4925, %v5589
        %v5937 = vadd.f32 %v4926, %v5592
        %v5938 = vadd.f32 %v4927, %v5595
        %v5939 = vadd.f32 %v4928, %v5598
        %v5940 = vadd.f32 %v4929, %v5601
        %v5941 = vadd.f32 %v4930, %v5604
        %v5942 = vadd.f32 %v4931, %v5607
        %v5943 = vadd.f32 %v4932, %v5610
        %v5944 = vadd.f32 %v4933, %v5613
        %v5945 = vadd.f32 %v4934, %v5616
        %v5946 = vadd.f32 %v4935, %v5619
        %v5947 = vadd.f32 %v4936, %v5622
        %v5948 = vadd.f32 %v4937, %v5625
        %v5949 = vadd.f32 %v4938, %v5628
        %v5950 = vadd.f32 %v4939, %v5631
        %v5951 = vadd.f32 %v4940, %v5634
        %v5952 = vadd.f32 %v4941, %v5637
        %v5953 = vadd.f32 %v4942, %v5640
        %v5954 = vadd.f32 %v4943, %v5643
        %v5955 = vadd.f32 %v4944, %v5646
        %v5956 = vadd.f32 %v4945, %v5649
        %v5957 = vadd.f32 %v4946, %v5652
        %v5958 = vadd.f32 %v4947, %v5655
        %v5959 = vadd.f32 %v4948, %v5658
        %v5960 = vadd.f32 %v4949, %v5661
        %v5961 = vadd.f32 %v4950, %v5664
        %v5962 = vadd.f32 %v4951, %v5667
        %v5963 = vadd.f32 %v4952, %v5670
        %v5964 = vadd.f32 %v4953, %v5673
        %v5965 = vadd.f32 %v4954, %v5676
        %v5966 = vadd.f32 %v4955, %v5679
        %v5967 = vadd.f32 %v4956, %v5682
        %v5968 = vadd.f32 %v4957, %v5685
        %v5969 = vadd.f32 %v4958, %v5688
        %v5970 = vadd.f32 %v4959, %v5691
        %v5971 = vadd.f32 %v4960, %v5694
        %v5972 = vadd.f32 %v4961, %v5697
        %v5973 = vadd.f32 %v4962, %v5700
        %v5974 = vadd.f32 %v4963, %v5703
        %v5975 = vadd.f32 %v4964, %v5706
        %v5976 = vadd.f32 %v4965, %v5709
        %v5977 = vadd.f32 %v4966, %v5712
        %v5978 = vadd.f32 %v4967, %v5715
        %v5979 = vadd.f32 %v4968, %v5718
        %v5980 = vadd.f32 %v4969, %v5721
        %v5981 = vadd.f32 %v4970, %v5724
        %v5982 = vadd.f32 %v4971, %v5727
        %v5983 = vadd.f32 %v4972, %v5730
        %v5984 = vadd.f32 %v4973, %v5733
        %v5985 = vadd.f32 %v4974, %v5736
        %v5986 = vadd.f32 %v4975, %v5739
        %v5987 = vadd.f32 %v4976, %v5742
        %v5988 = vadd.f32 %v4977, %v5745
        %v5989 = vadd.f32 %v4978, %v5748
        %v5990 = vadd.f32 %v4979, %v5751
        %v5991 = vadd.f32 %v4980, %v5754
        %v5992 = vadd.f32 %v4981, %v5757
        %v5993 = vadd.f32 %v4982, %v5760
        %v5994 = vadd.f32 %v4983, %v5763
        %v5995 = vadd.f32 %v4984, %v5766
        %v5996 = vadd.f32 %v4985, %v5769
        %v5997 = vadd.f32 %v4986, %v5772
        %v5998 = vadd.f32 %v4987, %v5775
        %v5999 = vadd.f32 %v4988, %v5778
        %v6000 = vadd.f32 %v4989, %v5781
        %v6001 = vadd.f32 %v4990, %v5784
        %v6002 = vadd.f32 %v4991, %v5787
        %v6003 = vadd.f32 %v4992, %v5790
        %v6004 = vadd.f32 %v4993, %v5793
        %v6005 = vadd.f32 %v4994, %v5796
        %v6006 = vadd.f32 %v4995, %v5799
        %v6007 = vadd.f32 %v4996, %v5802
        %v6008 = vadd.f32 %v4997, %v5805
        %v6009 = vadd.f32 %v4998, %v5808
        %v6010 = vadd.f32 %v4999, %v5811
        %v6011 = vadd.f32 %v5000, %v5814
        %v6012 = vadd.f32 %v5001, %v5817
        %v6013 = vadd.f32 %v5002, %v5820
        %v6014 = vadd.f32 %v5003, %v5823
        %v6015 = vadd.f32 %v5004, %v5826
        %v6016 = vadd.f32 %v5005, %v5829
        %v6017 = vadd.f32 %v5006, %v5832
        %v6018 = vadd.f32 %v5007, %v5835
        %v6019 = vadd.f32 %v5008, %v5838
        %v6020 = vadd.f32 %v5009, %v5841
        %v6021 = vadd.f32 %v5010, %v5844
        %v6022 = vadd.f32 %v5011, %v5847
        %v6023 = vadd.f32 %v5012, %v5850
        %v6024 = vadd.f32 %v5013, %v5853
        %v6025 = vadd.f32 %v5014, %v5856
        %v6026 = vadd.f32 %v5015, %v5859
        %v6027 = vadd.f32 %v5016, %v5862
        %v6028 = vadd.f32 %v5017, %v5865
        %v6029 = vadd.f32 %v5018, %v5868
        %v6030 = vadd.f32 %v5019, %v5871
        %v6031 = vadd.f32 %v5020, %v5874
        %v6032 = vadd.f32 %v5021, %v5877
        %v6033 = vadd.f32 %v5022, %v5880
        %v6034 = vadd.f32 %v5023, %v5883
        %v6035 = vadd.f32 %v5024, %v5886
        %v6036 = vadd.f32 %v5025, %v5889
        %v6037 = vadd.f32 %v5026, %v5892
        %v6038 = vadd.f32 %v5027, %v5895
        %v6039 = vadd.f32 %v5028, %v5898
        %v6040 = vadd.f32 %v5029, %v5901
        %v6041 = vadd.f32 %v5030, %v5904
        %v6042 = vadd.f32 %v5031, %v5907
        %v6043 = vadd.f32 %v5032, %v5910
        %v6044 = vadd.f32 %v5033, %v5913
        %v6045 = vadd.f32 %v5034, %v5916
        %v6046 = vmax.f32 %v5918, 0.0
        %v6047 = vmax.f32 %v5919, 0.0
        %v6048 = vmax.f32 %v5920, 0.0
        %v6049 = vmax.f32 %v5921, 0.0
        %v6050 = vmax.f32 %v5922, 0.0
        %v6051 = vmax.f32 %v5923, 0.0
        %v6052 = vmax.f32 %v5924, 0.0
        %v6053 = vmax.f32 %v5925, 0.0
        %v6054 = vmax.f32 %v5926, 0.0
        %v6055 = vmax.f32 %v5927, 0.0
        %v6056 = vmax.f32 %v5928, 0.0
        %v6057 = vmax.f32 %v5929, 0.0
        %v6058 = vmax.f32 %v5930, 0.0
        %v6059 = vmax.f32 %v5931, 0.0
        %v6060 = vmax.f32 %v5932, 0.0
        %v6061 = vmax.f32 %v5933, 0.0
        %v6062 = vmax.f32 %v5934, 0.0
        %v6063 = vmax.f32 %v5935, 0.0
        %v6064 = vmax.f32 %v5936, 0.0
        %v6065 = vmax.f32 %v5937, 0.0
        %v6066 = vmax.f32 %v5938, 0.0
        %v6067 = vmax.f32 %v5939, 0.0
        %v6068 = vmax.f32 %v5940, 0.0
        %v6069 = vmax.f32 %v5941, 0.0
        %v6070 = vmax.f32 %v5942, 0.0
        %v6071 = vmax.f32 %v5943, 0.0
        %v6072 = vmax.f32 %v5944, 0.0
        %v6073 = vmax.f32 %v5945, 0.0
        %v6074 = vmax.f32 %v5946, 0.0
        %v6075 = vmax.f32 %v5947, 0.0
        %v6076 = vmax.f32 %v5948, 0.0
        %v6077 = vmax.f32 %v5949, 0.0
        %v6078 = vmax.f32 %v5950, 0.0
        %v6079 = vmax.f32 %v5951, 0.0
        %v6080 = vmax.f32 %v5952, 0.0
        %v6081 = vmax.f32 %v5953, 0.0
        %v6082 = vmax.f32 %v5954, 0.0
        %v6083 = vmax.f32 %v5955, 0.0
        %v6084 = vmax.f32 %v5956, 0.0
        %v6085 = vmax.f32 %v5957, 0.0
        %v6086 = vmax.f32 %v5958, 0.0
        %v6087 = vmax.f32 %v5959, 0.0
        %v6088 = vmax.f32 %v5960, 0.0
        %v6089 = vmax.f32 %v5961, 0.0
        %v6090 = vmax.f32 %v5962, 0.0
        %v6091 = vmax.f32 %v5963, 0.0
        %v6092 = vmax.f32 %v5964, 0.0
        %v6093 = vmax.f32 %v5965, 0.0
        %v6094 = vmax.f32 %v5966, 0.0
        %v6095 = vmax.f32 %v5967, 0.0
        %v6096 = vmax.f32 %v5968, 0.0
        %v6097 = vmax.f32 %v5969, 0.0
        %v6098 = vmax.f32 %v5970, 0.0
        %v6099 = vmax.f32 %v5971, 0.0
        %v6100 = vmax.f32 %v5972, 0.0
        %v6101 = vmax.f32 %v5973, 0.0
        %v6102 = vmax.f32 %v5974, 0.0
        %v6103 = vmax.f32 %v5975, 0.0
        %v6104 = vmax.f32 %v5976, 0.0
        %v6105 = vmax.f32 %v5977, 0.0
        %v6106 = vmax.f32 %v5978, 0.0
        %v6107 = vmax.f32 %v5979, 0.0
        %v6108 = vmax.f32 %v5980, 0.0
        %v6109 = vmax.f32 %v5981, 0.0
        %v6110 = vmax.f32 %v5982, 0.0
        %v6111 = vmax.f32 %v5983, 0.0
        %v6112 = vmax.f32 %v5984, 0.0
        %v6113 = vmax.f32 %v5985, 0.0
        %v6114 = vmax.f32 %v5986, 0.0
        %v6115 = vmax.f32 %v5987, 0.0
        %v6116 = vmax.f32 %v5988, 0.0
        %v6117 = vmax.f32 %v5989, 0.0
        %v6118 = vmax.f32 %v5990, 0.0
        %v6119 = vmax.f32 %v5991, 0.0
        %v6120 = vmax.f32 %v5992, 0.0
        %v6121 = vmax.f32 %v5993, 0.0
        %v6122 = vmax.f32 %v5994, 0.0
        %v6123 = vmax.f32 %v5995, 0.0
        %v6124 = vmax.f32 %v5996, 0.0
        %v6125 = vmax.f32 %v5997, 0.0
        %v6126 = vmax.f32 %v5998, 0.0
        %v6127 = vmax.f32 %v5999, 0.0
        %v6128 = vmax.f32 %v6000, 0.0
        %v6129 = vmax.f32 %v6001, 0.0
        %v6130 = vmax.f32 %v6002, 0.0
        %v6131 = vmax.f32 %v6003, 0.0
        %v6132 = vmax.f32 %v6004, 0.0
        %v6133 = vmax.f32 %v6005, 0.0
        %v6134 = vmax.f32 %v6006, 0.0
        %v6135 = vmax.f32 %v6007, 0.0
        %v6136 = vmax.f32 %v6008, 0.0
        %v6137 = vmax.f32 %v6009, 0.0
        %v6138 = vmax.f32 %v6010, 0.0
        %v6139 = vmax.f32 %v6011, 0.0
        %v6140 = vmax.f32 %v6012, 0.0
        %v6141 = vmax.f32 %v6013, 0.0
        %v6142 = vmax.f32 %v6014, 0.0
        %v6143 = vmax.f32 %v6015, 0.0
        %v6144 = vmax.f32 %v6016, 0.0
        %v6145 = vmax.f32 %v6017, 0.0
        %v6146 = vmax.f32 %v6018, 0.0
        %v6147 = vmax.f32 %v6019, 0.0
        %v6148 = vmax.f32 %v6020, 0.0
        %v6149 = vmax.f32 %v6021, 0.0
        %v6150 = vmax.f32 %v6022, 0.0
        %v6151 = vmax.f32 %v6023, 0.0
        %v6152 = vmax.f32 %v6024, 0.0
        %v6153 = vmax.f32 %v6025, 0.0
        %v6154 = vmax.f32 %v6026, 0.0
        %v6155 = vmax.f32 %v6027, 0.0
        %v6156 = vmax.f32 %v6028, 0.0
        %v6157 = vmax.f32 %v6029, 0.0
        %v6158 = vmax.f32 %v6030, 0.0
        %v6159 = vmax.f32 %v6031, 0.0
        %v6160 = vmax.f32 %v6032, 0.0
        %v6161 = vmax.f32 %v6033, 0.0
        %v6162 = vmax.f32 %v6034, 0.0
        %v6163 = vmax.f32 %v6035, 0.0
        %v6164 = vmax.f32 %v6036, 0.0
        %v6165 = vmax.f32 %v6037, 0.0
        %v6166 = vmax.f32 %v6038, 0.0
        %v6167 = vmax.f32 %v6039, 0.0
        %v6168 = vmax.f32 %v6040, 0.0
        %v6169 = vmax.f32 %v6041, 0.0
        %v6170 = vmax.f32 %v6042, 0.0
        %v6171 = vmax.f32 %v6043, 0.0
        %v6172 = vmax.f32 %v6044, 0.0
        %v6173 = vmax.f32 %v6045, 0.0
        %6206 = vrot.lane.b32.xlu0 %v6046, 122
        %v6207 = vpop.permute.xlu0 %6206
        %6208 = vrot.lane.b32.xlu0 %v6047, 122
        %v6209 = vpop.permute.xlu0 %6208
        %6210 = vrot.lane.b32.xlu0 %v6048, 122
        %v6211 = vpop.permute.xlu0 %6210
        %6212 = vrot.lane.b32.xlu0 %v6049, 122
        %v6213 = vpop.permute.xlu0 %6212
        %6214 = vrot.lane.b32.xlu0 %v6050, 122
        %v6215 = vpop.permute.xlu0 %6214
        %6216 = vrot.lane.b32.xlu0 %v6051, 122
        %v6217 = vpop.permute.xlu0 %6216
        %6218 = vrot.lane.b32.xlu0 %v6052, 122
        %v6219 = vpop.permute.xlu0 %6218
        %6220 = vrot.lane.b32.xlu0 %v6053, 122
        %v6221 = vpop.permute.xlu0 %6220
        %6222 = vrot.lane.b32.xlu0 %v6054, 122
        %v6223 = vpop.permute.xlu0 %6222
        %6224 = vrot.lane.b32.xlu0 %v6055, 122
        %v6225 = vpop.permute.xlu0 %6224
        %6226 = vrot.lane.b32.xlu0 %v6056, 122
        %v6227 = vpop.permute.xlu0 %6226
        %6228 = vrot.lane.b32.xlu0 %v6057, 122
        %v6229 = vpop.permute.xlu0 %6228
        %6230 = vrot.lane.b32.xlu0 %v6058, 122
        %v6231 = vpop.permute.xlu0 %6230
        %6232 = vrot.lane.b32.xlu0 %v6059, 122
        %v6233 = vpop.permute.xlu0 %6232
        %6234 = vrot.lane.b32.xlu0 %v6060, 122
        %v6235 = vpop.permute.xlu0 %6234
        %6236 = vrot.lane.b32.xlu0 %v6061, 122
        %v6237 = vpop.permute.xlu0 %6236
        %6238 = vrot.lane.b32.xlu0 %v6062, 122
        %v6239 = vpop.permute.xlu0 %6238
        %6240 = vrot.lane.b32.xlu0 %v6063, 122
        %v6241 = vpop.permute.xlu0 %6240
        %6242 = vrot.lane.b32.xlu0 %v6064, 122
        %v6243 = vpop.permute.xlu0 %6242
        %6244 = vrot.lane.b32.xlu0 %v6065, 122
        %v6245 = vpop.permute.xlu0 %6244
        %6246 = vrot.lane.b32.xlu0 %v6066, 122
        %v6247 = vpop.permute.xlu0 %6246
        %6248 = vrot.lane.b32.xlu0 %v6067, 122
        %v6249 = vpop.permute.xlu0 %6248
        %6250 = vrot.lane.b32.xlu0 %v6068, 122
        %v6251 = vpop.permute.xlu0 %6250
        %6252 = vrot.lane.b32.xlu0 %v6069, 122
        %v6253 = vpop.permute.xlu0 %6252
        %6254 = vrot.lane.b32.xlu0 %v6070, 122
        %v6255 = vpop.permute.xlu0 %6254
        %6256 = vrot.lane.b32.xlu0 %v6071, 122
        %v6257 = vpop.permute.xlu0 %6256
        %6258 = vrot.lane.b32.xlu0 %v6072, 122
        %v6259 = vpop.permute.xlu0 %6258
        %6260 = vrot.lane.b32.xlu0 %v6073, 122
        %v6261 = vpop.permute.xlu0 %6260
        %6262 = vrot.lane.b32.xlu0 %v6074, 122
        %v6263 = vpop.permute.xlu0 %6262
        %6264 = vrot.lane.b32.xlu0 %v6075, 122
        %v6265 = vpop.permute.xlu0 %6264
        %6266 = vrot.lane.b32.xlu0 %v6076, 122
        %v6267 = vpop.permute.xlu0 %6266
        %6268 = vrot.lane.b32.xlu0 %v6077, 122
        %v6269 = vpop.permute.xlu0 %6268
        %6334 = vrot.lane.b32.xlu0 %v6078, 122
        %v6335 = vpop.permute.xlu0 %6334
        %6336 = vrot.lane.b32.xlu0 %v6079, 122
        %v6337 = vpop.permute.xlu0 %6336
        %6338 = vrot.lane.b32.xlu0 %v6080, 122
        %v6339 = vpop.permute.xlu0 %6338
        %6340 = vrot.lane.b32.xlu0 %v6081, 122
        %v6341 = vpop.permute.xlu0 %6340
        %6342 = vrot.lane.b32.xlu0 %v6082, 122
        %v6343 = vpop.permute.xlu0 %6342
        %6344 = vrot.lane.b32.xlu0 %v6083, 122
        %v6345 = vpop.permute.xlu0 %6344
        %6346 = vrot.lane.b32.xlu0 %v6084, 122
        %v6347 = vpop.permute.xlu0 %6346
        %6348 = vrot.lane.b32.xlu0 %v6085, 122
        %v6349 = vpop.permute.xlu0 %6348
        %6350 = vrot.lane.b32.xlu0 %v6086, 122
        %v6351 = vpop.permute.xlu0 %6350
        %6352 = vrot.lane.b32.xlu0 %v6087, 122
        %v6353 = vpop.permute.xlu0 %6352
        %6354 = vrot.lane.b32.xlu0 %v6088, 122
        %v6355 = vpop.permute.xlu0 %6354
        %6356 = vrot.lane.b32.xlu0 %v6089, 122
        %v6357 = vpop.permute.xlu0 %6356
        %6358 = vrot.lane.b32.xlu0 %v6090, 122
        %v6359 = vpop.permute.xlu0 %6358
        %6360 = vrot.lane.b32.xlu0 %v6091, 122
        %v6361 = vpop.permute.xlu0 %6360
        %6362 = vrot.lane.b32.xlu0 %v6092, 122
        %v6363 = vpop.permute.xlu0 %6362
        %6364 = vrot.lane.b32.xlu0 %v6093, 122
        %v6365 = vpop.permute.xlu0 %6364
        %6366 = vrot.lane.b32.xlu0 %v6094, 122
        %v6367 = vpop.permute.xlu0 %6366
        %6368 = vrot.lane.b32.xlu0 %v6095, 122
        %v6369 = vpop.permute.xlu0 %6368
        %6370 = vrot.lane.b32.xlu0 %v6096, 122
        %v6371 = vpop.permute.xlu0 %6370
        %6372 = vrot.lane.b32.xlu0 %v6097, 122
        %v6373 = vpop.permute.xlu0 %6372
        %6374 = vrot.lane.b32.xlu0 %v6098, 122
        %v6375 = vpop.permute.xlu0 %6374
        %6376 = vrot.lane.b32.xlu0 %v6099, 122
        %v6377 = vpop.permute.xlu0 %6376
        %6378 = vrot.lane.b32.xlu0 %v6100, 122
        %v6379 = vpop.permute.xlu0 %6378
        %6380 = vrot.lane.b32.xlu0 %v6101, 122
        %v6381 = vpop.permute.xlu0 %6380
        %6382 = vrot.lane.b32.xlu0 %v6102, 122
        %v6383 = vpop.permute.xlu0 %6382
        %6384 = vrot.lane.b32.xlu0 %v6103, 122
        %v6385 = vpop.permute.xlu0 %6384
        %6386 = vrot.lane.b32.xlu0 %v6104, 122
        %v6387 = vpop.permute.xlu0 %6386
        %6388 = vrot.lane.b32.xlu0 %v6105, 122
        %v6389 = vpop.permute.xlu0 %6388
        %6390 = vrot.lane.b32.xlu0 %v6106, 122
        %v6391 = vpop.permute.xlu0 %6390
        %6392 = vrot.lane.b32.xlu0 %v6107, 122
        %v6393 = vpop.permute.xlu0 %6392
        %6394 = vrot.lane.b32.xlu0 %v6108, 122
        %v6395 = vpop.permute.xlu0 %6394
        %6396 = vrot.lane.b32.xlu0 %v6109, 122
        %v6397 = vpop.permute.xlu0 %6396
        %6430 = vrot.lane.b32.xlu0 %v6110, 122
        %v6431 = vpop.permute.xlu0 %6430
        %6432 = vrot.lane.b32.xlu0 %v6111, 122
        %v6433 = vpop.permute.xlu0 %6432
        %6434 = vrot.lane.b32.xlu0 %v6112, 122
        %v6435 = vpop.permute.xlu0 %6434
        %6436 = vrot.lane.b32.xlu0 %v6113, 122
        %v6437 = vpop.permute.xlu0 %6436
        %6438 = vrot.lane.b32.xlu0 %v6114, 122
        %v6439 = vpop.permute.xlu0 %6438
        %6440 = vrot.lane.b32.xlu0 %v6115, 122
        %v6441 = vpop.permute.xlu0 %6440
        %6442 = vrot.lane.b32.xlu0 %v6116, 122
        %v6443 = vpop.permute.xlu0 %6442
        %6444 = vrot.lane.b32.xlu0 %v6117, 122
        %v6445 = vpop.permute.xlu0 %6444
        %6446 = vrot.lane.b32.xlu0 %v6118, 122
        %v6447 = vpop.permute.xlu0 %6446
        %6448 = vrot.lane.b32.xlu0 %v6119, 122
        %v6449 = vpop.permute.xlu0 %6448
        %6450 = vrot.lane.b32.xlu0 %v6120, 122
        %v6451 = vpop.permute.xlu0 %6450
        %6452 = vrot.lane.b32.xlu0 %v6121, 122
        %v6453 = vpop.permute.xlu0 %6452
        %6454 = vrot.lane.b32.xlu0 %v6122, 122
        %v6455 = vpop.permute.xlu0 %6454
        %6456 = vrot.lane.b32.xlu0 %v6123, 122
        %v6457 = vpop.permute.xlu0 %6456
        %6458 = vrot.lane.b32.xlu0 %v6124, 122
        %v6459 = vpop.permute.xlu0 %6458
        %6460 = vrot.lane.b32.xlu0 %v6125, 122
        %v6461 = vpop.permute.xlu0 %6460
        %6462 = vrot.lane.b32.xlu0 %v6126, 122
        %v6463 = vpop.permute.xlu0 %6462
        %6464 = vrot.lane.b32.xlu0 %v6127, 122
        %v6465 = vpop.permute.xlu0 %6464
        %6466 = vrot.lane.b32.xlu0 %v6128, 122
        %v6467 = vpop.permute.xlu0 %6466
        %6468 = vrot.lane.b32.xlu0 %v6129, 122
        %v6469 = vpop.permute.xlu0 %6468
        %6470 = vrot.lane.b32.xlu0 %v6130, 122
        %v6471 = vpop.permute.xlu0 %6470
        %6472 = vrot.lane.b32.xlu0 %v6131, 122
        %v6473 = vpop.permute.xlu0 %6472
        %6474 = vrot.lane.b32.xlu0 %v6132, 122
        %v6475 = vpop.permute.xlu0 %6474
        %6476 = vrot.lane.b32.xlu0 %v6133, 122
        %v6477 = vpop.permute.xlu0 %6476
        %6478 = vrot.lane.b32.xlu0 %v6134, 122
        %v6479 = vpop.permute.xlu0 %6478
        %6480 = vrot.lane.b32.xlu0 %v6135, 122
        %v6481 = vpop.permute.xlu0 %6480
        %6482 = vrot.lane.b32.xlu0 %v6136, 122
        %v6483 = vpop.permute.xlu0 %6482
        %6484 = vrot.lane.b32.xlu0 %v6137, 122
        %v6485 = vpop.permute.xlu0 %6484
        %6486 = vrot.lane.b32.xlu0 %v6138, 122
        %v6487 = vpop.permute.xlu0 %6486
        %6488 = vrot.lane.b32.xlu0 %v6139, 122
        %v6489 = vpop.permute.xlu0 %6488
        %6490 = vrot.lane.b32.xlu0 %v6140, 122
        %v6491 = vpop.permute.xlu0 %6490
        %6492 = vrot.lane.b32.xlu0 %v6141, 122
        %v6493 = vpop.permute.xlu0 %6492
        %6526 = vrot.lane.b32.xlu0 %v6142, 122
        %v6527 = vpop.permute.xlu0 %6526
        %6528 = vrot.lane.b32.xlu0 %v6143, 122
        %v6529 = vpop.permute.xlu0 %6528
        %6530 = vrot.lane.b32.xlu0 %v6144, 122
        %v6531 = vpop.permute.xlu0 %6530
        %6532 = vrot.lane.b32.xlu0 %v6145, 122
        %v6533 = vpop.permute.xlu0 %6532
        %6534 = vrot.lane.b32.xlu0 %v6146, 122
        %v6535 = vpop.permute.xlu0 %6534
        %6536 = vrot.lane.b32.xlu0 %v6147, 122
        %v6537 = vpop.permute.xlu0 %6536
        %6538 = vrot.lane.b32.xlu0 %v6148, 122
        %v6539 = vpop.permute.xlu0 %6538
        %6540 = vrot.lane.b32.xlu0 %v6149, 122
        %v6541 = vpop.permute.xlu0 %6540
        %6542 = vrot.lane.b32.xlu0 %v6150, 122
        %v6543 = vpop.permute.xlu0 %6542
        %6544 = vrot.lane.b32.xlu0 %v6151, 122
        %v6545 = vpop.permute.xlu0 %6544
        %6546 = vrot.lane.b32.xlu0 %v6152, 122
        %v6547 = vpop.permute.xlu0 %6546
        %6548 = vrot.lane.b32.xlu0 %v6153, 122
        %v6549 = vpop.permute.xlu0 %6548
        %6550 = vrot.lane.b32.xlu0 %v6154, 122
        %v6551 = vpop.permute.xlu0 %6550
        %6552 = vrot.lane.b32.xlu0 %v6155, 122
        %v6553 = vpop.permute.xlu0 %6552
        %6554 = vrot.lane.b32.xlu0 %v6156, 122
        %v6555 = vpop.permute.xlu0 %6554
        %6556 = vrot.lane.b32.xlu0 %v6157, 122
        %v6557 = vpop.permute.xlu0 %6556
        %6558 = vrot.lane.b32.xlu0 %v6158, 122
        %v6559 = vpop.permute.xlu0 %6558
        %6560 = vrot.lane.b32.xlu0 %v6159, 122
        %v6561 = vpop.permute.xlu0 %6560
        %6562 = vrot.lane.b32.xlu0 %v6160, 122
        %v6563 = vpop.permute.xlu0 %6562
        %6564 = vrot.lane.b32.xlu0 %v6161, 122
        %v6565 = vpop.permute.xlu0 %6564
        %6566 = vrot.lane.b32.xlu0 %v6162, 122
        %v6567 = vpop.permute.xlu0 %6566
        %6568 = vrot.lane.b32.xlu0 %v6163, 122
        %v6569 = vpop.permute.xlu0 %6568
        %6570 = vrot.lane.b32.xlu0 %v6164, 122
        %v6571 = vpop.permute.xlu0 %6570
        %6572 = vrot.lane.b32.xlu0 %v6165, 122
        %v6573 = vpop.permute.xlu0 %6572
        %6574 = vrot.lane.b32.xlu0 %v6166, 122
        %v6575 = vpop.permute.xlu0 %6574
        %6576 = vrot.lane.b32.xlu0 %v6167, 122
        %v6577 = vpop.permute.xlu0 %6576
        %6578 = vrot.lane.b32.xlu0 %v6168, 122
        %v6579 = vpop.permute.xlu0 %6578
        %6580 = vrot.lane.b32.xlu0 %v6169, 122
        %v6581 = vpop.permute.xlu0 %6580
        %6582 = vrot.lane.b32.xlu0 %v6170, 122
        %v6583 = vpop.permute.xlu0 %6582
        %6584 = vrot.lane.b32.xlu0 %v6171, 122
        %v6585 = vpop.permute.xlu0 %6584
        %6586 = vrot.lane.b32.xlu0 %v6172, 122
        %v6587 = vpop.permute.xlu0 %6586
        %6588 = vrot.lane.b32.xlu0 %v6173, 122
        %v6589 = vpop.permute.xlu0 %6588
        %vm6590 = vcmask 48128
        %6591 = vst.msk [vmem:[%s269] sm:$0xff] %vm6590, %v6046
        %6592 = vst.msk [vmem:[%s269 + $0x8] sm:$0xff] %vm6590, %v6207
        %6593 = vst.msk [vmem:[%s269 + $0x10] sm:$0xff] %vm6590, %v6047
        %6594 = vst.msk [vmem:[%s269 + $0x18] sm:$0xff] %vm6590, %v6209
        %6595 = vst.msk [vmem:[%s269 + $0x20] sm:$0xff] %vm6590, %v6048
        %6596 = vst.msk [vmem:[%s269 + $0x28] sm:$0xff] %vm6590, %v6211
        %6597 = vst.msk [vmem:[%s269 + $0x30] sm:$0xff] %vm6590, %v6049
        %6598 = vst.msk [vmem:[%s269 + $0x38] sm:$0xff] %vm6590, %v6213
        %6599 = vst.msk [vmem:[%s269 + $0x40] sm:$0xff] %vm6590, %v6050
        %6600 = vst.msk [vmem:[%s269 + $0x48] sm:$0xff] %vm6590, %v6215
        %6601 = vst.msk [vmem:[%s269 + $0x50] sm:$0xff] %vm6590, %v6051
        %6602 = vst.msk [vmem:[%s269 + $0x58] sm:$0xff] %vm6590, %v6217
        %6603 = vst.msk [vmem:[%s269 + $0x60] sm:$0xff] %vm6590, %v6052
        %6604 = vst.msk [vmem:[%s269 + $0x68] sm:$0xff] %vm6590, %v6219
        %6605 = vst.msk [vmem:[%s269 + $0x70] sm:$0xff] %vm6590, %v6053
        %6606 = vst.msk [vmem:[%s269 + $0x78] sm:$0xff] %vm6590, %v6221
        %6607 = vst.msk [vmem:[%s269 + $0x80] sm:$0xff] %vm6590, %v6054
        %6608 = vst.msk [vmem:[%s269 + $0x88] sm:$0xff] %vm6590, %v6223
        %6609 = vst.msk [vmem:[%s269 + $0x90] sm:$0xff] %vm6590, %v6055
        %6610 = vst.msk [vmem:[%s269 + $0x98] sm:$0xff] %vm6590, %v6225
        %6611 = vst.msk [vmem:[%s269 + $0xa0] sm:$0xff] %vm6590, %v6056
        %6612 = vst.msk [vmem:[%s269 + $0xa8] sm:$0xff] %vm6590, %v6227
        %6613 = vst.msk [vmem:[%s269 + $0xb0] sm:$0xff] %vm6590, %v6057
        %6614 = vst.msk [vmem:[%s269 + $0xb8] sm:$0xff] %vm6590, %v6229
        %6615 = vst.msk [vmem:[%s269 + $0xc0] sm:$0xff] %vm6590, %v6058
        %6616 = vst.msk [vmem:[%s269 + $0xc8] sm:$0xff] %vm6590, %v6231
        %6617 = vst.msk [vmem:[%s269 + $0xd0] sm:$0xff] %vm6590, %v6059
        %6618 = vst.msk [vmem:[%s269 + $0xd8] sm:$0xff] %vm6590, %v6233
        %6619 = vst.msk [vmem:[%s269 + $0xe0] sm:$0xff] %vm6590, %v6060
        %6620 = vst.msk [vmem:[%s269 + $0xe8] sm:$0xff] %vm6590, %v6235
        %6621 = vst.msk [vmem:[%s269 + $0xf0] sm:$0xff] %vm6590, %v6061
        %6622 = vst.msk [vmem:[%s269 + $0xf8] sm:$0xff] %vm6590, %v6237
        %6623 = vst.msk [vmem:[%s269 + $0x100] sm:$0xff] %vm6590, %v6062
        %6624 = vst.msk [vmem:[%s269 + $0x108] sm:$0xff] %vm6590, %v6239
        %6625 = vst.msk [vmem:[%s269 + $0x110] sm:$0xff] %vm6590, %v6063
        %6626 = vst.msk [vmem:[%s269 + $0x118] sm:$0xff] %vm6590, %v6241
        %6627 = vst.msk [vmem:[%s269 + $0x120] sm:$0xff] %vm6590, %v6064
        %6628 = vst.msk [vmem:[%s269 + $0x128] sm:$0xff] %vm6590, %v6243
        %6629 = vst.msk [vmem:[%s269 + $0x130] sm:$0xff] %vm6590, %v6065
        %6630 = vst.msk [vmem:[%s269 + $0x138] sm:$0xff] %vm6590, %v6245
        %6631 = vst.msk [vmem:[%s269 + $0x140] sm:$0xff] %vm6590, %v6066
        %6632 = vst.msk [vmem:[%s269 + $0x148] sm:$0xff] %vm6590, %v6247
        %6633 = vst.msk [vmem:[%s269 + $0x150] sm:$0xff] %vm6590, %v6067
        %6634 = vst.msk [vmem:[%s269 + $0x158] sm:$0xff] %vm6590, %v6249
        %6635 = vst.msk [vmem:[%s269 + $0x160] sm:$0xff] %vm6590, %v6068
        %6636 = vst.msk [vmem:[%s269 + $0x168] sm:$0xff] %vm6590, %v6251
        %6637 = vst.msk [vmem:[%s269 + $0x170] sm:$0xff] %vm6590, %v6069
        %6638 = vst.msk [vmem:[%s269 + $0x178] sm:$0xff] %vm6590, %v6253
        %6639 = vst.msk [vmem:[%s269 + $0x180] sm:$0xff] %vm6590, %v6070
        %6640 = vst.msk [vmem:[%s269 + $0x188] sm:$0xff] %vm6590, %v6255
        %6641 = vst.msk [vmem:[%s269 + $0x190] sm:$0xff] %vm6590, %v6071
        %6642 = vst.msk [vmem:[%s269 + $0x198] sm:$0xff] %vm6590, %v6257
        %6643 = vst.msk [vmem:[%s269 + $0x1a0] sm:$0xff] %vm6590, %v6072
        %6644 = vst.msk [vmem:[%s269 + $0x1a8] sm:$0xff] %vm6590, %v6259
        %6645 = vst.msk [vmem:[%s269 + $0x1b0] sm:$0xff] %vm6590, %v6073
        %6646 = vst.msk [vmem:[%s269 + $0x1b8] sm:$0xff] %vm6590, %v6261
        %6647 = vst.msk [vmem:[%s269 + $0x1c0] sm:$0xff] %vm6590, %v6074
        %6648 = vst.msk [vmem:[%s269 + $0x1c8] sm:$0xff] %vm6590, %v6263
        %6649 = vst.msk [vmem:[%s269 + $0x1d0] sm:$0xff] %vm6590, %v6075
        %6650 = vst.msk [vmem:[%s269 + $0x1d8] sm:$0xff] %vm6590, %v6265
        %6651 = vst.msk [vmem:[%s269 + $0x1e0] sm:$0xff] %vm6590, %v6076
        %6652 = vst.msk [vmem:[%s269 + $0x1e8] sm:$0xff] %vm6590, %v6267
        %6653 = vst.msk [vmem:[%s269 + $0x1f0] sm:$0xff] %vm6590, %v6077
        %6654 = vst.msk [vmem:[%s269 + $0x1f8] sm:$0xff] %vm6590, %v6269
        %6655 = vrot.lane.b32.xlu0 %v6078, 6
        %v6656 = vpop.permute.xlu0 %6655
        %6657 = vrot.lane.b32.xlu0 %v6335, 6
        %v6658 = vpop.permute.xlu0 %6657
        %6659 = vrot.lane.b32.xlu0 %v6079, 6
        %v6660 = vpop.permute.xlu0 %6659
        %6661 = vrot.lane.b32.xlu0 %v6337, 6
        %v6662 = vpop.permute.xlu0 %6661
        %6663 = vrot.lane.b32.xlu0 %v6080, 6
        %v6664 = vpop.permute.xlu0 %6663
        %6665 = vrot.lane.b32.xlu0 %v6339, 6
        %v6666 = vpop.permute.xlu0 %6665
        %6667 = vrot.lane.b32.xlu0 %v6081, 6
        %v6668 = vpop.permute.xlu0 %6667
        %6669 = vrot.lane.b32.xlu0 %v6341, 6
        %v6670 = vpop.permute.xlu0 %6669
        %6671 = vrot.lane.b32.xlu0 %v6082, 6
        %v6672 = vpop.permute.xlu0 %6671
        %6673 = vrot.lane.b32.xlu0 %v6343, 6
        %v6674 = vpop.permute.xlu0 %6673
        %6675 = vrot.lane.b32.xlu0 %v6083, 6
        %v6676 = vpop.permute.xlu0 %6675
        %6677 = vrot.lane.b32.xlu0 %v6345, 6
        %v6678 = vpop.permute.xlu0 %6677
        %6679 = vrot.lane.b32.xlu0 %v6084, 6
        %v6680 = vpop.permute.xlu0 %6679
        %6681 = vrot.lane.b32.xlu0 %v6347, 6
        %v6682 = vpop.permute.xlu0 %6681
        %6683 = vrot.lane.b32.xlu0 %v6085, 6
        %v6684 = vpop.permute.xlu0 %6683
        %6685 = vrot.lane.b32.xlu0 %v6349, 6
        %v6686 = vpop.permute.xlu0 %6685
        %6687 = vrot.lane.b32.xlu0 %v6086, 6
        %v6688 = vpop.permute.xlu0 %6687
        %6689 = vrot.lane.b32.xlu0 %v6351, 6
        %v6690 = vpop.permute.xlu0 %6689
        %6691 = vrot.lane.b32.xlu0 %v6087, 6
        %v6692 = vpop.permute.xlu0 %6691
        %6693 = vrot.lane.b32.xlu0 %v6353, 6
        %v6694 = vpop.permute.xlu0 %6693
        %6695 = vrot.lane.b32.xlu0 %v6088, 6
        %v6696 = vpop.permute.xlu0 %6695
        %6697 = vrot.lane.b32.xlu0 %v6355, 6
        %v6698 = vpop.permute.xlu0 %6697
        %6699 = vrot.lane.b32.xlu0 %v6089, 6
        %v6700 = vpop.permute.xlu0 %6699
        %6701 = vrot.lane.b32.xlu0 %v6357, 6
        %v6702 = vpop.permute.xlu0 %6701
        %6703 = vrot.lane.b32.xlu0 %v6090, 6
        %v6704 = vpop.permute.xlu0 %6703
        %6705 = vrot.lane.b32.xlu0 %v6359, 6
        %v6706 = vpop.permute.xlu0 %6705
        %6707 = vrot.lane.b32.xlu0 %v6091, 6
        %v6708 = vpop.permute.xlu0 %6707
        %6709 = vrot.lane.b32.xlu0 %v6361, 6
        %v6710 = vpop.permute.xlu0 %6709
        %6711 = vrot.lane.b32.xlu0 %v6092, 6
        %v6712 = vpop.permute.xlu0 %6711
        %6713 = vrot.lane.b32.xlu0 %v6363, 6
        %v6714 = vpop.permute.xlu0 %6713
        %6715 = vrot.lane.b32.xlu0 %v6093, 6
        %v6716 = vpop.permute.xlu0 %6715
        %6717 = vrot.lane.b32.xlu0 %v6365, 6
        %v6718 = vpop.permute.xlu0 %6717
        %6719 = vrot.lane.b32.xlu0 %v6094, 6
        %v6720 = vpop.permute.xlu0 %6719
        %6721 = vrot.lane.b32.xlu0 %v6367, 6
        %v6722 = vpop.permute.xlu0 %6721
        %6723 = vrot.lane.b32.xlu0 %v6095, 6
        %v6724 = vpop.permute.xlu0 %6723
        %6725 = vrot.lane.b32.xlu0 %v6369, 6
        %v6726 = vpop.permute.xlu0 %6725
        %6727 = vrot.lane.b32.xlu0 %v6096, 6
        %v6728 = vpop.permute.xlu0 %6727
        %6729 = vrot.lane.b32.xlu0 %v6371, 6
        %v6730 = vpop.permute.xlu0 %6729
        %6731 = vrot.lane.b32.xlu0 %v6097, 6
        %v6732 = vpop.permute.xlu0 %6731
        %6733 = vrot.lane.b32.xlu0 %v6373, 6
        %v6734 = vpop.permute.xlu0 %6733
        %6735 = vrot.lane.b32.xlu0 %v6098, 6
        %v6736 = vpop.permute.xlu0 %6735
        %6737 = vrot.lane.b32.xlu0 %v6375, 6
        %v6738 = vpop.permute.xlu0 %6737
        %6739 = vrot.lane.b32.xlu0 %v6099, 6
        %v6740 = vpop.permute.xlu0 %6739
        %6741 = vrot.lane.b32.xlu0 %v6377, 6
        %v6742 = vpop.permute.xlu0 %6741
        %6743 = vrot.lane.b32.xlu0 %v6100, 6
        %v6744 = vpop.permute.xlu0 %6743
        %6745 = vrot.lane.b32.xlu0 %v6379, 6
        %v6746 = vpop.permute.xlu0 %6745
        %6747 = vrot.lane.b32.xlu0 %v6101, 6
        %v6748 = vpop.permute.xlu0 %6747
        %6749 = vrot.lane.b32.xlu0 %v6381, 6
        %v6750 = vpop.permute.xlu0 %6749
        %6751 = vrot.lane.b32.xlu0 %v6102, 6
        %v6752 = vpop.permute.xlu0 %6751
        %6753 = vrot.lane.b32.xlu0 %v6383, 6
        %v6754 = vpop.permute.xlu0 %6753
        %6755 = vrot.lane.b32.xlu0 %v6103, 6
        %v6756 = vpop.permute.xlu0 %6755
        %6757 = vrot.lane.b32.xlu0 %v6385, 6
        %v6758 = vpop.permute.xlu0 %6757
        %6759 = vrot.lane.b32.xlu0 %v6104, 6
        %v6760 = vpop.permute.xlu0 %6759
        %6761 = vrot.lane.b32.xlu0 %v6387, 6
        %v6762 = vpop.permute.xlu0 %6761
        %6763 = vrot.lane.b32.xlu0 %v6105, 6
        %v6764 = vpop.permute.xlu0 %6763
        %6765 = vrot.lane.b32.xlu0 %v6389, 6
        %v6766 = vpop.permute.xlu0 %6765
        %6767 = vrot.lane.b32.xlu0 %v6106, 6
        %v6768 = vpop.permute.xlu0 %6767
        %6769 = vrot.lane.b32.xlu0 %v6391, 6
        %v6770 = vpop.permute.xlu0 %6769
        %6771 = vrot.lane.b32.xlu0 %v6107, 6
        %v6772 = vpop.permute.xlu0 %6771
        %6773 = vrot.lane.b32.xlu0 %v6393, 6
        %v6774 = vpop.permute.xlu0 %6773
        %6775 = vrot.lane.b32.xlu0 %v6108, 6
        %v6776 = vpop.permute.xlu0 %6775
        %6777 = vrot.lane.b32.xlu0 %v6395, 6
        %v6778 = vpop.permute.xlu0 %6777
        %6779 = vrot.lane.b32.xlu0 %v6109, 6
        %v6780 = vpop.permute.xlu0 %6779
        %6781 = vrot.lane.b32.xlu0 %v6397, 6
        %v6782 = vpop.permute.xlu0 %6781
        %vm6847 = vcmask 97328
        %6848 = vst.msk [vmem:[%s269] sm:$0xff] %vm6847, %v6656
        %6849 = vst.msk [vmem:[%s269 + $0x8] sm:$0xff] %vm6847, %v6658
        %6850 = vst.msk [vmem:[%s269 + $0x10] sm:$0xff] %vm6847, %v6660
        %6851 = vst.msk [vmem:[%s269 + $0x18] sm:$0xff] %vm6847, %v6662
        %6852 = vst.msk [vmem:[%s269 + $0x20] sm:$0xff] %vm6847, %v6664
        %6853 = vst.msk [vmem:[%s269 + $0x28] sm:$0xff] %vm6847, %v6666
        %6854 = vst.msk [vmem:[%s269 + $0x30] sm:$0xff] %vm6847, %v6668
        %6855 = vst.msk [vmem:[%s269 + $0x38] sm:$0xff] %vm6847, %v6670
        %6856 = vst.msk [vmem:[%s269 + $0x40] sm:$0xff] %vm6847, %v6672
        %6857 = vst.msk [vmem:[%s269 + $0x48] sm:$0xff] %vm6847, %v6674
        %6858 = vst.msk [vmem:[%s269 + $0x50] sm:$0xff] %vm6847, %v6676
        %6859 = vst.msk [vmem:[%s269 + $0x58] sm:$0xff] %vm6847, %v6678
        %6860 = vst.msk [vmem:[%s269 + $0x60] sm:$0xff] %vm6847, %v6680
        %6861 = vst.msk [vmem:[%s269 + $0x68] sm:$0xff] %vm6847, %v6682
        %6862 = vst.msk [vmem:[%s269 + $0x70] sm:$0xff] %vm6847, %v6684
        %6863 = vst.msk [vmem:[%s269 + $0x78] sm:$0xff] %vm6847, %v6686
        %6864 = vst.msk [vmem:[%s269 + $0x80] sm:$0xff] %vm6847, %v6688
        %6865 = vst.msk [vmem:[%s269 + $0x88] sm:$0xff] %vm6847, %v6690
        %6866 = vst.msk [vmem:[%s269 + $0x90] sm:$0xff] %vm6847, %v6692
        %6867 = vst.msk [vmem:[%s269 + $0x98] sm:$0xff] %vm6847, %v6694
        %6868 = vst.msk [vmem:[%s269 + $0xa0] sm:$0xff] %vm6847, %v6696
        %6869 = vst.msk [vmem:[%s269 + $0xa8] sm:$0xff] %vm6847, %v6698
        %6870 = vst.msk [vmem:[%s269 + $0xb0] sm:$0xff] %vm6847, %v6700
        %6871 = vst.msk [vmem:[%s269 + $0xb8] sm:$0xff] %vm6847, %v6702
        %6872 = vst.msk [vmem:[%s269 + $0xc0] sm:$0xff] %vm6847, %v6704
        %6873 = vst.msk [vmem:[%s269 + $0xc8] sm:$0xff] %vm6847, %v6706
        %6874 = vst.msk [vmem:[%s269 + $0xd0] sm:$0xff] %vm6847, %v6708
        %6875 = vst.msk [vmem:[%s269 + $0xd8] sm:$0xff] %vm6847, %v6710
        %6876 = vst.msk [vmem:[%s269 + $0xe0] sm:$0xff] %vm6847, %v6712
        %6877 = vst.msk [vmem:[%s269 + $0xe8] sm:$0xff] %vm6847, %v6714
        %6878 = vst.msk [vmem:[%s269 + $0xf0] sm:$0xff] %vm6847, %v6716
        %6879 = vst.msk [vmem:[%s269 + $0xf8] sm:$0xff] %vm6847, %v6718
        %6880 = vst.msk [vmem:[%s269 + $0x100] sm:$0xff] %vm6847, %v6720
        %6881 = vst.msk [vmem:[%s269 + $0x108] sm:$0xff] %vm6847, %v6722
        %6882 = vst.msk [vmem:[%s269 + $0x110] sm:$0xff] %vm6847, %v6724
        %6883 = vst.msk [vmem:[%s269 + $0x118] sm:$0xff] %vm6847, %v6726
        %6884 = vst.msk [vmem:[%s269 + $0x120] sm:$0xff] %vm6847, %v6728
        %6885 = vst.msk [vmem:[%s269 + $0x128] sm:$0xff] %vm6847, %v6730
        %6886 = vst.msk [vmem:[%s269 + $0x130] sm:$0xff] %vm6847, %v6732
        %6887 = vst.msk [vmem:[%s269 + $0x138] sm:$0xff] %vm6847, %v6734
        %6888 = vst.msk [vmem:[%s269 + $0x140] sm:$0xff] %vm6847, %v6736
        %6889 = vst.msk [vmem:[%s269 + $0x148] sm:$0xff] %vm6847, %v6738
        %6890 = vst.msk [vmem:[%s269 + $0x150] sm:$0xff] %vm6847, %v6740
        %6891 = vst.msk [vmem:[%s269 + $0x158] sm:$0xff] %vm6847, %v6742
        %6892 = vst.msk [vmem:[%s269 + $0x160] sm:$0xff] %vm6847, %v6744
        %6893 = vst.msk [vmem:[%s269 + $0x168] sm:$0xff] %vm6847, %v6746
        %6894 = vst.msk [vmem:[%s269 + $0x170] sm:$0xff] %vm6847, %v6748
        %6895 = vst.msk [vmem:[%s269 + $0x178] sm:$0xff] %vm6847, %v6750
        %6896 = vst.msk [vmem:[%s269 + $0x180] sm:$0xff] %vm6847, %v6752
        %6897 = vst.msk [vmem:[%s269 + $0x188] sm:$0xff] %vm6847, %v6754
        %6898 = vst.msk [vmem:[%s269 + $0x190] sm:$0xff] %vm6847, %v6756
        %6899 = vst.msk [vmem:[%s269 + $0x198] sm:$0xff] %vm6847, %v6758
        %6900 = vst.msk [vmem:[%s269 + $0x1a0] sm:$0xff] %vm6847, %v6760
        %6901 = vst.msk [vmem:[%s269 + $0x1a8] sm:$0xff] %vm6847, %v6762
        %6902 = vst.msk [vmem:[%s269 + $0x1b0] sm:$0xff] %vm6847, %v6764
        %6903 = vst.msk [vmem:[%s269 + $0x1b8] sm:$0xff] %vm6847, %v6766
        %6904 = vst.msk [vmem:[%s269 + $0x1c0] sm:$0xff] %vm6847, %v6768
        %6905 = vst.msk [vmem:[%s269 + $0x1c8] sm:$0xff] %vm6847, %v6770
        %6906 = vst.msk [vmem:[%s269 + $0x1d0] sm:$0xff] %vm6847, %v6772
        %6907 = vst.msk [vmem:[%s269 + $0x1d8] sm:$0xff] %vm6847, %v6774
        %6908 = vst.msk [vmem:[%s269 + $0x1e0] sm:$0xff] %vm6847, %v6776
        %6909 = vst.msk [vmem:[%s269 + $0x1e8] sm:$0xff] %vm6847, %v6778
        %6910 = vst.msk [vmem:[%s269 + $0x1f0] sm:$0xff] %vm6847, %v6780
        %6911 = vst.msk [vmem:[%s269 + $0x1f8] sm:$0xff] %vm6847, %v6782
        %6912 = vrot.lane.b32.xlu0 %v6110, 12
        %v6913 = vpop.permute.xlu0 %6912
        %6914 = vrot.lane.b32.xlu0 %v6431, 12
        %v6915 = vpop.permute.xlu0 %6914
        %6916 = vrot.lane.b32.xlu0 %v6111, 12
        %v6917 = vpop.permute.xlu0 %6916
        %6918 = vrot.lane.b32.xlu0 %v6433, 12
        %v6919 = vpop.permute.xlu0 %6918
        %6920 = vrot.lane.b32.xlu0 %v6112, 12
        %v6921 = vpop.permute.xlu0 %6920
        %6922 = vrot.lane.b32.xlu0 %v6435, 12
        %v6923 = vpop.permute.xlu0 %6922
        %6924 = vrot.lane.b32.xlu0 %v6113, 12
        %v6925 = vpop.permute.xlu0 %6924
        %6926 = vrot.lane.b32.xlu0 %v6437, 12
        %v6927 = vpop.permute.xlu0 %6926
        %6928 = vrot.lane.b32.xlu0 %v6114, 12
        %v6929 = vpop.permute.xlu0 %6928
        %6930 = vrot.lane.b32.xlu0 %v6439, 12
        %v6931 = vpop.permute.xlu0 %6930
        %6932 = vrot.lane.b32.xlu0 %v6115, 12
        %v6933 = vpop.permute.xlu0 %6932
        %6934 = vrot.lane.b32.xlu0 %v6441, 12
        %v6935 = vpop.permute.xlu0 %6934
        %6936 = vrot.lane.b32.xlu0 %v6116, 12
        %v6937 = vpop.permute.xlu0 %6936
        %6938 = vrot.lane.b32.xlu0 %v6443, 12
        %v6939 = vpop.permute.xlu0 %6938
        %6940 = vrot.lane.b32.xlu0 %v6117, 12
        %v6941 = vpop.permute.xlu0 %6940
        %6942 = vrot.lane.b32.xlu0 %v6445, 12
        %v6943 = vpop.permute.xlu0 %6942
        %6944 = vrot.lane.b32.xlu0 %v6118, 12
        %v6945 = vpop.permute.xlu0 %6944
        %6946 = vrot.lane.b32.xlu0 %v6447, 12
        %v6947 = vpop.permute.xlu0 %6946
        %6948 = vrot.lane.b32.xlu0 %v6119, 12
        %v6949 = vpop.permute.xlu0 %6948
        %6950 = vrot.lane.b32.xlu0 %v6449, 12
        %v6951 = vpop.permute.xlu0 %6950
        %6952 = vrot.lane.b32.xlu0 %v6120, 12
        %v6953 = vpop.permute.xlu0 %6952
        %6954 = vrot.lane.b32.xlu0 %v6451, 12
        %v6955 = vpop.permute.xlu0 %6954
        %6956 = vrot.lane.b32.xlu0 %v6121, 12
        %v6957 = vpop.permute.xlu0 %6956
        %6958 = vrot.lane.b32.xlu0 %v6453, 12
        %v6959 = vpop.permute.xlu0 %6958
        %6960 = vrot.lane.b32.xlu0 %v6122, 12
        %v6961 = vpop.permute.xlu0 %6960
        %6962 = vrot.lane.b32.xlu0 %v6455, 12
        %v6963 = vpop.permute.xlu0 %6962
        %6964 = vrot.lane.b32.xlu0 %v6123, 12
        %v6965 = vpop.permute.xlu0 %6964
        %6966 = vrot.lane.b32.xlu0 %v6457, 12
        %v6967 = vpop.permute.xlu0 %6966
        %6968 = vrot.lane.b32.xlu0 %v6124, 12
        %v6969 = vpop.permute.xlu0 %6968
        %6970 = vrot.lane.b32.xlu0 %v6459, 12
        %v6971 = vpop.permute.xlu0 %6970
        %6972 = vrot.lane.b32.xlu0 %v6125, 12
        %v6973 = vpop.permute.xlu0 %6972
        %6974 = vrot.lane.b32.xlu0 %v6461, 12
        %v6975 = vpop.permute.xlu0 %6974
        %6976 = vrot.lane.b32.xlu0 %v6126, 12
        %v6977 = vpop.permute.xlu0 %6976
        %6978 = vrot.lane.b32.xlu0 %v6463, 12
        %v6979 = vpop.permute.xlu0 %6978
        %6980 = vrot.lane.b32.xlu0 %v6127, 12
        %v6981 = vpop.permute.xlu0 %6980
        %6982 = vrot.lane.b32.xlu0 %v6465, 12
        %v6983 = vpop.permute.xlu0 %6982
        %6984 = vrot.lane.b32.xlu0 %v6128, 12
        %v6985 = vpop.permute.xlu0 %6984
        %6986 = vrot.lane.b32.xlu0 %v6467, 12
        %v6987 = vpop.permute.xlu0 %6986
        %6988 = vrot.lane.b32.xlu0 %v6129, 12
        %v6989 = vpop.permute.xlu0 %6988
        %6990 = vrot.lane.b32.xlu0 %v6469, 12
        %v6991 = vpop.permute.xlu0 %6990
        %6992 = vrot.lane.b32.xlu0 %v6130, 12
        %v6993 = vpop.permute.xlu0 %6992
        %6994 = vrot.lane.b32.xlu0 %v6471, 12
        %v6995 = vpop.permute.xlu0 %6994
        %6996 = vrot.lane.b32.xlu0 %v6131, 12
        %v6997 = vpop.permute.xlu0 %6996
        %6998 = vrot.lane.b32.xlu0 %v6473, 12
        %v6999 = vpop.permute.xlu0 %6998
        %7000 = vrot.lane.b32.xlu0 %v6132, 12
        %v7001 = vpop.permute.xlu0 %7000
        %7002 = vrot.lane.b32.xlu0 %v6475, 12
        %v7003 = vpop.permute.xlu0 %7002
        %7004 = vrot.lane.b32.xlu0 %v6133, 12
        %v7005 = vpop.permute.xlu0 %7004
        %7006 = vrot.lane.b32.xlu0 %v6477, 12
        %v7007 = vpop.permute.xlu0 %7006
        %7008 = vrot.lane.b32.xlu0 %v6134, 12
        %v7009 = vpop.permute.xlu0 %7008
        %7010 = vrot.lane.b32.xlu0 %v6479, 12
        %v7011 = vpop.permute.xlu0 %7010
        %7012 = vrot.lane.b32.xlu0 %v6135, 12
        %v7013 = vpop.permute.xlu0 %7012
        %7014 = vrot.lane.b32.xlu0 %v6481, 12
        %v7015 = vpop.permute.xlu0 %7014
        %7016 = vrot.lane.b32.xlu0 %v6136, 12
        %v7017 = vpop.permute.xlu0 %7016
        %7018 = vrot.lane.b32.xlu0 %v6483, 12
        %v7019 = vpop.permute.xlu0 %7018
        %7020 = vrot.lane.b32.xlu0 %v6137, 12
        %v7021 = vpop.permute.xlu0 %7020
        %7022 = vrot.lane.b32.xlu0 %v6485, 12
        %v7023 = vpop.permute.xlu0 %7022
        %7024 = vrot.lane.b32.xlu0 %v6138, 12
        %v7025 = vpop.permute.xlu0 %7024
        %7026 = vrot.lane.b32.xlu0 %v6487, 12
        %v7027 = vpop.permute.xlu0 %7026
        %7028 = vrot.lane.b32.xlu0 %v6139, 12
        %v7029 = vpop.permute.xlu0 %7028
        %7030 = vrot.lane.b32.xlu0 %v6489, 12
        %v7031 = vpop.permute.xlu0 %7030
        %7032 = vrot.lane.b32.xlu0 %v6140, 12
        %v7033 = vpop.permute.xlu0 %7032
        %7034 = vrot.lane.b32.xlu0 %v6491, 12
        %v7035 = vpop.permute.xlu0 %7034
        %7036 = vrot.lane.b32.xlu0 %v6141, 12
        %v7037 = vpop.permute.xlu0 %7036
        %7038 = vrot.lane.b32.xlu0 %v6493, 12
        %v7039 = vpop.permute.xlu0 %7038
        %vm7104 = vcmask 146528
        %7105 = vst.msk [vmem:[%s269] sm:$0xff] %vm7104, %v6913
        %7106 = vst.msk [vmem:[%s269 + $0x8] sm:$0xff] %vm7104, %v6915
        %7107 = vst.msk [vmem:[%s269 + $0x10] sm:$0xff] %vm7104, %v6917
        %7108 = vst.msk [vmem:[%s269 + $0x18] sm:$0xff] %vm7104, %v6919
        %7109 = vst.msk [vmem:[%s269 + $0x20] sm:$0xff] %vm7104, %v6921
        %7110 = vst.msk [vmem:[%s269 + $0x28] sm:$0xff] %vm7104, %v6923
        %7111 = vst.msk [vmem:[%s269 + $0x30] sm:$0xff] %vm7104, %v6925
        %7112 = vst.msk [vmem:[%s269 + $0x38] sm:$0xff] %vm7104, %v6927
        %7113 = vst.msk [vmem:[%s269 + $0x40] sm:$0xff] %vm7104, %v6929
        %7114 = vst.msk [vmem:[%s269 + $0x48] sm:$0xff] %vm7104, %v6931
        %7115 = vst.msk [vmem:[%s269 + $0x50] sm:$0xff] %vm7104, %v6933
        %7116 = vst.msk [vmem:[%s269 + $0x58] sm:$0xff] %vm7104, %v6935
        %7117 = vst.msk [vmem:[%s269 + $0x60] sm:$0xff] %vm7104, %v6937
        %7118 = vst.msk [vmem:[%s269 + $0x68] sm:$0xff] %vm7104, %v6939
        %7119 = vst.msk [vmem:[%s269 + $0x70] sm:$0xff] %vm7104, %v6941
        %7120 = vst.msk [vmem:[%s269 + $0x78] sm:$0xff] %vm7104, %v6943
        %7121 = vst.msk [vmem:[%s269 + $0x80] sm:$0xff] %vm7104, %v6945
        %7122 = vst.msk [vmem:[%s269 + $0x88] sm:$0xff] %vm7104, %v6947
        %7123 = vst.msk [vmem:[%s269 + $0x90] sm:$0xff] %vm7104, %v6949
        %7124 = vst.msk [vmem:[%s269 + $0x98] sm:$0xff] %vm7104, %v6951
        %7125 = vst.msk [vmem:[%s269 + $0xa0] sm:$0xff] %vm7104, %v6953
        %7126 = vst.msk [vmem:[%s269 + $0xa8] sm:$0xff] %vm7104, %v6955
        %7127 = vst.msk [vmem:[%s269 + $0xb0] sm:$0xff] %vm7104, %v6957
        %7128 = vst.msk [vmem:[%s269 + $0xb8] sm:$0xff] %vm7104, %v6959
        %7129 = vst.msk [vmem:[%s269 + $0xc0] sm:$0xff] %vm7104, %v6961
        %7130 = vst.msk [vmem:[%s269 + $0xc8] sm:$0xff] %vm7104, %v6963
        %7131 = vst.msk [vmem:[%s269 + $0xd0] sm:$0xff] %vm7104, %v6965
        %7132 = vst.msk [vmem:[%s269 + $0xd8] sm:$0xff] %vm7104, %v6967
        %7133 = vst.msk [vmem:[%s269 + $0xe0] sm:$0xff] %vm7104, %v6969
        %7134 = vst.msk [vmem:[%s269 + $0xe8] sm:$0xff] %vm7104, %v6971
        %7135 = vst.msk [vmem:[%s269 + $0xf0] sm:$0xff] %vm7104, %v6973
        %7136 = vst.msk [vmem:[%s269 + $0xf8] sm:$0xff] %vm7104, %v6975
        %7137 = vst.msk [vmem:[%s269 + $0x100] sm:$0xff] %vm7104, %v6977
        %7138 = vst.msk [vmem:[%s269 + $0x108] sm:$0xff] %vm7104, %v6979
        %7139 = vst.msk [vmem:[%s269 + $0x110] sm:$0xff] %vm7104, %v6981
        %7140 = vst.msk [vmem:[%s269 + $0x118] sm:$0xff] %vm7104, %v6983
        %7141 = vst.msk [vmem:[%s269 + $0x120] sm:$0xff] %vm7104, %v6985
        %7142 = vst.msk [vmem:[%s269 + $0x128] sm:$0xff] %vm7104, %v6987
        %7143 = vst.msk [vmem:[%s269 + $0x130] sm:$0xff] %vm7104, %v6989
        %7144 = vst.msk [vmem:[%s269 + $0x138] sm:$0xff] %vm7104, %v6991
        %7145 = vst.msk [vmem:[%s269 + $0x140] sm:$0xff] %vm7104, %v6993
        %7146 = vst.msk [vmem:[%s269 + $0x148] sm:$0xff] %vm7104, %v6995
        %7147 = vst.msk [vmem:[%s269 + $0x150] sm:$0xff] %vm7104, %v6997
        %7148 = vst.msk [vmem:[%s269 + $0x158] sm:$0xff] %vm7104, %v6999
        %7149 = vst.msk [vmem:[%s269 + $0x160] sm:$0xff] %vm7104, %v7001
        %7150 = vst.msk [vmem:[%s269 + $0x168] sm:$0xff] %vm7104, %v7003
        %7151 = vst.msk [vmem:[%s269 + $0x170] sm:$0xff] %vm7104, %v7005
        %7152 = vst.msk [vmem:[%s269 + $0x178] sm:$0xff] %vm7104, %v7007
        %7153 = vst.msk [vmem:[%s269 + $0x180] sm:$0xff] %vm7104, %v7009
        %7154 = vst.msk [vmem:[%s269 + $0x188] sm:$0xff] %vm7104, %v7011
        %7155 = vst.msk [vmem:[%s269 + $0x190] sm:$0xff] %vm7104, %v7013
        %7156 = vst.msk [vmem:[%s269 + $0x198] sm:$0xff] %vm7104, %v7015
        %7157 = vst.msk [vmem:[%s269 + $0x1a0] sm:$0xff] %vm7104, %v7017
        %7158 = vst.msk [vmem:[%s269 + $0x1a8] sm:$0xff] %vm7104, %v7019
        %7159 = vst.msk [vmem:[%s269 + $0x1b0] sm:$0xff] %vm7104, %v7021
        %7160 = vst.msk [vmem:[%s269 + $0x1b8] sm:$0xff] %vm7104, %v7023
        %7161 = vst.msk [vmem:[%s269 + $0x1c0] sm:$0xff] %vm7104, %v7025
        %7162 = vst.msk [vmem:[%s269 + $0x1c8] sm:$0xff] %vm7104, %v7027
        %7163 = vst.msk [vmem:[%s269 + $0x1d0] sm:$0xff] %vm7104, %v7029
        %7164 = vst.msk [vmem:[%s269 + $0x1d8] sm:$0xff] %vm7104, %v7031
        %7165 = vst.msk [vmem:[%s269 + $0x1e0] sm:$0xff] %vm7104, %v7033
        %7166 = vst.msk [vmem:[%s269 + $0x1e8] sm:$0xff] %vm7104, %v7035
        %7167 = vst.msk [vmem:[%s269 + $0x1f0] sm:$0xff] %vm7104, %v7037
        %7168 = vst.msk [vmem:[%s269 + $0x1f8] sm:$0xff] %vm7104, %v7039
        %7169 = vrot.lane.b32.xlu0 %v6142, 18
        %v7170 = vpop.permute.xlu0 %7169
        %7171 = vrot.lane.b32.xlu0 %v6527, 18
        %v7172 = vpop.permute.xlu0 %7171
        %7173 = vrot.lane.b32.xlu0 %v6143, 18
        %v7174 = vpop.permute.xlu0 %7173
        %7175 = vrot.lane.b32.xlu0 %v6529, 18
        %v7176 = vpop.permute.xlu0 %7175
        %7177 = vrot.lane.b32.xlu0 %v6144, 18
        %v7178 = vpop.permute.xlu0 %7177
        %7179 = vrot.lane.b32.xlu0 %v6531, 18
        %v7180 = vpop.permute.xlu0 %7179
        %7181 = vrot.lane.b32.xlu0 %v6145, 18
        %v7182 = vpop.permute.xlu0 %7181
        %7183 = vrot.lane.b32.xlu0 %v6533, 18
        %v7184 = vpop.permute.xlu0 %7183
        %7185 = vrot.lane.b32.xlu0 %v6146, 18
        %v7186 = vpop.permute.xlu0 %7185
        %7187 = vrot.lane.b32.xlu0 %v6535, 18
        %v7188 = vpop.permute.xlu0 %7187
        %7189 = vrot.lane.b32.xlu0 %v6147, 18
        %v7190 = vpop.permute.xlu0 %7189
        %7191 = vrot.lane.b32.xlu0 %v6537, 18
        %v7192 = vpop.permute.xlu0 %7191
        %7193 = vrot.lane.b32.xlu0 %v6148, 18
        %v7194 = vpop.permute.xlu0 %7193
        %7195 = vrot.lane.b32.xlu0 %v6539, 18
        %v7196 = vpop.permute.xlu0 %7195
        %7197 = vrot.lane.b32.xlu0 %v6149, 18
        %v7198 = vpop.permute.xlu0 %7197
        %7199 = vrot.lane.b32.xlu0 %v6541, 18
        %v7200 = vpop.permute.xlu0 %7199
        %7201 = vrot.lane.b32.xlu0 %v6150, 18
        %v7202 = vpop.permute.xlu0 %7201
        %7203 = vrot.lane.b32.xlu0 %v6543, 18
        %v7204 = vpop.permute.xlu0 %7203
        %7205 = vrot.lane.b32.xlu0 %v6151, 18
        %v7206 = vpop.permute.xlu0 %7205
        %7207 = vrot.lane.b32.xlu0 %v6545, 18
        %v7208 = vpop.permute.xlu0 %7207
        %7209 = vrot.lane.b32.xlu0 %v6152, 18
        %v7210 = vpop.permute.xlu0 %7209
        %7211 = vrot.lane.b32.xlu0 %v6547, 18
        %v7212 = vpop.permute.xlu0 %7211
        %7213 = vrot.lane.b32.xlu0 %v6153, 18
        %v7214 = vpop.permute.xlu0 %7213
        %7215 = vrot.lane.b32.xlu0 %v6549, 18
        %v7216 = vpop.permute.xlu0 %7215
        %7217 = vrot.lane.b32.xlu0 %v6154, 18
        %v7218 = vpop.permute.xlu0 %7217
        %7219 = vrot.lane.b32.xlu0 %v6551, 18
        %v7220 = vpop.permute.xlu0 %7219
        %7221 = vrot.lane.b32.xlu0 %v6155, 18
        %v7222 = vpop.permute.xlu0 %7221
        %7223 = vrot.lane.b32.xlu0 %v6553, 18
        %v7224 = vpop.permute.xlu0 %7223
        %7225 = vrot.lane.b32.xlu0 %v6156, 18
        %v7226 = vpop.permute.xlu0 %7225
        %7227 = vrot.lane.b32.xlu0 %v6555, 18
        %v7228 = vpop.permute.xlu0 %7227
        %7229 = vrot.lane.b32.xlu0 %v6157, 18
        %v7230 = vpop.permute.xlu0 %7229
        %7231 = vrot.lane.b32.xlu0 %v6557, 18
        %v7232 = vpop.permute.xlu0 %7231
        %7233 = vrot.lane.b32.xlu0 %v6158, 18
        %v7234 = vpop.permute.xlu0 %7233
        %7235 = vrot.lane.b32.xlu0 %v6559, 18
        %v7236 = vpop.permute.xlu0 %7235
        %7237 = vrot.lane.b32.xlu0 %v6159, 18
        %v7238 = vpop.permute.xlu0 %7237
        %7239 = vrot.lane.b32.xlu0 %v6561, 18
        %v7240 = vpop.permute.xlu0 %7239
        %7241 = vrot.lane.b32.xlu0 %v6160, 18
        %v7242 = vpop.permute.xlu0 %7241
        %7243 = vrot.lane.b32.xlu0 %v6563, 18
        %v7244 = vpop.permute.xlu0 %7243
        %7245 = vrot.lane.b32.xlu0 %v6161, 18
        %v7246 = vpop.permute.xlu0 %7245
        %7247 = vrot.lane.b32.xlu0 %v6565, 18
        %v7248 = vpop.permute.xlu0 %7247
        %7249 = vrot.lane.b32.xlu0 %v6162, 18
        %v7250 = vpop.permute.xlu0 %7249
        %7251 = vrot.lane.b32.xlu0 %v6567, 18
        %v7252 = vpop.permute.xlu0 %7251
        %7253 = vrot.lane.b32.xlu0 %v6163, 18
        %v7254 = vpop.permute.xlu0 %7253
        %7255 = vrot.lane.b32.xlu0 %v6569, 18
        %v7256 = vpop.permute.xlu0 %7255
        %7257 = vrot.lane.b32.xlu0 %v6164, 18
        %v7258 = vpop.permute.xlu0 %7257
        %7259 = vrot.lane.b32.xlu0 %v6571, 18
        %v7260 = vpop.permute.xlu0 %7259
        %7261 = vrot.lane.b32.xlu0 %v6165, 18
        %v7262 = vpop.permute.xlu0 %7261
        %7263 = vrot.lane.b32.xlu0 %v6573, 18
        %v7264 = vpop.permute.xlu0 %7263
        %7265 = vrot.lane.b32.xlu0 %v6166, 18
        %v7266 = vpop.permute.xlu0 %7265
        %7267 = vrot.lane.b32.xlu0 %v6575, 18
        %v7268 = vpop.permute.xlu0 %7267
        %7269 = vrot.lane.b32.xlu0 %v6167, 18
        %v7270 = vpop.permute.xlu0 %7269
        %7271 = vrot.lane.b32.xlu0 %v6577, 18
        %v7272 = vpop.permute.xlu0 %7271
        %7273 = vrot.lane.b32.xlu0 %v6168, 18
        %v7274 = vpop.permute.xlu0 %7273
        %7275 = vrot.lane.b32.xlu0 %v6579, 18
        %v7276 = vpop.permute.xlu0 %7275
        %7277 = vrot.lane.b32.xlu0 %v6169, 18
        %v7278 = vpop.permute.xlu0 %7277
        %7279 = vrot.lane.b32.xlu0 %v6581, 18
        %v7280 = vpop.permute.xlu0 %7279
        %7281 = vrot.lane.b32.xlu0 %v6170, 18
        %v7282 = vpop.permute.xlu0 %7281
        %7283 = vrot.lane.b32.xlu0 %v6583, 18
        %v7284 = vpop.permute.xlu0 %7283
        %7285 = vrot.lane.b32.xlu0 %v6171, 18
        %v7286 = vpop.permute.xlu0 %7285
        %7287 = vrot.lane.b32.xlu0 %v6585, 18
        %v7288 = vpop.permute.xlu0 %7287
        %7289 = vrot.lane.b32.xlu0 %v6172, 18
        %v7290 = vpop.permute.xlu0 %7289
        %7291 = vrot.lane.b32.xlu0 %v6587, 18
        %v7292 = vpop.permute.xlu0 %7291
        %7293 = vrot.lane.b32.xlu0 %v6173, 18
        %v7294 = vpop.permute.xlu0 %7293
        %7295 = vrot.lane.b32.xlu0 %v6589, 18
        %v7296 = vpop.permute.xlu0 %7295
        %vm7361 = vcmask 195728
        %7362 = vst.msk [vmem:[%s269] sm:$0xff] %vm7361, %v7170
        %7363 = vst.msk [vmem:[%s269 + $0x8] sm:$0xff] %vm7361, %v7172
        %7364 = vst.msk [vmem:[%s269 + $0x10] sm:$0xff] %vm7361, %v7174
        %7365 = vst.msk [vmem:[%s269 + $0x18] sm:$0xff] %vm7361, %v7176
        %7366 = vst.msk [vmem:[%s269 + $0x20] sm:$0xff] %vm7361, %v7178
        %7367 = vst.msk [vmem:[%s269 + $0x28] sm:$0xff] %vm7361, %v7180
        %7368 = vst.msk [vmem:[%s269 + $0x30] sm:$0xff] %vm7361, %v7182
        %7369 = vst.msk [vmem:[%s269 + $0x38] sm:$0xff] %vm7361, %v7184
        %7370 = vst.msk [vmem:[%s269 + $0x40] sm:$0xff] %vm7361, %v7186
        %7371 = vst.msk [vmem:[%s269 + $0x48] sm:$0xff] %vm7361, %v7188
        %7372 = vst.msk [vmem:[%s269 + $0x50] sm:$0xff] %vm7361, %v7190
        %7373 = vst.msk [vmem:[%s269 + $0x58] sm:$0xff] %vm7361, %v7192
        %7374 = vst.msk [vmem:[%s269 + $0x60] sm:$0xff] %vm7361, %v7194
        %7375 = vst.msk [vmem:[%s269 + $0x68] sm:$0xff] %vm7361, %v7196
        %7376 = vst.msk [vmem:[%s269 + $0x70] sm:$0xff] %vm7361, %v7198
        %7377 = vst.msk [vmem:[%s269 + $0x78] sm:$0xff] %vm7361, %v7200
        %7378 = vst.msk [vmem:[%s269 + $0x80] sm:$0xff] %vm7361, %v7202
        %7379 = vst.msk [vmem:[%s269 + $0x88] sm:$0xff] %vm7361, %v7204
        %7380 = vst.msk [vmem:[%s269 + $0x90] sm:$0xff] %vm7361, %v7206
        %7381 = vst.msk [vmem:[%s269 + $0x98] sm:$0xff] %vm7361, %v7208
        %7382 = vst.msk [vmem:[%s269 + $0xa0] sm:$0xff] %vm7361, %v7210
        %7383 = vst.msk [vmem:[%s269 + $0xa8] sm:$0xff] %vm7361, %v7212
        %7384 = vst.msk [vmem:[%s269 + $0xb0] sm:$0xff] %vm7361, %v7214
        %7385 = vst.msk [vmem:[%s269 + $0xb8] sm:$0xff] %vm7361, %v7216
        %7386 = vst.msk [vmem:[%s269 + $0xc0] sm:$0xff] %vm7361, %v7218
        %7387 = vst.msk [vmem:[%s269 + $0xc8] sm:$0xff] %vm7361, %v7220
        %7388 = vst.msk [vmem:[%s269 + $0xd0] sm:$0xff] %vm7361, %v7222
        %7389 = vst.msk [vmem:[%s269 + $0xd8] sm:$0xff] %vm7361, %v7224
        %7390 = vst.msk [vmem:[%s269 + $0xe0] sm:$0xff] %vm7361, %v7226
        %7391 = vst.msk [vmem:[%s269 + $0xe8] sm:$0xff] %vm7361, %v7228
        %7392 = vst.msk [vmem:[%s269 + $0xf0] sm:$0xff] %vm7361, %v7230
        %7393 = vst.msk [vmem:[%s269 + $0xf8] sm:$0xff] %vm7361, %v7232
        %7394 = vst.msk [vmem:[%s269 + $0x100] sm:$0xff] %vm7361, %v7234
        %7395 = vst.msk [vmem:[%s269 + $0x108] sm:$0xff] %vm7361, %v7236
        %7396 = vst.msk [vmem:[%s269 + $0x110] sm:$0xff] %vm7361, %v7238
        %7397 = vst.msk [vmem:[%s269 + $0x118] sm:$0xff] %vm7361, %v7240
        %7398 = vst.msk [vmem:[%s269 + $0x120] sm:$0xff] %vm7361, %v7242
        %7399 = vst.msk [vmem:[%s269 + $0x128] sm:$0xff] %vm7361, %v7244
        %7400 = vst.msk [vmem:[%s269 + $0x130] sm:$0xff] %vm7361, %v7246
        %7401 = vst.msk [vmem:[%s269 + $0x138] sm:$0xff] %vm7361, %v7248
        %7402 = vst.msk [vmem:[%s269 + $0x140] sm:$0xff] %vm7361, %v7250
        %7403 = vst.msk [vmem:[%s269 + $0x148] sm:$0xff] %vm7361, %v7252
        %7404 = vst.msk [vmem:[%s269 + $0x150] sm:$0xff] %vm7361, %v7254
        %7405 = vst.msk [vmem:[%s269 + $0x158] sm:$0xff] %vm7361, %v7256
        %7406 = vst.msk [vmem:[%s269 + $0x160] sm:$0xff] %vm7361, %v7258
        %7407 = vst.msk [vmem:[%s269 + $0x168] sm:$0xff] %vm7361, %v7260
        %7408 = vst.msk [vmem:[%s269 + $0x170] sm:$0xff] %vm7361, %v7262
        %7409 = vst.msk [vmem:[%s269 + $0x178] sm:$0xff] %vm7361, %v7264
        %7410 = vst.msk [vmem:[%s269 + $0x180] sm:$0xff] %vm7361, %v7266
        %7411 = vst.msk [vmem:[%s269 + $0x188] sm:$0xff] %vm7361, %v7268
        %7412 = vst.msk [vmem:[%s269 + $0x190] sm:$0xff] %vm7361, %v7270
        %7413 = vst.msk [vmem:[%s269 + $0x198] sm:$0xff] %vm7361, %v7272
        %7414 = vst.msk [vmem:[%s269 + $0x1a0] sm:$0xff] %vm7361, %v7274
        %7415 = vst.msk [vmem:[%s269 + $0x1a8] sm:$0xff] %vm7361, %v7276
        %7416 = vst.msk [vmem:[%s269 + $0x1b0] sm:$0xff] %vm7361, %v7278
        %7417 = vst.msk [vmem:[%s269 + $0x1b8] sm:$0xff] %vm7361, %v7280
        %7418 = vst.msk [vmem:[%s269 + $0x1c0] sm:$0xff] %vm7361, %v7282
        %7419 = vst.msk [vmem:[%s269 + $0x1c8] sm:$0xff] %vm7361, %v7284
        %7420 = vst.msk [vmem:[%s269 + $0x1d0] sm:$0xff] %vm7361, %v7286
        %7421 = vst.msk [vmem:[%s269 + $0x1d8] sm:$0xff] %vm7361, %v7288
        %7422 = vst.msk [vmem:[%s269 + $0x1e0] sm:$0xff] %vm7361, %v7290
        %7423 = vst.msk [vmem:[%s269 + $0x1e8] sm:$0xff] %vm7361, %v7292
        %7424 = vst.msk [vmem:[%s269 + $0x1f0] sm:$0xff] %vm7361, %v7294
        %7425 = vst.msk [vmem:[%s269 + $0x1f8] sm:$0xff] %vm7361, %v7296
        %p7426 = scmp.lt.s32.totalorder %s20, 1
        %s7427 = scalar_select %p7426, %s20, 1
        %s7428 = smul.addr %s7427, 64
        %s7429 = smul.addr %s7428, 8
        %s7430 = scalar_lea.vmem %s4, %s7429
        // Predicated region
        $region53: #{decoder_forward.1} parent=35 // pred_check
          %p7431 = pneg %p127
        $region54: #{decoder_forward.1} parent=35 // pred_check_branch
          %7433 = sbr.rel (%p7431) target = $region56
        $region55: #{decoder_forward.1} parent=35 // pred_region
          _
        $region56: #{decoder_forward.1} parent=35 // pred_fallthru
          _
      $region36: #{decoder_forward.1} parent=5 // pred_fallthru
        _
      %p7434 = scmp.le.s32.totalorder 2, %s15
      // Predicated region
      $region57: #{decoder_forward.1} parent=5 // pred_check
        %p7435 = pneg %p7434
      $region58: #{decoder_forward.1} parent=5 // pred_check_branch
        %7437 = sbr.rel (%p7435) target = $region60
      $region59: #{decoder_forward.1} parent=5 // pred_region
        %s7438 = ssub.s32 %s15, 2
        // Predicated region
        $region61: #{decoder_forward.1} parent=59 // pred_check
          %p7439 = pneg %p133
        $region62: #{decoder_forward.1} parent=59 // pred_check_branch
          %7441 = sbr.rel (%p7439) target = $region64
        $region63: #{decoder_forward.1} parent=59 // pred_region
          %p7442 = scmp.lt.s32.totalorder %s21, 1
          %s7443 = scalar_select %p7442, %s21, 1
          %s7444 = smul.addr %s7443, 64
          %s7445 = smul.addr %s7444, 8
          %s7446 = scalar_lea.vmem %s4, %s7445
        $region64: #{decoder_forward.1} parent=59 // pred_fallthru
          _
      $region60: #{decoder_forward.1} parent=5 // pred_fallthru
        _
    $region6: #{decoder_forward.1} parent=1 // loop_footer
      %s19 = sadd.s32 1, %s15
    $region7: #{decoder_forward.1} parent=1 // loop_footer_branch
      %14 = sbr.rel target = $region3
    $region8: #{decoder_forward.1} parent=1 // loop_exit
      _
    %7447 = vsyncpa [#allocation6], 1
    %s7448 = scalar_lea.sflag [#allocation6], 1
    %7449 = vsyncpa %s7448, 1
    %7450 = vsyncpa [#allocation8], 1
    %7451 = vsyncpa [#allocation11], 1

</llo_original>
